<compile_context>
chip_gen: v7x
topology: tpu7x:2x2x1
jax: 0.10.0
libtpu: 0.0.40
codegen_flags: <defaults>
</compile_context>

<pallas_src>
import functools

import jax
import jax.numpy as jnp
from jax.experimental import pallas as pl
from jax.experimental.pallas import tpu as pltpu


def _mha_kernel(xq_ref, xk_ref, xv_ref, mask_ref,
                wq_ref, wk_ref, wv_ref, wfc_ref,
                out_ref, attn_ref, *, n_heads, d_k, eps):
    # One batch element per grid step.
    xq = xq_ref[0]                       # (S, D)  also the residual
    xk = xk_ref[0]                       # (S, D)
    xv = xv_ref[0]                       # (S, D)
    masked = mask_ref[0] != 0.0          # (S, S)  True -> masked

    scale = jnp.float32(1.0 / (d_k ** 0.5))
    neg_big = jnp.float32(-1e9)

    # Residual goes straight into the output accumulator; the fc projection is
    # accumulated head-by-head on top of it.
    acc = xq.astype(jnp.float32)         # (S, D)

    for h in range(n_heads):             # static unroll, H = 8
        q = jnp.dot(xq, wq_ref[h], preferred_element_type=jnp.float32)   # (S, d_k)
        k = jnp.dot(xk, wk_ref[h], preferred_element_type=jnp.float32)   # (S, d_k)
        v = jnp.dot(xv, wv_ref[h], preferred_element_type=jnp.float32)   # (S, d_v)

        s = jnp.einsum('qd,kd->qk', q, k,
                       preferred_element_type=jnp.float32) * scale        # (S, S)
        s = jnp.where(masked, neg_big, s)                                 # masked_fill

        # Softmax over keys.
        m = jnp.max(s, axis=-1, keepdims=True)
        e = jnp.exp(s - m)
        p = e / jnp.sum(e, axis=-1, keepdims=True)                        # (S, S)

        attn_ref[0, h] = p.astype(attn_ref.dtype)

        ctx = jnp.dot(p, v, preferred_element_type=jnp.float32)           # (S, d_v)
        acc = acc + jnp.dot(ctx, wfc_ref[h],
                            preferred_element_type=jnp.float32)           # (S, D)

    # LayerNorm(d_model) with default gamma=1, beta=0, eps=1e-5.
    mu = jnp.mean(acc, axis=-1, keepdims=True)
    d = acc - mu
    var = jnp.mean(d * d, axis=-1, keepdims=True)
    out_ref[0] = (d * jax.lax.rsqrt(var + eps)).astype(out_ref.dtype)


def multi_head_attention_forward(input_q, input_k, input_v, attn_mask,
                                 w_q, w_k, w_v, w_fc,
                                 *, n_heads=8, d_k=64, d_v=64):
    """input_q/k/v: (B, S, d_model) f32; attn_mask: (B, S, S) bool (True = mask).
    w_q/w_k/w_v: (n_heads*d_k, d_model); w_fc: (d_model, n_heads*d_v)  (PyTorch
    Linear weight layout).  Returns (output (B,S,d_model), attn (B,H,S,S))."""
    B, S, D = input_q.shape

    # Per-head weight slabs so the kernel never lane-slices inside a vreg.
    wq_h = jnp.transpose(w_q.astype(jnp.float32)).reshape(D, n_heads, d_k)
    wq_h = jnp.transpose(wq_h, (1, 0, 2))                       # (H, D, d_k)
    wk_h = jnp.transpose(w_k.astype(jnp.float32)).reshape(D, n_heads, d_k)
    wk_h = jnp.transpose(wk_h, (1, 0, 2))                       # (H, D, d_k)
    wv_h = jnp.transpose(w_v.astype(jnp.float32)).reshape(D, n_heads, d_v)
    wv_h = jnp.transpose(wv_h, (1, 0, 2))                       # (H, D, d_v)
    wfc_h = jnp.transpose(w_fc.astype(jnp.float32)).reshape(n_heads, d_v, D)  # (H, d_v, D)

    mask_f = attn_mask.astype(jnp.float32)                      # (B, S, S)

    kernel = functools.partial(_mha_kernel, n_heads=n_heads, d_k=d_k, eps=1e-5)

    out, attn = pl.pallas_call(
        kernel,
        out_shape=(
            jax.ShapeDtypeStruct((B, S, D), jnp.float32),
            jax.ShapeDtypeStruct((B, n_heads, S, S), jnp.float32),
        ),
        grid_spec=pltpu.PrefetchScalarGridSpec(
            num_scalar_prefetch=0,
            grid=(B,),
            in_specs=[
                pl.BlockSpec((1, S, D), lambda b: (b, 0, 0)),             # input_Q
                pl.BlockSpec((1, S, D), lambda b: (b, 0, 0)),             # input_K
                pl.BlockSpec((1, S, D), lambda b: (b, 0, 0)),             # input_V
                pl.BlockSpec((1, S, S), lambda b: (b, 0, 0)),             # attn_mask
                pl.BlockSpec((n_heads, D, d_k), lambda b: (0, 0, 0)),     # W_Q^T per head
                pl.BlockSpec((n_heads, D, d_k), lambda b: (0, 0, 0)),     # W_K^T per head
                pl.BlockSpec((n_heads, D, d_v), lambda b: (0, 0, 0)),     # W_V^T per head
                pl.BlockSpec((n_heads, d_v, D), lambda b: (0, 0, 0)),     # fc^T per head
            ],
            out_specs=[
                pl.BlockSpec((1, S, D), lambda b: (b, 0, 0)),             # output
                pl.BlockSpec((1, n_heads, S, S), lambda b: (b, 0, 0, 0)), # attn
            ],
        ),
        compiler_params=pltpu.CompilerParams(
            dimension_semantics=("parallel",),    # batches are independent
        ),
    )(input_q.astype(jnp.float32), input_k.astype(jnp.float32),
      input_v.astype(jnp.float32), mask_f, wq_h, wk_h, wv_h, wfc_h)

    return out, attn


def _mha_reference(input_q, input_k, input_v, attn_mask, w_q, w_k, w_v, w_fc,
                   *, n_heads=8, d_k=64, d_v=64):
    """Pure-JAX reference of the PyTorch MultiHeadAttention forward."""
    B, S, D = input_q.shape
    hp = jax.lax.Precision.HIGHEST
    Q = jnp.matmul(input_q, w_q.T, precision=hp).reshape(B, S, n_heads, d_k)
    K = jnp.matmul(input_k, w_k.T, precision=hp).reshape(B, S, n_heads, d_k)
    V = jnp.matmul(input_v, w_v.T, precision=hp).reshape(B, S, n_heads, d_v)
    Q = jnp.transpose(Q, (0, 2, 1, 3))
    K = jnp.transpose(K, (0, 2, 1, 3))
    V = jnp.transpose(V, (0, 2, 1, 3))
    scores = jnp.einsum('bhqd,bhkd->bhqk', Q, K, precision=hp) / jnp.sqrt(
        jnp.float32(d_k))
    scores = jnp.where(attn_mask[:, None, :, :], jnp.float32(-1e9), scores)
    attn = jax.nn.softmax(scores, axis=-1)
    ctx = jnp.einsum('bhqk,bhkd->bhqd', attn, V, precision=hp)
    ctx = jnp.transpose(ctx, (0, 2, 1, 3)).reshape(B, S, n_heads * d_v)
    out = jnp.matmul(ctx, w_fc.T, precision=hp)
    y = out + input_q
    mu = jnp.mean(y, axis=-1, keepdims=True)
    var = jnp.mean((y - mu) ** 2, axis=-1, keepdims=True)
    return (y - mu) / jnp.sqrt(var + 1e-5), attn


if __name__ == "__main__":
    # Module hyper-parameters from the spec: d_model=512, n_heads=8, d_k=d_v=64.
    d_model = 512
    n_heads = 8
    d_k = d_v = 64
    batch = 2
    seq_len = 16

    key = jax.random.PRNGKey(0)
    kq, kk, kv, kwq, kwk, kwv, kwfc = jax.random.split(key, 7)

    # PyTorch-style Linear init: uniform(-1/sqrt(in_features), 1/sqrt(in_features)).
    bound = 1.0 / (d_model ** 0.5)
    w_q = jax.random.uniform(kwq, (n_heads * d_k, d_model), jnp.float32, -bound, bound)
    w_k = jax.random.uniform(kwk, (n_heads * d_k, d_model), jnp.float32, -bound, bound)
    w_v = jax.random.uniform(kwv, (n_heads * d_v, d_model), jnp.float32, -bound, bound)
    w_fc = jax.random.uniform(kwfc, (d_model, n_heads * d_v), jnp.float32, -bound, bound)

    input_q = jax.random.normal(kq, (batch, seq_len, d_model), jnp.float32)
    input_k = jax.random.normal(kk, (batch, seq_len, d_model), jnp.float32)
    input_v = jax.random.normal(kv, (batch, seq_len, d_model), jnp.float32)

    # Key-padding-style boolean mask (True = masked). Deterministic.
    lengths = jnp.array([seq_len, seq_len - 4], dtype=jnp.int32)
    key_idx = jnp.arange(seq_len)[None, None, :]                       # (1,1,S)
    attn_mask = key_idx >= lengths[:, None, None]                      # (B,1,S)
    attn_mask = jnp.broadcast_to(attn_mask, (batch, seq_len, seq_len)) # (B,S,S)

    out, attn = multi_head_attention_forward(
        input_q, input_k, input_v, attn_mask, w_q, w_k, w_v, w_fc,
        n_heads=n_heads, d_k=d_k, d_v=d_v)
    out = jax.block_until_ready(out)
    attn = jax.block_until_ready(attn)
    assert out.shape == (batch, seq_len, d_model)
    assert attn.shape == (batch, n_heads, seq_len, seq_len)

    ref_out, ref_attn = _mha_reference(
        input_q, input_k, input_v, attn_mask, w_q, w_k, w_v, w_fc,
        n_heads=n_heads, d_k=d_k, d_v=d_v)
    ref_out = jax.block_until_ready(ref_out)
    ref_attn = jax.block_until_ready(ref_attn)

    assert jnp.allclose(attn, ref_attn, atol=1e-3, rtol=1e-3), "attn mismatch"
    assert jnp.allclose(out, ref_out, atol=2e-3, rtol=2e-3), "output mismatch"

    print("KERNEL_OK")
</pallas_src>

<mosaic_0001>
module attributes {stable_mosaic.version = 11 : i64} {
  func.func @_mha_kernel(%arg0: i32, %arg1: memref<1x16x512xf32, #tpu.memory_space<vmem>>, %arg2: memref<1x16x512xf32, #tpu.memory_space<vmem>>, %arg3: memref<1x16x512xf32, #tpu.memory_space<vmem>>, %arg4: memref<1x16x16xf32, #tpu.memory_space<vmem>>, %arg5: memref<8x512x64xf32, #tpu.memory_space<vmem>>, %arg6: memref<8x512x64xf32, #tpu.memory_space<vmem>>, %arg7: memref<8x512x64xf32, #tpu.memory_space<vmem>>, %arg8: memref<8x64x512xf32, #tpu.memory_space<vmem>>, %arg9: memref<1x16x512xf32, #tpu.memory_space<vmem>>, %arg10: memref<1x8x16x16xf32, #tpu.memory_space<vmem>>) attributes {dimension_semantics = [#tpu.dimension_semantics<parallel>], iteration_bounds = array<i64: 2>, scalar_prefetch = 0 : i64, scratch_operands = 0 : i64, tpu.core_type = #tpu.core_type<tc>, window_params = [{transform_indices = @transform_0, window_bounds = array<i64: 1, 16, 512>}, {transform_indices = @transform_1, window_bounds = array<i64: 1, 16, 512>}, {transform_indices = @transform_2, window_bounds = array<i64: 1, 16, 512>}, {transform_indices = @transform_3, window_bounds = array<i64: 1, 16, 16>}, {pipeline_mode = #tpu.pipeline_mode<synchronous>, transform_indices = @transform_4, window_bounds = array<i64: 8, 512, 64>}, {pipeline_mode = #tpu.pipeline_mode<synchronous>, transform_indices = @transform_5, window_bounds = array<i64: 8, 512, 64>}, {pipeline_mode = #tpu.pipeline_mode<synchronous>, transform_indices = @transform_6, window_bounds = array<i64: 8, 512, 64>}, {pipeline_mode = #tpu.pipeline_mode<synchronous>, transform_indices = @transform_7, window_bounds = array<i64: 8, 64, 512>}, {transform_indices = @transform_8, window_bounds = array<i64: 1, 16, 512>}, {transform_indices = @transform_9, window_bounds = array<i64: 1, 8, 16, 16>}]} {
    %c0 = arith.constant 0 : index
    %c0_0 = arith.constant 0 : index
    %c0_1 = arith.constant 0 : index
    %0 = vector.load %arg1[%c0, %c0_0, %c0_1] : memref<1x16x512xf32, #tpu.memory_space<vmem>>, vector<1x16x512xf32>
    %1 = vector.shape_cast %0 : vector<1x16x512xf32> to vector<16x512xf32>
    %c0_2 = arith.constant 0 : index
    %c0_3 = arith.constant 0 : index
    %c0_4 = arith.constant 0 : index
    %2 = vector.load %arg2[%c0_2, %c0_3, %c0_4] : memref<1x16x512xf32, #tpu.memory_space<vmem>>, vector<1x16x512xf32>
    %3 = vector.shape_cast %2 : vector<1x16x512xf32> to vector<16x512xf32>
    %c0_5 = arith.constant 0 : index
    %c0_6 = arith.constant 0 : index
    %c0_7 = arith.constant 0 : index
    %4 = vector.load %arg3[%c0_5, %c0_6, %c0_7] : memref<1x16x512xf32, #tpu.memory_space<vmem>>, vector<1x16x512xf32>
    %5 = vector.shape_cast %4 : vector<1x16x512xf32> to vector<16x512xf32>
    %c0_8 = arith.constant 0 : index
    %c0_9 = arith.constant 0 : index
    %c0_10 = arith.constant 0 : index
    %6 = vector.load %arg4[%c0_8, %c0_9, %c0_10] : memref<1x16x16xf32, #tpu.memory_space<vmem>>, vector<1x16x16xf32>
    %7 = vector.shape_cast %6 : vector<1x16x16xf32> to vector<16x16xf32>
    %cst = arith.constant 0.000000e+00 : f32
    %8 = vector.broadcast %cst : f32 to vector<16x16xf32>
    %9 = arith.cmpf one, %7, %8 : vector<16x16xf32>
    %c0_11 = arith.constant 0 : index
    %c0_12 = arith.constant 0 : index
    %c0_13 = arith.constant 0 : index
    %10 = vector.load %arg5[%c0_11, %c0_12, %c0_13] : memref<8x512x64xf32, #tpu.memory_space<vmem>>, vector<1x512x64xf32>
    %11 = vector.shape_cast %10 : vector<1x512x64xf32> to vector<512x64xf32>
    %cst_14 = arith.constant dense<0.000000e+00> : vector<16x64xf32>
    %12 = tpu.matmul %1, %11, %cst_14 {dimension_numbers = #tpu.dot_dimension_numbers<[1], [0], [0], [1], [0, 0, 1, 1], [], []>} : vector<16x512xf32>, vector<512x64xf32>, vector<16x64xf32> -> vector<16x64xf32>
    %c0_15 = arith.constant 0 : index
    %c0_16 = arith.constant 0 : index
    %c0_17 = arith.constant 0 : index
    %13 = vector.load %arg6[%c0_15, %c0_16, %c0_17] : memref<8x512x64xf32, #tpu.memory_space<vmem>>, vector<1x512x64xf32>
    %14 = vector.shape_cast %13 : vector<1x512x64xf32> to vector<512x64xf32>
    %cst_18 = arith.constant dense<0.000000e+00> : vector<16x64xf32>
    %15 = tpu.matmul %3, %14, %cst_18 {dimension_numbers = #tpu.dot_dimension_numbers<[1], [0], [0], [1], [0, 0, 1, 1], [], []>} : vector<16x512xf32>, vector<512x64xf32>, vector<16x64xf32> -> vector<16x64xf32>
    %c0_19 = arith.constant 0 : index
    %c0_20 = arith.constant 0 : index
    %c0_21 = arith.constant 0 : index
    %16 = vector.load %arg7[%c0_19, %c0_20, %c0_21] : memref<8x512x64xf32, #tpu.memory_space<vmem>>, vector<1x512x64xf32>
    %17 = vector.shape_cast %16 : vector<1x512x64xf32> to vector<512x64xf32>
    %cst_22 = arith.constant dense<0.000000e+00> : vector<16x64xf32>
    %18 = tpu.matmul %5, %17, %cst_22 {dimension_numbers = #tpu.dot_dimension_numbers<[1], [0], [0], [1], [0, 0, 1, 1], [], []>} : vector<16x512xf32>, vector<512x64xf32>, vector<16x64xf32> -> vector<16x64xf32>
    "tpu.trace_start"() <{level = 10 : i32, message = "qd,kd->qk"}> : () -> ()
    %cst_23 = arith.constant dense<0.000000e+00> : vector<16x16xf32>
    %19 = tpu.matmul %12, %15, %cst_23 {dimension_numbers = #tpu.dot_dimension_numbers<[1], [1], [0], [0], [0, 0, 1, 0], [], []>} : vector<16x64xf32>, vector<16x64xf32>, vector<16x16xf32> -> vector<16x16xf32>
    "tpu.trace_stop"() : () -> ()
    %cst_24 = arith.constant 1.250000e-01 : f32
    %20 = vector.broadcast %cst_24 : f32 to vector<16x16xf32>
    %21 = arith.mulf %19, %20 : vector<16x16xf32>
    %cst_25 = arith.constant -1.000000e+09 : f32
    %22 = vector.broadcast %cst_25 : f32 to vector<16x16xf32>
    %23 = arith.select %9, %22, %21 : vector<16x16xi1>, vector<16x16xf32>
    %cst_26 = arith.constant dense<0xFF800000> : vector<16xf32>
    %24 = vector.multi_reduction <maximumf>, %23, %cst_26 [1] : vector<16x16xf32> to vector<16xf32>
    %25 = vector.shape_cast %24 : vector<16xf32> to vector<16x1xf32>
    %26 = vector.broadcast %25 : vector<16x1xf32> to vector<16x16xf32>
    %27 = arith.subf %23, %26 : vector<16x16xf32>
    %28 = math.exp %27 : vector<16x16xf32>
    %cst_27 = arith.constant dense<0.000000e+00> : vector<16xf32>
    %29 = vector.multi_reduction <add>, %28, %cst_27 [1] : vector<16x16xf32> to vector<16xf32>
    %30 = vector.shape_cast %29 : vector<16xf32> to vector<16x1xf32>
    %31 = vector.broadcast %30 : vector<16x1xf32> to vector<16x16xf32>
    %32 = arith.divf %28, %31 : vector<16x16xf32>
    %c0_28 = arith.constant 0 : index
    %c0_29 = arith.constant 0 : index
    %c0_30 = arith.constant 0 : index
    %c0_31 = arith.constant 0 : index
    %33 = vector.load %arg10[%c0_28, %c0_29, %c0_30, %c0_31] : memref<1x8x16x16xf32, #tpu.memory_space<vmem>>, vector<1x1x16x16xf32>
    %34 = vector.shape_cast %33 : vector<1x1x16x16xf32> to vector<16x16xf32>
    %35 = vector.shape_cast %32 : vector<16x16xf32> to vector<1x1x16x16xf32>
    tpu.vector_store %arg10[%c0_28, %c0_29, %c0_30, %c0_31], %35 {strides = array<i32>} : memref<1x8x16x16xf32, #tpu.memory_space<vmem>>, vector<1x1x16x16xf32>,
    %cst_32 = arith.constant dense<0.000000e+00> : vector<16x64xf32>
    %36 = tpu.matmul %32, %18, %cst_32 {dimension_numbers = #tpu.dot_dimension_numbers<[1], [0], [0], [1], [0, 0, 1, 1], [], []>} : vector<16x16xf32>, vector<16x64xf32>, vector<16x64xf32> -> vector<16x64xf32>
    %c0_33 = arith.constant 0 : index
    %c0_34 = arith.constant 0 : index
    %c0_35 = arith.constant 0 : index
    %37 = vector.load %arg8[%c0_33, %c0_34, %c0_35] : memref<8x64x512xf32, #tpu.memory_space<vmem>>, vector<1x64x512xf32>
    %38 = vector.shape_cast %37 : vector<1x64x512xf32> to vector<64x512xf32>
    %cst_36 = arith.constant dense<0.000000e+00> : vector<16x512xf32>
    %39 = tpu.matmul %36, %38, %cst_36 {dimension_numbers = #tpu.dot_dimension_numbers<[1], [0], [0], [1], [0, 0, 1, 1], [], []>} : vector<16x64xf32>, vector<64x512xf32>, vector<16x512xf32> -> vector<16x512xf32>
    %40 = arith.addf %1, %39 : vector<16x512xf32>
    %c1 = arith.constant 1 : index
    %c0_37 = arith.constant 0 : index
    %c0_38 = arith.constant 0 : index
    %41 = vector.load %arg5[%c1, %c0_37, %c0_38] : memref<8x512x64xf32, #tpu.memory_space<vmem>>, vector<1x512x64xf32>
    %42 = vector.shape_cast %41 : vector<1x512x64xf32> to vector<512x64xf32>
    %cst_39 = arith.constant dense<0.000000e+00> : vector<16x64xf32>
    %43 = tpu.matmul %1, %42, %cst_39 {dimension_numbers = #tpu.dot_dimension_numbers<[1], [0], [0], [1], [0, 0, 1, 1], [], []>} : vector<16x512xf32>, vector<512x64xf32>, vector<16x64xf32> -> vector<16x64xf32>
    %c1_40 = arith.constant 1 : index
    %c0_41 = arith.constant 0 : index
    %c0_42 = arith.constant 0 : index
    %44 = vector.load %arg6[%c1_40, %c0_41, %c0_42] : memref<8x512x64xf32, #tpu.memory_space<vmem>>, vector<1x512x64xf32>
    %45 = vector.shape_cast %44 : vector<1x512x64xf32> to vector<512x64xf32>
    %cst_43 = arith.constant dense<0.000000e+00> : vector<16x64xf32>
    %46 = tpu.matmul %3, %45, %cst_43 {dimension_numbers = #tpu.dot_dimension_numbers<[1], [0], [0], [1], [0, 0, 1, 1], [], []>} : vector<16x512xf32>, vector<512x64xf32>, vector<16x64xf32> -> vector<16x64xf32>
    %c1_44 = arith.constant 1 : index
    %c0_45 = arith.constant 0 : index
    %c0_46 = arith.constant 0 : index
    %47 = vector.load %arg7[%c1_44, %c0_45, %c0_46] : memref<8x512x64xf32, #tpu.memory_space<vmem>>, vector<1x512x64xf32>
    %48 = vector.shape_cast %47 : vector<1x512x64xf32> to vector<512x64xf32>
    %cst_47 = arith.constant dense<0.000000e+00> : vector<16x64xf32>
    %49 = tpu.matmul %5, %48, %cst_47 {dimension_numbers = #tpu.dot_dimension_numbers<[1], [0], [0], [1], [0, 0, 1, 1], [], []>} : vector<16x512xf32>, vector<512x64xf32>, vector<16x64xf32> -> vector<16x64xf32>
    "tpu.trace_start"() <{level = 10 : i32, message = "qd,kd->qk"}> : () -> ()
    %cst_48 = arith.constant dense<0.000000e+00> : vector<16x16xf32>
    %50 = tpu.matmul %43, %46, %cst_48 {dimension_numbers = #tpu.dot_dimension_numbers<[1], [1], [0], [0], [0, 0, 1, 0], [], []>} : vector<16x64xf32>, vector<16x64xf32>, vector<16x16xf32> -> vector<16x16xf32>
    "tpu.trace_stop"() : () -> ()
    %cst_49 = arith.constant 1.250000e-01 : f32
    %51 = vector.broadcast %cst_49 : f32 to vector<16x16xf32>
    %52 = arith.mulf %50, %51 : vector<16x16xf32>
    %cst_50 = arith.constant -1.000000e+09 : f32
    %53 = vector.broadcast %cst_50 : f32 to vector<16x16xf32>
    %54 = arith.select %9, %53, %52 : vector<16x16xi1>, vector<16x16xf32>
    %cst_51 = arith.constant dense<0xFF800000> : vector<16xf32>
    %55 = vector.multi_reduction <maximumf>, %54, %cst_51 [1] : vector<16x16xf32> to vector<16xf32>
    %56 = vector.shape_cast %55 : vector<16xf32> to vector<16x1xf32>
    %57 = vector.broadcast %56 : vector<16x1xf32> to vector<16x16xf32>
    %58 = arith.subf %54, %57 : vector<16x16xf32>
    %59 = math.exp %58 : vector<16x16xf32>
    %cst_52 = arith.constant dense<0.000000e+00> : vector<16xf32>
    %60 = vector.multi_reduction <add>, %59, %cst_52 [1] : vector<16x16xf32> to vector<16xf32>
    %61 = vector.shape_cast %60 : vector<16xf32> to vector<16x1xf32>
    %62 = vector.broadcast %61 : vector<16x1xf32> to vector<16x16xf32>
    %63 = arith.divf %59, %62 : vector<16x16xf32>
    %c0_53 = arith.constant 0 : index
    %c1_54 = arith.constant 1 : index
    %c0_55 = arith.constant 0 : index
    %c0_56 = arith.constant 0 : index
    %64 = vector.load %arg10[%c0_53, %c1_54, %c0_55, %c0_56] : memref<1x8x16x16xf32, #tpu.memory_space<vmem>>, vector<1x1x16x16xf32>
    %65 = vector.shape_cast %64 : vector<1x1x16x16xf32> to vector<16x16xf32>
    %66 = vector.shape_cast %63 : vector<16x16xf32> to vector<1x1x16x16xf32>
    tpu.vector_store %arg10[%c0_53, %c1_54, %c0_55, %c0_56], %66 {strides = array<i32>} : memref<1x8x16x16xf32, #tpu.memory_space<vmem>>, vector<1x1x16x16xf32>,
    %cst_57 = arith.constant dense<0.000000e+00> : vector<16x64xf32>
    %67 = tpu.matmul %63, %49, %cst_57 {dimension_numbers = #tpu.dot_dimension_numbers<[1], [0], [0], [1], [0, 0, 1, 1], [], []>} : vector<16x16xf32>, vector<16x64xf32>, vector<16x64xf32> -> vector<16x64xf32>
    %c1_58 = arith.constant 1 : index
    %c0_59 = arith.constant 0 : index
    %c0_60 = arith.constant 0 : index
    %68 = vector.load %arg8[%c1_58, %c0_59, %c0_60] : memref<8x64x512xf32, #tpu.memory_space<vmem>>, vector<1x64x512xf32>
    %69 = vector.shape_cast %68 : vector<1x64x512xf32> to vector<64x512xf32>
    %cst_61 = arith.constant dense<0.000000e+00> : vector<16x512xf32>
    %70 = tpu.matmul %67, %69, %cst_61 {dimension_numbers = #tpu.dot_dimension_numbers<[1], [0], [0], [1], [0, 0, 1, 1], [], []>} : vector<16x64xf32>, vector<64x512xf32>, vector<16x512xf32> -> vector<16x512xf32>
    %71 = arith.addf %40, %70 : vector<16x512xf32>
    %c2 = arith.constant 2 : index
    %c0_62 = arith.constant 0 : index
    %c0_63 = arith.constant 0 : index
    %72 = vector.load %arg5[%c2, %c0_62, %c0_63] : memref<8x512x64xf32, #tpu.memory_space<vmem>>, vector<1x512x64xf32>
    %73 = vector.shape_cast %72 : vector<1x512x64xf32> to vector<512x64xf32>
    %cst_64 = arith.constant dense<0.000000e+00> : vector<16x64xf32>
    %74 = tpu.matmul %1, %73, %cst_64 {dimension_numbers = #tpu.dot_dimension_numbers<[1], [0], [0], [1], [0, 0, 1, 1], [], []>} : vector<16x512xf32>, vector<512x64xf32>, vector<16x64xf32> -> vector<16x64xf32>
    %c2_65 = arith.constant 2 : index
    %c0_66 = arith.constant 0 : index
    %c0_67 = arith.constant 0 : index
    %75 = vector.load %arg6[%c2_65, %c0_66, %c0_67] : memref<8x512x64xf32, #tpu.memory_space<vmem>>, vector<1x512x64xf32>
    %76 = vector.shape_cast %75 : vector<1x512x64xf32> to vector<512x64xf32>
    %cst_68 = arith.constant dense<0.000000e+00> : vector<16x64xf32>
    %77 = tpu.matmul %3, %76, %cst_68 {dimension_numbers = #tpu.dot_dimension_numbers<[1], [0], [0], [1], [0, 0, 1, 1], [], []>} : vector<16x512xf32>, vector<512x64xf32>, vector<16x64xf32> -> vector<16x64xf32>
    %c2_69 = arith.constant 2 : index
    %c0_70 = arith.constant 0 : index
    %c0_71 = arith.constant 0 : index
    %78 = vector.load %arg7[%c2_69, %c0_70, %c0_71] : memref<8x512x64xf32, #tpu.memory_space<vmem>>, vector<1x512x64xf32>
    %79 = vector.shape_cast %78 : vector<1x512x64xf32> to vector<512x64xf32>
    %cst_72 = arith.constant dense<0.000000e+00> : vector<16x64xf32>
    %80 = tpu.matmul %5, %79, %cst_72 {dimension_numbers = #tpu.dot_dimension_numbers<[1], [0], [0], [1], [0, 0, 1, 1], [], []>} : vector<16x512xf32>, vector<512x64xf32>, vector<16x64xf32> -> vector<16x64xf32>
    "tpu.trace_start"() <{level = 10 : i32, message = "qd,kd->qk"}> : () -> ()
    %cst_73 = arith.constant dense<0.000000e+00> : vector<16x16xf32>
    %81 = tpu.matmul %74, %77, %cst_73 {dimension_numbers = #tpu.dot_dimension_numbers<[1], [1], [0], [0], [0, 0, 1, 0], [], []>} : vector<16x64xf32>, vector<16x64xf32>, vector<16x16xf32> -> vector<16x16xf32>
    "tpu.trace_stop"() : () -> ()
    %cst_74 = arith.constant 1.250000e-01 : f32
    %82 = vector.broadcast %cst_74 : f32 to vector<16x16xf32>
    %83 = arith.mulf %81, %82 : vector<16x16xf32>
    %cst_75 = arith.constant -1.000000e+09 : f32
    %84 = vector.broadcast %cst_75 : f32 to vector<16x16xf32>
    %85 = arith.select %9, %84, %83 : vector<16x16xi1>, vector<16x16xf32>
    %cst_76 = arith.constant dense<0xFF800000> : vector<16xf32>
    %86 = vector.multi_reduction <maximumf>, %85, %cst_76 [1] : vector<16x16xf32> to vector<16xf32>
    %87 = vector.shape_cast %86 : vector<16xf32> to vector<16x1xf32>
    %88 = vector.broadcast %87 : vector<16x1xf32> to vector<16x16xf32>
    %89 = arith.subf %85, %88 : vector<16x16xf32>
    %90 = math.exp %89 : vector<16x16xf32>
    %cst_77 = arith.constant dense<0.000000e+00> : vector<16xf32>
    %91 = vector.multi_reduction <add>, %90, %cst_77 [1] : vector<16x16xf32> to vector<16xf32>
    %92 = vector.shape_cast %91 : vector<16xf32> to vector<16x1xf32>
    %93 = vector.broadcast %92 : vector<16x1xf32> to vector<16x16xf32>
    %94 = arith.divf %90, %93 : vector<16x16xf32>
    %c0_78 = arith.constant 0 : index
    %c2_79 = arith.constant 2 : index
    %c0_80 = arith.constant 0 : index
    %c0_81 = arith.constant 0 : index
    %95 = vector.load %arg10[%c0_78, %c2_79, %c0_80, %c0_81] : memref<1x8x16x16xf32, #tpu.memory_space<vmem>>, vector<1x1x16x16xf32>
    %96 = vector.shape_cast %95 : vector<1x1x16x16xf32> to vector<16x16xf32>
    %97 = vector.shape_cast %94 : vector<16x16xf32> to vector<1x1x16x16xf32>
    tpu.vector_store %arg10[%c0_78, %c2_79, %c0_80, %c0_81], %97 {strides = array<i32>} : memref<1x8x16x16xf32, #tpu.memory_space<vmem>>, vector<1x1x16x16xf32>,
    %cst_82 = arith.constant dense<0.000000e+00> : vector<16x64xf32>
    %98 = tpu.matmul %94, %80, %cst_82 {dimension_numbers = #tpu.dot_dimension_numbers<[1], [0], [0], [1], [0, 0, 1, 1], [], []>} : vector<16x16xf32>, vector<16x64xf32>, vector<16x64xf32> -> vector<16x64xf32>
    %c2_83 = arith.constant 2 : index
    %c0_84 = arith.constant 0 : index
    %c0_85 = arith.constant 0 : index
    %99 = vector.load %arg8[%c2_83, %c0_84, %c0_85] : memref<8x64x512xf32, #tpu.memory_space<vmem>>, vector<1x64x512xf32>
    %100 = vector.shape_cast %99 : vector<1x64x512xf32> to vector<64x512xf32>
    %cst_86 = arith.constant dense<0.000000e+00> : vector<16x512xf32>
    %101 = tpu.matmul %98, %100, %cst_86 {dimension_numbers = #tpu.dot_dimension_numbers<[1], [0], [0], [1], [0, 0, 1, 1], [], []>} : vector<16x64xf32>, vector<64x512xf32>, vector<16x512xf32> -> vector<16x512xf32>
    %102 = arith.addf %71, %101 : vector<16x512xf32>
    %c3 = arith.constant 3 : index
    %c0_87 = arith.constant 0 : index
    %c0_88 = arith.constant 0 : index
    %103 = vector.load %arg5[%c3, %c0_87, %c0_88] : memref<8x512x64xf32, #tpu.memory_space<vmem>>, vector<1x512x64xf32>
    %104 = vector.shape_cast %103 : vector<1x512x64xf32> to vector<512x64xf32>
    %cst_89 = arith.constant dense<0.000000e+00> : vector<16x64xf32>
    %105 = tpu.matmul %1, %104, %cst_89 {dimension_numbers = #tpu.dot_dimension_numbers<[1], [0], [0], [1], [0, 0, 1, 1], [], []>} : vector<16x512xf32>, vector<512x64xf32>, vector<16x64xf32> -> vector<16x64xf32>
    %c3_90 = arith.constant 3 : index
    %c0_91 = arith.constant 0 : index
    %c0_92 = arith.constant 0 : index
    %106 = vector.load %arg6[%c3_90, %c0_91, %c0_92] : memref<8x512x64xf32, #tpu.memory_space<vmem>>, vector<1x512x64xf32>
    %107 = vector.shape_cast %106 : vector<1x512x64xf32> to vector<512x64xf32>
    %cst_93 = arith.constant dense<0.000000e+00> : vector<16x64xf32>
    %108 = tpu.matmul %3, %107, %cst_93 {dimension_numbers = #tpu.dot_dimension_numbers<[1], [0], [0], [1], [0, 0, 1, 1], [], []>} : vector<16x512xf32>, vector<512x64xf32>, vector<16x64xf32> -> vector<16x64xf32>
    %c3_94 = arith.constant 3 : index
    %c0_95 = arith.constant 0 : index
    %c0_96 = arith.constant 0 : index
    %109 = vector.load %arg7[%c3_94, %c0_95, %c0_96] : memref<8x512x64xf32, #tpu.memory_space<vmem>>, vector<1x512x64xf32>
    %110 = vector.shape_cast %109 : vector<1x512x64xf32> to vector<512x64xf32>
    %cst_97 = arith.constant dense<0.000000e+00> : vector<16x64xf32>
    %111 = tpu.matmul %5, %110, %cst_97 {dimension_numbers = #tpu.dot_dimension_numbers<[1], [0], [0], [1], [0, 0, 1, 1], [], []>} : vector<16x512xf32>, vector<512x64xf32>, vector<16x64xf32> -> vector<16x64xf32>
    "tpu.trace_start"() <{level = 10 : i32, message = "qd,kd->qk"}> : () -> ()
    %cst_98 = arith.constant dense<0.000000e+00> : vector<16x16xf32>
    %112 = tpu.matmul %105, %108, %cst_98 {dimension_numbers = #tpu.dot_dimension_numbers<[1], [1], [0], [0], [0, 0, 1, 0], [], []>} : vector<16x64xf32>, vector<16x64xf32>, vector<16x16xf32> -> vector<16x16xf32>
    "tpu.trace_stop"() : () -> ()
    %cst_99 = arith.constant 1.250000e-01 : f32
    %113 = vector.broadcast %cst_99 : f32 to vector<16x16xf32>
    %114 = arith.mulf %112, %113 : vector<16x16xf32>
    %cst_100 = arith.constant -1.000000e+09 : f32
    %115 = vector.broadcast %cst_100 : f32 to vector<16x16xf32>
    %116 = arith.select %9, %115, %114 : vector<16x16xi1>, vector<16x16xf32>
    %cst_101 = arith.constant dense<0xFF800000> : vector<16xf32>
    %117 = vector.multi_reduction <maximumf>, %116, %cst_101 [1] : vector<16x16xf32> to vector<16xf32>
    %118 = vector.shape_cast %117 : vector<16xf32> to vector<16x1xf32>
    %119 = vector.broadcast %118 : vector<16x1xf32> to vector<16x16xf32>
    %120 = arith.subf %116, %119 : vector<16x16xf32>
    %121 = math.exp %120 : vector<16x16xf32>
    %cst_102 = arith.constant dense<0.000000e+00> : vector<16xf32>
    %122 = vector.multi_reduction <add>, %121, %cst_102 [1] : vector<16x16xf32> to vector<16xf32>
    %123 = vector.shape_cast %122 : vector<16xf32> to vector<16x1xf32>
    %124 = vector.broadcast %123 : vector<16x1xf32> to vector<16x16xf32>
    %125 = arith.divf %121, %124 : vector<16x16xf32>
    %c0_103 = arith.constant 0 : index
    %c3_104 = arith.constant 3 : index
    %c0_105 = arith.constant 0 : index
    %c0_106 = arith.constant 0 : index
    %126 = vector.load %arg10[%c0_103, %c3_104, %c0_105, %c0_106] : memref<1x8x16x16xf32, #tpu.memory_space<vmem>>, vector<1x1x16x16xf32>
    %127 = vector.shape_cast %126 : vector<1x1x16x16xf32> to vector<16x16xf32>
    %128 = vector.shape_cast %125 : vector<16x16xf32> to vector<1x1x16x16xf32>
    tpu.vector_store %arg10[%c0_103, %c3_104, %c0_105, %c0_106], %128 {strides = array<i32>} : memref<1x8x16x16xf32, #tpu.memory_space<vmem>>, vector<1x1x16x16xf32>,
    %cst_107 = arith.constant dense<0.000000e+00> : vector<16x64xf32>
    %129 = tpu.matmul %125, %111, %cst_107 {dimension_numbers = #tpu.dot_dimension_numbers<[1], [0], [0], [1], [0, 0, 1, 1], [], []>} : vector<16x16xf32>, vector<16x64xf32>, vector<16x64xf32> -> vector<16x64xf32>
    %c3_108 = arith.constant 3 : index
    %c0_109 = arith.constant 0 : index
    %c0_110 = arith.constant 0 : index
    %130 = vector.load %arg8[%c3_108, %c0_109, %c0_110] : memref<8x64x512xf32, #tpu.memory_space<vmem>>, vector<1x64x512xf32>
    %131 = vector.shape_cast %130 : vector<1x64x512xf32> to vector<64x512xf32>
    %cst_111 = arith.constant dense<0.000000e+00> : vector<16x512xf32>
    %132 = tpu.matmul %129, %131, %cst_111 {dimension_numbers = #tpu.dot_dimension_numbers<[1], [0], [0], [1], [0, 0, 1, 1], [], []>} : vector<16x64xf32>, vector<64x512xf32>, vector<16x512xf32> -> vector<16x512xf32>
    %133 = arith.addf %102, %132 : vector<16x512xf32>
    %c4 = arith.constant 4 : index
    %c0_112 = arith.constant 0 : index
    %c0_113 = arith.constant 0 : index
    %134 = vector.load %arg5[%c4, %c0_112, %c0_113] : memref<8x512x64xf32, #tpu.memory_space<vmem>>, vector<1x512x64xf32>
    %135 = vector.shape_cast %134 : vector<1x512x64xf32> to vector<512x64xf32>
    %cst_114 = arith.constant dense<0.000000e+00> : vector<16x64xf32>
    %136 = tpu.matmul %1, %135, %cst_114 {dimension_numbers = #tpu.dot_dimension_numbers<[1], [0], [0], [1], [0, 0, 1, 1], [], []>} : vector<16x512xf32>, vector<512x64xf32>, vector<16x64xf32> -> vector<16x64xf32>
    %c4_115 = arith.constant 4 : index
    %c0_116 = arith.constant 0 : index
    %c0_117 = arith.constant 0 : index
    %137 = vector.load %arg6[%c4_115, %c0_116, %c0_117] : memref<8x512x64xf32, #tpu.memory_space<vmem>>, vector<1x512x64xf32>
    %138 = vector.shape_cast %137 : vector<1x512x64xf32> to vector<512x64xf32>
    %cst_118 = arith.constant dense<0.000000e+00> : vector<16x64xf32>
    %139 = tpu.matmul %3, %138, %cst_118 {dimension_numbers = #tpu.dot_dimension_numbers<[1], [0], [0], [1], [0, 0, 1, 1], [], []>} : vector<16x512xf32>, vector<512x64xf32>, vector<16x64xf32> -> vector<16x64xf32>
    %c4_119 = arith.constant 4 : index
    %c0_120 = arith.constant 0 : index
    %c0_121 = arith.constant 0 : index
    %140 = vector.load %arg7[%c4_119, %c0_120, %c0_121] : memref<8x512x64xf32, #tpu.memory_space<vmem>>, vector<1x512x64xf32>
    %141 = vector.shape_cast %140 : vector<1x512x64xf32> to vector<512x64xf32>
    %cst_122 = arith.constant dense<0.000000e+00> : vector<16x64xf32>
    %142 = tpu.matmul %5, %141, %cst_122 {dimension_numbers = #tpu.dot_dimension_numbers<[1], [0], [0], [1], [0, 0, 1, 1], [], []>} : vector<16x512xf32>, vector<512x64xf32>, vector<16x64xf32> -> vector<16x64xf32>
    "tpu.trace_start"() <{level = 10 : i32, message = "qd,kd->qk"}> : () -> ()
    %cst_123 = arith.constant dense<0.000000e+00> : vector<16x16xf32>
    %143 = tpu.matmul %136, %139, %cst_123 {dimension_numbers = #tpu.dot_dimension_numbers<[1], [1], [0], [0], [0, 0, 1, 0], [], []>} : vector<16x64xf32>, vector<16x64xf32>, vector<16x16xf32> -> vector<16x16xf32>
    "tpu.trace_stop"() : () -> ()
    %cst_124 = arith.constant 1.250000e-01 : f32
    %144 = vector.broadcast %cst_124 : f32 to vector<16x16xf32>
    %145 = arith.mulf %143, %144 : vector<16x16xf32>
    %cst_125 = arith.constant -1.000000e+09 : f32
    %146 = vector.broadcast %cst_125 : f32 to vector<16x16xf32>
    %147 = arith.select %9, %146, %145 : vector<16x16xi1>, vector<16x16xf32>
    %cst_126 = arith.constant dense<0xFF800000> : vector<16xf32>
    %148 = vector.multi_reduction <maximumf>, %147, %cst_126 [1] : vector<16x16xf32> to vector<16xf32>
    %149 = vector.shape_cast %148 : vector<16xf32> to vector<16x1xf32>
    %150 = vector.broadcast %149 : vector<16x1xf32> to vector<16x16xf32>
    %151 = arith.subf %147, %150 : vector<16x16xf32>
    %152 = math.exp %151 : vector<16x16xf32>
    %cst_127 = arith.constant dense<0.000000e+00> : vector<16xf32>
    %153 = vector.multi_reduction <add>, %152, %cst_127 [1] : vector<16x16xf32> to vector<16xf32>
    %154 = vector.shape_cast %153 : vector<16xf32> to vector<16x1xf32>
    %155 = vector.broadcast %154 : vector<16x1xf32> to vector<16x16xf32>
    %156 = arith.divf %152, %155 : vector<16x16xf32>
    %c0_128 = arith.constant 0 : index
    %c4_129 = arith.constant 4 : index
    %c0_130 = arith.constant 0 : index
    %c0_131 = arith.constant 0 : index
    %157 = vector.load %arg10[%c0_128, %c4_129, %c0_130, %c0_131] : memref<1x8x16x16xf32, #tpu.memory_space<vmem>>, vector<1x1x16x16xf32>
    %158 = vector.shape_cast %157 : vector<1x1x16x16xf32> to vector<16x16xf32>
    %159 = vector.shape_cast %156 : vector<16x16xf32> to vector<1x1x16x16xf32>
    tpu.vector_store %arg10[%c0_128, %c4_129, %c0_130, %c0_131], %159 {strides = array<i32>} : memref<1x8x16x16xf32, #tpu.memory_space<vmem>>, vector<1x1x16x16xf32>,
    %cst_132 = arith.constant dense<0.000000e+00> : vector<16x64xf32>
    %160 = tpu.matmul %156, %142, %cst_132 {dimension_numbers = #tpu.dot_dimension_numbers<[1], [0], [0], [1], [0, 0, 1, 1], [], []>} : vector<16x16xf32>, vector<16x64xf32>, vector<16x64xf32> -> vector<16x64xf32>
    %c4_133 = arith.constant 4 : index
    %c0_134 = arith.constant 0 : index
    %c0_135 = arith.constant 0 : index
    %161 = vector.load %arg8[%c4_133, %c0_134, %c0_135] : memref<8x64x512xf32, #tpu.memory_space<vmem>>, vector<1x64x512xf32>
    %162 = vector.shape_cast %161 : vector<1x64x512xf32> to vector<64x512xf32>
    %cst_136 = arith.constant dense<0.000000e+00> : vector<16x512xf32>
    %163 = tpu.matmul %160, %162, %cst_136 {dimension_numbers = #tpu.dot_dimension_numbers<[1], [0], [0], [1], [0, 0, 1, 1], [], []>} : vector<16x64xf32>, vector<64x512xf32>, vector<16x512xf32> -> vector<16x512xf32>
    %164 = arith.addf %133, %163 : vector<16x512xf32>
    %c5 = arith.constant 5 : index
    %c0_137 = arith.constant 0 : index
    %c0_138 = arith.constant 0 : index
    %165 = vector.load %arg5[%c5, %c0_137, %c0_138] : memref<8x512x64xf32, #tpu.memory_space<vmem>>, vector<1x512x64xf32>
    %166 = vector.shape_cast %165 : vector<1x512x64xf32> to vector<512x64xf32>
    %cst_139 = arith.constant dense<0.000000e+00> : vector<16x64xf32>
    %167 = tpu.matmul %1, %166, %cst_139 {dimension_numbers = #tpu.dot_dimension_numbers<[1], [0], [0], [1], [0, 0, 1, 1], [], []>} : vector<16x512xf32>, vector<512x64xf32>, vector<16x64xf32> -> vector<16x64xf32>
    %c5_140 = arith.constant 5 : index
    %c0_141 = arith.constant 0 : index
    %c0_142 = arith.constant 0 : index
    %168 = vector.load %arg6[%c5_140, %c0_141, %c0_142] : memref<8x512x64xf32, #tpu.memory_space<vmem>>, vector<1x512x64xf32>
    %169 = vector.shape_cast %168 : vector<1x512x64xf32> to vector<512x64xf32>
    %cst_143 = arith.constant dense<0.000000e+00> : vector<16x64xf32>
    %170 = tpu.matmul %3, %169, %cst_143 {dimension_numbers = #tpu.dot_dimension_numbers<[1], [0], [0], [1], [0, 0, 1, 1], [], []>} : vector<16x512xf32>, vector<512x64xf32>, vector<16x64xf32> -> vector<16x64xf32>
    %c5_144 = arith.constant 5 : index
    %c0_145 = arith.constant 0 : index
    %c0_146 = arith.constant 0 : index
    %171 = vector.load %arg7[%c5_144, %c0_145, %c0_146] : memref<8x512x64xf32, #tpu.memory_space<vmem>>, vector<1x512x64xf32>
    %172 = vector.shape_cast %171 : vector<1x512x64xf32> to vector<512x64xf32>
    %cst_147 = arith.constant dense<0.000000e+00> : vector<16x64xf32>
    %173 = tpu.matmul %5, %172, %cst_147 {dimension_numbers = #tpu.dot_dimension_numbers<[1], [0], [0], [1], [0, 0, 1, 1], [], []>} : vector<16x512xf32>, vector<512x64xf32>, vector<16x64xf32> -> vector<16x64xf32>
    "tpu.trace_start"() <{level = 10 : i32, message = "qd,kd->qk"}> : () -> ()
    %cst_148 = arith.constant dense<0.000000e+00> : vector<16x16xf32>
    %174 = tpu.matmul %167, %170, %cst_148 {dimension_numbers = #tpu.dot_dimension_numbers<[1], [1], [0], [0], [0, 0, 1, 0], [], []>} : vector<16x64xf32>, vector<16x64xf32>, vector<16x16xf32> -> vector<16x16xf32>
    "tpu.trace_stop"() : () -> ()
    %cst_149 = arith.constant 1.250000e-01 : f32
    %175 = vector.broadcast %cst_149 : f32 to vector<16x16xf32>
    %176 = arith.mulf %174, %175 : vector<16x16xf32>
    %cst_150 = arith.constant -1.000000e+09 : f32
    %177 = vector.broadcast %cst_150 : f32 to vector<16x16xf32>
    %178 = arith.select %9, %177, %176 : vector<16x16xi1>, vector<16x16xf32>
    %cst_151 = arith.constant dense<0xFF800000> : vector<16xf32>
    %179 = vector.multi_reduction <maximumf>, %178, %cst_151 [1] : vector<16x16xf32> to vector<16xf32>
    %180 = vector.shape_cast %179 : vector<16xf32> to vector<16x1xf32>
    %181 = vector.broadcast %180 : vector<16x1xf32> to vector<16x16xf32>
    %182 = arith.subf %178, %181 : vector<16x16xf32>
    %183 = math.exp %182 : vector<16x16xf32>
    %cst_152 = arith.constant dense<0.000000e+00> : vector<16xf32>
    %184 = vector.multi_reduction <add>, %183, %cst_152 [1] : vector<16x16xf32> to vector<16xf32>
    %185 = vector.shape_cast %184 : vector<16xf32> to vector<16x1xf32>
    %186 = vector.broadcast %185 : vector<16x1xf32> to vector<16x16xf32>
    %187 = arith.divf %183, %186 : vector<16x16xf32>
    %c0_153 = arith.constant 0 : index
    %c5_154 = arith.constant 5 : index
    %c0_155 = arith.constant 0 : index
    %c0_156 = arith.constant 0 : index
    %188 = vector.load %arg10[%c0_153, %c5_154, %c0_155, %c0_156] : memref<1x8x16x16xf32, #tpu.memory_space<vmem>>, vector<1x1x16x16xf32>
    %189 = vector.shape_cast %188 : vector<1x1x16x16xf32> to vector<16x16xf32>
    %190 = vector.shape_cast %187 : vector<16x16xf32> to vector<1x1x16x16xf32>
    tpu.vector_store %arg10[%c0_153, %c5_154, %c0_155, %c0_156], %190 {strides = array<i32>} : memref<1x8x16x16xf32, #tpu.memory_space<vmem>>, vector<1x1x16x16xf32>,
    %cst_157 = arith.constant dense<0.000000e+00> : vector<16x64xf32>
    %191 = tpu.matmul %187, %173, %cst_157 {dimension_numbers = #tpu.dot_dimension_numbers<[1], [0], [0], [1], [0, 0, 1, 1], [], []>} : vector<16x16xf32>, vector<16x64xf32>, vector<16x64xf32> -> vector<16x64xf32>
    %c5_158 = arith.constant 5 : index
    %c0_159 = arith.constant 0 : index
    %c0_160 = arith.constant 0 : index
    %192 = vector.load %arg8[%c5_158, %c0_159, %c0_160] : memref<8x64x512xf32, #tpu.memory_space<vmem>>, vector<1x64x512xf32>
    %193 = vector.shape_cast %192 : vector<1x64x512xf32> to vector<64x512xf32>
    %cst_161 = arith.constant dense<0.000000e+00> : vector<16x512xf32>
    %194 = tpu.matmul %191, %193, %cst_161 {dimension_numbers = #tpu.dot_dimension_numbers<[1], [0], [0], [1], [0, 0, 1, 1], [], []>} : vector<16x64xf32>, vector<64x512xf32>, vector<16x512xf32> -> vector<16x512xf32>
    %195 = arith.addf %164, %194 : vector<16x512xf32>
    %c6 = arith.constant 6 : index
    %c0_162 = arith.constant 0 : index
    %c0_163 = arith.constant 0 : index
    %196 = vector.load %arg5[%c6, %c0_162, %c0_163] : memref<8x512x64xf32, #tpu.memory_space<vmem>>, vector<1x512x64xf32>
    %197 = vector.shape_cast %196 : vector<1x512x64xf32> to vector<512x64xf32>
    %cst_164 = arith.constant dense<0.000000e+00> : vector<16x64xf32>
    %198 = tpu.matmul %1, %197, %cst_164 {dimension_numbers = #tpu.dot_dimension_numbers<[1], [0], [0], [1], [0, 0, 1, 1], [], []>} : vector<16x512xf32>, vector<512x64xf32>, vector<16x64xf32> -> vector<16x64xf32>
    %c6_165 = arith.constant 6 : index
    %c0_166 = arith.constant 0 : index
    %c0_167 = arith.constant 0 : index
    %199 = vector.load %arg6[%c6_165, %c0_166, %c0_167] : memref<8x512x64xf32, #tpu.memory_space<vmem>>, vector<1x512x64xf32>
    %200 = vector.shape_cast %199 : vector<1x512x64xf32> to vector<512x64xf32>
    %cst_168 = arith.constant dense<0.000000e+00> : vector<16x64xf32>
    %201 = tpu.matmul %3, %200, %cst_168 {dimension_numbers = #tpu.dot_dimension_numbers<[1], [0], [0], [1], [0, 0, 1, 1], [], []>} : vector<16x512xf32>, vector<512x64xf32>, vector<16x64xf32> -> vector<16x64xf32>
    %c6_169 = arith.constant 6 : index
    %c0_170 = arith.constant 0 : index
    %c0_171 = arith.constant 0 : index
    %202 = vector.load %arg7[%c6_169, %c0_170, %c0_171] : memref<8x512x64xf32, #tpu.memory_space<vmem>>, vector<1x512x64xf32>
    %203 = vector.shape_cast %202 : vector<1x512x64xf32> to vector<512x64xf32>
    %cst_172 = arith.constant dense<0.000000e+00> : vector<16x64xf32>
    %204 = tpu.matmul %5, %203, %cst_172 {dimension_numbers = #tpu.dot_dimension_numbers<[1], [0], [0], [1], [0, 0, 1, 1], [], []>} : vector<16x512xf32>, vector<512x64xf32>, vector<16x64xf32> -> vector<16x64xf32>
    "tpu.trace_start"() <{level = 10 : i32, message = "qd,kd->qk"}> : () -> ()
    %cst_173 = arith.constant dense<0.000000e+00> : vector<16x16xf32>
    %205 = tpu.matmul %198, %201, %cst_173 {dimension_numbers = #tpu.dot_dimension_numbers<[1], [1], [0], [0], [0, 0, 1, 0], [], []>} : vector<16x64xf32>, vector<16x64xf32>, vector<16x16xf32> -> vector<16x16xf32>
    "tpu.trace_stop"() : () -> ()
    %cst_174 = arith.constant 1.250000e-01 : f32
    %206 = vector.broadcast %cst_174 : f32 to vector<16x16xf32>
    %207 = arith.mulf %205, %206 : vector<16x16xf32>
    %cst_175 = arith.constant -1.000000e+09 : f32
    %208 = vector.broadcast %cst_175 : f32 to vector<16x16xf32>
    %209 = arith.select %9, %208, %207 : vector<16x16xi1>, vector<16x16xf32>
    %cst_176 = arith.constant dense<0xFF800000> : vector<16xf32>
    %210 = vector.multi_reduction <maximumf>, %209, %cst_176 [1] : vector<16x16xf32> to vector<16xf32>
    %211 = vector.shape_cast %210 : vector<16xf32> to vector<16x1xf32>
    %212 = vector.broadcast %211 : vector<16x1xf32> to vector<16x16xf32>
    %213 = arith.subf %209, %212 : vector<16x16xf32>
    %214 = math.exp %213 : vector<16x16xf32>
    %cst_177 = arith.constant dense<0.000000e+00> : vector<16xf32>
    %215 = vector.multi_reduction <add>, %214, %cst_177 [1] : vector<16x16xf32> to vector<16xf32>
    %216 = vector.shape_cast %215 : vector<16xf32> to vector<16x1xf32>
    %217 = vector.broadcast %216 : vector<16x1xf32> to vector<16x16xf32>
    %218 = arith.divf %214, %217 : vector<16x16xf32>
    %c0_178 = arith.constant 0 : index
    %c6_179 = arith.constant 6 : index
    %c0_180 = arith.constant 0 : index
    %c0_181 = arith.constant 0 : index
    %219 = vector.load %arg10[%c0_178, %c6_179, %c0_180, %c0_181] : memref<1x8x16x16xf32, #tpu.memory_space<vmem>>, vector<1x1x16x16xf32>
    %220 = vector.shape_cast %219 : vector<1x1x16x16xf32> to vector<16x16xf32>
    %221 = vector.shape_cast %218 : vector<16x16xf32> to vector<1x1x16x16xf32>
    tpu.vector_store %arg10[%c0_178, %c6_179, %c0_180, %c0_181], %221 {strides = array<i32>} : memref<1x8x16x16xf32, #tpu.memory_space<vmem>>, vector<1x1x16x16xf32>,
    %cst_182 = arith.constant dense<0.000000e+00> : vector<16x64xf32>
    %222 = tpu.matmul %218, %204, %cst_182 {dimension_numbers = #tpu.dot_dimension_numbers<[1], [0], [0], [1], [0, 0, 1, 1], [], []>} : vector<16x16xf32>, vector<16x64xf32>, vector<16x64xf32> -> vector<16x64xf32>
    %c6_183 = arith.constant 6 : index
    %c0_184 = arith.constant 0 : index
    %c0_185 = arith.constant 0 : index
    %223 = vector.load %arg8[%c6_183, %c0_184, %c0_185] : memref<8x64x512xf32, #tpu.memory_space<vmem>>, vector<1x64x512xf32>
    %224 = vector.shape_cast %223 : vector<1x64x512xf32> to vector<64x512xf32>
    %cst_186 = arith.constant dense<0.000000e+00> : vector<16x512xf32>
    %225 = tpu.matmul %222, %224, %cst_186 {dimension_numbers = #tpu.dot_dimension_numbers<[1], [0], [0], [1], [0, 0, 1, 1], [], []>} : vector<16x64xf32>, vector<64x512xf32>, vector<16x512xf32> -> vector<16x512xf32>
    %226 = arith.addf %195, %225 : vector<16x512xf32>
    %c7 = arith.constant 7 : index
    %c0_187 = arith.constant 0 : index
    %c0_188 = arith.constant 0 : index
    %227 = vector.load %arg5[%c7, %c0_187, %c0_188] : memref<8x512x64xf32, #tpu.memory_space<vmem>>, vector<1x512x64xf32>
    %228 = vector.shape_cast %227 : vector<1x512x64xf32> to vector<512x64xf32>
    %cst_189 = arith.constant dense<0.000000e+00> : vector<16x64xf32>
    %229 = tpu.matmul %1, %228, %cst_189 {dimension_numbers = #tpu.dot_dimension_numbers<[1], [0], [0], [1], [0, 0, 1, 1], [], []>} : vector<16x512xf32>, vector<512x64xf32>, vector<16x64xf32> -> vector<16x64xf32>
    %c7_190 = arith.constant 7 : index
    %c0_191 = arith.constant 0 : index
    %c0_192 = arith.constant 0 : index
    %230 = vector.load %arg6[%c7_190, %c0_191, %c0_192] : memref<8x512x64xf32, #tpu.memory_space<vmem>>, vector<1x512x64xf32>
    %231 = vector.shape_cast %230 : vector<1x512x64xf32> to vector<512x64xf32>
    %cst_193 = arith.constant dense<0.000000e+00> : vector<16x64xf32>
    %232 = tpu.matmul %3, %231, %cst_193 {dimension_numbers = #tpu.dot_dimension_numbers<[1], [0], [0], [1], [0, 0, 1, 1], [], []>} : vector<16x512xf32>, vector<512x64xf32>, vector<16x64xf32> -> vector<16x64xf32>
    %c7_194 = arith.constant 7 : index
    %c0_195 = arith.constant 0 : index
    %c0_196 = arith.constant 0 : index
    %233 = vector.load %arg7[%c7_194, %c0_195, %c0_196] : memref<8x512x64xf32, #tpu.memory_space<vmem>>, vector<1x512x64xf32>
    %234 = vector.shape_cast %233 : vector<1x512x64xf32> to vector<512x64xf32>
    %cst_197 = arith.constant dense<0.000000e+00> : vector<16x64xf32>
    %235 = tpu.matmul %5, %234, %cst_197 {dimension_numbers = #tpu.dot_dimension_numbers<[1], [0], [0], [1], [0, 0, 1, 1], [], []>} : vector<16x512xf32>, vector<512x64xf32>, vector<16x64xf32> -> vector<16x64xf32>
    "tpu.trace_start"() <{level = 10 : i32, message = "qd,kd->qk"}> : () -> ()
    %cst_198 = arith.constant dense<0.000000e+00> : vector<16x16xf32>
    %236 = tpu.matmul %229, %232, %cst_198 {dimension_numbers = #tpu.dot_dimension_numbers<[1], [1], [0], [0], [0, 0, 1, 0], [], []>} : vector<16x64xf32>, vector<16x64xf32>, vector<16x16xf32> -> vector<16x16xf32>
    "tpu.trace_stop"() : () -> ()
    %cst_199 = arith.constant 1.250000e-01 : f32
    %237 = vector.broadcast %cst_199 : f32 to vector<16x16xf32>
    %238 = arith.mulf %236, %237 : vector<16x16xf32>
    %cst_200 = arith.constant -1.000000e+09 : f32
    %239 = vector.broadcast %cst_200 : f32 to vector<16x16xf32>
    %240 = arith.select %9, %239, %238 : vector<16x16xi1>, vector<16x16xf32>
    %cst_201 = arith.constant dense<0xFF800000> : vector<16xf32>
    %241 = vector.multi_reduction <maximumf>, %240, %cst_201 [1] : vector<16x16xf32> to vector<16xf32>
    %242 = vector.shape_cast %241 : vector<16xf32> to vector<16x1xf32>
    %243 = vector.broadcast %242 : vector<16x1xf32> to vector<16x16xf32>
    %244 = arith.subf %240, %243 : vector<16x16xf32>
    %245 = math.exp %244 : vector<16x16xf32>
    %cst_202 = arith.constant dense<0.000000e+00> : vector<16xf32>
    %246 = vector.multi_reduction <add>, %245, %cst_202 [1] : vector<16x16xf32> to vector<16xf32>
    %247 = vector.shape_cast %246 : vector<16xf32> to vector<16x1xf32>
    %248 = vector.broadcast %247 : vector<16x1xf32> to vector<16x16xf32>
    %249 = arith.divf %245, %248 : vector<16x16xf32>
    %c0_203 = arith.constant 0 : index
    %c7_204 = arith.constant 7 : index
    %c0_205 = arith.constant 0 : index
    %c0_206 = arith.constant 0 : index
    %250 = vector.load %arg10[%c0_203, %c7_204, %c0_205, %c0_206] : memref<1x8x16x16xf32, #tpu.memory_space<vmem>>, vector<1x1x16x16xf32>
    %251 = vector.shape_cast %250 : vector<1x1x16x16xf32> to vector<16x16xf32>
    %252 = vector.shape_cast %249 : vector<16x16xf32> to vector<1x1x16x16xf32>
    tpu.vector_store %arg10[%c0_203, %c7_204, %c0_205, %c0_206], %252 {strides = array<i32>} : memref<1x8x16x16xf32, #tpu.memory_space<vmem>>, vector<1x1x16x16xf32>,
    %cst_207 = arith.constant dense<0.000000e+00> : vector<16x64xf32>
    %253 = tpu.matmul %249, %235, %cst_207 {dimension_numbers = #tpu.dot_dimension_numbers<[1], [0], [0], [1], [0, 0, 1, 1], [], []>} : vector<16x16xf32>, vector<16x64xf32>, vector<16x64xf32> -> vector<16x64xf32>
    %c7_208 = arith.constant 7 : index
    %c0_209 = arith.constant 0 : index
    %c0_210 = arith.constant 0 : index
    %254 = vector.load %arg8[%c7_208, %c0_209, %c0_210] : memref<8x64x512xf32, #tpu.memory_space<vmem>>, vector<1x64x512xf32>
    %255 = vector.shape_cast %254 : vector<1x64x512xf32> to vector<64x512xf32>
    %cst_211 = arith.constant dense<0.000000e+00> : vector<16x512xf32>
    %256 = tpu.matmul %253, %255, %cst_211 {dimension_numbers = #tpu.dot_dimension_numbers<[1], [0], [0], [1], [0, 0, 1, 1], [], []>} : vector<16x64xf32>, vector<64x512xf32>, vector<16x512xf32> -> vector<16x512xf32>
    %257 = arith.addf %226, %256 : vector<16x512xf32>
    %cst_212 = arith.constant dense<0.000000e+00> : vector<16xf32>
    %258 = vector.multi_reduction <add>, %257, %cst_212 [1] : vector<16x512xf32> to vector<16xf32>
    %259 = vector.shape_cast %258 : vector<16xf32> to vector<16x1xf32>
    %cst_213 = arith.constant 5.120000e+02 : f32
    %260 = vector.broadcast %cst_213 : f32 to vector<16x1xf32>
    %261 = arith.divf %259, %260 : vector<16x1xf32>
    %262 = vector.broadcast %261 : vector<16x1xf32> to vector<16x512xf32>
    %263 = arith.subf %257, %262 : vector<16x512xf32>
    %264 = arith.mulf %263, %263 : vector<16x512xf32>
    %cst_214 = arith.constant dense<0.000000e+00> : vector<16xf32>
    %265 = vector.multi_reduction <add>, %264, %cst_214 [1] : vector<16x512xf32> to vector<16xf32>
    %266 = vector.shape_cast %265 : vector<16xf32> to vector<16x1xf32>
    %cst_215 = arith.constant 5.120000e+02 : f32
    %267 = vector.broadcast %cst_215 : f32 to vector<16x1xf32>
    %268 = arith.divf %266, %267 : vector<16x1xf32>
    %cst_216 = arith.constant 9.99999974E-6 : f32
    %269 = vector.broadcast %cst_216 : f32 to vector<16x1xf32>
    %270 = arith.addf %268, %269 : vector<16x1xf32>
    %271 = math.rsqrt %270 : vector<16x1xf32>
    %272 = vector.broadcast %271 : vector<16x1xf32> to vector<16x512xf32>
    %273 = arith.mulf %263, %272 : vector<16x512xf32>
    %c0_217 = arith.constant 0 : index
    %c0_218 = arith.constant 0 : index
    %c0_219 = arith.constant 0 : index
    %274 = vector.load %arg9[%c0_217, %c0_218, %c0_219] : memref<1x16x512xf32, #tpu.memory_space<vmem>>, vector<1x16x512xf32>
    %275 = vector.shape_cast %274 : vector<1x16x512xf32> to vector<16x512xf32>
    %276 = vector.shape_cast %273 : vector<16x512xf32> to vector<1x16x512xf32>
    tpu.vector_store %arg9[%c0_217, %c0_218, %c0_219], %276 {strides = array<i32>} : memref<1x16x512xf32, #tpu.memory_space<vmem>>, vector<1x16x512xf32>,
    return
  }
  func.func @transform_0(%arg0: i32) -> (i32, i32, i32) {
    %c0_i32 = arith.constant 0 : i32
    %c0_i32_0 = arith.constant 0 : i32
    %c0_i32_1 = arith.constant 0 : i32
    return %arg0, %c0_i32, %c0_i32_0 : i32, i32, i32
  }
  func.func @transform_1(%arg0: i32) -> (i32, i32, i32) {
    %c0_i32 = arith.constant 0 : i32
    %c0_i32_0 = arith.constant 0 : i32
    %c0_i32_1 = arith.constant 0 : i32
    return %arg0, %c0_i32, %c0_i32_0 : i32, i32, i32
  }
  func.func @transform_2(%arg0: i32) -> (i32, i32, i32) {
    %c0_i32 = arith.constant 0 : i32
    %c0_i32_0 = arith.constant 0 : i32
    %c0_i32_1 = arith.constant 0 : i32
    return %arg0, %c0_i32, %c0_i32_0 : i32, i32, i32
  }
  func.func @transform_3(%arg0: i32) -> (i32, i32, i32) {
    %c0_i32 = arith.constant 0 : i32
    %c0_i32_0 = arith.constant 0 : i32
    %c0_i32_1 = arith.constant 0 : i32
    return %arg0, %c0_i32, %c0_i32_0 : i32, i32, i32
  }
  func.func @transform_4(%arg0: i32) -> (i32, i32, i32) {
    %c0_i32 = arith.constant 0 : i32
    %c0_i32_0 = arith.constant 0 : i32
    %c0_i32_1 = arith.constant 0 : i32
    %c0_i32_2 = arith.constant 0 : i32
    return %c0_i32, %c0_i32_0, %c0_i32_1 : i32, i32, i32
  }
  func.func @transform_5(%arg0: i32) -> (i32, i32, i32) {
    %c0_i32 = arith.constant 0 : i32
    %c0_i32_0 = arith.constant 0 : i32
    %c0_i32_1 = arith.constant 0 : i32
    %c0_i32_2 = arith.constant 0 : i32
    return %c0_i32, %c0_i32_0, %c0_i32_1 : i32, i32, i32
  }
  func.func @transform_6(%arg0: i32) -> (i32, i32, i32) {
    %c0_i32 = arith.constant 0 : i32
    %c0_i32_0 = arith.constant 0 : i32
    %c0_i32_1 = arith.constant 0 : i32
    %c0_i32_2 = arith.constant 0 : i32
    return %c0_i32, %c0_i32_0, %c0_i32_1 : i32, i32, i32
  }
  func.func @transform_7(%arg0: i32) -> (i32, i32, i32) {
    %c0_i32 = arith.constant 0 : i32
    %c0_i32_0 = arith.constant 0 : i32
    %c0_i32_1 = arith.constant 0 : i32
    %c0_i32_2 = arith.constant 0 : i32
    return %c0_i32, %c0_i32_0, %c0_i32_1 : i32, i32, i32
  }
  func.func @transform_8(%arg0: i32) -> (i32, i32, i32) {
    %c0_i32 = arith.constant 0 : i32
    %c0_i32_0 = arith.constant 0 : i32
    %c0_i32_1 = arith.constant 0 : i32
    return %arg0, %c0_i32, %c0_i32_0 : i32, i32, i32
  }
  func.func @transform_9(%arg0: i32) -> (i32, i32, i32, i32) {
    %c0_i32 = arith.constant 0 : i32
    %c0_i32_0 = arith.constant 0 : i32
    %c0_i32_1 = arith.constant 0 : i32
    %c0_i32_2 = arith.constant 0 : i32
    return %arg0, %c0_i32, %c0_i32_0, %c0_i32_1 : i32, i32, i32, i32
  }
}

</mosaic_0001>

<llo_original>
// kernel: tpu_custom_call.1
$region0: #{tpu_custom_call.1}
  #allocation0 [shape = 'u32[]', space=smem, size = 0x4, offset = 0x4, fixed_abs, tag = 'smem constant byte address 0x4 - core index']
  #allocation1 [shape = 'u32[144,128]{1,0:T(1,128)}', space=vmem, size = 0x12000, scoped, tag = 'internal scratch']
  %s0 = inlined_call_operand.vmem [shape: f32[2,16,512], index: 0, kind: input, shape index: {}]
  %s1 = inlined_call_operand.vmem [shape: f32[2,16,512], index: 1, kind: input, shape index: {}]
  %s2 = inlined_call_operand.vmem [shape: f32[2,16,512], index: 2, kind: input, shape index: {}]
  %s3 = inlined_call_operand.vmem [shape: f32[2,16,16], index: 3, kind: input, shape index: {}]
  %s4 = inlined_call_operand.vmem [shape: f32[8,512,64], index: 4, kind: input, shape index: {}]
  %s5 = inlined_call_operand.vmem [shape: f32[8,512,64], index: 5, kind: input, shape index: {}]
  %s6 = inlined_call_operand.vmem [shape: f32[8,512,64], index: 6, kind: input, shape index: {}]
  %s7 = inlined_call_operand.vmem [shape: f32[8,64,512], index: 7, kind: input, shape index: {}]
  %s8 = inlined_call_operand.hbm [shape: f32[2,16,512], index: 8, kind: output, shape index: {0}]
  %s9 = inlined_call_operand.hbm [shape: f32[2,8,16,16], index: 9, kind: output, shape index: {1}]
  %10 = xla_tuple %s8, %s9
  %s11 = sld [smem:[#allocation0]]
  $region73: #{tpu_custom_call.1} parent=0
    _
  %s13 = ssub.s32 1, %s11
  %s14 = scalar_select 0, %s13, %s11
  $region1: #{tpu_custom_call.1} parent=0
    #allocation2 [shape = 'u8[65536]{0}', space=vmem, size = 0x10000, scoped, tag = 'output window, operand 0']
    #allocation3 [shape = 's32[2]{0}', space=sflag, size = 0x8, scoped, tag = 'scoped memory for tpu_custom_call.1']
    #allocation4 [shape = 'u8[131072]{0}', space=vmem, size = 0x20000, scoped, tag = 'output window, operand 1']
    #allocation5 [shape = 's32[2]{0}', space=sflag, size = 0x8, scoped, tag = 'scoped memory for tpu_custom_call.1']
    %15 = vsyncpa [#allocation3], 0
    %s16 = scalar_lea.sflag [#allocation3], 1
    %17 = vsyncpa %s16, 0
    %18 = vsyncpa [#allocation5], 0
    %s19 = scalar_lea.sflag [#allocation5], 1
    %20 = vsyncpa %s19, 0
    loop: start=0, step=1, limit=4
    $region2: #{tpu_custom_call.1} parent=1 // loop_pre_header
      _
    $region3: #{tpu_custom_call.1} parent=1 // loop_header
      %s22 = sphi 0, %s26
      %p23 = scmp.ge.s32.totalorder %s22, 4
      %s32 = sphi 0, %s34
      %s35 = sphi 0, %s32
      %s36 = sphi 0, %s35
      %s52 = sphi 0, %s36
      %s58 = sphi 0, %s60
      %s61 = sphi 0, %s58
      %s62 = sphi 0, %s61
      %s78 = sphi 0, %s62
      %s84 = sphi 0, %s86
      %s87 = sphi 0, %s84
      %s88 = sphi 0, %s87
      %s104 = sphi 0, %s88
      %s110 = sphi 0, %s112
      %s113 = sphi 0, %s110
      %s114 = sphi 0, %s113
      %s130 = sphi 0, %s114
      %s134 = sphi 0, %s134
      %s136 = sphi 0, %s134
      %s137 = sphi 0, %s136
      %s151 = sphi 0, %s137
      %s155 = sphi 0, %s155
      %s157 = sphi 0, %s155
      %s158 = sphi 0, %s157
      %s172 = sphi 0, %s158
      %s176 = sphi 0, %s176
      %s178 = sphi 0, %s176
      %s179 = sphi 0, %s178
      %s193 = sphi 0, %s179
      %s197 = sphi 0, %s197
      %s199 = sphi 0, %s197
      %s200 = sphi 0, %s199
      %s214 = sphi 0, %s200
      %s220 = sphi 0, %s222
      %s223 = sphi 0, %s220
      %s224 = sphi 0, %s223
      %s240 = sphi 0, %s224
      %s246 = sphi 0, %s248
      %s249 = sphi 0, %s246
      %s250 = sphi 0, %s249
      %s266 = sphi 0, %s250
    $region4: #{tpu_custom_call.1} parent=1 // loop_header_branch
      %25 = sbr.rel (%p23) target = $region8
    $region5: #{tpu_custom_call.1} parent=1 // loop_body
      %s27 = ssub.s32 %s22, 1
      %s28 = ssub.s32 %s22, 2
      %s29 = sadd.s32 %s22, 1
      %s30 = ssub.s32 %s22, %s29
      %p31 = scmp.eq.s32.totalorder %s30, 0
      %s33 = sadd.s32 %s32, 1
      %s34 = scalar_select %p31, %s32, %s33
      %p37 = pneg %p31
      %p38 = scmp.eq.s32.totalorder %s22, 1
      %p39 = por %p37, %p38
      %p40 = scmp.ne.s32.totalorder %s32, %s35
      %p41 = scmp.eq.s32.totalorder %s22, 0
      %p42 = por %p40, %p41
      %p43 = scmp.ne.s32.totalorder %s32, %s35
      %p44 = scmp.eq.s32.totalorder %s27, 1
      %p45 = por %p43, %p44
      %p46 = scmp.ne.s32.totalorder %s35, %s36
      %p47 = scmp.eq.s32.totalorder %s27, 0
      %p48 = por %p46, %p47
      %p49 = scmp.ne.s32.totalorder %s35, %s36
      %p50 = scmp.eq.s32.totalorder %s28, 1
      %p51 = por %p49, %p50
      %p53 = scmp.ne.s32.totalorder %s36, %s52
      %p54 = scmp.eq.s32.totalorder %s28, 0
      %p55 = por %p53, %p54
      %s56 = ssub.s32 %s22, %s29
      %p57 = scmp.eq.s32.totalorder %s56, 0
      %s59 = sadd.s32 %s58, 1
      %s60 = scalar_select %p57, %s58, %s59
      %p63 = pneg %p57
      %p64 = scmp.eq.s32.totalorder %s22, 1
      %p65 = por %p63, %p64
      %p66 = scmp.ne.s32.totalorder %s58, %s61
      %p67 = scmp.eq.s32.totalorder %s22, 0
      %p68 = por %p66, %p67
      %p69 = scmp.ne.s32.totalorder %s58, %s61
      %p70 = scmp.eq.s32.totalorder %s27, 1
      %p71 = por %p69, %p70
      %p72 = scmp.ne.s32.totalorder %s61, %s62
      %p73 = scmp.eq.s32.totalorder %s27, 0
      %p74 = por %p72, %p73
      %p75 = scmp.ne.s32.totalorder %s61, %s62
      %p76 = scmp.eq.s32.totalorder %s28, 1
      %p77 = por %p75, %p76
      %p79 = scmp.ne.s32.totalorder %s62, %s78
      %p80 = scmp.eq.s32.totalorder %s28, 0
      %p81 = por %p79, %p80
      %s82 = ssub.s32 %s22, %s29
      %p83 = scmp.eq.s32.totalorder %s82, 0
      %s85 = sadd.s32 %s84, 1
      %s86 = scalar_select %p83, %s84, %s85
      %p89 = pneg %p83
      %p90 = scmp.eq.s32.totalorder %s22, 1
      %p91 = por %p89, %p90
      %p92 = scmp.ne.s32.totalorder %s84, %s87
      %p93 = scmp.eq.s32.totalorder %s22, 0
      %p94 = por %p92, %p93
      %p95 = scmp.ne.s32.totalorder %s84, %s87
      %p96 = scmp.eq.s32.totalorder %s27, 1
      %p97 = por %p95, %p96
      %p98 = scmp.ne.s32.totalorder %s87, %s88
      %p99 = scmp.eq.s32.totalorder %s27, 0
      %p100 = por %p98, %p99
      %p101 = scmp.ne.s32.totalorder %s87, %s88
      %p102 = scmp.eq.s32.totalorder %s28, 1
      %p103 = por %p101, %p102
      %p105 = scmp.ne.s32.totalorder %s88, %s104
      %p106 = scmp.eq.s32.totalorder %s28, 0
      %p107 = por %p105, %p106
      %s108 = ssub.s32 %s22, %s29
      %p109 = scmp.eq.s32.totalorder %s108, 0
      %s111 = sadd.s32 %s110, 1
      %s112 = scalar_select %p109, %s110, %s111
      %p115 = pneg %p109
      %p116 = scmp.eq.s32.totalorder %s22, 1
      %p117 = por %p115, %p116
      %p118 = scmp.ne.s32.totalorder %s110, %s113
      %p119 = scmp.eq.s32.totalorder %s22, 0
      %p120 = por %p118, %p119
      %p121 = scmp.ne.s32.totalorder %s110, %s113
      %p122 = scmp.eq.s32.totalorder %s27, 1
      %p123 = por %p121, %p122
      %p124 = scmp.ne.s32.totalorder %s113, %s114
      %p125 = scmp.eq.s32.totalorder %s27, 0
      %p126 = por %p124, %p125
      %p127 = scmp.ne.s32.totalorder %s113, %s114
      %p128 = scmp.eq.s32.totalorder %s28, 1
      %p129 = por %p127, %p128
      %p131 = scmp.ne.s32.totalorder %s114, %s130
      %p132 = scmp.eq.s32.totalorder %s28, 0
      %p133 = por %p131, %p132
      %s135 = sadd.s32 %s134, 1
      %p138 = scmp.eq.s32.totalorder %s22, 1
      %p139 = scmp.ne.s32.totalorder %s134, %s136
      %p140 = scmp.eq.s32.totalorder %s22, 0
      %p141 = por %p139, %p140
      %p142 = scmp.ne.s32.totalorder %s134, %s136
      %p143 = scmp.eq.s32.totalorder %s27, 1
      %p144 = por %p142, %p143
      %p145 = scmp.ne.s32.totalorder %s136, %s137
      %p146 = scmp.eq.s32.totalorder %s27, 0
      %p147 = por %p145, %p146
      %p148 = scmp.ne.s32.totalorder %s136, %s137
      %p149 = scmp.eq.s32.totalorder %s28, 1
      %p150 = por %p148, %p149
      %p152 = scmp.ne.s32.totalorder %s137, %s151
      %p153 = scmp.eq.s32.totalorder %s28, 0
      %p154 = por %p152, %p153
      %s156 = sadd.s32 %s155, 1
      %p159 = scmp.eq.s32.totalorder %s22, 1
      %p160 = scmp.ne.s32.totalorder %s155, %s157
      %p161 = scmp.eq.s32.totalorder %s22, 0
      %p162 = por %p160, %p161
      %p163 = scmp.ne.s32.totalorder %s155, %s157
      %p164 = scmp.eq.s32.totalorder %s27, 1
      %p165 = por %p163, %p164
      %p166 = scmp.ne.s32.totalorder %s157, %s158
      %p167 = scmp.eq.s32.totalorder %s27, 0
      %p168 = por %p166, %p167
      %p169 = scmp.ne.s32.totalorder %s157, %s158
      %p170 = scmp.eq.s32.totalorder %s28, 1
      %p171 = por %p169, %p170
      %p173 = scmp.ne.s32.totalorder %s158, %s172
      %p174 = scmp.eq.s32.totalorder %s28, 0
      %p175 = por %p173, %p174
      %s177 = sadd.s32 %s176, 1
      %p180 = scmp.eq.s32.totalorder %s22, 1
      %p181 = scmp.ne.s32.totalorder %s176, %s178
      %p182 = scmp.eq.s32.totalorder %s22, 0
      %p183 = por %p181, %p182
      %p184 = scmp.ne.s32.totalorder %s176, %s178
      %p185 = scmp.eq.s32.totalorder %s27, 1
      %p186 = por %p184, %p185
      %p187 = scmp.ne.s32.totalorder %s178, %s179
      %p188 = scmp.eq.s32.totalorder %s27, 0
      %p189 = por %p187, %p188
      %p190 = scmp.ne.s32.totalorder %s178, %s179
      %p191 = scmp.eq.s32.totalorder %s28, 1
      %p192 = por %p190, %p191
      %p194 = scmp.ne.s32.totalorder %s179, %s193
      %p195 = scmp.eq.s32.totalorder %s28, 0
      %p196 = por %p194, %p195
      %s198 = sadd.s32 %s197, 1
      %p201 = scmp.eq.s32.totalorder %s22, 1
      %p202 = scmp.ne.s32.totalorder %s197, %s199
      %p203 = scmp.eq.s32.totalorder %s22, 0
      %p204 = por %p202, %p203
      %p205 = scmp.ne.s32.totalorder %s197, %s199
      %p206 = scmp.eq.s32.totalorder %s27, 1
      %p207 = por %p205, %p206
      %p208 = scmp.ne.s32.totalorder %s199, %s200
      %p209 = scmp.eq.s32.totalorder %s27, 0
      %p210 = por %p208, %p209
      %p211 = scmp.ne.s32.totalorder %s199, %s200
      %p212 = scmp.eq.s32.totalorder %s28, 1
      %p213 = por %p211, %p212
      %p215 = scmp.ne.s32.totalorder %s200, %s214
      %p216 = scmp.eq.s32.totalorder %s28, 0
      %p217 = por %p215, %p216
      %s218 = ssub.s32 %s22, %s29
      %p219 = scmp.eq.s32.totalorder %s218, 0
      %s221 = sadd.s32 %s220, 1
      %s222 = scalar_select %p219, %s220, %s221
      %p225 = pneg %p219
      %p226 = scmp.eq.s32.totalorder %s22, 1
      %p227 = por %p225, %p226
      %p228 = scmp.ne.s32.totalorder %s220, %s223
      %p229 = scmp.eq.s32.totalorder %s22, 0
      %p230 = por %p228, %p229
      %p231 = scmp.ne.s32.totalorder %s220, %s223
      %p232 = scmp.eq.s32.totalorder %s27, 1
      %p233 = por %p231, %p232
      %p234 = scmp.ne.s32.totalorder %s223, %s224
      %p235 = scmp.eq.s32.totalorder %s27, 0
      %p236 = por %p234, %p235
      %p237 = scmp.ne.s32.totalorder %s223, %s224
      %p238 = scmp.eq.s32.totalorder %s28, 1
      %p239 = por %p237, %p238
      %p241 = scmp.ne.s32.totalorder %s224, %s240
      %p242 = scmp.eq.s32.totalorder %s28, 0
      %p243 = por %p241, %p242
      %s244 = ssub.s32 %s22, %s29
      %p245 = scmp.eq.s32.totalorder %s244, 0
      %s247 = sadd.s32 %s246, 1
      %s248 = scalar_select %p245, %s246, %s247
      %p251 = pneg %p245
      %p252 = scmp.eq.s32.totalorder %s22, 1
      %p253 = por %p251, %p252
      %p254 = scmp.ne.s32.totalorder %s246, %s249
      %p255 = scmp.eq.s32.totalorder %s22, 0
      %p256 = por %p254, %p255
      %p257 = scmp.ne.s32.totalorder %s246, %s249
      %p258 = scmp.eq.s32.totalorder %s27, 1
      %p259 = por %p257, %p258
      %p260 = scmp.ne.s32.totalorder %s249, %s250
      %p261 = scmp.eq.s32.totalorder %s27, 0
      %p262 = por %p260, %p261
      %p263 = scmp.ne.s32.totalorder %s249, %s250
      %p264 = scmp.eq.s32.totalorder %s28, 1
      %p265 = por %p263, %p264
      %p267 = scmp.ne.s32.totalorder %s250, %s266
      %p268 = scmp.eq.s32.totalorder %s28, 0
      %p269 = por %p267, %p268
      %p270 = scmp.le.s32.totalorder 1, %s22
      %p271 = scmp.lt.s32.totalorder %s22, 3
      %p272 = pnand %p270, %p271
      %p273 = pneg %p272
      // Predicated region
      $region9: #{tpu_custom_call.1} parent=5 // pred_check
        _
      $region10: #{tpu_custom_call.1} parent=5 // pred_check_branch
        %275 = sbr.rel (%p272) target = $region12
      $region11: #{tpu_custom_call.1} parent=5 // pred_region
        %s276 = ssub.s32 %s22, 1
        // Predicated region
        $region13: #{tpu_custom_call.1} parent=11 // pred_check
          %p277 = pneg %p147
        $region14: #{tpu_custom_call.1} parent=11 // pred_check_branch
          %279 = sbr.rel (%p277) target = $region16
        $region15: #{tpu_custom_call.1} parent=11 // pred_region
          _
        $region16: #{tpu_custom_call.1} parent=11 // pred_fallthru
          _
        // Predicated region
        $region17: #{tpu_custom_call.1} parent=11 // pred_check
          %p280 = pneg %p168
        $region18: #{tpu_custom_call.1} parent=11 // pred_check_branch
          %282 = sbr.rel (%p280) target = $region20
        $region19: #{tpu_custom_call.1} parent=11 // pred_region
          _
        $region20: #{tpu_custom_call.1} parent=11 // pred_fallthru
          _
        // Predicated region
        $region21: #{tpu_custom_call.1} parent=11 // pred_check
          %p283 = pneg %p189
        $region22: #{tpu_custom_call.1} parent=11 // pred_check_branch
          %285 = sbr.rel (%p283) target = $region24
        $region23: #{tpu_custom_call.1} parent=11 // pred_region
          _
        $region24: #{tpu_custom_call.1} parent=11 // pred_fallthru
          _
        // Predicated region
        $region25: #{tpu_custom_call.1} parent=11 // pred_check
          %p286 = pneg %p210
        $region26: #{tpu_custom_call.1} parent=11 // pred_check_branch
          %288 = sbr.rel (%p286) target = $region28
        $region27: #{tpu_custom_call.1} parent=11 // pred_region
          _
        $region28: #{tpu_custom_call.1} parent=11 // pred_fallthru
          _
      $region12: #{tpu_custom_call.1} parent=5 // pred_fallthru
        _
      %p289 = scmp.lt.s32.totalorder %s22, 2
      // Predicated region
      $region29: #{tpu_custom_call.1} parent=5 // pred_check
        %p290 = pneg %p289
      $region30: #{tpu_custom_call.1} parent=5 // pred_check_branch
        %292 = sbr.rel (%p290) target = $region32
      $region31: #{tpu_custom_call.1} parent=5 // pred_region
        // Predicated region
        $region33: #{tpu_custom_call.1} parent=31 // pred_check
          %p293 = pneg %p42
        $region34: #{tpu_custom_call.1} parent=31 // pred_check_branch
          %295 = sbr.rel (%p293) target = $region36
        $region35: #{tpu_custom_call.1} parent=31 // pred_region
          %p296 = scmp.lt.s32.totalorder %s22, 1
          %s297 = scalar_select %p296, %s22, 1
          %s298 = smul.addr %s297, 8
          %s299 = smul.addr %s298, 8
          %s300 = scalar_lea.vmem %s0, %s299
        $region36: #{tpu_custom_call.1} parent=31 // pred_fallthru
          _
        // Predicated region
        $region37: #{tpu_custom_call.1} parent=31 // pred_check
          %p301 = pneg %p68
        $region38: #{tpu_custom_call.1} parent=31 // pred_check_branch
          %303 = sbr.rel (%p301) target = $region40
        $region39: #{tpu_custom_call.1} parent=31 // pred_region
          %p304 = scmp.lt.s32.totalorder %s22, 1
          %s305 = scalar_select %p304, %s22, 1
          %s306 = smul.addr %s305, 8
          %s307 = smul.addr %s306, 8
          %s308 = scalar_lea.vmem %s1, %s307
        $region40: #{tpu_custom_call.1} parent=31 // pred_fallthru
          _
        // Predicated region
        $region41: #{tpu_custom_call.1} parent=31 // pred_check
          %p309 = pneg %p94
        $region42: #{tpu_custom_call.1} parent=31 // pred_check_branch
          %311 = sbr.rel (%p309) target = $region44
        $region43: #{tpu_custom_call.1} parent=31 // pred_region
          %p312 = scmp.lt.s32.totalorder %s22, 1
          %s313 = scalar_select %p312, %s22, 1
          %s314 = smul.addr %s313, 8
          %s315 = smul.addr %s314, 8
          %s316 = scalar_lea.vmem %s2, %s315
        $region44: #{tpu_custom_call.1} parent=31 // pred_fallthru
          _
        // Predicated region
        $region45: #{tpu_custom_call.1} parent=31 // pred_check
          %p317 = pneg %p120
        $region46: #{tpu_custom_call.1} parent=31 // pred_check_branch
          %319 = sbr.rel (%p317) target = $region48
        $region47: #{tpu_custom_call.1} parent=31 // pred_region
          %p320 = scmp.lt.s32.totalorder %s22, 1
          %s321 = scalar_select %p320, %s22, 1
          %s322 = smul.addr %s321, 2
          %s323 = smul.addr %s322, 8
          %s324 = scalar_lea.vmem %s3, %s323
        $region48: #{tpu_custom_call.1} parent=31 // pred_fallthru
          _
      $region32: #{tpu_custom_call.1} parent=5 // pred_fallthru
        _
      %p325 = scmp.le.s32.totalorder 1, %s22
      %p326 = scmp.lt.s32.totalorder %s22, 3
      %p327 = pnand %p325, %p326
      %p328 = pneg %p327
      // Predicated region
      $region49: #{tpu_custom_call.1} parent=5 // pred_check
        _
      $region50: #{tpu_custom_call.1} parent=5 // pred_check_branch
        %330 = sbr.rel (%p327) target = $region52
      $region51: #{tpu_custom_call.1} parent=5 // pred_region
        %s331 = ssub.s32 %s22, 1
        %p332 = scmp.lt.s32.totalorder %s27, 1
        %s333 = scalar_select %p332, %s27, 1
        %s334 = smul.addr %s333, 8
        %s335 = smul.addr %s334, 8
        %s336 = scalar_lea.vmem %s0, %s335
        %p337 = pneg %p48
        %p338 = pneg %p45
        %p339 = scmp.lt.s32.totalorder %s27, 1
        %s340 = scalar_select %p339, %s27, 1
        %s341 = smul.addr %s340, 8
        %s342 = smul.addr %s341, 8
        %s343 = scalar_lea.vmem %s1, %s342
        %p344 = pneg %p74
        %p345 = pneg %p71
        %p346 = scmp.lt.s32.totalorder %s27, 1
        %s347 = scalar_select %p346, %s27, 1
        %s348 = smul.addr %s347, 8
        %s349 = smul.addr %s348, 8
        %s350 = scalar_lea.vmem %s2, %s349
        %p351 = pneg %p100
        %p352 = pneg %p97
        %p353 = scmp.lt.s32.totalorder %s27, 1
        %s354 = scalar_select %p353, %s27, 1
        %s355 = smul.addr %s354, 2
        %s356 = smul.addr %s355, 8
        %s357 = scalar_lea.vmem %s3, %s356
        %p358 = pneg %p126
        %p359 = pneg %p123
        %p360 = pneg %p147
        %p361 = pneg %p144
        %p362 = pneg %p168
        %p363 = pneg %p165
        %p364 = pneg %p189
        %p365 = pneg %p186
        %p366 = pneg %p210
        %p367 = pneg %p207
        %p368 = pneg %p236
        %p369 = pneg %p233
        %s370 = sand.u32 %s223, 1
        %s371 = scalar_lea.sflag [#allocation3], %s370
        %s372 = sand.u32 %s223, 1
        %s373 = smul.addr %s372, 64
        %s374 = scalar_lea.vmem [#allocation2], %s373
        %p375 = pneg %p262
        %p376 = pneg %p259
        %s377 = sand.u32 %s249, 1
        %s378 = scalar_lea.sflag [#allocation5], %s377
        %s379 = sand.u32 %s249, 1
        %s380 = smul.addr %s379, 128
        %s381 = scalar_lea.vmem [#allocation4], %s380
        %p382 = scmp.lt.s32.totalorder %s27, 1
        %s383 = scalar_select %p382, %s27, 1
        %s384 = smul.addr %s383, 8
        %s385 = smul.addr %s384, 8
        %s386 = scalar_lea.vmem %s0, %s385
        %p387 = scmp.lt.s32.totalorder %s27, 1
        %s388 = scalar_select %p387, %s27, 1
        %s389 = smul.addr %s388, 8
        %s390 = smul.addr %s389, 8
        %s391 = scalar_lea.vmem %s1, %s390
        %p392 = scmp.lt.s32.totalorder %s27, 1
        %s393 = scalar_select %p392, %s27, 1
        %s394 = smul.addr %s393, 8
        %s395 = smul.addr %s394, 8
        %s396 = scalar_lea.vmem %s2, %s395
        %p397 = scmp.lt.s32.totalorder %s27, 1
        %s398 = scalar_select %p397, %s27, 1
        %s399 = smul.addr %s398, 2
        %s400 = smul.addr %s399, 8
        %s401 = scalar_lea.vmem %s3, %s400
        %v402 = vld [vmem:[%s386] sm:$0xff]
        %v403 = vld [vmem:[%s386 + $0x8] sm:$0xff]
        %v404 = vld [vmem:[%s386 + $0x10] sm:$0xff]
        %v405 = vld [vmem:[%s386 + $0x18] sm:$0xff]
        %v406 = vld [vmem:[%s386 + $0x20] sm:$0xff]
        %v407 = vld [vmem:[%s386 + $0x28] sm:$0xff]
        %v408 = vld [vmem:[%s386 + $0x30] sm:$0xff]
        %v409 = vld [vmem:[%s386 + $0x38] sm:$0xff]
        %v410 = vld [vmem:[%s391] sm:$0xff]
        %v411 = vld [vmem:[%s391 + $0x8] sm:$0xff]
        %v412 = vld [vmem:[%s391 + $0x10] sm:$0xff]
        %v413 = vld [vmem:[%s391 + $0x18] sm:$0xff]
        %v414 = vld [vmem:[%s391 + $0x20] sm:$0xff]
        %v415 = vld [vmem:[%s391 + $0x28] sm:$0xff]
        %v416 = vld [vmem:[%s391 + $0x30] sm:$0xff]
        %v417 = vld [vmem:[%s391 + $0x38] sm:$0xff]
        %v418 = vld [vmem:[%s396] sm:$0xff]
        %v419 = vld [vmem:[%s396 + $0x8] sm:$0xff]
        %v420 = vld [vmem:[%s396 + $0x10] sm:$0xff]
        %v421 = vld [vmem:[%s396 + $0x18] sm:$0xff]
        %v422 = vld [vmem:[%s396 + $0x20] sm:$0xff]
        %v423 = vld [vmem:[%s396 + $0x28] sm:$0xff]
        %v424 = vld [vmem:[%s396 + $0x30] sm:$0xff]
        %v425 = vld [vmem:[%s396 + $0x38] sm:$0xff]
        %v426 = vld [vmem:[%s401] sm:$0xff]
        %v427 = vld [vmem:[%s401 + $0x8] sm:$0xff]
        %vm428 = vcmp.ne.f32.partialorder %v426, 0.0
        %vm429 = vcmp.ne.f32.partialorder %v427, 0.0
        %v430 = vld [vmem:[%s4] sm:$0xff]
        %v431 = vld [vmem:[%s4 + $0x8] sm:$0xff]
        %v432 = vld [vmem:[%s4 + $0x10] sm:$0xff]
        %v433 = vld [vmem:[%s4 + $0x18] sm:$0xff]
        %v434 = vld [vmem:[%s4 + $0x20] sm:$0xff]
        %v435 = vld [vmem:[%s4 + $0x28] sm:$0xff]
        %v436 = vld [vmem:[%s4 + $0x30] sm:$0xff]
        %v437 = vld [vmem:[%s4 + $0x38] sm:$0xff]
        %v438 = vld [vmem:[%s4 + $0x40] sm:$0xff]
        %v439 = vld [vmem:[%s4 + $0x48] sm:$0xff]
        %v440 = vld [vmem:[%s4 + $0x50] sm:$0xff]
        %v441 = vld [vmem:[%s4 + $0x58] sm:$0xff]
        %v442 = vld [vmem:[%s4 + $0x60] sm:$0xff]
        %v443 = vld [vmem:[%s4 + $0x68] sm:$0xff]
        %v444 = vld [vmem:[%s4 + $0x70] sm:$0xff]
        %v445 = vld [vmem:[%s4 + $0x78] sm:$0xff]
        %v446 = vld [vmem:[%s4 + $0x80] sm:$0xff]
        %v447 = vld [vmem:[%s4 + $0x88] sm:$0xff]
        %v448 = vld [vmem:[%s4 + $0x90] sm:$0xff]
        %v449 = vld [vmem:[%s4 + $0x98] sm:$0xff]
        %v450 = vld [vmem:[%s4 + $0xa0] sm:$0xff]
        %v451 = vld [vmem:[%s4 + $0xa8] sm:$0xff]
        %v452 = vld [vmem:[%s4 + $0xb0] sm:$0xff]
        %v453 = vld [vmem:[%s4 + $0xb8] sm:$0xff]
        %v454 = vld [vmem:[%s4 + $0xc0] sm:$0xff]
        %v455 = vld [vmem:[%s4 + $0xc8] sm:$0xff]
        %v456 = vld [vmem:[%s4 + $0xd0] sm:$0xff]
        %v457 = vld [vmem:[%s4 + $0xd8] sm:$0xff]
        %v458 = vld [vmem:[%s4 + $0xe0] sm:$0xff]
        %v459 = vld [vmem:[%s4 + $0xe8] sm:$0xff]
        %v460 = vld [vmem:[%s4 + $0xf0] sm:$0xff]
        %v461 = vld [vmem:[%s4 + $0xf8] sm:$0xff]
        %v462 = vld [vmem:[%s4 + $0x100] sm:$0xff]
        %v463 = vld [vmem:[%s4 + $0x108] sm:$0xff]
        %v464 = vld [vmem:[%s4 + $0x110] sm:$0xff]
        %v465 = vld [vmem:[%s4 + $0x118] sm:$0xff]
        %v466 = vld [vmem:[%s4 + $0x120] sm:$0xff]
        %v467 = vld [vmem:[%s4 + $0x128] sm:$0xff]
        %v468 = vld [vmem:[%s4 + $0x130] sm:$0xff]
        %v469 = vld [vmem:[%s4 + $0x138] sm:$0xff]
        %v470 = vld [vmem:[%s4 + $0x140] sm:$0xff]
        %v471 = vld [vmem:[%s4 + $0x148] sm:$0xff]
        %v472 = vld [vmem:[%s4 + $0x150] sm:$0xff]
        %v473 = vld [vmem:[%s4 + $0x158] sm:$0xff]
        %v474 = vld [vmem:[%s4 + $0x160] sm:$0xff]
        %v475 = vld [vmem:[%s4 + $0x168] sm:$0xff]
        %v476 = vld [vmem:[%s4 + $0x170] sm:$0xff]
        %v477 = vld [vmem:[%s4 + $0x178] sm:$0xff]
        %v478 = vld [vmem:[%s4 + $0x180] sm:$0xff]
        %v479 = vld [vmem:[%s4 + $0x188] sm:$0xff]
        %v480 = vld [vmem:[%s4 + $0x190] sm:$0xff]
        %v481 = vld [vmem:[%s4 + $0x198] sm:$0xff]
        %v482 = vld [vmem:[%s4 + $0x1a0] sm:$0xff]
        %v483 = vld [vmem:[%s4 + $0x1a8] sm:$0xff]
        %v484 = vld [vmem:[%s4 + $0x1b0] sm:$0xff]
        %v485 = vld [vmem:[%s4 + $0x1b8] sm:$0xff]
        %v486 = vld [vmem:[%s4 + $0x1c0] sm:$0xff]
        %v487 = vld [vmem:[%s4 + $0x1c8] sm:$0xff]
        %v488 = vld [vmem:[%s4 + $0x1d0] sm:$0xff]
        %v489 = vld [vmem:[%s4 + $0x1d8] sm:$0xff]
        %v490 = vld [vmem:[%s4 + $0x1e0] sm:$0xff]
        %v491 = vld [vmem:[%s4 + $0x1e8] sm:$0xff]
        %v492 = vld [vmem:[%s4 + $0x1f0] sm:$0xff]
        %v493 = vld [vmem:[%s4 + $0x1f8] sm:$0xff]
        %494 = vmatprep.subr.mxu0 0.0
        %495 = vmatpush1.msra.mxu0 %v430
        %496 = vmatprep.subr.mxu0 0.0
        %497 = vmatpush1.msra.mxu0 %v431
        %498 = vmatprep.subr.mxu0 0.0
        %499 = vmatpush1.msra.mxu0 %v432
        %500 = vmatprep.subr.mxu0 0.0
        %501 = vmatpush1.msra.mxu0 %v433
        %502 = vmatprep.subr.mxu0 0.0
        %503 = vmatpush1.msra.mxu0 %v434
        %504 = vmatprep.subr.mxu0 0.0
        %505 = vmatpush1.msra.mxu0 %v435
        %506 = vmatprep.subr.mxu0 0.0
        %507 = vmatpush1.msra.mxu0 %v436
        %508 = vmatprep.subr.mxu0 0.0
        %509 = vmatpush1.msra.mxu0 %v437
        %510 = vmatprep.subr.mxu0 0.0
        %511 = vmatpush1.msra.mxu0 %v438
        %512 = vmatprep.subr.mxu0 0.0
        %513 = vmatpush1.msra.mxu0 %v439
        %514 = vmatprep.subr.mxu0 0.0
        %515 = vmatpush1.msra.mxu0 %v440
        %516 = vmatprep.subr.mxu0 0.0
        %517 = vmatpush1.msra.mxu0 %v441
        %518 = vmatprep.subr.mxu0 0.0
        %519 = vmatpush1.msra.mxu0 %v442
        %520 = vmatprep.subr.mxu0 0.0
        %521 = vmatpush1.msra.mxu0 %v443
        %522 = vmatprep.subr.mxu0 0.0
        %523 = vmatpush1.msra.mxu0 %v444
        %524 = vmatprep.subr.mxu0 0.0
        %525 = vmatpush1.msra.mxu0 %v445
        %526 = vmatprep.subr.mxu0 0.0
        %527 = vmatpush1.msra.mxu0 %v446
        %528 = vmatprep.subr.mxu0 0.0
        %529 = vmatpush1.msra.mxu0 %v447
        %530 = vmatprep.subr.mxu0 0.0
        %531 = vmatpush1.msra.mxu0 %v448
        %532 = vmatprep.subr.mxu0 0.0
        %533 = vmatpush1.msra.mxu0 %v449
        %534 = vmatprep.subr.mxu0 0.0
        %535 = vmatpush1.msra.mxu0 %v450
        %536 = vmatprep.subr.mxu0 0.0
        %537 = vmatpush1.msra.mxu0 %v451
        %538 = vmatprep.subr.mxu0 0.0
        %539 = vmatpush1.msra.mxu0 %v452
        %540 = vmatprep.subr.mxu0 0.0
        %541 = vmatpush1.msra.mxu0 %v453
        %542 = vmatprep.subr.mxu0 0.0
        %543 = vmatpush1.msra.mxu0 %v454
        %544 = vmatprep.subr.mxu0 0.0
        %545 = vmatpush1.msra.mxu0 %v455
        %546 = vmatprep.subr.mxu0 0.0
        %547 = vmatpush1.msra.mxu0 %v456
        %548 = vmatprep.subr.mxu0 0.0
        %549 = vmatpush1.msra.mxu0 %v457
        %550 = vmatprep.subr.mxu0 0.0
        %551 = vmatpush1.msra.mxu0 %v458
        %552 = vmatprep.subr.mxu0 0.0
        %553 = vmatpush1.msra.mxu0 %v459
        %554 = vmatprep.subr.mxu0 0.0
        %555 = vmatpush1.msra.mxu0 %v460
        %556 = vmatprep.subr.mxu0 0.0
        %557 = vmatpush1.msra.mxu0 %v461
        %558 = vmatprep.mubr.f32.mxu0 %v403
        %559 = vmatmul.mubr.f32.gmra.mrb[0].mxu0 %v402
        %v560 = vpop.f32.mrb[0].mxu0
        %v561 = vadd.f32 0.0, %v560
        %v562 = vpop.f32.mrb[0].mxu0
        %563 = vmatprep.mubr.f32.mxu0 %v407
        %564 = vmatmul.mubr.f32.gmra.mrb[0].mxu0 %v406
        %v565 = vpop.f32.mrb[0].mxu0
        %v566 = vadd.f32 0.0, %v565
        %v567 = vpop.f32.mrb[0].mxu0
        %568 = vdwg.mxu0
        %569 = vmatprep.subr.mxu0 0.0
        %570 = vmatpush1.msra.mxu0 %v462
        %571 = vmatprep.subr.mxu0 0.0
        %572 = vmatpush1.msra.mxu0 %v463
        %573 = vmatprep.subr.mxu0 0.0
        %574 = vmatpush1.msra.mxu0 %v464
        %575 = vmatprep.subr.mxu0 0.0
        %576 = vmatpush1.msra.mxu0 %v465
        %577 = vmatprep.subr.mxu0 0.0
        %578 = vmatpush1.msra.mxu0 %v466
        %579 = vmatprep.subr.mxu0 0.0
        %580 = vmatpush1.msra.mxu0 %v467
        %581 = vmatprep.subr.mxu0 0.0
        %582 = vmatpush1.msra.mxu0 %v468
        %583 = vmatprep.subr.mxu0 0.0
        %584 = vmatpush1.msra.mxu0 %v469
        %585 = vmatprep.subr.mxu0 0.0
        %586 = vmatpush1.msra.mxu0 %v470
        %587 = vmatprep.subr.mxu0 0.0
        %588 = vmatpush1.msra.mxu0 %v471
        %589 = vmatprep.subr.mxu0 0.0
        %590 = vmatpush1.msra.mxu0 %v472
        %591 = vmatprep.subr.mxu0 0.0
        %592 = vmatpush1.msra.mxu0 %v473
        %593 = vmatprep.subr.mxu0 0.0
        %594 = vmatpush1.msra.mxu0 %v474
        %595 = vmatprep.subr.mxu0 0.0
        %596 = vmatpush1.msra.mxu0 %v475
        %597 = vmatprep.subr.mxu0 0.0
        %598 = vmatpush1.msra.mxu0 %v476
        %599 = vmatprep.subr.mxu0 0.0
        %600 = vmatpush1.msra.mxu0 %v477
        %601 = vmatprep.subr.mxu0 0.0
        %602 = vmatpush1.msra.mxu0 %v478
        %603 = vmatprep.subr.mxu0 0.0
        %604 = vmatpush1.msra.mxu0 %v479
        %605 = vmatprep.subr.mxu0 0.0
        %606 = vmatpush1.msra.mxu0 %v480
        %607 = vmatprep.subr.mxu0 0.0
        %608 = vmatpush1.msra.mxu0 %v481
        %609 = vmatprep.subr.mxu0 0.0
        %610 = vmatpush1.msra.mxu0 %v482
        %611 = vmatprep.subr.mxu0 0.0
        %612 = vmatpush1.msra.mxu0 %v483
        %613 = vmatprep.subr.mxu0 0.0
        %614 = vmatpush1.msra.mxu0 %v484
        %615 = vmatprep.subr.mxu0 0.0
        %616 = vmatpush1.msra.mxu0 %v485
        %617 = vmatprep.subr.mxu0 0.0
        %618 = vmatpush1.msra.mxu0 %v486
        %619 = vmatprep.subr.mxu0 0.0
        %620 = vmatpush1.msra.mxu0 %v487
        %621 = vmatprep.subr.mxu0 0.0
        %622 = vmatpush1.msra.mxu0 %v488
        %623 = vmatprep.subr.mxu0 0.0
        %624 = vmatpush1.msra.mxu0 %v489
        %625 = vmatprep.subr.mxu0 0.0
        %626 = vmatpush1.msra.mxu0 %v490
        %627 = vmatprep.subr.mxu0 0.0
        %628 = vmatpush1.msra.mxu0 %v491
        %629 = vmatprep.subr.mxu0 0.0
        %630 = vmatpush1.msra.mxu0 %v492
        %631 = vmatprep.subr.mxu0 0.0
        %632 = vmatpush1.msra.mxu0 %v493
        %633 = vmatprep.mubr.f32.mxu0 %v405
        %634 = vmatmul.mubr.f32.gmra.mrb[0].mxu0 %v404
        %v635 = vpop.f32.mrb[0].mxu0
        %v636 = vadd.f32 %v561, %v635
        %v637 = vpop.f32.mrb[0].mxu0
        %638 = vmatprep.mubr.f32.mxu0 %v409
        %639 = vmatmul.mubr.f32.gmra.mrb[0].mxu0 %v408
        %v640 = vpop.f32.mrb[0].mxu0
        %v641 = vadd.f32 %v566, %v640
        %v642 = vpop.f32.mrb[0].mxu0
        %643 = vdwg.mxu0
        %v644 = vld [vmem:[%s5] sm:$0xff]
        %v645 = vld [vmem:[%s5 + $0x8] sm:$0xff]
        %v646 = vld [vmem:[%s5 + $0x10] sm:$0xff]
        %v647 = vld [vmem:[%s5 + $0x18] sm:$0xff]
        %v648 = vld [vmem:[%s5 + $0x20] sm:$0xff]
        %v649 = vld [vmem:[%s5 + $0x28] sm:$0xff]
        %v650 = vld [vmem:[%s5 + $0x30] sm:$0xff]
        %v651 = vld [vmem:[%s5 + $0x38] sm:$0xff]
        %v652 = vld [vmem:[%s5 + $0x40] sm:$0xff]
        %v653 = vld [vmem:[%s5 + $0x48] sm:$0xff]
        %v654 = vld [vmem:[%s5 + $0x50] sm:$0xff]
        %v655 = vld [vmem:[%s5 + $0x58] sm:$0xff]
        %v656 = vld [vmem:[%s5 + $0x60] sm:$0xff]
        %v657 = vld [vmem:[%s5 + $0x68] sm:$0xff]
        %v658 = vld [vmem:[%s5 + $0x70] sm:$0xff]
        %v659 = vld [vmem:[%s5 + $0x78] sm:$0xff]
        %v660 = vld [vmem:[%s5 + $0x80] sm:$0xff]
        %v661 = vld [vmem:[%s5 + $0x88] sm:$0xff]
        %v662 = vld [vmem:[%s5 + $0x90] sm:$0xff]
        %v663 = vld [vmem:[%s5 + $0x98] sm:$0xff]
        %v664 = vld [vmem:[%s5 + $0xa0] sm:$0xff]
        %v665 = vld [vmem:[%s5 + $0xa8] sm:$0xff]
        %v666 = vld [vmem:[%s5 + $0xb0] sm:$0xff]
        %v667 = vld [vmem:[%s5 + $0xb8] sm:$0xff]
        %v668 = vld [vmem:[%s5 + $0xc0] sm:$0xff]
        %v669 = vld [vmem:[%s5 + $0xc8] sm:$0xff]
        %v670 = vld [vmem:[%s5 + $0xd0] sm:$0xff]
        %v671 = vld [vmem:[%s5 + $0xd8] sm:$0xff]
        %v672 = vld [vmem:[%s5 + $0xe0] sm:$0xff]
        %v673 = vld [vmem:[%s5 + $0xe8] sm:$0xff]
        %v674 = vld [vmem:[%s5 + $0xf0] sm:$0xff]
        %v675 = vld [vmem:[%s5 + $0xf8] sm:$0xff]
        %v676 = vld [vmem:[%s5 + $0x100] sm:$0xff]
        %v677 = vld [vmem:[%s5 + $0x108] sm:$0xff]
        %v678 = vld [vmem:[%s5 + $0x110] sm:$0xff]
        %v679 = vld [vmem:[%s5 + $0x118] sm:$0xff]
        %v680 = vld [vmem:[%s5 + $0x120] sm:$0xff]
        %v681 = vld [vmem:[%s5 + $0x128] sm:$0xff]
        %v682 = vld [vmem:[%s5 + $0x130] sm:$0xff]
        %v683 = vld [vmem:[%s5 + $0x138] sm:$0xff]
        %v684 = vld [vmem:[%s5 + $0x140] sm:$0xff]
        %v685 = vld [vmem:[%s5 + $0x148] sm:$0xff]
        %v686 = vld [vmem:[%s5 + $0x150] sm:$0xff]
        %v687 = vld [vmem:[%s5 + $0x158] sm:$0xff]
        %v688 = vld [vmem:[%s5 + $0x160] sm:$0xff]
        %v689 = vld [vmem:[%s5 + $0x168] sm:$0xff]
        %v690 = vld [vmem:[%s5 + $0x170] sm:$0xff]
        %v691 = vld [vmem:[%s5 + $0x178] sm:$0xff]
        %v692 = vld [vmem:[%s5 + $0x180] sm:$0xff]
        %v693 = vld [vmem:[%s5 + $0x188] sm:$0xff]
        %v694 = vld [vmem:[%s5 + $0x190] sm:$0xff]
        %v695 = vld [vmem:[%s5 + $0x198] sm:$0xff]
        %v696 = vld [vmem:[%s5 + $0x1a0] sm:$0xff]
        %v697 = vld [vmem:[%s5 + $0x1a8] sm:$0xff]
        %v698 = vld [vmem:[%s5 + $0x1b0] sm:$0xff]
        %v699 = vld [vmem:[%s5 + $0x1b8] sm:$0xff]
        %v700 = vld [vmem:[%s5 + $0x1c0] sm:$0xff]
        %v701 = vld [vmem:[%s5 + $0x1c8] sm:$0xff]
        %v702 = vld [vmem:[%s5 + $0x1d0] sm:$0xff]
        %v703 = vld [vmem:[%s5 + $0x1d8] sm:$0xff]
        %v704 = vld [vmem:[%s5 + $0x1e0] sm:$0xff]
        %v705 = vld [vmem:[%s5 + $0x1e8] sm:$0xff]
        %v706 = vld [vmem:[%s5 + $0x1f0] sm:$0xff]
        %v707 = vld [vmem:[%s5 + $0x1f8] sm:$0xff]
        %708 = vmatprep.subr.mxu0 0.0
        %709 = vmatpush1.msra.mxu0 %v644
        %710 = vmatprep.subr.mxu0 0.0
        %711 = vmatpush1.msra.mxu0 %v645
        %712 = vmatprep.subr.mxu0 0.0
        %713 = vmatpush1.msra.mxu0 %v646
        %714 = vmatprep.subr.mxu0 0.0
        %715 = vmatpush1.msra.mxu0 %v647
        %716 = vmatprep.subr.mxu0 0.0
        %717 = vmatpush1.msra.mxu0 %v648
        %718 = vmatprep.subr.mxu0 0.0
        %719 = vmatpush1.msra.mxu0 %v649
        %720 = vmatprep.subr.mxu0 0.0
        %721 = vmatpush1.msra.mxu0 %v650
        %722 = vmatprep.subr.mxu0 0.0
        %723 = vmatpush1.msra.mxu0 %v651
        %724 = vmatprep.subr.mxu0 0.0
        %725 = vmatpush1.msra.mxu0 %v652
        %726 = vmatprep.subr.mxu0 0.0
        %727 = vmatpush1.msra.mxu0 %v653
        %728 = vmatprep.subr.mxu0 0.0
        %729 = vmatpush1.msra.mxu0 %v654
        %730 = vmatprep.subr.mxu0 0.0
        %731 = vmatpush1.msra.mxu0 %v655
        %732 = vmatprep.subr.mxu0 0.0
        %733 = vmatpush1.msra.mxu0 %v656
        %734 = vmatprep.subr.mxu0 0.0
        %735 = vmatpush1.msra.mxu0 %v657
        %736 = vmatprep.subr.mxu0 0.0
        %737 = vmatpush1.msra.mxu0 %v658
        %738 = vmatprep.subr.mxu0 0.0
        %739 = vmatpush1.msra.mxu0 %v659
        %740 = vmatprep.subr.mxu0 0.0
        %741 = vmatpush1.msra.mxu0 %v660
        %742 = vmatprep.subr.mxu0 0.0
        %743 = vmatpush1.msra.mxu0 %v661
        %744 = vmatprep.subr.mxu0 0.0
        %745 = vmatpush1.msra.mxu0 %v662
        %746 = vmatprep.subr.mxu0 0.0
        %747 = vmatpush1.msra.mxu0 %v663
        %748 = vmatprep.subr.mxu0 0.0
        %749 = vmatpush1.msra.mxu0 %v664
        %750 = vmatprep.subr.mxu0 0.0
        %751 = vmatpush1.msra.mxu0 %v665
        %752 = vmatprep.subr.mxu0 0.0
        %753 = vmatpush1.msra.mxu0 %v666
        %754 = vmatprep.subr.mxu0 0.0
        %755 = vmatpush1.msra.mxu0 %v667
        %756 = vmatprep.subr.mxu0 0.0
        %757 = vmatpush1.msra.mxu0 %v668
        %758 = vmatprep.subr.mxu0 0.0
        %759 = vmatpush1.msra.mxu0 %v669
        %760 = vmatprep.subr.mxu0 0.0
        %761 = vmatpush1.msra.mxu0 %v670
        %762 = vmatprep.subr.mxu0 0.0
        %763 = vmatpush1.msra.mxu0 %v671
        %764 = vmatprep.subr.mxu0 0.0
        %765 = vmatpush1.msra.mxu0 %v672
        %766 = vmatprep.subr.mxu0 0.0
        %767 = vmatpush1.msra.mxu0 %v673
        %768 = vmatprep.subr.mxu0 0.0
        %769 = vmatpush1.msra.mxu0 %v674
        %770 = vmatprep.subr.mxu0 0.0
        %771 = vmatpush1.msra.mxu0 %v675
        %772 = vmatprep.mubr.f32.mxu0 %v411
        %773 = vmatmul.mubr.f32.gmra.mrb[0].mxu0 %v410
        %v774 = vpop.f32.mrb[0].mxu0
        %v775 = vadd.f32 0.0, %v774
        %v776 = vpop.f32.mrb[0].mxu0
        %777 = vmatprep.mubr.f32.mxu0 %v415
        %778 = vmatmul.mubr.f32.gmra.mrb[0].mxu0 %v414
        %v779 = vpop.f32.mrb[0].mxu0
        %v780 = vadd.f32 0.0, %v779
        %v781 = vpop.f32.mrb[0].mxu0
        %782 = vdwg.mxu0
        %783 = vmatprep.subr.mxu0 0.0
        %784 = vmatpush1.msra.mxu0 %v676
        %785 = vmatprep.subr.mxu0 0.0
        %786 = vmatpush1.msra.mxu0 %v677
        %787 = vmatprep.subr.mxu0 0.0
        %788 = vmatpush1.msra.mxu0 %v678
        %789 = vmatprep.subr.mxu0 0.0
        %790 = vmatpush1.msra.mxu0 %v679
        %791 = vmatprep.subr.mxu0 0.0
        %792 = vmatpush1.msra.mxu0 %v680
        %793 = vmatprep.subr.mxu0 0.0
        %794 = vmatpush1.msra.mxu0 %v681
        %795 = vmatprep.subr.mxu0 0.0
        %796 = vmatpush1.msra.mxu0 %v682
        %797 = vmatprep.subr.mxu0 0.0
        %798 = vmatpush1.msra.mxu0 %v683
        %799 = vmatprep.subr.mxu0 0.0
        %800 = vmatpush1.msra.mxu0 %v684
        %801 = vmatprep.subr.mxu0 0.0
        %802 = vmatpush1.msra.mxu0 %v685
        %803 = vmatprep.subr.mxu0 0.0
        %804 = vmatpush1.msra.mxu0 %v686
        %805 = vmatprep.subr.mxu0 0.0
        %806 = vmatpush1.msra.mxu0 %v687
        %807 = vmatprep.subr.mxu0 0.0
        %808 = vmatpush1.msra.mxu0 %v688
        %809 = vmatprep.subr.mxu0 0.0
        %810 = vmatpush1.msra.mxu0 %v689
        %811 = vmatprep.subr.mxu0 0.0
        %812 = vmatpush1.msra.mxu0 %v690
        %813 = vmatprep.subr.mxu0 0.0
        %814 = vmatpush1.msra.mxu0 %v691
        %815 = vmatprep.subr.mxu0 0.0
        %816 = vmatpush1.msra.mxu0 %v692
        %817 = vmatprep.subr.mxu0 0.0
        %818 = vmatpush1.msra.mxu0 %v693
        %819 = vmatprep.subr.mxu0 0.0
        %820 = vmatpush1.msra.mxu0 %v694
        %821 = vmatprep.subr.mxu0 0.0
        %822 = vmatpush1.msra.mxu0 %v695
        %823 = vmatprep.subr.mxu0 0.0
        %824 = vmatpush1.msra.mxu0 %v696
        %825 = vmatprep.subr.mxu0 0.0
        %826 = vmatpush1.msra.mxu0 %v697
        %827 = vmatprep.subr.mxu0 0.0
        %828 = vmatpush1.msra.mxu0 %v698
        %829 = vmatprep.subr.mxu0 0.0
        %830 = vmatpush1.msra.mxu0 %v699
        %831 = vmatprep.subr.mxu0 0.0
        %832 = vmatpush1.msra.mxu0 %v700
        %833 = vmatprep.subr.mxu0 0.0
        %834 = vmatpush1.msra.mxu0 %v701
        %835 = vmatprep.subr.mxu0 0.0
        %836 = vmatpush1.msra.mxu0 %v702
        %837 = vmatprep.subr.mxu0 0.0
        %838 = vmatpush1.msra.mxu0 %v703
        %839 = vmatprep.subr.mxu0 0.0
        %840 = vmatpush1.msra.mxu0 %v704
        %841 = vmatprep.subr.mxu0 0.0
        %842 = vmatpush1.msra.mxu0 %v705
        %843 = vmatprep.subr.mxu0 0.0
        %844 = vmatpush1.msra.mxu0 %v706
        %845 = vmatprep.subr.mxu0 0.0
        %846 = vmatpush1.msra.mxu0 %v707
        %847 = vmatprep.mubr.f32.mxu0 %v413
        %848 = vmatmul.mubr.f32.gmra.mrb[0].mxu0 %v412
        %v849 = vpop.f32.mrb[0].mxu0
        %v850 = vadd.f32 %v775, %v849
        %v851 = vpop.f32.mrb[0].mxu0
        %852 = vmatprep.mubr.f32.mxu0 %v417
        %853 = vmatmul.mubr.f32.gmra.mrb[0].mxu0 %v416
        %v854 = vpop.f32.mrb[0].mxu0
        %v855 = vadd.f32 %v780, %v854
        %v856 = vpop.f32.mrb[0].mxu0
        %857 = vdwg.mxu0
        %v858 = vld [vmem:[%s6] sm:$0xff]
        %v859 = vld [vmem:[%s6 + $0x8] sm:$0xff]
        %v860 = vld [vmem:[%s6 + $0x10] sm:$0xff]
        %v861 = vld [vmem:[%s6 + $0x18] sm:$0xff]
        %v862 = vld [vmem:[%s6 + $0x20] sm:$0xff]
        %v863 = vld [vmem:[%s6 + $0x28] sm:$0xff]
        %v864 = vld [vmem:[%s6 + $0x30] sm:$0xff]
        %v865 = vld [vmem:[%s6 + $0x38] sm:$0xff]
        %v866 = vld [vmem:[%s6 + $0x40] sm:$0xff]
        %v867 = vld [vmem:[%s6 + $0x48] sm:$0xff]
        %v868 = vld [vmem:[%s6 + $0x50] sm:$0xff]
        %v869 = vld [vmem:[%s6 + $0x58] sm:$0xff]
        %v870 = vld [vmem:[%s6 + $0x60] sm:$0xff]
        %v871 = vld [vmem:[%s6 + $0x68] sm:$0xff]
        %v872 = vld [vmem:[%s6 + $0x70] sm:$0xff]
        %v873 = vld [vmem:[%s6 + $0x78] sm:$0xff]
        %v874 = vld [vmem:[%s6 + $0x80] sm:$0xff]
        %v875 = vld [vmem:[%s6 + $0x88] sm:$0xff]
        %v876 = vld [vmem:[%s6 + $0x90] sm:$0xff]
        %v877 = vld [vmem:[%s6 + $0x98] sm:$0xff]
        %v878 = vld [vmem:[%s6 + $0xa0] sm:$0xff]
        %v879 = vld [vmem:[%s6 + $0xa8] sm:$0xff]
        %v880 = vld [vmem:[%s6 + $0xb0] sm:$0xff]
        %v881 = vld [vmem:[%s6 + $0xb8] sm:$0xff]
        %v882 = vld [vmem:[%s6 + $0xc0] sm:$0xff]
        %v883 = vld [vmem:[%s6 + $0xc8] sm:$0xff]
        %v884 = vld [vmem:[%s6 + $0xd0] sm:$0xff]
        %v885 = vld [vmem:[%s6 + $0xd8] sm:$0xff]
        %v886 = vld [vmem:[%s6 + $0xe0] sm:$0xff]
        %v887 = vld [vmem:[%s6 + $0xe8] sm:$0xff]
        %v888 = vld [vmem:[%s6 + $0xf0] sm:$0xff]
        %v889 = vld [vmem:[%s6 + $0xf8] sm:$0xff]
        %v890 = vld [vmem:[%s6 + $0x100] sm:$0xff]
        %v891 = vld [vmem:[%s6 + $0x108] sm:$0xff]
        %v892 = vld [vmem:[%s6 + $0x110] sm:$0xff]
        %v893 = vld [vmem:[%s6 + $0x118] sm:$0xff]
        %v894 = vld [vmem:[%s6 + $0x120] sm:$0xff]
        %v895 = vld [vmem:[%s6 + $0x128] sm:$0xff]
        %v896 = vld [vmem:[%s6 + $0x130] sm:$0xff]
        %v897 = vld [vmem:[%s6 + $0x138] sm:$0xff]
        %v898 = vld [vmem:[%s6 + $0x140] sm:$0xff]
        %v899 = vld [vmem:[%s6 + $0x148] sm:$0xff]
        %v900 = vld [vmem:[%s6 + $0x150] sm:$0xff]
        %v901 = vld [vmem:[%s6 + $0x158] sm:$0xff]
        %v902 = vld [vmem:[%s6 + $0x160] sm:$0xff]
        %v903 = vld [vmem:[%s6 + $0x168] sm:$0xff]
        %v904 = vld [vmem:[%s6 + $0x170] sm:$0xff]
        %v905 = vld [vmem:[%s6 + $0x178] sm:$0xff]
        %v906 = vld [vmem:[%s6 + $0x180] sm:$0xff]
        %v907 = vld [vmem:[%s6 + $0x188] sm:$0xff]
        %v908 = vld [vmem:[%s6 + $0x190] sm:$0xff]
        %v909 = vld [vmem:[%s6 + $0x198] sm:$0xff]
        %v910 = vld [vmem:[%s6 + $0x1a0] sm:$0xff]
        %v911 = vld [vmem:[%s6 + $0x1a8] sm:$0xff]
        %v912 = vld [vmem:[%s6 + $0x1b0] sm:$0xff]
        %v913 = vld [vmem:[%s6 + $0x1b8] sm:$0xff]
        %v914 = vld [vmem:[%s6 + $0x1c0] sm:$0xff]
        %v915 = vld [vmem:[%s6 + $0x1c8] sm:$0xff]
        %v916 = vld [vmem:[%s6 + $0x1d0] sm:$0xff]
        %v917 = vld [vmem:[%s6 + $0x1d8] sm:$0xff]
        %v918 = vld [vmem:[%s6 + $0x1e0] sm:$0xff]
        %v919 = vld [vmem:[%s6 + $0x1e8] sm:$0xff]
        %v920 = vld [vmem:[%s6 + $0x1f0] sm:$0xff]
        %v921 = vld [vmem:[%s6 + $0x1f8] sm:$0xff]
        %922 = vmatprep.subr.mxu0 0.0
        %923 = vmatpush1.msra.mxu0 %v858
        %924 = vmatprep.subr.mxu0 0.0
        %925 = vmatpush1.msra.mxu0 %v859
        %926 = vmatprep.subr.mxu0 0.0
        %927 = vmatpush1.msra.mxu0 %v860
        %928 = vmatprep.subr.mxu0 0.0
        %929 = vmatpush1.msra.mxu0 %v861
        %930 = vmatprep.subr.mxu0 0.0
        %931 = vmatpush1.msra.mxu0 %v862
        %932 = vmatprep.subr.mxu0 0.0
        %933 = vmatpush1.msra.mxu0 %v863
        %934 = vmatprep.subr.mxu0 0.0
        %935 = vmatpush1.msra.mxu0 %v864
        %936 = vmatprep.subr.mxu0 0.0
        %937 = vmatpush1.msra.mxu0 %v865
        %938 = vmatprep.subr.mxu0 0.0
        %939 = vmatpush1.msra.mxu0 %v866
        %940 = vmatprep.subr.mxu0 0.0
        %941 = vmatpush1.msra.mxu0 %v867
        %942 = vmatprep.subr.mxu0 0.0
        %943 = vmatpush1.msra.mxu0 %v868
        %944 = vmatprep.subr.mxu0 0.0
        %945 = vmatpush1.msra.mxu0 %v869
        %946 = vmatprep.subr.mxu0 0.0
        %947 = vmatpush1.msra.mxu0 %v870
        %948 = vmatprep.subr.mxu0 0.0
        %949 = vmatpush1.msra.mxu0 %v871
        %950 = vmatprep.subr.mxu0 0.0
        %951 = vmatpush1.msra.mxu0 %v872
        %952 = vmatprep.subr.mxu0 0.0
        %953 = vmatpush1.msra.mxu0 %v873
        %954 = vmatprep.subr.mxu0 0.0
        %955 = vmatpush1.msra.mxu0 %v874
        %956 = vmatprep.subr.mxu0 0.0
        %957 = vmatpush1.msra.mxu0 %v875
        %958 = vmatprep.subr.mxu0 0.0
        %959 = vmatpush1.msra.mxu0 %v876
        %960 = vmatprep.subr.mxu0 0.0
        %961 = vmatpush1.msra.mxu0 %v877
        %962 = vmatprep.subr.mxu0 0.0
        %963 = vmatpush1.msra.mxu0 %v878
        %964 = vmatprep.subr.mxu0 0.0
        %965 = vmatpush1.msra.mxu0 %v879
        %966 = vmatprep.subr.mxu0 0.0
        %967 = vmatpush1.msra.mxu0 %v880
        %968 = vmatprep.subr.mxu0 0.0
        %969 = vmatpush1.msra.mxu0 %v881
        %970 = vmatprep.subr.mxu0 0.0
        %971 = vmatpush1.msra.mxu0 %v882
        %972 = vmatprep.subr.mxu0 0.0
        %973 = vmatpush1.msra.mxu0 %v883
        %974 = vmatprep.subr.mxu0 0.0
        %975 = vmatpush1.msra.mxu0 %v884
        %976 = vmatprep.subr.mxu0 0.0
        %977 = vmatpush1.msra.mxu0 %v885
        %978 = vmatprep.subr.mxu0 0.0
        %979 = vmatpush1.msra.mxu0 %v886
        %980 = vmatprep.subr.mxu0 0.0
        %981 = vmatpush1.msra.mxu0 %v887
        %982 = vmatprep.subr.mxu0 0.0
        %983 = vmatpush1.msra.mxu0 %v888
        %984 = vmatprep.subr.mxu0 0.0
        %985 = vmatpush1.msra.mxu0 %v889
        %986 = vmatprep.mubr.f32.mxu0 %v419
        %987 = vmatmul.mubr.f32.gmra.mrb[0].mxu0 %v418
        %v988 = vpop.f32.mrb[0].mxu0
        %v989 = vadd.f32 0.0, %v988
        %v990 = vpop.f32.mrb[0].mxu0
        %991 = vmatprep.mubr.f32.mxu0 %v423
        %992 = vmatmul.mubr.f32.gmra.mrb[0].mxu0 %v422
        %v993 = vpop.f32.mrb[0].mxu0
        %v994 = vadd.f32 0.0, %v993
        %v995 = vpop.f32.mrb[0].mxu0
        %996 = vdwg.mxu0
        %997 = vmatprep.subr.mxu0 0.0
        %998 = vmatpush1.msra.mxu0 %v890
        %999 = vmatprep.subr.mxu0 0.0
        %1000 = vmatpush1.msra.mxu0 %v891
        %1001 = vmatprep.subr.mxu0 0.0
        %1002 = vmatpush1.msra.mxu0 %v892
        %1003 = vmatprep.subr.mxu0 0.0
        %1004 = vmatpush1.msra.mxu0 %v893
        %1005 = vmatprep.subr.mxu0 0.0
        %1006 = vmatpush1.msra.mxu0 %v894
        %1007 = vmatprep.subr.mxu0 0.0
        %1008 = vmatpush1.msra.mxu0 %v895
        %1009 = vmatprep.subr.mxu0 0.0
        %1010 = vmatpush1.msra.mxu0 %v896
        %1011 = vmatprep.subr.mxu0 0.0
        %1012 = vmatpush1.msra.mxu0 %v897
        %1013 = vmatprep.subr.mxu0 0.0
        %1014 = vmatpush1.msra.mxu0 %v898
        %1015 = vmatprep.subr.mxu0 0.0
        %1016 = vmatpush1.msra.mxu0 %v899
        %1017 = vmatprep.subr.mxu0 0.0
        %1018 = vmatpush1.msra.mxu0 %v900
        %1019 = vmatprep.subr.mxu0 0.0
        %1020 = vmatpush1.msra.mxu0 %v901
        %1021 = vmatprep.subr.mxu0 0.0
        %1022 = vmatpush1.msra.mxu0 %v902
        %1023 = vmatprep.subr.mxu0 0.0
        %1024 = vmatpush1.msra.mxu0 %v903
        %1025 = vmatprep.subr.mxu0 0.0
        %1026 = vmatpush1.msra.mxu0 %v904
        %1027 = vmatprep.subr.mxu0 0.0
        %1028 = vmatpush1.msra.mxu0 %v905
        %1029 = vmatprep.subr.mxu0 0.0
        %1030 = vmatpush1.msra.mxu0 %v906
        %1031 = vmatprep.subr.mxu0 0.0
        %1032 = vmatpush1.msra.mxu0 %v907
        %1033 = vmatprep.subr.mxu0 0.0
        %1034 = vmatpush1.msra.mxu0 %v908
        %1035 = vmatprep.subr.mxu0 0.0
        %1036 = vmatpush1.msra.mxu0 %v909
        %1037 = vmatprep.subr.mxu0 0.0
        %1038 = vmatpush1.msra.mxu0 %v910
        %1039 = vmatprep.subr.mxu0 0.0
        %1040 = vmatpush1.msra.mxu0 %v911
        %1041 = vmatprep.subr.mxu0 0.0
        %1042 = vmatpush1.msra.mxu0 %v912
        %1043 = vmatprep.subr.mxu0 0.0
        %1044 = vmatpush1.msra.mxu0 %v913
        %1045 = vmatprep.subr.mxu0 0.0
        %1046 = vmatpush1.msra.mxu0 %v914
        %1047 = vmatprep.subr.mxu0 0.0
        %1048 = vmatpush1.msra.mxu0 %v915
        %1049 = vmatprep.subr.mxu0 0.0
        %1050 = vmatpush1.msra.mxu0 %v916
        %1051 = vmatprep.subr.mxu0 0.0
        %1052 = vmatpush1.msra.mxu0 %v917
        %1053 = vmatprep.subr.mxu0 0.0
        %1054 = vmatpush1.msra.mxu0 %v918
        %1055 = vmatprep.subr.mxu0 0.0
        %1056 = vmatpush1.msra.mxu0 %v919
        %1057 = vmatprep.subr.mxu0 0.0
        %1058 = vmatpush1.msra.mxu0 %v920
        %1059 = vmatprep.subr.mxu0 0.0
        %1060 = vmatpush1.msra.mxu0 %v921
        %1061 = vmatprep.mubr.f32.mxu0 %v421
        %1062 = vmatmul.mubr.f32.gmra.mrb[0].mxu0 %v420
        %v1063 = vpop.f32.mrb[0].mxu0
        %v1064 = vadd.f32 %v989, %v1063
        %v1065 = vpop.f32.mrb[0].mxu0
        %1066 = vmatprep.mubr.f32.mxu0 %v425
        %1067 = vmatmul.mubr.f32.gmra.mrb[0].mxu0 %v424
        %v1068 = vpop.f32.mrb[0].mxu0
        %v1069 = vadd.f32 %v994, %v1068
        %v1070 = vpop.f32.mrb[0].mxu0
        %1071 = vdwg.mxu0
        %vm1072 = vcmask 523264
        %v1074 = vsel %vm1072, %v636, 0
        %v1077 = vsel %vm1072, %v641, 0
        %v1080 = vsel %vm1072, %v850, 0
        %v1083 = vsel %vm1072, %v855, 0
        %1085 = vmatprep.subr.mxu0 0.0
        %1086 = vmatpush1.xpose.msra.mxu0 %v1080
        %1087 = vmatprep.subr.mxu0 0.0
        %1088 = vmatpush1.xpose.msra.mxu0 %v1083
        %1089 = vmatprep.subr.mxu0 0.0
        %1090 = vmatpush1.xpose.msra.mxu0 0.0
        %1091 = vmatprep.subr.mxu0 0.0
        %1092 = vmatpush1.xpose.msra.mxu0 0.0
        %1093 = vmatprep.subr.mxu0 0.0
        %1094 = vmatpush1.xpose.msra.mxu0 0.0
        %1095 = vmatprep.subr.mxu0 0.0
        %1096 = vmatpush1.xpose.msra.mxu0 0.0
        %1097 = vmatprep.subr.mxu0 0.0
        %1098 = vmatpush1.xpose.msra.mxu0 0.0
        %1099 = vmatprep.subr.mxu0 0.0
        %1100 = vmatpush1.xpose.msra.mxu0 0.0
        %1101 = vmatprep.subr.mxu0 0.0
        %1102 = vmatpush1.xpose.msra.mxu0 0.0
        %1103 = vmatprep.subr.mxu0 0.0
        %1104 = vmatpush1.xpose.msra.mxu0 0.0
        %1105 = vmatprep.subr.mxu0 0.0
        %1106 = vmatpush1.xpose.msra.mxu0 0.0
        %1107 = vmatprep.subr.mxu0 0.0
        %1108 = vmatpush1.xpose.msra.mxu0 0.0
        %1109 = vmatprep.subr.mxu0 0.0
        %1110 = vmatpush1.xpose.msra.mxu0 0.0
        %1111 = vmatprep.subr.mxu0 0.0
        %1112 = vmatpush1.xpose.msra.mxu0 0.0
        %1113 = vmatprep.subr.mxu0 0.0
        %1114 = vmatpush1.xpose.msra.mxu0 0.0
        %1115 = vmatprep.subr.mxu0 0.0
        %1116 = vmatpush1.xpose.msra.mxu0 0.0
        %1117 = vmatprep.subr.mxu0 0.0
        %1118 = vmatpush1.xpose.msra.mxu0 0.0
        %1119 = vmatprep.subr.mxu0 0.0
        %1120 = vmatpush1.xpose.msra.mxu0 0.0
        %1121 = vmatprep.subr.mxu0 0.0
        %1122 = vmatpush1.xpose.msra.mxu0 0.0
        %1123 = vmatprep.subr.mxu0 0.0
        %1124 = vmatpush1.xpose.msra.mxu0 0.0
        %1125 = vmatprep.subr.mxu0 0.0
        %1126 = vmatpush1.xpose.msra.mxu0 0.0
        %1127 = vmatprep.subr.mxu0 0.0
        %1128 = vmatpush1.xpose.msra.mxu0 0.0
        %1129 = vmatprep.subr.mxu0 0.0
        %1130 = vmatpush1.xpose.msra.mxu0 0.0
        %1131 = vmatprep.subr.mxu0 0.0
        %1132 = vmatpush1.xpose.msra.mxu0 0.0
        %1133 = vmatprep.subr.mxu0 0.0
        %1134 = vmatpush1.xpose.msra.mxu0 0.0
        %1135 = vmatprep.subr.mxu0 0.0
        %1136 = vmatpush1.xpose.msra.mxu0 0.0
        %1137 = vmatprep.subr.mxu0 0.0
        %1138 = vmatpush1.xpose.msra.mxu0 0.0
        %1139 = vmatprep.subr.mxu0 0.0
        %1140 = vmatpush1.xpose.msra.mxu0 0.0
        %1141 = vmatprep.subr.mxu0 0.0
        %1142 = vmatpush1.xpose.msra.mxu0 0.0
        %1143 = vmatprep.subr.mxu0 0.0
        %1144 = vmatpush1.xpose.msra.mxu0 0.0
        %1145 = vmatprep.subr.mxu0 0.0
        %1146 = vmatpush1.xpose.msra.mxu0 0.0
        %1147 = vmatprep.subr.mxu0 0.0
        %1148 = vmatpush1.xpose.msra.mxu0 0.0
        %1149 = vmatprep.mubr.f32.mxu0 0.0
        %1150 = vmatmul.mubr.f32.gmra.mrb[0].mxu0 %v1074
        %v1151 = vpop.f32.mrb[0].mxu0
        %v1152 = vadd.f32 0.0, %v1151
        %v1153 = vpop.f32.mrb[0].mxu0
        %1154 = vmatprep.mubr.f32.mxu0 0.0
        %1155 = vmatmul.mubr.f32.gmra.mrb[0].mxu0 %v1077
        %v1156 = vpop.f32.mrb[0].mxu0
        %v1157 = vadd.f32 0.0, %v1156
        %v1158 = vpop.f32.mrb[0].mxu0
        %1159 = vdwg.mxu0
        %v1160 = vmul.f32 %v1152, 0.125
        %v1161 = vmul.f32 %v1157, 0.125
        %v1162 = vsel %vm428, -1e+09, %v1160
        %v1163 = vsel %vm429, -1e+09, %v1161
        %vm1164 = vcmask 130048
        %v1165 = vsel %vm1164, %v1162, -inf
        %1166 = vmax.xlane.f32.xlu0 %v1165
        %v1167 = vpop.xlane.xlu0 %1166
        %v1168 = vsel %vm1164, %v1163, -inf
        %1169 = vmax.xlane.f32.xlu0 %v1168
        %v1170 = vpop.xlane.xlu0 %1169
        %v1171 = vsub.f32 %v1162, %v1167
        %v1172 = vsub.f32 %v1163, %v1170
        %v1173 = vmul.f32 %v1171, 1.442695
        %v1174 = vpow.pop %v1173
        %v1175 = vmul.f32 %v1172, 1.442695
        %v1176 = vpow.pop %v1175
        %v1177 = vsel %vm1164, %v1174, 0.0
        %1178 = vadd.xlane.f32.xlu0 %v1177
        %v1179 = vpop.xlane.xlu0 %1178
        %v1180 = vsel %vm1164, %v1176, 0.0
        %1181 = vadd.xlane.f32.xlu0 %v1180
        %v1182 = vpop.xlane.xlu0 %1181
        %v1183 = vrcp.pop %v1179
        %v1184 = vmul.f32 %v1174, %v1183
        %v1185 = vrcp.pop %v1182
        %v1186 = vmul.f32 %v1176, %v1185
        %1187 = vst.msk [vmem:[%s381] sm:$0xff] %vm1164, %v1184
        %1188 = vst.msk [vmem:[%s381 + $0x8] sm:$0xff] %vm1164, %v1186
        %v1190 = vsel %vm1164, %v1184, 0
        %v1193 = vsel %vm1164, %v1186, 0
        %1195 = vmatprep.subr.mxu0 0.0
        %1196 = vmatpush1.msra.mxu0 %v1064
        %1197 = vmatprep.subr.mxu0 0.0
        %1198 = vmatpush1.msra.mxu0 %v1069
        %1199 = vmatprep.subr.mxu0 0.0
        %1200 = vmatpush1.msra.mxu0 0.0
        %1201 = vmatprep.subr.mxu0 0.0
        %1202 = vmatpush1.msra.mxu0 0.0
        %1203 = vmatprep.subr.mxu0 0.0
        %1204 = vmatpush1.msra.mxu0 0.0
        %1205 = vmatprep.subr.mxu0 0.0
        %1206 = vmatpush1.msra.mxu0 0.0
        %1207 = vmatprep.subr.mxu0 0.0
        %1208 = vmatpush1.msra.mxu0 0.0
        %1209 = vmatprep.subr.mxu0 0.0
        %1210 = vmatpush1.msra.mxu0 0.0
        %1211 = vmatprep.subr.mxu0 0.0
        %1212 = vmatpush1.msra.mxu0 0.0
        %1213 = vmatprep.subr.mxu0 0.0
        %1214 = vmatpush1.msra.mxu0 0.0
        %1215 = vmatprep.subr.mxu0 0.0
        %1216 = vmatpush1.msra.mxu0 0.0
        %1217 = vmatprep.subr.mxu0 0.0
        %1218 = vmatpush1.msra.mxu0 0.0
        %1219 = vmatprep.subr.mxu0 0.0
        %1220 = vmatpush1.msra.mxu0 0.0
        %1221 = vmatprep.subr.mxu0 0.0
        %1222 = vmatpush1.msra.mxu0 0.0
        %1223 = vmatprep.subr.mxu0 0.0
        %1224 = vmatpush1.msra.mxu0 0.0
        %1225 = vmatprep.subr.mxu0 0.0
        %1226 = vmatpush1.msra.mxu0 0.0
        %1227 = vmatprep.subr.mxu0 0.0
        %1228 = vmatpush1.msra.mxu0 0.0
        %1229 = vmatprep.subr.mxu0 0.0
        %1230 = vmatpush1.msra.mxu0 0.0
        %1231 = vmatprep.subr.mxu0 0.0
        %1232 = vmatpush1.msra.mxu0 0.0
        %1233 = vmatprep.subr.mxu0 0.0
        %1234 = vmatpush1.msra.mxu0 0.0
        %1235 = vmatprep.subr.mxu0 0.0
        %1236 = vmatpush1.msra.mxu0 0.0
        %1237 = vmatprep.subr.mxu0 0.0
        %1238 = vmatpush1.msra.mxu0 0.0
        %1239 = vmatprep.subr.mxu0 0.0
        %1240 = vmatpush1.msra.mxu0 0.0
        %1241 = vmatprep.subr.mxu0 0.0
        %1242 = vmatpush1.msra.mxu0 0.0
        %1243 = vmatprep.subr.mxu0 0.0
        %1244 = vmatpush1.msra.mxu0 0.0
        %1245 = vmatprep.subr.mxu0 0.0
        %1246 = vmatpush1.msra.mxu0 0.0
        %1247 = vmatprep.subr.mxu0 0.0
        %1248 = vmatpush1.msra.mxu0 0.0
        %1249 = vmatprep.subr.mxu0 0.0
        %1250 = vmatpush1.msra.mxu0 0.0
        %1251 = vmatprep.subr.mxu0 0.0
        %1252 = vmatpush1.msra.mxu0 0.0
        %1253 = vmatprep.subr.mxu0 0.0
        %1254 = vmatpush1.msra.mxu0 0.0
        %1255 = vmatprep.subr.mxu0 0.0
        %1256 = vmatpush1.msra.mxu0 0.0
        %1257 = vmatprep.subr.mxu0 0.0
        %1258 = vmatpush1.msra.mxu0 0.0
        %1259 = vmatprep.mubr.f32.mxu0 0.0
        %1260 = vmatmul.mubr.f32.gmra.mrb[0].mxu0 %v1190
        %v1261 = vpop.f32.mrb[0].mxu0
        %v1262 = vadd.f32 0.0, %v1261
        %v1263 = vpop.f32.mrb[0].mxu0
        %1264 = vmatprep.mubr.f32.mxu0 0.0
        %1265 = vmatmul.mubr.f32.gmra.mrb[0].mxu0 %v1193
        %v1266 = vpop.f32.mrb[0].mxu0
        %v1267 = vadd.f32 0.0, %v1266
        %v1268 = vpop.f32.mrb[0].mxu0
        %1269 = vdwg.mxu0
        %v1270 = vld [vmem:[%s7] sm:$0xff]
        %v1271 = vld [vmem:[%s7 + $0x8] sm:$0xff]
        %v1272 = vld [vmem:[%s7 + $0x10] sm:$0xff]
        %v1273 = vld [vmem:[%s7 + $0x18] sm:$0xff]
        %v1274 = vld [vmem:[%s7 + $0x20] sm:$0xff]
        %v1275 = vld [vmem:[%s7 + $0x28] sm:$0xff]
        %v1276 = vld [vmem:[%s7 + $0x30] sm:$0xff]
        %v1277 = vld [vmem:[%s7 + $0x38] sm:$0xff]
        %v1278 = vld [vmem:[%s7 + $0x40] sm:$0xff]
        %v1279 = vld [vmem:[%s7 + $0x48] sm:$0xff]
        %v1280 = vld [vmem:[%s7 + $0x50] sm:$0xff]
        %v1281 = vld [vmem:[%s7 + $0x58] sm:$0xff]
        %v1282 = vld [vmem:[%s7 + $0x60] sm:$0xff]
        %v1283 = vld [vmem:[%s7 + $0x68] sm:$0xff]
        %v1284 = vld [vmem:[%s7 + $0x70] sm:$0xff]
        %v1285 = vld [vmem:[%s7 + $0x78] sm:$0xff]
        %v1286 = vld [vmem:[%s7 + $0x80] sm:$0xff]
        %v1287 = vld [vmem:[%s7 + $0x88] sm:$0xff]
        %v1288 = vld [vmem:[%s7 + $0x90] sm:$0xff]
        %v1289 = vld [vmem:[%s7 + $0x98] sm:$0xff]
        %v1290 = vld [vmem:[%s7 + $0xa0] sm:$0xff]
        %v1291 = vld [vmem:[%s7 + $0xa8] sm:$0xff]
        %v1292 = vld [vmem:[%s7 + $0xb0] sm:$0xff]
        %v1293 = vld [vmem:[%s7 + $0xb8] sm:$0xff]
        %v1294 = vld [vmem:[%s7 + $0xc0] sm:$0xff]
        %v1295 = vld [vmem:[%s7 + $0xc8] sm:$0xff]
        %v1296 = vld [vmem:[%s7 + $0xd0] sm:$0xff]
        %v1297 = vld [vmem:[%s7 + $0xd8] sm:$0xff]
        %v1298 = vld [vmem:[%s7 + $0xe0] sm:$0xff]
        %v1299 = vld [vmem:[%s7 + $0xe8] sm:$0xff]
        %v1300 = vld [vmem:[%s7 + $0xf0] sm:$0xff]
        %v1301 = vld [vmem:[%s7 + $0xf8] sm:$0xff]
        %v1303 = vsel %vm1072, %v1262, 0
        %v1306 = vsel %vm1072, %v1267, 0
        %1308 = vmatprep.subr.mxu0 %v1271
        %1309 = vmatpush1.msra.mxu0 %v1270
        %1310 = vmatprep.subr.mxu0 %v1275
        %1311 = vmatpush1.msra.mxu0 %v1274
        %1312 = vmatprep.subr.mxu0 %v1279
        %1313 = vmatpush1.msra.mxu0 %v1278
        %1314 = vmatprep.subr.mxu0 %v1283
        %1315 = vmatpush1.msra.mxu0 %v1282
        %1316 = vmatprep.subr.mxu0 %v1287
        %1317 = vmatpush1.msra.mxu0 %v1286
        %1318 = vmatprep.subr.mxu0 %v1291
        %1319 = vmatpush1.msra.mxu0 %v1290
        %1320 = vmatprep.subr.mxu0 %v1295
        %1321 = vmatpush1.msra.mxu0 %v1294
        %1322 = vmatprep.subr.mxu0 %v1299
        %1323 = vmatpush1.msra.mxu0 %v1298
        %1324 = vmatprep.subr.mxu0 0.0
        %1325 = vmatpush1.msra.mxu0 0.0
        %1326 = vmatprep.subr.mxu0 0.0
        %1327 = vmatpush1.msra.mxu0 0.0
        %1328 = vmatprep.subr.mxu0 0.0
        %1329 = vmatpush1.msra.mxu0 0.0
        %1330 = vmatprep.subr.mxu0 0.0
        %1331 = vmatpush1.msra.mxu0 0.0
        %1332 = vmatprep.subr.mxu0 0.0
        %1333 = vmatpush1.msra.mxu0 0.0
        %1334 = vmatprep.subr.mxu0 0.0
        %1335 = vmatpush1.msra.mxu0 0.0
        %1336 = vmatprep.subr.mxu0 0.0
        %1337 = vmatpush1.msra.mxu0 0.0
        %1338 = vmatprep.subr.mxu0 0.0
        %1339 = vmatpush1.msra.mxu0 0.0
        %1340 = vmatprep.subr.mxu0 0.0
        %1341 = vmatpush1.msra.mxu0 0.0
        %1342 = vmatprep.subr.mxu0 0.0
        %1343 = vmatpush1.msra.mxu0 0.0
        %1344 = vmatprep.subr.mxu0 0.0
        %1345 = vmatpush1.msra.mxu0 0.0
        %1346 = vmatprep.subr.mxu0 0.0
        %1347 = vmatpush1.msra.mxu0 0.0
        %1348 = vmatprep.subr.mxu0 0.0
        %1349 = vmatpush1.msra.mxu0 0.0
        %1350 = vmatprep.subr.mxu0 0.0
        %1351 = vmatpush1.msra.mxu0 0.0
        %1352 = vmatprep.subr.mxu0 0.0
        %1353 = vmatpush1.msra.mxu0 0.0
        %1354 = vmatprep.subr.mxu0 0.0
        %1355 = vmatpush1.msra.mxu0 0.0
        %1356 = vmatprep.subr.mxu0 0.0
        %1357 = vmatpush1.msra.mxu0 0.0
        %1358 = vmatprep.subr.mxu0 0.0
        %1359 = vmatpush1.msra.mxu0 0.0
        %1360 = vmatprep.subr.mxu0 0.0
        %1361 = vmatpush1.msra.mxu0 0.0
        %1362 = vmatprep.subr.mxu0 0.0
        %1363 = vmatpush1.msra.mxu0 0.0
        %1364 = vmatprep.subr.mxu0 0.0
        %1365 = vmatpush1.msra.mxu0 0.0
        %1366 = vmatprep.subr.mxu0 0.0
        %1367 = vmatpush1.msra.mxu0 0.0
        %1368 = vmatprep.subr.mxu0 0.0
        %1369 = vmatpush1.msra.mxu0 0.0
        %1370 = vmatprep.subr.mxu0 0.0
        %1371 = vmatpush1.msra.mxu0 0.0
        %1372 = vmatprep.mubr.f32.mxu0 0.0
        %1373 = vmatmul.mubr.f32.gmra.mrb[0].mxu0 %v1303
        %v1374 = vpop.f32.mrb[0].mxu0
        %v1375 = vadd.f32 0.0, %v1374
        %v1376 = vpop.f32.mrb[0].mxu0
        %v1377 = vadd.f32 0.0, %v1376
        %1378 = vmatprep.mubr.f32.mxu0 0.0
        %1379 = vmatmul.mubr.f32.gmra.mrb[0].mxu0 %v1306
        %v1380 = vpop.f32.mrb[0].mxu0
        %v1381 = vadd.f32 0.0, %v1380
        %v1382 = vpop.f32.mrb[0].mxu0
        %v1383 = vadd.f32 0.0, %v1382
        %1384 = vdwg.mxu0
        %1385 = vmatprep.subr.mxu0 %v1273
        %1386 = vmatpush1.msra.mxu0 %v1272
        %1387 = vmatprep.subr.mxu0 %v1277
        %1388 = vmatpush1.msra.mxu0 %v1276
        %1389 = vmatprep.subr.mxu0 %v1281
        %1390 = vmatpush1.msra.mxu0 %v1280
        %1391 = vmatprep.subr.mxu0 %v1285
        %1392 = vmatpush1.msra.mxu0 %v1284
        %1393 = vmatprep.subr.mxu0 %v1289
        %1394 = vmatpush1.msra.mxu0 %v1288
        %1395 = vmatprep.subr.mxu0 %v1293
        %1396 = vmatpush1.msra.mxu0 %v1292
        %1397 = vmatprep.subr.mxu0 %v1297
        %1398 = vmatpush1.msra.mxu0 %v1296
        %1399 = vmatprep.subr.mxu0 %v1301
        %1400 = vmatpush1.msra.mxu0 %v1300
        %1401 = vmatprep.subr.mxu0 0.0
        %1402 = vmatpush1.msra.mxu0 0.0
        %1403 = vmatprep.subr.mxu0 0.0
        %1404 = vmatpush1.msra.mxu0 0.0
        %1405 = vmatprep.subr.mxu0 0.0
        %1406 = vmatpush1.msra.mxu0 0.0
        %1407 = vmatprep.subr.mxu0 0.0
        %1408 = vmatpush1.msra.mxu0 0.0
        %1409 = vmatprep.subr.mxu0 0.0
        %1410 = vmatpush1.msra.mxu0 0.0
        %1411 = vmatprep.subr.mxu0 0.0
        %1412 = vmatpush1.msra.mxu0 0.0
        %1413 = vmatprep.subr.mxu0 0.0
        %1414 = vmatpush1.msra.mxu0 0.0
        %1415 = vmatprep.subr.mxu0 0.0
        %1416 = vmatpush1.msra.mxu0 0.0
        %1417 = vmatprep.subr.mxu0 0.0
        %1418 = vmatpush1.msra.mxu0 0.0
        %1419 = vmatprep.subr.mxu0 0.0
        %1420 = vmatpush1.msra.mxu0 0.0
        %1421 = vmatprep.subr.mxu0 0.0
        %1422 = vmatpush1.msra.mxu0 0.0
        %1423 = vmatprep.subr.mxu0 0.0
        %1424 = vmatpush1.msra.mxu0 0.0
        %1425 = vmatprep.subr.mxu0 0.0
        %1426 = vmatpush1.msra.mxu0 0.0
        %1427 = vmatprep.subr.mxu0 0.0
        %1428 = vmatpush1.msra.mxu0 0.0
        %1429 = vmatprep.subr.mxu0 0.0
        %1430 = vmatpush1.msra.mxu0 0.0
        %1431 = vmatprep.subr.mxu0 0.0
        %1432 = vmatpush1.msra.mxu0 0.0
        %1433 = vmatprep.subr.mxu0 0.0
        %1434 = vmatpush1.msra.mxu0 0.0
        %1435 = vmatprep.subr.mxu0 0.0
        %1436 = vmatpush1.msra.mxu0 0.0
        %1437 = vmatprep.subr.mxu0 0.0
        %1438 = vmatpush1.msra.mxu0 0.0
        %1439 = vmatprep.subr.mxu0 0.0
        %1440 = vmatpush1.msra.mxu0 0.0
        %1441 = vmatprep.subr.mxu0 0.0
        %1442 = vmatpush1.msra.mxu0 0.0
        %1443 = vmatprep.subr.mxu0 0.0
        %1444 = vmatpush1.msra.mxu0 0.0
        %1445 = vmatprep.subr.mxu0 0.0
        %1446 = vmatpush1.msra.mxu0 0.0
        %1447 = vmatprep.subr.mxu0 0.0
        %1448 = vmatpush1.msra.mxu0 0.0
        %1449 = vmatprep.mubr.f32.mxu0 0.0
        %1450 = vmatmul.mubr.f32.gmra.mrb[0].mxu0 %v1303
        %v1451 = vpop.f32.mrb[0].mxu0
        %v1452 = vadd.f32 0.0, %v1451
        %v1453 = vpop.f32.mrb[0].mxu0
        %v1454 = vadd.f32 0.0, %v1453
        %1455 = vmatprep.mubr.f32.mxu0 0.0
        %1456 = vmatmul.mubr.f32.gmra.mrb[0].mxu0 %v1306
        %v1457 = vpop.f32.mrb[0].mxu0
        %v1458 = vadd.f32 0.0, %v1457
        %v1459 = vpop.f32.mrb[0].mxu0
        %v1460 = vadd.f32 0.0, %v1459
        %1461 = vdwg.mxu0
        %v1462 = vadd.f32 %v402, %v1375
        %v1463 = vadd.f32 %v403, %v1377
        %v1464 = vadd.f32 %v404, %v1452
        %v1465 = vadd.f32 %v405, %v1454
        %v1466 = vadd.f32 %v406, %v1381
        %v1467 = vadd.f32 %v407, %v1383
        %v1468 = vadd.f32 %v408, %v1458
        %v1469 = vadd.f32 %v409, %v1460
        %s1470 = scalar_lea.vmem %s4, 512
        %v1471 = vld [vmem:[%s1470] sm:$0xff]
        %v1472 = vld [vmem:[%s1470 + $0x8] sm:$0xff]
        %v1473 = vld [vmem:[%s1470 + $0x10] sm:$0xff]
        %v1474 = vld [vmem:[%s1470 + $0x18] sm:$0xff]
        %v1475 = vld [vmem:[%s1470 + $0x20] sm:$0xff]
        %v1476 = vld [vmem:[%s1470 + $0x28] sm:$0xff]
        %v1477 = vld [vmem:[%s1470 + $0x30] sm:$0xff]
        %v1478 = vld [vmem:[%s1470 + $0x38] sm:$0xff]
        %v1479 = vld [vmem:[%s1470 + $0x40] sm:$0xff]
        %v1480 = vld [vmem:[%s1470 + $0x48] sm:$0xff]
        %v1481 = vld [vmem:[%s1470 + $0x50] sm:$0xff]
        %v1482 = vld [vmem:[%s1470 + $0x58] sm:$0xff]
        %v1483 = vld [vmem:[%s1470 + $0x60] sm:$0xff]
        %v1484 = vld [vmem:[%s1470 + $0x68] sm:$0xff]
        %v1485 = vld [vmem:[%s1470 + $0x70] sm:$0xff]
        %v1486 = vld [vmem:[%s1470 + $0x78] sm:$0xff]
        %v1487 = vld [vmem:[%s1470 + $0x80] sm:$0xff]
        %v1488 = vld [vmem:[%s1470 + $0x88] sm:$0xff]
        %v1489 = vld [vmem:[%s1470 + $0x90] sm:$0xff]
        %v1490 = vld [vmem:[%s1470 + $0x98] sm:$0xff]
        %v1491 = vld [vmem:[%s1470 + $0xa0] sm:$0xff]
        %v1492 = vld [vmem:[%s1470 + $0xa8] sm:$0xff]
        %v1493 = vld [vmem:[%s1470 + $0xb0] sm:$0xff]
        %v1494 = vld [vmem:[%s1470 + $0xb8] sm:$0xff]
        %v1495 = vld [vmem:[%s1470 + $0xc0] sm:$0xff]
        %v1496 = vld [vmem:[%s1470 + $0xc8] sm:$0xff]
        %v1497 = vld [vmem:[%s1470 + $0xd0] sm:$0xff]
        %v1498 = vld [vmem:[%s1470 + $0xd8] sm:$0xff]
        %v1499 = vld [vmem:[%s1470 + $0xe0] sm:$0xff]
        %v1500 = vld [vmem:[%s1470 + $0xe8] sm:$0xff]
        %v1501 = vld [vmem:[%s1470 + $0xf0] sm:$0xff]
        %v1502 = vld [vmem:[%s1470 + $0xf8] sm:$0xff]
        %v1503 = vld [vmem:[%s1470 + $0x100] sm:$0xff]
        %v1504 = vld [vmem:[%s1470 + $0x108] sm:$0xff]
        %v1505 = vld [vmem:[%s1470 + $0x110] sm:$0xff]
        %v1506 = vld [vmem:[%s1470 + $0x118] sm:$0xff]
        %v1507 = vld [vmem:[%s1470 + $0x120] sm:$0xff]
        %v1508 = vld [vmem:[%s1470 + $0x128] sm:$0xff]
        %v1509 = vld [vmem:[%s1470 + $0x130] sm:$0xff]
        %v1510 = vld [vmem:[%s1470 + $0x138] sm:$0xff]
        %v1511 = vld [vmem:[%s1470 + $0x140] sm:$0xff]
        %v1512 = vld [vmem:[%s1470 + $0x148] sm:$0xff]
        %v1513 = vld [vmem:[%s1470 + $0x150] sm:$0xff]
        %v1514 = vld [vmem:[%s1470 + $0x158] sm:$0xff]
        %v1515 = vld [vmem:[%s1470 + $0x160] sm:$0xff]
        %v1516 = vld [vmem:[%s1470 + $0x168] sm:$0xff]
        %v1517 = vld [vmem:[%s1470 + $0x170] sm:$0xff]
        %v1518 = vld [vmem:[%s1470 + $0x178] sm:$0xff]
        %v1519 = vld [vmem:[%s1470 + $0x180] sm:$0xff]
        %v1520 = vld [vmem:[%s1470 + $0x188] sm:$0xff]
        %v1521 = vld [vmem:[%s1470 + $0x190] sm:$0xff]
        %v1522 = vld [vmem:[%s1470 + $0x198] sm:$0xff]
        %v1523 = vld [vmem:[%s1470 + $0x1a0] sm:$0xff]
        %v1524 = vld [vmem:[%s1470 + $0x1a8] sm:$0xff]
        %v1525 = vld [vmem:[%s1470 + $0x1b0] sm:$0xff]
        %v1526 = vld [vmem:[%s1470 + $0x1b8] sm:$0xff]
        %v1527 = vld [vmem:[%s1470 + $0x1c0] sm:$0xff]
        %v1528 = vld [vmem:[%s1470 + $0x1c8] sm:$0xff]
        %v1529 = vld [vmem:[%s1470 + $0x1d0] sm:$0xff]
        %v1530 = vld [vmem:[%s1470 + $0x1d8] sm:$0xff]
        %v1531 = vld [vmem:[%s1470 + $0x1e0] sm:$0xff]
        %v1532 = vld [vmem:[%s1470 + $0x1e8] sm:$0xff]
        %v1533 = vld [vmem:[%s1470 + $0x1f0] sm:$0xff]
        %v1534 = vld [vmem:[%s1470 + $0x1f8] sm:$0xff]
        %1535 = vmatprep.subr.mxu0 0.0
        %1536 = vmatpush1.msra.mxu0 %v1471
        %1537 = vmatprep.subr.mxu0 0.0
        %1538 = vmatpush1.msra.mxu0 %v1472
        %1539 = vmatprep.subr.mxu0 0.0
        %1540 = vmatpush1.msra.mxu0 %v1473
        %1541 = vmatprep.subr.mxu0 0.0
        %1542 = vmatpush1.msra.mxu0 %v1474
        %1543 = vmatprep.subr.mxu0 0.0
        %1544 = vmatpush1.msra.mxu0 %v1475
        %1545 = vmatprep.subr.mxu0 0.0
        %1546 = vmatpush1.msra.mxu0 %v1476
        %1547 = vmatprep.subr.mxu0 0.0
        %1548 = vmatpush1.msra.mxu0 %v1477
        %1549 = vmatprep.subr.mxu0 0.0
        %1550 = vmatpush1.msra.mxu0 %v1478
        %1551 = vmatprep.subr.mxu0 0.0
        %1552 = vmatpush1.msra.mxu0 %v1479
        %1553 = vmatprep.subr.mxu0 0.0
        %1554 = vmatpush1.msra.mxu0 %v1480
        %1555 = vmatprep.subr.mxu0 0.0
        %1556 = vmatpush1.msra.mxu0 %v1481
        %1557 = vmatprep.subr.mxu0 0.0
        %1558 = vmatpush1.msra.mxu0 %v1482
        %1559 = vmatprep.subr.mxu0 0.0
        %1560 = vmatpush1.msra.mxu0 %v1483
        %1561 = vmatprep.subr.mxu0 0.0
        %1562 = vmatpush1.msra.mxu0 %v1484
        %1563 = vmatprep.subr.mxu0 0.0
        %1564 = vmatpush1.msra.mxu0 %v1485
        %1565 = vmatprep.subr.mxu0 0.0
        %1566 = vmatpush1.msra.mxu0 %v1486
        %1567 = vmatprep.subr.mxu0 0.0
        %1568 = vmatpush1.msra.mxu0 %v1487
        %1569 = vmatprep.subr.mxu0 0.0
        %1570 = vmatpush1.msra.mxu0 %v1488
        %1571 = vmatprep.subr.mxu0 0.0
        %1572 = vmatpush1.msra.mxu0 %v1489
        %1573 = vmatprep.subr.mxu0 0.0
        %1574 = vmatpush1.msra.mxu0 %v1490
        %1575 = vmatprep.subr.mxu0 0.0
        %1576 = vmatpush1.msra.mxu0 %v1491
        %1577 = vmatprep.subr.mxu0 0.0
        %1578 = vmatpush1.msra.mxu0 %v1492
        %1579 = vmatprep.subr.mxu0 0.0
        %1580 = vmatpush1.msra.mxu0 %v1493
        %1581 = vmatprep.subr.mxu0 0.0
        %1582 = vmatpush1.msra.mxu0 %v1494
        %1583 = vmatprep.subr.mxu0 0.0
        %1584 = vmatpush1.msra.mxu0 %v1495
        %1585 = vmatprep.subr.mxu0 0.0
        %1586 = vmatpush1.msra.mxu0 %v1496
        %1587 = vmatprep.subr.mxu0 0.0
        %1588 = vmatpush1.msra.mxu0 %v1497
        %1589 = vmatprep.subr.mxu0 0.0
        %1590 = vmatpush1.msra.mxu0 %v1498
        %1591 = vmatprep.subr.mxu0 0.0
        %1592 = vmatpush1.msra.mxu0 %v1499
        %1593 = vmatprep.subr.mxu0 0.0
        %1594 = vmatpush1.msra.mxu0 %v1500
        %1595 = vmatprep.subr.mxu0 0.0
        %1596 = vmatpush1.msra.mxu0 %v1501
        %1597 = vmatprep.subr.mxu0 0.0
        %1598 = vmatpush1.msra.mxu0 %v1502
        %1599 = vmatprep.mubr.f32.mxu0 %v403
        %1600 = vmatmul.mubr.f32.gmra.mrb[0].mxu0 %v402
        %v1601 = vpop.f32.mrb[0].mxu0
        %v1602 = vadd.f32 0.0, %v1601
        %v1603 = vpop.f32.mrb[0].mxu0
        %1604 = vmatprep.mubr.f32.mxu0 %v407
        %1605 = vmatmul.mubr.f32.gmra.mrb[0].mxu0 %v406
        %v1606 = vpop.f32.mrb[0].mxu0
        %v1607 = vadd.f32 0.0, %v1606
        %v1608 = vpop.f32.mrb[0].mxu0
        %1609 = vdwg.mxu0
        %1610 = vmatprep.subr.mxu0 0.0
        %1611 = vmatpush1.msra.mxu0 %v1503
        %1612 = vmatprep.subr.mxu0 0.0
        %1613 = vmatpush1.msra.mxu0 %v1504
        %1614 = vmatprep.subr.mxu0 0.0
        %1615 = vmatpush1.msra.mxu0 %v1505
        %1616 = vmatprep.subr.mxu0 0.0
        %1617 = vmatpush1.msra.mxu0 %v1506
        %1618 = vmatprep.subr.mxu0 0.0
        %1619 = vmatpush1.msra.mxu0 %v1507
        %1620 = vmatprep.subr.mxu0 0.0
        %1621 = vmatpush1.msra.mxu0 %v1508
        %1622 = vmatprep.subr.mxu0 0.0
        %1623 = vmatpush1.msra.mxu0 %v1509
        %1624 = vmatprep.subr.mxu0 0.0
        %1625 = vmatpush1.msra.mxu0 %v1510
        %1626 = vmatprep.subr.mxu0 0.0
        %1627 = vmatpush1.msra.mxu0 %v1511
        %1628 = vmatprep.subr.mxu0 0.0
        %1629 = vmatpush1.msra.mxu0 %v1512
        %1630 = vmatprep.subr.mxu0 0.0
        %1631 = vmatpush1.msra.mxu0 %v1513
        %1632 = vmatprep.subr.mxu0 0.0
        %1633 = vmatpush1.msra.mxu0 %v1514
        %1634 = vmatprep.subr.mxu0 0.0
        %1635 = vmatpush1.msra.mxu0 %v1515
        %1636 = vmatprep.subr.mxu0 0.0
        %1637 = vmatpush1.msra.mxu0 %v1516
        %1638 = vmatprep.subr.mxu0 0.0
        %1639 = vmatpush1.msra.mxu0 %v1517
        %1640 = vmatprep.subr.mxu0 0.0
        %1641 = vmatpush1.msra.mxu0 %v1518
        %1642 = vmatprep.subr.mxu0 0.0
        %1643 = vmatpush1.msra.mxu0 %v1519
        %1644 = vmatprep.subr.mxu0 0.0
        %1645 = vmatpush1.msra.mxu0 %v1520
        %1646 = vmatprep.subr.mxu0 0.0
        %1647 = vmatpush1.msra.mxu0 %v1521
        %1648 = vmatprep.subr.mxu0 0.0
        %1649 = vmatpush1.msra.mxu0 %v1522
        %1650 = vmatprep.subr.mxu0 0.0
        %1651 = vmatpush1.msra.mxu0 %v1523
        %1652 = vmatprep.subr.mxu0 0.0
        %1653 = vmatpush1.msra.mxu0 %v1524
        %1654 = vmatprep.subr.mxu0 0.0
        %1655 = vmatpush1.msra.mxu0 %v1525
        %1656 = vmatprep.subr.mxu0 0.0
        %1657 = vmatpush1.msra.mxu0 %v1526
        %1658 = vmatprep.subr.mxu0 0.0
        %1659 = vmatpush1.msra.mxu0 %v1527
        %1660 = vmatprep.subr.mxu0 0.0
        %1661 = vmatpush1.msra.mxu0 %v1528
        %1662 = vmatprep.subr.mxu0 0.0
        %1663 = vmatpush1.msra.mxu0 %v1529
        %1664 = vmatprep.subr.mxu0 0.0
        %1665 = vmatpush1.msra.mxu0 %v1530
        %1666 = vmatprep.subr.mxu0 0.0
        %1667 = vmatpush1.msra.mxu0 %v1531
        %1668 = vmatprep.subr.mxu0 0.0
        %1669 = vmatpush1.msra.mxu0 %v1532
        %1670 = vmatprep.subr.mxu0 0.0
        %1671 = vmatpush1.msra.mxu0 %v1533
        %1672 = vmatprep.subr.mxu0 0.0
        %1673 = vmatpush1.msra.mxu0 %v1534
        %1674 = vmatprep.mubr.f32.mxu0 %v405
        %1675 = vmatmul.mubr.f32.gmra.mrb[0].mxu0 %v404
        %v1676 = vpop.f32.mrb[0].mxu0
        %v1677 = vadd.f32 %v1602, %v1676
        %v1678 = vpop.f32.mrb[0].mxu0
        %1679 = vmatprep.mubr.f32.mxu0 %v409
        %1680 = vmatmul.mubr.f32.gmra.mrb[0].mxu0 %v408
        %v1681 = vpop.f32.mrb[0].mxu0
        %v1682 = vadd.f32 %v1607, %v1681
        %v1683 = vpop.f32.mrb[0].mxu0
        %1684 = vdwg.mxu0
        %s1685 = scalar_lea.vmem %s5, 512
        %v1686 = vld [vmem:[%s1685] sm:$0xff]
        %v1687 = vld [vmem:[%s1685 + $0x8] sm:$0xff]
        %v1688 = vld [vmem:[%s1685 + $0x10] sm:$0xff]
        %v1689 = vld [vmem:[%s1685 + $0x18] sm:$0xff]
        %v1690 = vld [vmem:[%s1685 + $0x20] sm:$0xff]
        %v1691 = vld [vmem:[%s1685 + $0x28] sm:$0xff]
        %v1692 = vld [vmem:[%s1685 + $0x30] sm:$0xff]
        %v1693 = vld [vmem:[%s1685 + $0x38] sm:$0xff]
        %v1694 = vld [vmem:[%s1685 + $0x40] sm:$0xff]
        %v1695 = vld [vmem:[%s1685 + $0x48] sm:$0xff]
        %v1696 = vld [vmem:[%s1685 + $0x50] sm:$0xff]
        %v1697 = vld [vmem:[%s1685 + $0x58] sm:$0xff]
        %v1698 = vld [vmem:[%s1685 + $0x60] sm:$0xff]
        %v1699 = vld [vmem:[%s1685 + $0x68] sm:$0xff]
        %v1700 = vld [vmem:[%s1685 + $0x70] sm:$0xff]
        %v1701 = vld [vmem:[%s1685 + $0x78] sm:$0xff]
        %v1702 = vld [vmem:[%s1685 + $0x80] sm:$0xff]
        %v1703 = vld [vmem:[%s1685 + $0x88] sm:$0xff]
        %v1704 = vld [vmem:[%s1685 + $0x90] sm:$0xff]
        %v1705 = vld [vmem:[%s1685 + $0x98] sm:$0xff]
        %v1706 = vld [vmem:[%s1685 + $0xa0] sm:$0xff]
        %v1707 = vld [vmem:[%s1685 + $0xa8] sm:$0xff]
        %v1708 = vld [vmem:[%s1685 + $0xb0] sm:$0xff]
        %v1709 = vld [vmem:[%s1685 + $0xb8] sm:$0xff]
        %v1710 = vld [vmem:[%s1685 + $0xc0] sm:$0xff]
        %v1711 = vld [vmem:[%s1685 + $0xc8] sm:$0xff]
        %v1712 = vld [vmem:[%s1685 + $0xd0] sm:$0xff]
        %v1713 = vld [vmem:[%s1685 + $0xd8] sm:$0xff]
        %v1714 = vld [vmem:[%s1685 + $0xe0] sm:$0xff]
        %v1715 = vld [vmem:[%s1685 + $0xe8] sm:$0xff]
        %v1716 = vld [vmem:[%s1685 + $0xf0] sm:$0xff]
        %v1717 = vld [vmem:[%s1685 + $0xf8] sm:$0xff]
        %v1718 = vld [vmem:[%s1685 + $0x100] sm:$0xff]
        %v1719 = vld [vmem:[%s1685 + $0x108] sm:$0xff]
        %v1720 = vld [vmem:[%s1685 + $0x110] sm:$0xff]
        %v1721 = vld [vmem:[%s1685 + $0x118] sm:$0xff]
        %v1722 = vld [vmem:[%s1685 + $0x120] sm:$0xff]
        %v1723 = vld [vmem:[%s1685 + $0x128] sm:$0xff]
        %v1724 = vld [vmem:[%s1685 + $0x130] sm:$0xff]
        %v1725 = vld [vmem:[%s1685 + $0x138] sm:$0xff]
        %v1726 = vld [vmem:[%s1685 + $0x140] sm:$0xff]
        %v1727 = vld [vmem:[%s1685 + $0x148] sm:$0xff]
        %v1728 = vld [vmem:[%s1685 + $0x150] sm:$0xff]
        %v1729 = vld [vmem:[%s1685 + $0x158] sm:$0xff]
        %v1730 = vld [vmem:[%s1685 + $0x160] sm:$0xff]
        %v1731 = vld [vmem:[%s1685 + $0x168] sm:$0xff]
        %v1732 = vld [vmem:[%s1685 + $0x170] sm:$0xff]
        %v1733 = vld [vmem:[%s1685 + $0x178] sm:$0xff]
        %v1734 = vld [vmem:[%s1685 + $0x180] sm:$0xff]
        %v1735 = vld [vmem:[%s1685 + $0x188] sm:$0xff]
        %v1736 = vld [vmem:[%s1685 + $0x190] sm:$0xff]
        %v1737 = vld [vmem:[%s1685 + $0x198] sm:$0xff]
        %v1738 = vld [vmem:[%s1685 + $0x1a0] sm:$0xff]
        %v1739 = vld [vmem:[%s1685 + $0x1a8] sm:$0xff]
        %v1740 = vld [vmem:[%s1685 + $0x1b0] sm:$0xff]
        %v1741 = vld [vmem:[%s1685 + $0x1b8] sm:$0xff]
        %v1742 = vld [vmem:[%s1685 + $0x1c0] sm:$0xff]
        %v1743 = vld [vmem:[%s1685 + $0x1c8] sm:$0xff]
        %v1744 = vld [vmem:[%s1685 + $0x1d0] sm:$0xff]
        %v1745 = vld [vmem:[%s1685 + $0x1d8] sm:$0xff]
        %v1746 = vld [vmem:[%s1685 + $0x1e0] sm:$0xff]
        %v1747 = vld [vmem:[%s1685 + $0x1e8] sm:$0xff]
        %v1748 = vld [vmem:[%s1685 + $0x1f0] sm:$0xff]
        %v1749 = vld [vmem:[%s1685 + $0x1f8] sm:$0xff]
        %1750 = vmatprep.subr.mxu0 0.0
        %1751 = vmatpush1.msra.mxu0 %v1686
        %1752 = vmatprep.subr.mxu0 0.0
        %1753 = vmatpush1.msra.mxu0 %v1687
        %1754 = vmatprep.subr.mxu0 0.0
        %1755 = vmatpush1.msra.mxu0 %v1688
        %1756 = vmatprep.subr.mxu0 0.0
        %1757 = vmatpush1.msra.mxu0 %v1689
        %1758 = vmatprep.subr.mxu0 0.0
        %1759 = vmatpush1.msra.mxu0 %v1690
        %1760 = vmatprep.subr.mxu0 0.0
        %1761 = vmatpush1.msra.mxu0 %v1691
        %1762 = vmatprep.subr.mxu0 0.0
        %1763 = vmatpush1.msra.mxu0 %v1692
        %1764 = vmatprep.subr.mxu0 0.0
        %1765 = vmatpush1.msra.mxu0 %v1693
        %1766 = vmatprep.subr.mxu0 0.0
        %1767 = vmatpush1.msra.mxu0 %v1694
        %1768 = vmatprep.subr.mxu0 0.0
        %1769 = vmatpush1.msra.mxu0 %v1695
        %1770 = vmatprep.subr.mxu0 0.0
        %1771 = vmatpush1.msra.mxu0 %v1696
        %1772 = vmatprep.subr.mxu0 0.0
        %1773 = vmatpush1.msra.mxu0 %v1697
        %1774 = vmatprep.subr.mxu0 0.0
        %1775 = vmatpush1.msra.mxu0 %v1698
        %1776 = vmatprep.subr.mxu0 0.0
        %1777 = vmatpush1.msra.mxu0 %v1699
        %1778 = vmatprep.subr.mxu0 0.0
        %1779 = vmatpush1.msra.mxu0 %v1700
        %1780 = vmatprep.subr.mxu0 0.0
        %1781 = vmatpush1.msra.mxu0 %v1701
        %1782 = vmatprep.subr.mxu0 0.0
        %1783 = vmatpush1.msra.mxu0 %v1702
        %1784 = vmatprep.subr.mxu0 0.0
        %1785 = vmatpush1.msra.mxu0 %v1703
        %1786 = vmatprep.subr.mxu0 0.0
        %1787 = vmatpush1.msra.mxu0 %v1704
        %1788 = vmatprep.subr.mxu0 0.0
        %1789 = vmatpush1.msra.mxu0 %v1705
        %1790 = vmatprep.subr.mxu0 0.0
        %1791 = vmatpush1.msra.mxu0 %v1706
        %1792 = vmatprep.subr.mxu0 0.0
        %1793 = vmatpush1.msra.mxu0 %v1707
        %1794 = vmatprep.subr.mxu0 0.0
        %1795 = vmatpush1.msra.mxu0 %v1708
        %1796 = vmatprep.subr.mxu0 0.0
        %1797 = vmatpush1.msra.mxu0 %v1709
        %1798 = vmatprep.subr.mxu0 0.0
        %1799 = vmatpush1.msra.mxu0 %v1710
        %1800 = vmatprep.subr.mxu0 0.0
        %1801 = vmatpush1.msra.mxu0 %v1711
        %1802 = vmatprep.subr.mxu0 0.0
        %1803 = vmatpush1.msra.mxu0 %v1712
        %1804 = vmatprep.subr.mxu0 0.0
        %1805 = vmatpush1.msra.mxu0 %v1713
        %1806 = vmatprep.subr.mxu0 0.0
        %1807 = vmatpush1.msra.mxu0 %v1714
        %1808 = vmatprep.subr.mxu0 0.0
        %1809 = vmatpush1.msra.mxu0 %v1715
        %1810 = vmatprep.subr.mxu0 0.0
        %1811 = vmatpush1.msra.mxu0 %v1716
        %1812 = vmatprep.subr.mxu0 0.0
        %1813 = vmatpush1.msra.mxu0 %v1717
        %1814 = vmatprep.mubr.f32.mxu0 %v411
        %1815 = vmatmul.mubr.f32.gmra.mrb[0].mxu0 %v410
        %v1816 = vpop.f32.mrb[0].mxu0
        %v1817 = vadd.f32 0.0, %v1816
        %v1818 = vpop.f32.mrb[0].mxu0
        %1819 = vmatprep.mubr.f32.mxu0 %v415
        %1820 = vmatmul.mubr.f32.gmra.mrb[0].mxu0 %v414
        %v1821 = vpop.f32.mrb[0].mxu0
        %v1822 = vadd.f32 0.0, %v1821
        %v1823 = vpop.f32.mrb[0].mxu0
        %1824 = vdwg.mxu0
        %1825 = vmatprep.subr.mxu0 0.0
        %1826 = vmatpush1.msra.mxu0 %v1718
        %1827 = vmatprep.subr.mxu0 0.0
        %1828 = vmatpush1.msra.mxu0 %v1719
        %1829 = vmatprep.subr.mxu0 0.0
        %1830 = vmatpush1.msra.mxu0 %v1720
        %1831 = vmatprep.subr.mxu0 0.0
        %1832 = vmatpush1.msra.mxu0 %v1721
        %1833 = vmatprep.subr.mxu0 0.0
        %1834 = vmatpush1.msra.mxu0 %v1722
        %1835 = vmatprep.subr.mxu0 0.0
        %1836 = vmatpush1.msra.mxu0 %v1723
        %1837 = vmatprep.subr.mxu0 0.0
        %1838 = vmatpush1.msra.mxu0 %v1724
        %1839 = vmatprep.subr.mxu0 0.0
        %1840 = vmatpush1.msra.mxu0 %v1725
        %1841 = vmatprep.subr.mxu0 0.0
        %1842 = vmatpush1.msra.mxu0 %v1726
        %1843 = vmatprep.subr.mxu0 0.0
        %1844 = vmatpush1.msra.mxu0 %v1727
        %1845 = vmatprep.subr.mxu0 0.0
        %1846 = vmatpush1.msra.mxu0 %v1728
        %1847 = vmatprep.subr.mxu0 0.0
        %1848 = vmatpush1.msra.mxu0 %v1729
        %1849 = vmatprep.subr.mxu0 0.0
        %1850 = vmatpush1.msra.mxu0 %v1730
        %1851 = vmatprep.subr.mxu0 0.0
        %1852 = vmatpush1.msra.mxu0 %v1731
        %1853 = vmatprep.subr.mxu0 0.0
        %1854 = vmatpush1.msra.mxu0 %v1732
        %1855 = vmatprep.subr.mxu0 0.0
        %1856 = vmatpush1.msra.mxu0 %v1733
        %1857 = vmatprep.subr.mxu0 0.0
        %1858 = vmatpush1.msra.mxu0 %v1734
        %1859 = vmatprep.subr.mxu0 0.0
        %1860 = vmatpush1.msra.mxu0 %v1735
        %1861 = vmatprep.subr.mxu0 0.0
        %1862 = vmatpush1.msra.mxu0 %v1736
        %1863 = vmatprep.subr.mxu0 0.0
        %1864 = vmatpush1.msra.mxu0 %v1737
        %1865 = vmatprep.subr.mxu0 0.0
        %1866 = vmatpush1.msra.mxu0 %v1738
        %1867 = vmatprep.subr.mxu0 0.0
        %1868 = vmatpush1.msra.mxu0 %v1739
        %1869 = vmatprep.subr.mxu0 0.0
        %1870 = vmatpush1.msra.mxu0 %v1740
        %1871 = vmatprep.subr.mxu0 0.0
        %1872 = vmatpush1.msra.mxu0 %v1741
        %1873 = vmatprep.subr.mxu0 0.0
        %1874 = vmatpush1.msra.mxu0 %v1742
        %1875 = vmatprep.subr.mxu0 0.0
        %1876 = vmatpush1.msra.mxu0 %v1743
        %1877 = vmatprep.subr.mxu0 0.0
        %1878 = vmatpush1.msra.mxu0 %v1744
        %1879 = vmatprep.subr.mxu0 0.0
        %1880 = vmatpush1.msra.mxu0 %v1745
        %1881 = vmatprep.subr.mxu0 0.0
        %1882 = vmatpush1.msra.mxu0 %v1746
        %1883 = vmatprep.subr.mxu0 0.0
        %1884 = vmatpush1.msra.mxu0 %v1747
        %1885 = vmatprep.subr.mxu0 0.0
        %1886 = vmatpush1.msra.mxu0 %v1748
        %1887 = vmatprep.subr.mxu0 0.0
        %1888 = vmatpush1.msra.mxu0 %v1749
        %1889 = vmatprep.mubr.f32.mxu0 %v413
        %1890 = vmatmul.mubr.f32.gmra.mrb[0].mxu0 %v412
        %v1891 = vpop.f32.mrb[0].mxu0
        %v1892 = vadd.f32 %v1817, %v1891
        %v1893 = vpop.f32.mrb[0].mxu0
        %1894 = vmatprep.mubr.f32.mxu0 %v417
        %1895 = vmatmul.mubr.f32.gmra.mrb[0].mxu0 %v416
        %v1896 = vpop.f32.mrb[0].mxu0
        %v1897 = vadd.f32 %v1822, %v1896
        %v1898 = vpop.f32.mrb[0].mxu0
        %1899 = vdwg.mxu0
        %s1900 = scalar_lea.vmem %s6, 512
        %v1901 = vld [vmem:[%s1900] sm:$0xff]
        %v1902 = vld [vmem:[%s1900 + $0x8] sm:$0xff]
        %v1903 = vld [vmem:[%s1900 + $0x10] sm:$0xff]
        %v1904 = vld [vmem:[%s1900 + $0x18] sm:$0xff]
        %v1905 = vld [vmem:[%s1900 + $0x20] sm:$0xff]
        %v1906 = vld [vmem:[%s1900 + $0x28] sm:$0xff]
        %v1907 = vld [vmem:[%s1900 + $0x30] sm:$0xff]
        %v1908 = vld [vmem:[%s1900 + $0x38] sm:$0xff]
        %v1909 = vld [vmem:[%s1900 + $0x40] sm:$0xff]
        %v1910 = vld [vmem:[%s1900 + $0x48] sm:$0xff]
        %v1911 = vld [vmem:[%s1900 + $0x50] sm:$0xff]
        %v1912 = vld [vmem:[%s1900 + $0x58] sm:$0xff]
        %v1913 = vld [vmem:[%s1900 + $0x60] sm:$0xff]
        %v1914 = vld [vmem:[%s1900 + $0x68] sm:$0xff]
        %v1915 = vld [vmem:[%s1900 + $0x70] sm:$0xff]
        %v1916 = vld [vmem:[%s1900 + $0x78] sm:$0xff]
        %v1917 = vld [vmem:[%s1900 + $0x80] sm:$0xff]
        %v1918 = vld [vmem:[%s1900 + $0x88] sm:$0xff]
        %v1919 = vld [vmem:[%s1900 + $0x90] sm:$0xff]
        %v1920 = vld [vmem:[%s1900 + $0x98] sm:$0xff]
        %v1921 = vld [vmem:[%s1900 + $0xa0] sm:$0xff]
        %v1922 = vld [vmem:[%s1900 + $0xa8] sm:$0xff]
        %v1923 = vld [vmem:[%s1900 + $0xb0] sm:$0xff]
        %v1924 = vld [vmem:[%s1900 + $0xb8] sm:$0xff]
        %v1925 = vld [vmem:[%s1900 + $0xc0] sm:$0xff]
        %v1926 = vld [vmem:[%s1900 + $0xc8] sm:$0xff]
        %v1927 = vld [vmem:[%s1900 + $0xd0] sm:$0xff]
        %v1928 = vld [vmem:[%s1900 + $0xd8] sm:$0xff]
        %v1929 = vld [vmem:[%s1900 + $0xe0] sm:$0xff]
        %v1930 = vld [vmem:[%s1900 + $0xe8] sm:$0xff]
        %v1931 = vld [vmem:[%s1900 + $0xf0] sm:$0xff]
        %v1932 = vld [vmem:[%s1900 + $0xf8] sm:$0xff]
        %v1933 = vld [vmem:[%s1900 + $0x100] sm:$0xff]
        %v1934 = vld [vmem:[%s1900 + $0x108] sm:$0xff]
        %v1935 = vld [vmem:[%s1900 + $0x110] sm:$0xff]
        %v1936 = vld [vmem:[%s1900 + $0x118] sm:$0xff]
        %v1937 = vld [vmem:[%s1900 + $0x120] sm:$0xff]
        %v1938 = vld [vmem:[%s1900 + $0x128] sm:$0xff]
        %v1939 = vld [vmem:[%s1900 + $0x130] sm:$0xff]
        %v1940 = vld [vmem:[%s1900 + $0x138] sm:$0xff]
        %v1941 = vld [vmem:[%s1900 + $0x140] sm:$0xff]
        %v1942 = vld [vmem:[%s1900 + $0x148] sm:$0xff]
        %v1943 = vld [vmem:[%s1900 + $0x150] sm:$0xff]
        %v1944 = vld [vmem:[%s1900 + $0x158] sm:$0xff]
        %v1945 = vld [vmem:[%s1900 + $0x160] sm:$0xff]
        %v1946 = vld [vmem:[%s1900 + $0x168] sm:$0xff]
        %v1947 = vld [vmem:[%s1900 + $0x170] sm:$0xff]
        %v1948 = vld [vmem:[%s1900 + $0x178] sm:$0xff]
        %v1949 = vld [vmem:[%s1900 + $0x180] sm:$0xff]
        %v1950 = vld [vmem:[%s1900 + $0x188] sm:$0xff]
        %v1951 = vld [vmem:[%s1900 + $0x190] sm:$0xff]
        %v1952 = vld [vmem:[%s1900 + $0x198] sm:$0xff]
        %v1953 = vld [vmem:[%s1900 + $0x1a0] sm:$0xff]
        %v1954 = vld [vmem:[%s1900 + $0x1a8] sm:$0xff]
        %v1955 = vld [vmem:[%s1900 + $0x1b0] sm:$0xff]
        %v1956 = vld [vmem:[%s1900 + $0x1b8] sm:$0xff]
        %v1957 = vld [vmem:[%s1900 + $0x1c0] sm:$0xff]
        %v1958 = vld [vmem:[%s1900 + $0x1c8] sm:$0xff]
        %v1959 = vld [vmem:[%s1900 + $0x1d0] sm:$0xff]
        %v1960 = vld [vmem:[%s1900 + $0x1d8] sm:$0xff]
        %v1961 = vld [vmem:[%s1900 + $0x1e0] sm:$0xff]
        %v1962 = vld [vmem:[%s1900 + $0x1e8] sm:$0xff]
        %v1963 = vld [vmem:[%s1900 + $0x1f0] sm:$0xff]
        %v1964 = vld [vmem:[%s1900 + $0x1f8] sm:$0xff]
        %1965 = vmatprep.subr.mxu0 0.0
        %1966 = vmatpush1.msra.mxu0 %v1901
        %1967 = vmatprep.subr.mxu0 0.0
        %1968 = vmatpush1.msra.mxu0 %v1902
        %1969 = vmatprep.subr.mxu0 0.0
        %1970 = vmatpush1.msra.mxu0 %v1903
        %1971 = vmatprep.subr.mxu0 0.0
        %1972 = vmatpush1.msra.mxu0 %v1904
        %1973 = vmatprep.subr.mxu0 0.0
        %1974 = vmatpush1.msra.mxu0 %v1905
        %1975 = vmatprep.subr.mxu0 0.0
        %1976 = vmatpush1.msra.mxu0 %v1906
        %1977 = vmatprep.subr.mxu0 0.0
        %1978 = vmatpush1.msra.mxu0 %v1907
        %1979 = vmatprep.subr.mxu0 0.0
        %1980 = vmatpush1.msra.mxu0 %v1908
        %1981 = vmatprep.subr.mxu0 0.0
        %1982 = vmatpush1.msra.mxu0 %v1909
        %1983 = vmatprep.subr.mxu0 0.0
        %1984 = vmatpush1.msra.mxu0 %v1910
        %1985 = vmatprep.subr.mxu0 0.0
        %1986 = vmatpush1.msra.mxu0 %v1911
        %1987 = vmatprep.subr.mxu0 0.0
        %1988 = vmatpush1.msra.mxu0 %v1912
        %1989 = vmatprep.subr.mxu0 0.0
        %1990 = vmatpush1.msra.mxu0 %v1913
        %1991 = vmatprep.subr.mxu0 0.0
        %1992 = vmatpush1.msra.mxu0 %v1914
        %1993 = vmatprep.subr.mxu0 0.0
        %1994 = vmatpush1.msra.mxu0 %v1915
        %1995 = vmatprep.subr.mxu0 0.0
        %1996 = vmatpush1.msra.mxu0 %v1916
        %1997 = vmatprep.subr.mxu0 0.0
        %1998 = vmatpush1.msra.mxu0 %v1917
        %1999 = vmatprep.subr.mxu0 0.0
        %2000 = vmatpush1.msra.mxu0 %v1918
        %2001 = vmatprep.subr.mxu0 0.0
        %2002 = vmatpush1.msra.mxu0 %v1919
        %2003 = vmatprep.subr.mxu0 0.0
        %2004 = vmatpush1.msra.mxu0 %v1920
        %2005 = vmatprep.subr.mxu0 0.0
        %2006 = vmatpush1.msra.mxu0 %v1921
        %2007 = vmatprep.subr.mxu0 0.0
        %2008 = vmatpush1.msra.mxu0 %v1922
        %2009 = vmatprep.subr.mxu0 0.0
        %2010 = vmatpush1.msra.mxu0 %v1923
        %2011 = vmatprep.subr.mxu0 0.0
        %2012 = vmatpush1.msra.mxu0 %v1924
        %2013 = vmatprep.subr.mxu0 0.0
        %2014 = vmatpush1.msra.mxu0 %v1925
        %2015 = vmatprep.subr.mxu0 0.0
        %2016 = vmatpush1.msra.mxu0 %v1926
        %2017 = vmatprep.subr.mxu0 0.0
        %2018 = vmatpush1.msra.mxu0 %v1927
        %2019 = vmatprep.subr.mxu0 0.0
        %2020 = vmatpush1.msra.mxu0 %v1928
        %2021 = vmatprep.subr.mxu0 0.0
        %2022 = vmatpush1.msra.mxu0 %v1929
        %2023 = vmatprep.subr.mxu0 0.0
        %2024 = vmatpush1.msra.mxu0 %v1930
        %2025 = vmatprep.subr.mxu0 0.0
        %2026 = vmatpush1.msra.mxu0 %v1931
        %2027 = vmatprep.subr.mxu0 0.0
        %2028 = vmatpush1.msra.mxu0 %v1932
        %2029 = vmatprep.mubr.f32.mxu0 %v419
        %2030 = vmatmul.mubr.f32.gmra.mrb[0].mxu0 %v418
        %v2031 = vpop.f32.mrb[0].mxu0
        %v2032 = vadd.f32 0.0, %v2031
        %v2033 = vpop.f32.mrb[0].mxu0
        %2034 = vmatprep.mubr.f32.mxu0 %v423
        %2035 = vmatmul.mubr.f32.gmra.mrb[0].mxu0 %v422
        %v2036 = vpop.f32.mrb[0].mxu0
        %v2037 = vadd.f32 0.0, %v2036
        %v2038 = vpop.f32.mrb[0].mxu0
        %2039 = vdwg.mxu0
        %2040 = vmatprep.subr.mxu0 0.0
        %2041 = vmatpush1.msra.mxu0 %v1933
        %2042 = vmatprep.subr.mxu0 0.0
        %2043 = vmatpush1.msra.mxu0 %v1934
        %2044 = vmatprep.subr.mxu0 0.0
        %2045 = vmatpush1.msra.mxu0 %v1935
        %2046 = vmatprep.subr.mxu0 0.0
        %2047 = vmatpush1.msra.mxu0 %v1936
        %2048 = vmatprep.subr.mxu0 0.0
        %2049 = vmatpush1.msra.mxu0 %v1937
        %2050 = vmatprep.subr.mxu0 0.0
        %2051 = vmatpush1.msra.mxu0 %v1938
        %2052 = vmatprep.subr.mxu0 0.0
        %2053 = vmatpush1.msra.mxu0 %v1939
        %2054 = vmatprep.subr.mxu0 0.0
        %2055 = vmatpush1.msra.mxu0 %v1940
        %2056 = vmatprep.subr.mxu0 0.0
        %2057 = vmatpush1.msra.mxu0 %v1941
        %2058 = vmatprep.subr.mxu0 0.0
        %2059 = vmatpush1.msra.mxu0 %v1942
        %2060 = vmatprep.subr.mxu0 0.0
        %2061 = vmatpush1.msra.mxu0 %v1943
        %2062 = vmatprep.subr.mxu0 0.0
        %2063 = vmatpush1.msra.mxu0 %v1944
        %2064 = vmatprep.subr.mxu0 0.0
        %2065 = vmatpush1.msra.mxu0 %v1945
        %2066 = vmatprep.subr.mxu0 0.0
        %2067 = vmatpush1.msra.mxu0 %v1946
        %2068 = vmatprep.subr.mxu0 0.0
        %2069 = vmatpush1.msra.mxu0 %v1947
        %2070 = vmatprep.subr.mxu0 0.0
        %2071 = vmatpush1.msra.mxu0 %v1948
        %2072 = vmatprep.subr.mxu0 0.0
        %2073 = vmatpush1.msra.mxu0 %v1949
        %2074 = vmatprep.subr.mxu0 0.0
        %2075 = vmatpush1.msra.mxu0 %v1950
        %2076 = vmatprep.subr.mxu0 0.0
        %2077 = vmatpush1.msra.mxu0 %v1951
        %2078 = vmatprep.subr.mxu0 0.0
        %2079 = vmatpush1.msra.mxu0 %v1952
        %2080 = vmatprep.subr.mxu0 0.0
        %2081 = vmatpush1.msra.mxu0 %v1953
        %2082 = vmatprep.subr.mxu0 0.0
        %2083 = vmatpush1.msra.mxu0 %v1954
        %2084 = vmatprep.subr.mxu0 0.0
        %2085 = vmatpush1.msra.mxu0 %v1955
        %2086 = vmatprep.subr.mxu0 0.0
        %2087 = vmatpush1.msra.mxu0 %v1956
        %2088 = vmatprep.subr.mxu0 0.0
        %2089 = vmatpush1.msra.mxu0 %v1957
        %2090 = vmatprep.subr.mxu0 0.0
        %2091 = vmatpush1.msra.mxu0 %v1958
        %2092 = vmatprep.subr.mxu0 0.0
        %2093 = vmatpush1.msra.mxu0 %v1959
        %2094 = vmatprep.subr.mxu0 0.0
        %2095 = vmatpush1.msra.mxu0 %v1960
        %2096 = vmatprep.subr.mxu0 0.0
        %2097 = vmatpush1.msra.mxu0 %v1961
        %2098 = vmatprep.subr.mxu0 0.0
        %2099 = vmatpush1.msra.mxu0 %v1962
        %2100 = vmatprep.subr.mxu0 0.0
        %2101 = vmatpush1.msra.mxu0 %v1963
        %2102 = vmatprep.subr.mxu0 0.0
        %2103 = vmatpush1.msra.mxu0 %v1964
        %2104 = vmatprep.mubr.f32.mxu0 %v421
        %2105 = vmatmul.mubr.f32.gmra.mrb[0].mxu0 %v420
        %v2106 = vpop.f32.mrb[0].mxu0
        %v2107 = vadd.f32 %v2032, %v2106
        %v2108 = vpop.f32.mrb[0].mxu0
        %2109 = vmatprep.mubr.f32.mxu0 %v425
        %2110 = vmatmul.mubr.f32.gmra.mrb[0].mxu0 %v424
        %v2111 = vpop.f32.mrb[0].mxu0
        %v2112 = vadd.f32 %v2037, %v2111
        %v2113 = vpop.f32.mrb[0].mxu0
        %2114 = vdwg.mxu0
        %v2116 = vsel %vm1072, %v1677, 0
        %v2119 = vsel %vm1072, %v1682, 0
        %v2122 = vsel %vm1072, %v1892, 0
        %v2125 = vsel %vm1072, %v1897, 0
        %2127 = vmatprep.subr.mxu0 0.0
        %2128 = vmatpush1.xpose.msra.mxu0 %v2122
        %2129 = vmatprep.subr.mxu0 0.0
        %2130 = vmatpush1.xpose.msra.mxu0 %v2125
        %2131 = vmatprep.subr.mxu0 0.0
        %2132 = vmatpush1.xpose.msra.mxu0 0.0
        %2133 = vmatprep.subr.mxu0 0.0
        %2134 = vmatpush1.xpose.msra.mxu0 0.0
        %2135 = vmatprep.subr.mxu0 0.0
        %2136 = vmatpush1.xpose.msra.mxu0 0.0
        %2137 = vmatprep.subr.mxu0 0.0
        %2138 = vmatpush1.xpose.msra.mxu0 0.0
        %2139 = vmatprep.subr.mxu0 0.0
        %2140 = vmatpush1.xpose.msra.mxu0 0.0
        %2141 = vmatprep.subr.mxu0 0.0
        %2142 = vmatpush1.xpose.msra.mxu0 0.0
        %2143 = vmatprep.subr.mxu0 0.0
        %2144 = vmatpush1.xpose.msra.mxu0 0.0
        %2145 = vmatprep.subr.mxu0 0.0
        %2146 = vmatpush1.xpose.msra.mxu0 0.0
        %2147 = vmatprep.subr.mxu0 0.0
        %2148 = vmatpush1.xpose.msra.mxu0 0.0
        %2149 = vmatprep.subr.mxu0 0.0
        %2150 = vmatpush1.xpose.msra.mxu0 0.0
        %2151 = vmatprep.subr.mxu0 0.0
        %2152 = vmatpush1.xpose.msra.mxu0 0.0
        %2153 = vmatprep.subr.mxu0 0.0
        %2154 = vmatpush1.xpose.msra.mxu0 0.0
        %2155 = vmatprep.subr.mxu0 0.0
        %2156 = vmatpush1.xpose.msra.mxu0 0.0
        %2157 = vmatprep.subr.mxu0 0.0
        %2158 = vmatpush1.xpose.msra.mxu0 0.0
        %2159 = vmatprep.subr.mxu0 0.0
        %2160 = vmatpush1.xpose.msra.mxu0 0.0
        %2161 = vmatprep.subr.mxu0 0.0
        %2162 = vmatpush1.xpose.msra.mxu0 0.0
        %2163 = vmatprep.subr.mxu0 0.0
        %2164 = vmatpush1.xpose.msra.mxu0 0.0
        %2165 = vmatprep.subr.mxu0 0.0
        %2166 = vmatpush1.xpose.msra.mxu0 0.0
        %2167 = vmatprep.subr.mxu0 0.0
        %2168 = vmatpush1.xpose.msra.mxu0 0.0
        %2169 = vmatprep.subr.mxu0 0.0
        %2170 = vmatpush1.xpose.msra.mxu0 0.0
        %2171 = vmatprep.subr.mxu0 0.0
        %2172 = vmatpush1.xpose.msra.mxu0 0.0
        %2173 = vmatprep.subr.mxu0 0.0
        %2174 = vmatpush1.xpose.msra.mxu0 0.0
        %2175 = vmatprep.subr.mxu0 0.0
        %2176 = vmatpush1.xpose.msra.mxu0 0.0
        %2177 = vmatprep.subr.mxu0 0.0
        %2178 = vmatpush1.xpose.msra.mxu0 0.0
        %2179 = vmatprep.subr.mxu0 0.0
        %2180 = vmatpush1.xpose.msra.mxu0 0.0
        %2181 = vmatprep.subr.mxu0 0.0
        %2182 = vmatpush1.xpose.msra.mxu0 0.0
        %2183 = vmatprep.subr.mxu0 0.0
        %2184 = vmatpush1.xpose.msra.mxu0 0.0
        %2185 = vmatprep.subr.mxu0 0.0
        %2186 = vmatpush1.xpose.msra.mxu0 0.0
        %2187 = vmatprep.subr.mxu0 0.0
        %2188 = vmatpush1.xpose.msra.mxu0 0.0
        %2189 = vmatprep.subr.mxu0 0.0
        %2190 = vmatpush1.xpose.msra.mxu0 0.0
        %2191 = vmatprep.mubr.f32.mxu0 0.0
        %2192 = vmatmul.mubr.f32.gmra.mrb[0].mxu0 %v2116
        %v2193 = vpop.f32.mrb[0].mxu0
        %v2194 = vadd.f32 0.0, %v2193
        %v2195 = vpop.f32.mrb[0].mxu0
        %2196 = vmatprep.mubr.f32.mxu0 0.0
        %2197 = vmatmul.mubr.f32.gmra.mrb[0].mxu0 %v2119
        %v2198 = vpop.f32.mrb[0].mxu0
        %v2199 = vadd.f32 0.0, %v2198
        %v2200 = vpop.f32.mrb[0].mxu0
        %2201 = vdwg.mxu0
        %v2202 = vmul.f32 %v2194, 0.125
        %v2203 = vmul.f32 %v2199, 0.125
        %v2204 = vsel %vm428, -1e+09, %v2202
        %v2205 = vsel %vm429, -1e+09, %v2203
        %v2206 = vsel %vm1164, %v2204, -inf
        %2207 = vmax.xlane.f32.xlu0 %v2206
        %v2208 = vpop.xlane.xlu0 %2207
        %v2209 = vsel %vm1164, %v2205, -inf
        %2210 = vmax.xlane.f32.xlu0 %v2209
        %v2211 = vpop.xlane.xlu0 %2210
        %v2212 = vsub.f32 %v2204, %v2208
        %v2213 = vsub.f32 %v2205, %v2211
        %v2214 = vmul.f32 %v2212, 1.442695
        %v2215 = vpow.pop %v2214
        %v2216 = vmul.f32 %v2213, 1.442695
        %v2217 = vpow.pop %v2216
        %v2218 = vsel %vm1164, %v2215, 0.0
        %2219 = vadd.xlane.f32.xlu0 %v2218
        %v2220 = vpop.xlane.xlu0 %2219
        %v2221 = vsel %vm1164, %v2217, 0.0
        %2222 = vadd.xlane.f32.xlu0 %v2221
        %v2223 = vpop.xlane.xlu0 %2222
        %v2224 = vrcp.pop %v2220
        %v2225 = vmul.f32 %v2215, %v2224
        %v2226 = vrcp.pop %v2223
        %v2227 = vmul.f32 %v2217, %v2226
        %s2228 = scalar_lea.vmem %s381, 16 [#allocation4]
        %2229 = vst.msk [vmem:[%s2228] sm:$0xff] %vm1164, %v2225
        %2230 = vst.msk [vmem:[%s2228 + $0x8] sm:$0xff] %vm1164, %v2227
        %v2232 = vsel %vm1164, %v2225, 0
        %v2235 = vsel %vm1164, %v2227, 0
        %2237 = vmatprep.subr.mxu0 0.0
        %2238 = vmatpush1.msra.mxu0 %v2107
        %2239 = vmatprep.subr.mxu0 0.0
        %2240 = vmatpush1.msra.mxu0 %v2112
        %2241 = vmatprep.subr.mxu0 0.0
        %2242 = vmatpush1.msra.mxu0 0.0
        %2243 = vmatprep.subr.mxu0 0.0
        %2244 = vmatpush1.msra.mxu0 0.0
        %2245 = vmatprep.subr.mxu0 0.0
        %2246 = vmatpush1.msra.mxu0 0.0
        %2247 = vmatprep.subr.mxu0 0.0
        %2248 = vmatpush1.msra.mxu0 0.0
        %2249 = vmatprep.subr.mxu0 0.0
        %2250 = vmatpush1.msra.mxu0 0.0
        %2251 = vmatprep.subr.mxu0 0.0
        %2252 = vmatpush1.msra.mxu0 0.0
        %2253 = vmatprep.subr.mxu0 0.0
        %2254 = vmatpush1.msra.mxu0 0.0
        %2255 = vmatprep.subr.mxu0 0.0
        %2256 = vmatpush1.msra.mxu0 0.0
        %2257 = vmatprep.subr.mxu0 0.0
        %2258 = vmatpush1.msra.mxu0 0.0
        %2259 = vmatprep.subr.mxu0 0.0
        %2260 = vmatpush1.msra.mxu0 0.0
        %2261 = vmatprep.subr.mxu0 0.0
        %2262 = vmatpush1.msra.mxu0 0.0
        %2263 = vmatprep.subr.mxu0 0.0
        %2264 = vmatpush1.msra.mxu0 0.0
        %2265 = vmatprep.subr.mxu0 0.0
        %2266 = vmatpush1.msra.mxu0 0.0
        %2267 = vmatprep.subr.mxu0 0.0
        %2268 = vmatpush1.msra.mxu0 0.0
        %2269 = vmatprep.subr.mxu0 0.0
        %2270 = vmatpush1.msra.mxu0 0.0
        %2271 = vmatprep.subr.mxu0 0.0
        %2272 = vmatpush1.msra.mxu0 0.0
        %2273 = vmatprep.subr.mxu0 0.0
        %2274 = vmatpush1.msra.mxu0 0.0
        %2275 = vmatprep.subr.mxu0 0.0
        %2276 = vmatpush1.msra.mxu0 0.0
        %2277 = vmatprep.subr.mxu0 0.0
        %2278 = vmatpush1.msra.mxu0 0.0
        %2279 = vmatprep.subr.mxu0 0.0
        %2280 = vmatpush1.msra.mxu0 0.0
        %2281 = vmatprep.subr.mxu0 0.0
        %2282 = vmatpush1.msra.mxu0 0.0
        %2283 = vmatprep.subr.mxu0 0.0
        %2284 = vmatpush1.msra.mxu0 0.0
        %2285 = vmatprep.subr.mxu0 0.0
        %2286 = vmatpush1.msra.mxu0 0.0
        %2287 = vmatprep.subr.mxu0 0.0
        %2288 = vmatpush1.msra.mxu0 0.0
        %2289 = vmatprep.subr.mxu0 0.0
        %2290 = vmatpush1.msra.mxu0 0.0
        %2291 = vmatprep.subr.mxu0 0.0
        %2292 = vmatpush1.msra.mxu0 0.0
        %2293 = vmatprep.subr.mxu0 0.0
        %2294 = vmatpush1.msra.mxu0 0.0
        %2295 = vmatprep.subr.mxu0 0.0
        %2296 = vmatpush1.msra.mxu0 0.0
        %2297 = vmatprep.subr.mxu0 0.0
        %2298 = vmatpush1.msra.mxu0 0.0
        %2299 = vmatprep.subr.mxu0 0.0
        %2300 = vmatpush1.msra.mxu0 0.0
        %2301 = vmatprep.mubr.f32.mxu0 0.0
        %2302 = vmatmul.mubr.f32.gmra.mrb[0].mxu0 %v2232
        %v2303 = vpop.f32.mrb[0].mxu0
        %v2304 = vadd.f32 0.0, %v2303
        %v2305 = vpop.f32.mrb[0].mxu0
        %2306 = vmatprep.mubr.f32.mxu0 0.0
        %2307 = vmatmul.mubr.f32.gmra.mrb[0].mxu0 %v2235
        %v2308 = vpop.f32.mrb[0].mxu0
        %v2309 = vadd.f32 0.0, %v2308
        %v2310 = vpop.f32.mrb[0].mxu0
        %2311 = vdwg.mxu0
        %s2312 = scalar_lea.vmem %s7, 256
        %v2313 = vld [vmem:[%s2312] sm:$0xff]
        %v2314 = vld [vmem:[%s2312 + $0x8] sm:$0xff]
        %v2315 = vld [vmem:[%s2312 + $0x10] sm:$0xff]
        %v2316 = vld [vmem:[%s2312 + $0x18] sm:$0xff]
        %v2317 = vld [vmem:[%s2312 + $0x20] sm:$0xff]
        %v2318 = vld [vmem:[%s2312 + $0x28] sm:$0xff]
        %v2319 = vld [vmem:[%s2312 + $0x30] sm:$0xff]
        %v2320 = vld [vmem:[%s2312 + $0x38] sm:$0xff]
        %v2321 = vld [vmem:[%s2312 + $0x40] sm:$0xff]
        %v2322 = vld [vmem:[%s2312 + $0x48] sm:$0xff]
        %v2323 = vld [vmem:[%s2312 + $0x50] sm:$0xff]
        %v2324 = vld [vmem:[%s2312 + $0x58] sm:$0xff]
        %v2325 = vld [vmem:[%s2312 + $0x60] sm:$0xff]
        %v2326 = vld [vmem:[%s2312 + $0x68] sm:$0xff]
        %v2327 = vld [vmem:[%s2312 + $0x70] sm:$0xff]
        %v2328 = vld [vmem:[%s2312 + $0x78] sm:$0xff]
        %v2329 = vld [vmem:[%s2312 + $0x80] sm:$0xff]
        %v2330 = vld [vmem:[%s2312 + $0x88] sm:$0xff]
        %v2331 = vld [vmem:[%s2312 + $0x90] sm:$0xff]
        %v2332 = vld [vmem:[%s2312 + $0x98] sm:$0xff]
        %v2333 = vld [vmem:[%s2312 + $0xa0] sm:$0xff]
        %v2334 = vld [vmem:[%s2312 + $0xa8] sm:$0xff]
        %v2335 = vld [vmem:[%s2312 + $0xb0] sm:$0xff]
        %v2336 = vld [vmem:[%s2312 + $0xb8] sm:$0xff]
        %v2337 = vld [vmem:[%s2312 + $0xc0] sm:$0xff]
        %v2338 = vld [vmem:[%s2312 + $0xc8] sm:$0xff]
        %v2339 = vld [vmem:[%s2312 + $0xd0] sm:$0xff]
        %v2340 = vld [vmem:[%s2312 + $0xd8] sm:$0xff]
        %v2341 = vld [vmem:[%s2312 + $0xe0] sm:$0xff]
        %v2342 = vld [vmem:[%s2312 + $0xe8] sm:$0xff]
        %v2343 = vld [vmem:[%s2312 + $0xf0] sm:$0xff]
        %v2344 = vld [vmem:[%s2312 + $0xf8] sm:$0xff]
        %v2346 = vsel %vm1072, %v2304, 0
        %v2349 = vsel %vm1072, %v2309, 0
        %2351 = vmatprep.subr.mxu0 %v2314
        %2352 = vmatpush1.msra.mxu0 %v2313
        %2353 = vmatprep.subr.mxu0 %v2318
        %2354 = vmatpush1.msra.mxu0 %v2317
        %2355 = vmatprep.subr.mxu0 %v2322
        %2356 = vmatpush1.msra.mxu0 %v2321
        %2357 = vmatprep.subr.mxu0 %v2326
        %2358 = vmatpush1.msra.mxu0 %v2325
        %2359 = vmatprep.subr.mxu0 %v2330
        %2360 = vmatpush1.msra.mxu0 %v2329
        %2361 = vmatprep.subr.mxu0 %v2334
        %2362 = vmatpush1.msra.mxu0 %v2333
        %2363 = vmatprep.subr.mxu0 %v2338
        %2364 = vmatpush1.msra.mxu0 %v2337
        %2365 = vmatprep.subr.mxu0 %v2342
        %2366 = vmatpush1.msra.mxu0 %v2341
        %2367 = vmatprep.subr.mxu0 0.0
        %2368 = vmatpush1.msra.mxu0 0.0
        %2369 = vmatprep.subr.mxu0 0.0
        %2370 = vmatpush1.msra.mxu0 0.0
        %2371 = vmatprep.subr.mxu0 0.0
        %2372 = vmatpush1.msra.mxu0 0.0
        %2373 = vmatprep.subr.mxu0 0.0
        %2374 = vmatpush1.msra.mxu0 0.0
        %2375 = vmatprep.subr.mxu0 0.0
        %2376 = vmatpush1.msra.mxu0 0.0
        %2377 = vmatprep.subr.mxu0 0.0
        %2378 = vmatpush1.msra.mxu0 0.0
        %2379 = vmatprep.subr.mxu0 0.0
        %2380 = vmatpush1.msra.mxu0 0.0
        %2381 = vmatprep.subr.mxu0 0.0
        %2382 = vmatpush1.msra.mxu0 0.0
        %2383 = vmatprep.subr.mxu0 0.0
        %2384 = vmatpush1.msra.mxu0 0.0
        %2385 = vmatprep.subr.mxu0 0.0
        %2386 = vmatpush1.msra.mxu0 0.0
        %2387 = vmatprep.subr.mxu0 0.0
        %2388 = vmatpush1.msra.mxu0 0.0
        %2389 = vmatprep.subr.mxu0 0.0
        %2390 = vmatpush1.msra.mxu0 0.0
        %2391 = vmatprep.subr.mxu0 0.0
        %2392 = vmatpush1.msra.mxu0 0.0
        %2393 = vmatprep.subr.mxu0 0.0
        %2394 = vmatpush1.msra.mxu0 0.0
        %2395 = vmatprep.subr.mxu0 0.0
        %2396 = vmatpush1.msra.mxu0 0.0
        %2397 = vmatprep.subr.mxu0 0.0
        %2398 = vmatpush1.msra.mxu0 0.0
        %2399 = vmatprep.subr.mxu0 0.0
        %2400 = vmatpush1.msra.mxu0 0.0
        %2401 = vmatprep.subr.mxu0 0.0
        %2402 = vmatpush1.msra.mxu0 0.0
        %2403 = vmatprep.subr.mxu0 0.0
        %2404 = vmatpush1.msra.mxu0 0.0
        %2405 = vmatprep.subr.mxu0 0.0
        %2406 = vmatpush1.msra.mxu0 0.0
        %2407 = vmatprep.subr.mxu0 0.0
        %2408 = vmatpush1.msra.mxu0 0.0
        %2409 = vmatprep.subr.mxu0 0.0
        %2410 = vmatpush1.msra.mxu0 0.0
        %2411 = vmatprep.subr.mxu0 0.0
        %2412 = vmatpush1.msra.mxu0 0.0
        %2413 = vmatprep.subr.mxu0 0.0
        %2414 = vmatpush1.msra.mxu0 0.0
        %2415 = vmatprep.mubr.f32.mxu0 0.0
        %2416 = vmatmul.mubr.f32.gmra.mrb[0].mxu0 %v2346
        %v2417 = vpop.f32.mrb[0].mxu0
        %v2418 = vadd.f32 0.0, %v2417
        %v2419 = vpop.f32.mrb[0].mxu0
        %v2420 = vadd.f32 0.0, %v2419
        %2421 = vmatprep.mubr.f32.mxu0 0.0
        %2422 = vmatmul.mubr.f32.gmra.mrb[0].mxu0 %v2349
        %v2423 = vpop.f32.mrb[0].mxu0
        %v2424 = vadd.f32 0.0, %v2423
        %v2425 = vpop.f32.mrb[0].mxu0
        %v2426 = vadd.f32 0.0, %v2425
        %2427 = vdwg.mxu0
        %2428 = vmatprep.subr.mxu0 %v2316
        %2429 = vmatpush1.msra.mxu0 %v2315
        %2430 = vmatprep.subr.mxu0 %v2320
        %2431 = vmatpush1.msra.mxu0 %v2319
        %2432 = vmatprep.subr.mxu0 %v2324
        %2433 = vmatpush1.msra.mxu0 %v2323
        %2434 = vmatprep.subr.mxu0 %v2328
        %2435 = vmatpush1.msra.mxu0 %v2327
        %2436 = vmatprep.subr.mxu0 %v2332
        %2437 = vmatpush1.msra.mxu0 %v2331
        %2438 = vmatprep.subr.mxu0 %v2336
        %2439 = vmatpush1.msra.mxu0 %v2335
        %2440 = vmatprep.subr.mxu0 %v2340
        %2441 = vmatpush1.msra.mxu0 %v2339
        %2442 = vmatprep.subr.mxu0 %v2344
        %2443 = vmatpush1.msra.mxu0 %v2343
        %2444 = vmatprep.subr.mxu0 0.0
        %2445 = vmatpush1.msra.mxu0 0.0
        %2446 = vmatprep.subr.mxu0 0.0
        %2447 = vmatpush1.msra.mxu0 0.0
        %2448 = vmatprep.subr.mxu0 0.0
        %2449 = vmatpush1.msra.mxu0 0.0
        %2450 = vmatprep.subr.mxu0 0.0
        %2451 = vmatpush1.msra.mxu0 0.0
        %2452 = vmatprep.subr.mxu0 0.0
        %2453 = vmatpush1.msra.mxu0 0.0
        %2454 = vmatprep.subr.mxu0 0.0
        %2455 = vmatpush1.msra.mxu0 0.0
        %2456 = vmatprep.subr.mxu0 0.0
        %2457 = vmatpush1.msra.mxu0 0.0
        %2458 = vmatprep.subr.mxu0 0.0
        %2459 = vmatpush1.msra.mxu0 0.0
        %2460 = vmatprep.subr.mxu0 0.0
        %2461 = vmatpush1.msra.mxu0 0.0
        %2462 = vmatprep.subr.mxu0 0.0
        %2463 = vmatpush1.msra.mxu0 0.0
        %2464 = vmatprep.subr.mxu0 0.0
        %2465 = vmatpush1.msra.mxu0 0.0
        %2466 = vmatprep.subr.mxu0 0.0
        %2467 = vmatpush1.msra.mxu0 0.0
        %2468 = vmatprep.subr.mxu0 0.0
        %2469 = vmatpush1.msra.mxu0 0.0
        %2470 = vmatprep.subr.mxu0 0.0
        %2471 = vmatpush1.msra.mxu0 0.0
        %2472 = vmatprep.subr.mxu0 0.0
        %2473 = vmatpush1.msra.mxu0 0.0
        %2474 = vmatprep.subr.mxu0 0.0
        %2475 = vmatpush1.msra.mxu0 0.0
        %2476 = vmatprep.subr.mxu0 0.0
        %2477 = vmatpush1.msra.mxu0 0.0
        %2478 = vmatprep.subr.mxu0 0.0
        %2479 = vmatpush1.msra.mxu0 0.0
        %2480 = vmatprep.subr.mxu0 0.0
        %2481 = vmatpush1.msra.mxu0 0.0
        %2482 = vmatprep.subr.mxu0 0.0
        %2483 = vmatpush1.msra.mxu0 0.0
        %2484 = vmatprep.subr.mxu0 0.0
        %2485 = vmatpush1.msra.mxu0 0.0
        %2486 = vmatprep.subr.mxu0 0.0
        %2487 = vmatpush1.msra.mxu0 0.0
        %2488 = vmatprep.subr.mxu0 0.0
        %2489 = vmatpush1.msra.mxu0 0.0
        %2490 = vmatprep.subr.mxu0 0.0
        %2491 = vmatpush1.msra.mxu0 0.0
        %2492 = vmatprep.mubr.f32.mxu0 0.0
        %2493 = vmatmul.mubr.f32.gmra.mrb[0].mxu0 %v2346
        %v2494 = vpop.f32.mrb[0].mxu0
        %v2495 = vadd.f32 0.0, %v2494
        %v2496 = vpop.f32.mrb[0].mxu0
        %v2497 = vadd.f32 0.0, %v2496
        %2498 = vmatprep.mubr.f32.mxu0 0.0
        %2499 = vmatmul.mubr.f32.gmra.mrb[0].mxu0 %v2349
        %v2500 = vpop.f32.mrb[0].mxu0
        %v2501 = vadd.f32 0.0, %v2500
        %v2502 = vpop.f32.mrb[0].mxu0
        %v2503 = vadd.f32 0.0, %v2502
        %2504 = vdwg.mxu0
        %v2505 = vadd.f32 %v1462, %v2418
        %v2506 = vadd.f32 %v1463, %v2420
        %v2507 = vadd.f32 %v1464, %v2495
        %v2508 = vadd.f32 %v1465, %v2497
        %v2509 = vadd.f32 %v1466, %v2424
        %v2510 = vadd.f32 %v1467, %v2426
        %v2511 = vadd.f32 %v1468, %v2501
        %v2512 = vadd.f32 %v1469, %v2503
        %s2513 = scalar_lea.vmem %s4, 1024
        %v2514 = vld [vmem:[%s2513] sm:$0xff]
        %v2515 = vld [vmem:[%s2513 + $0x8] sm:$0xff]
        %v2516 = vld [vmem:[%s2513 + $0x10] sm:$0xff]
        %v2517 = vld [vmem:[%s2513 + $0x18] sm:$0xff]
        %v2518 = vld [vmem:[%s2513 + $0x20] sm:$0xff]
        %v2519 = vld [vmem:[%s2513 + $0x28] sm:$0xff]
        %v2520 = vld [vmem:[%s2513 + $0x30] sm:$0xff]
        %v2521 = vld [vmem:[%s2513 + $0x38] sm:$0xff]
        %v2522 = vld [vmem:[%s2513 + $0x40] sm:$0xff]
        %v2523 = vld [vmem:[%s2513 + $0x48] sm:$0xff]
        %v2524 = vld [vmem:[%s2513 + $0x50] sm:$0xff]
        %v2525 = vld [vmem:[%s2513 + $0x58] sm:$0xff]
        %v2526 = vld [vmem:[%s2513 + $0x60] sm:$0xff]
        %v2527 = vld [vmem:[%s2513 + $0x68] sm:$0xff]
        %v2528 = vld [vmem:[%s2513 + $0x70] sm:$0xff]
        %v2529 = vld [vmem:[%s2513 + $0x78] sm:$0xff]
        %v2530 = vld [vmem:[%s2513 + $0x80] sm:$0xff]
        %v2531 = vld [vmem:[%s2513 + $0x88] sm:$0xff]
        %v2532 = vld [vmem:[%s2513 + $0x90] sm:$0xff]
        %v2533 = vld [vmem:[%s2513 + $0x98] sm:$0xff]
        %v2534 = vld [vmem:[%s2513 + $0xa0] sm:$0xff]
        %v2535 = vld [vmem:[%s2513 + $0xa8] sm:$0xff]
        %v2536 = vld [vmem:[%s2513 + $0xb0] sm:$0xff]
        %v2537 = vld [vmem:[%s2513 + $0xb8] sm:$0xff]
        %v2538 = vld [vmem:[%s2513 + $0xc0] sm:$0xff]
        %v2539 = vld [vmem:[%s2513 + $0xc8] sm:$0xff]
        %v2540 = vld [vmem:[%s2513 + $0xd0] sm:$0xff]
        %v2541 = vld [vmem:[%s2513 + $0xd8] sm:$0xff]
        %v2542 = vld [vmem:[%s2513 + $0xe0] sm:$0xff]
        %v2543 = vld [vmem:[%s2513 + $0xe8] sm:$0xff]
        %v2544 = vld [vmem:[%s2513 + $0xf0] sm:$0xff]
        %v2545 = vld [vmem:[%s2513 + $0xf8] sm:$0xff]
        %v2546 = vld [vmem:[%s2513 + $0x100] sm:$0xff]
        %v2547 = vld [vmem:[%s2513 + $0x108] sm:$0xff]
        %v2548 = vld [vmem:[%s2513 + $0x110] sm:$0xff]
        %v2549 = vld [vmem:[%s2513 + $0x118] sm:$0xff]
        %v2550 = vld [vmem:[%s2513 + $0x120] sm:$0xff]
        %v2551 = vld [vmem:[%s2513 + $0x128] sm:$0xff]
        %v2552 = vld [vmem:[%s2513 + $0x130] sm:$0xff]
        %v2553 = vld [vmem:[%s2513 + $0x138] sm:$0xff]
        %v2554 = vld [vmem:[%s2513 + $0x140] sm:$0xff]
        %v2555 = vld [vmem:[%s2513 + $0x148] sm:$0xff]
        %v2556 = vld [vmem:[%s2513 + $0x150] sm:$0xff]
        %v2557 = vld [vmem:[%s2513 + $0x158] sm:$0xff]
        %v2558 = vld [vmem:[%s2513 + $0x160] sm:$0xff]
        %v2559 = vld [vmem:[%s2513 + $0x168] sm:$0xff]
        %v2560 = vld [vmem:[%s2513 + $0x170] sm:$0xff]
        %v2561 = vld [vmem:[%s2513 + $0x178] sm:$0xff]
        %v2562 = vld [vmem:[%s2513 + $0x180] sm:$0xff]
        %v2563 = vld [vmem:[%s2513 + $0x188] sm:$0xff]
        %v2564 = vld [vmem:[%s2513 + $0x190] sm:$0xff]
        %v2565 = vld [vmem:[%s2513 + $0x198] sm:$0xff]
        %v2566 = vld [vmem:[%s2513 + $0x1a0] sm:$0xff]
        %v2567 = vld [vmem:[%s2513 + $0x1a8] sm:$0xff]
        %v2568 = vld [vmem:[%s2513 + $0x1b0] sm:$0xff]
        %v2569 = vld [vmem:[%s2513 + $0x1b8] sm:$0xff]
        %v2570 = vld [vmem:[%s2513 + $0x1c0] sm:$0xff]
        %v2571 = vld [vmem:[%s2513 + $0x1c8] sm:$0xff]
        %v2572 = vld [vmem:[%s2513 + $0x1d0] sm:$0xff]
        %v2573 = vld [vmem:[%s2513 + $0x1d8] sm:$0xff]
        %v2574 = vld [vmem:[%s2513 + $0x1e0] sm:$0xff]
        %v2575 = vld [vmem:[%s2513 + $0x1e8] sm:$0xff]
        %v2576 = vld [vmem:[%s2513 + $0x1f0] sm:$0xff]
        %v2577 = vld [vmem:[%s2513 + $0x1f8] sm:$0xff]
        %2578 = vmatprep.subr.mxu0 0.0
        %2579 = vmatpush1.msra.mxu0 %v2514
        %2580 = vmatprep.subr.mxu0 0.0
        %2581 = vmatpush1.msra.mxu0 %v2515
        %2582 = vmatprep.subr.mxu0 0.0
        %2583 = vmatpush1.msra.mxu0 %v2516
        %2584 = vmatprep.subr.mxu0 0.0
        %2585 = vmatpush1.msra.mxu0 %v2517
        %2586 = vmatprep.subr.mxu0 0.0
        %2587 = vmatpush1.msra.mxu0 %v2518
        %2588 = vmatprep.subr.mxu0 0.0
        %2589 = vmatpush1.msra.mxu0 %v2519
        %2590 = vmatprep.subr.mxu0 0.0
        %2591 = vmatpush1.msra.mxu0 %v2520
        %2592 = vmatprep.subr.mxu0 0.0
        %2593 = vmatpush1.msra.mxu0 %v2521
        %2594 = vmatprep.subr.mxu0 0.0
        %2595 = vmatpush1.msra.mxu0 %v2522
        %2596 = vmatprep.subr.mxu0 0.0
        %2597 = vmatpush1.msra.mxu0 %v2523
        %2598 = vmatprep.subr.mxu0 0.0
        %2599 = vmatpush1.msra.mxu0 %v2524
        %2600 = vmatprep.subr.mxu0 0.0
        %2601 = vmatpush1.msra.mxu0 %v2525
        %2602 = vmatprep.subr.mxu0 0.0
        %2603 = vmatpush1.msra.mxu0 %v2526
        %2604 = vmatprep.subr.mxu0 0.0
        %2605 = vmatpush1.msra.mxu0 %v2527
        %2606 = vmatprep.subr.mxu0 0.0
        %2607 = vmatpush1.msra.mxu0 %v2528
        %2608 = vmatprep.subr.mxu0 0.0
        %2609 = vmatpush1.msra.mxu0 %v2529
        %2610 = vmatprep.subr.mxu0 0.0
        %2611 = vmatpush1.msra.mxu0 %v2530
        %2612 = vmatprep.subr.mxu0 0.0
        %2613 = vmatpush1.msra.mxu0 %v2531
        %2614 = vmatprep.subr.mxu0 0.0
        %2615 = vmatpush1.msra.mxu0 %v2532
        %2616 = vmatprep.subr.mxu0 0.0
        %2617 = vmatpush1.msra.mxu0 %v2533
        %2618 = vmatprep.subr.mxu0 0.0
        %2619 = vmatpush1.msra.mxu0 %v2534
        %2620 = vmatprep.subr.mxu0 0.0
        %2621 = vmatpush1.msra.mxu0 %v2535
        %2622 = vmatprep.subr.mxu0 0.0
        %2623 = vmatpush1.msra.mxu0 %v2536
        %2624 = vmatprep.subr.mxu0 0.0
        %2625 = vmatpush1.msra.mxu0 %v2537
        %2626 = vmatprep.subr.mxu0 0.0
        %2627 = vmatpush1.msra.mxu0 %v2538
        %2628 = vmatprep.subr.mxu0 0.0
        %2629 = vmatpush1.msra.mxu0 %v2539
        %2630 = vmatprep.subr.mxu0 0.0
        %2631 = vmatpush1.msra.mxu0 %v2540
        %2632 = vmatprep.subr.mxu0 0.0
        %2633 = vmatpush1.msra.mxu0 %v2541
        %2634 = vmatprep.subr.mxu0 0.0
        %2635 = vmatpush1.msra.mxu0 %v2542
        %2636 = vmatprep.subr.mxu0 0.0
        %2637 = vmatpush1.msra.mxu0 %v2543
        %2638 = vmatprep.subr.mxu0 0.0
        %2639 = vmatpush1.msra.mxu0 %v2544
        %2640 = vmatprep.subr.mxu0 0.0
        %2641 = vmatpush1.msra.mxu0 %v2545
        %2642 = vmatprep.mubr.f32.mxu0 %v403
        %2643 = vmatmul.mubr.f32.gmra.mrb[0].mxu0 %v402
        %v2644 = vpop.f32.mrb[0].mxu0
        %v2645 = vadd.f32 0.0, %v2644
        %v2646 = vpop.f32.mrb[0].mxu0
        %2647 = vmatprep.mubr.f32.mxu0 %v407
        %2648 = vmatmul.mubr.f32.gmra.mrb[0].mxu0 %v406
        %v2649 = vpop.f32.mrb[0].mxu0
        %v2650 = vadd.f32 0.0, %v2649
        %v2651 = vpop.f32.mrb[0].mxu0
        %2652 = vdwg.mxu0
        %2653 = vmatprep.subr.mxu0 0.0
        %2654 = vmatpush1.msra.mxu0 %v2546
        %2655 = vmatprep.subr.mxu0 0.0
        %2656 = vmatpush1.msra.mxu0 %v2547
        %2657 = vmatprep.subr.mxu0 0.0
        %2658 = vmatpush1.msra.mxu0 %v2548
        %2659 = vmatprep.subr.mxu0 0.0
        %2660 = vmatpush1.msra.mxu0 %v2549
        %2661 = vmatprep.subr.mxu0 0.0
        %2662 = vmatpush1.msra.mxu0 %v2550
        %2663 = vmatprep.subr.mxu0 0.0
        %2664 = vmatpush1.msra.mxu0 %v2551
        %2665 = vmatprep.subr.mxu0 0.0
        %2666 = vmatpush1.msra.mxu0 %v2552
        %2667 = vmatprep.subr.mxu0 0.0
        %2668 = vmatpush1.msra.mxu0 %v2553
        %2669 = vmatprep.subr.mxu0 0.0
        %2670 = vmatpush1.msra.mxu0 %v2554
        %2671 = vmatprep.subr.mxu0 0.0
        %2672 = vmatpush1.msra.mxu0 %v2555
        %2673 = vmatprep.subr.mxu0 0.0
        %2674 = vmatpush1.msra.mxu0 %v2556
        %2675 = vmatprep.subr.mxu0 0.0
        %2676 = vmatpush1.msra.mxu0 %v2557
        %2677 = vmatprep.subr.mxu0 0.0
        %2678 = vmatpush1.msra.mxu0 %v2558
        %2679 = vmatprep.subr.mxu0 0.0
        %2680 = vmatpush1.msra.mxu0 %v2559
        %2681 = vmatprep.subr.mxu0 0.0
        %2682 = vmatpush1.msra.mxu0 %v2560
        %2683 = vmatprep.subr.mxu0 0.0
        %2684 = vmatpush1.msra.mxu0 %v2561
        %2685 = vmatprep.subr.mxu0 0.0
        %2686 = vmatpush1.msra.mxu0 %v2562
        %2687 = vmatprep.subr.mxu0 0.0
        %2688 = vmatpush1.msra.mxu0 %v2563
        %2689 = vmatprep.subr.mxu0 0.0
        %2690 = vmatpush1.msra.mxu0 %v2564
        %2691 = vmatprep.subr.mxu0 0.0
        %2692 = vmatpush1.msra.mxu0 %v2565
        %2693 = vmatprep.subr.mxu0 0.0
        %2694 = vmatpush1.msra.mxu0 %v2566
        %2695 = vmatprep.subr.mxu0 0.0
        %2696 = vmatpush1.msra.mxu0 %v2567
        %2697 = vmatprep.subr.mxu0 0.0
        %2698 = vmatpush1.msra.mxu0 %v2568
        %2699 = vmatprep.subr.mxu0 0.0
        %2700 = vmatpush1.msra.mxu0 %v2569
        %2701 = vmatprep.subr.mxu0 0.0
        %2702 = vmatpush1.msra.mxu0 %v2570
        %2703 = vmatprep.subr.mxu0 0.0
        %2704 = vmatpush1.msra.mxu0 %v2571
        %2705 = vmatprep.subr.mxu0 0.0
        %2706 = vmatpush1.msra.mxu0 %v2572
        %2707 = vmatprep.subr.mxu0 0.0
        %2708 = vmatpush1.msra.mxu0 %v2573
        %2709 = vmatprep.subr.mxu0 0.0
        %2710 = vmatpush1.msra.mxu0 %v2574
        %2711 = vmatprep.subr.mxu0 0.0
        %2712 = vmatpush1.msra.mxu0 %v2575
        %2713 = vmatprep.subr.mxu0 0.0
        %2714 = vmatpush1.msra.mxu0 %v2576
        %2715 = vmatprep.subr.mxu0 0.0
        %2716 = vmatpush1.msra.mxu0 %v2577
        %2717 = vmatprep.mubr.f32.mxu0 %v405
        %2718 = vmatmul.mubr.f32.gmra.mrb[0].mxu0 %v404
        %v2719 = vpop.f32.mrb[0].mxu0
        %v2720 = vadd.f32 %v2645, %v2719
        %v2721 = vpop.f32.mrb[0].mxu0
        %2722 = vmatprep.mubr.f32.mxu0 %v409
        %2723 = vmatmul.mubr.f32.gmra.mrb[0].mxu0 %v408
        %v2724 = vpop.f32.mrb[0].mxu0
        %v2725 = vadd.f32 %v2650, %v2724
        %v2726 = vpop.f32.mrb[0].mxu0
        %2727 = vdwg.mxu0
        %s2728 = scalar_lea.vmem %s5, 1024
        %v2729 = vld [vmem:[%s2728] sm:$0xff]
        %v2730 = vld [vmem:[%s2728 + $0x8] sm:$0xff]
        %v2731 = vld [vmem:[%s2728 + $0x10] sm:$0xff]
        %v2732 = vld [vmem:[%s2728 + $0x18] sm:$0xff]
        %v2733 = vld [vmem:[%s2728 + $0x20] sm:$0xff]
        %v2734 = vld [vmem:[%s2728 + $0x28] sm:$0xff]
        %v2735 = vld [vmem:[%s2728 + $0x30] sm:$0xff]
        %v2736 = vld [vmem:[%s2728 + $0x38] sm:$0xff]
        %v2737 = vld [vmem:[%s2728 + $0x40] sm:$0xff]
        %v2738 = vld [vmem:[%s2728 + $0x48] sm:$0xff]
        %v2739 = vld [vmem:[%s2728 + $0x50] sm:$0xff]
        %v2740 = vld [vmem:[%s2728 + $0x58] sm:$0xff]
        %v2741 = vld [vmem:[%s2728 + $0x60] sm:$0xff]
        %v2742 = vld [vmem:[%s2728 + $0x68] sm:$0xff]
        %v2743 = vld [vmem:[%s2728 + $0x70] sm:$0xff]
        %v2744 = vld [vmem:[%s2728 + $0x78] sm:$0xff]
        %v2745 = vld [vmem:[%s2728 + $0x80] sm:$0xff]
        %v2746 = vld [vmem:[%s2728 + $0x88] sm:$0xff]
        %v2747 = vld [vmem:[%s2728 + $0x90] sm:$0xff]
        %v2748 = vld [vmem:[%s2728 + $0x98] sm:$0xff]
        %v2749 = vld [vmem:[%s2728 + $0xa0] sm:$0xff]
        %v2750 = vld [vmem:[%s2728 + $0xa8] sm:$0xff]
        %v2751 = vld [vmem:[%s2728 + $0xb0] sm:$0xff]
        %v2752 = vld [vmem:[%s2728 + $0xb8] sm:$0xff]
        %v2753 = vld [vmem:[%s2728 + $0xc0] sm:$0xff]
        %v2754 = vld [vmem:[%s2728 + $0xc8] sm:$0xff]
        %v2755 = vld [vmem:[%s2728 + $0xd0] sm:$0xff]
        %v2756 = vld [vmem:[%s2728 + $0xd8] sm:$0xff]
        %v2757 = vld [vmem:[%s2728 + $0xe0] sm:$0xff]
        %v2758 = vld [vmem:[%s2728 + $0xe8] sm:$0xff]
        %v2759 = vld [vmem:[%s2728 + $0xf0] sm:$0xff]
        %v2760 = vld [vmem:[%s2728 + $0xf8] sm:$0xff]
        %v2761 = vld [vmem:[%s2728 + $0x100] sm:$0xff]
        %v2762 = vld [vmem:[%s2728 + $0x108] sm:$0xff]
        %v2763 = vld [vmem:[%s2728 + $0x110] sm:$0xff]
        %v2764 = vld [vmem:[%s2728 + $0x118] sm:$0xff]
        %v2765 = vld [vmem:[%s2728 + $0x120] sm:$0xff]
        %v2766 = vld [vmem:[%s2728 + $0x128] sm:$0xff]
        %v2767 = vld [vmem:[%s2728 + $0x130] sm:$0xff]
        %v2768 = vld [vmem:[%s2728 + $0x138] sm:$0xff]
        %v2769 = vld [vmem:[%s2728 + $0x140] sm:$0xff]
        %v2770 = vld [vmem:[%s2728 + $0x148] sm:$0xff]
        %v2771 = vld [vmem:[%s2728 + $0x150] sm:$0xff]
        %v2772 = vld [vmem:[%s2728 + $0x158] sm:$0xff]
        %v2773 = vld [vmem:[%s2728 + $0x160] sm:$0xff]
        %v2774 = vld [vmem:[%s2728 + $0x168] sm:$0xff]
        %v2775 = vld [vmem:[%s2728 + $0x170] sm:$0xff]
        %v2776 = vld [vmem:[%s2728 + $0x178] sm:$0xff]
        %v2777 = vld [vmem:[%s2728 + $0x180] sm:$0xff]
        %v2778 = vld [vmem:[%s2728 + $0x188] sm:$0xff]
        %v2779 = vld [vmem:[%s2728 + $0x190] sm:$0xff]
        %v2780 = vld [vmem:[%s2728 + $0x198] sm:$0xff]
        %v2781 = vld [vmem:[%s2728 + $0x1a0] sm:$0xff]
        %v2782 = vld [vmem:[%s2728 + $0x1a8] sm:$0xff]
        %v2783 = vld [vmem:[%s2728 + $0x1b0] sm:$0xff]
        %v2784 = vld [vmem:[%s2728 + $0x1b8] sm:$0xff]
        %v2785 = vld [vmem:[%s2728 + $0x1c0] sm:$0xff]
        %v2786 = vld [vmem:[%s2728 + $0x1c8] sm:$0xff]
        %v2787 = vld [vmem:[%s2728 + $0x1d0] sm:$0xff]
        %v2788 = vld [vmem:[%s2728 + $0x1d8] sm:$0xff]
        %v2789 = vld [vmem:[%s2728 + $0x1e0] sm:$0xff]
        %v2790 = vld [vmem:[%s2728 + $0x1e8] sm:$0xff]
        %v2791 = vld [vmem:[%s2728 + $0x1f0] sm:$0xff]
        %v2792 = vld [vmem:[%s2728 + $0x1f8] sm:$0xff]
        %2793 = vmatprep.subr.mxu0 0.0
        %2794 = vmatpush1.msra.mxu0 %v2729
        %2795 = vmatprep.subr.mxu0 0.0
        %2796 = vmatpush1.msra.mxu0 %v2730
        %2797 = vmatprep.subr.mxu0 0.0
        %2798 = vmatpush1.msra.mxu0 %v2731
        %2799 = vmatprep.subr.mxu0 0.0
        %2800 = vmatpush1.msra.mxu0 %v2732
        %2801 = vmatprep.subr.mxu0 0.0
        %2802 = vmatpush1.msra.mxu0 %v2733
        %2803 = vmatprep.subr.mxu0 0.0
        %2804 = vmatpush1.msra.mxu0 %v2734
        %2805 = vmatprep.subr.mxu0 0.0
        %2806 = vmatpush1.msra.mxu0 %v2735
        %2807 = vmatprep.subr.mxu0 0.0
        %2808 = vmatpush1.msra.mxu0 %v2736
        %2809 = vmatprep.subr.mxu0 0.0
        %2810 = vmatpush1.msra.mxu0 %v2737
        %2811 = vmatprep.subr.mxu0 0.0
        %2812 = vmatpush1.msra.mxu0 %v2738
        %2813 = vmatprep.subr.mxu0 0.0
        %2814 = vmatpush1.msra.mxu0 %v2739
        %2815 = vmatprep.subr.mxu0 0.0
        %2816 = vmatpush1.msra.mxu0 %v2740
        %2817 = vmatprep.subr.mxu0 0.0
        %2818 = vmatpush1.msra.mxu0 %v2741
        %2819 = vmatprep.subr.mxu0 0.0
        %2820 = vmatpush1.msra.mxu0 %v2742
        %2821 = vmatprep.subr.mxu0 0.0
        %2822 = vmatpush1.msra.mxu0 %v2743
        %2823 = vmatprep.subr.mxu0 0.0
        %2824 = vmatpush1.msra.mxu0 %v2744
        %2825 = vmatprep.subr.mxu0 0.0
        %2826 = vmatpush1.msra.mxu0 %v2745
        %2827 = vmatprep.subr.mxu0 0.0
        %2828 = vmatpush1.msra.mxu0 %v2746
        %2829 = vmatprep.subr.mxu0 0.0
        %2830 = vmatpush1.msra.mxu0 %v2747
        %2831 = vmatprep.subr.mxu0 0.0
        %2832 = vmatpush1.msra.mxu0 %v2748
        %2833 = vmatprep.subr.mxu0 0.0
        %2834 = vmatpush1.msra.mxu0 %v2749
        %2835 = vmatprep.subr.mxu0 0.0
        %2836 = vmatpush1.msra.mxu0 %v2750
        %2837 = vmatprep.subr.mxu0 0.0
        %2838 = vmatpush1.msra.mxu0 %v2751
        %2839 = vmatprep.subr.mxu0 0.0
        %2840 = vmatpush1.msra.mxu0 %v2752
        %2841 = vmatprep.subr.mxu0 0.0
        %2842 = vmatpush1.msra.mxu0 %v2753
        %2843 = vmatprep.subr.mxu0 0.0
        %2844 = vmatpush1.msra.mxu0 %v2754
        %2845 = vmatprep.subr.mxu0 0.0
        %2846 = vmatpush1.msra.mxu0 %v2755
        %2847 = vmatprep.subr.mxu0 0.0
        %2848 = vmatpush1.msra.mxu0 %v2756
        %2849 = vmatprep.subr.mxu0 0.0
        %2850 = vmatpush1.msra.mxu0 %v2757
        %2851 = vmatprep.subr.mxu0 0.0
        %2852 = vmatpush1.msra.mxu0 %v2758
        %2853 = vmatprep.subr.mxu0 0.0
        %2854 = vmatpush1.msra.mxu0 %v2759
        %2855 = vmatprep.subr.mxu0 0.0
        %2856 = vmatpush1.msra.mxu0 %v2760
        %2857 = vmatprep.mubr.f32.mxu0 %v411
        %2858 = vmatmul.mubr.f32.gmra.mrb[0].mxu0 %v410
        %v2859 = vpop.f32.mrb[0].mxu0
        %v2860 = vadd.f32 0.0, %v2859
        %v2861 = vpop.f32.mrb[0].mxu0
        %2862 = vmatprep.mubr.f32.mxu0 %v415
        %2863 = vmatmul.mubr.f32.gmra.mrb[0].mxu0 %v414
        %v2864 = vpop.f32.mrb[0].mxu0
        %v2865 = vadd.f32 0.0, %v2864
        %v2866 = vpop.f32.mrb[0].mxu0
        %2867 = vdwg.mxu0
        %2868 = vmatprep.subr.mxu0 0.0
        %2869 = vmatpush1.msra.mxu0 %v2761
        %2870 = vmatprep.subr.mxu0 0.0
        %2871 = vmatpush1.msra.mxu0 %v2762
        %2872 = vmatprep.subr.mxu0 0.0
        %2873 = vmatpush1.msra.mxu0 %v2763
        %2874 = vmatprep.subr.mxu0 0.0
        %2875 = vmatpush1.msra.mxu0 %v2764
        %2876 = vmatprep.subr.mxu0 0.0
        %2877 = vmatpush1.msra.mxu0 %v2765
        %2878 = vmatprep.subr.mxu0 0.0
        %2879 = vmatpush1.msra.mxu0 %v2766
        %2880 = vmatprep.subr.mxu0 0.0
        %2881 = vmatpush1.msra.mxu0 %v2767
        %2882 = vmatprep.subr.mxu0 0.0
        %2883 = vmatpush1.msra.mxu0 %v2768
        %2884 = vmatprep.subr.mxu0 0.0
        %2885 = vmatpush1.msra.mxu0 %v2769
        %2886 = vmatprep.subr.mxu0 0.0
        %2887 = vmatpush1.msra.mxu0 %v2770
        %2888 = vmatprep.subr.mxu0 0.0
        %2889 = vmatpush1.msra.mxu0 %v2771
        %2890 = vmatprep.subr.mxu0 0.0
        %2891 = vmatpush1.msra.mxu0 %v2772
        %2892 = vmatprep.subr.mxu0 0.0
        %2893 = vmatpush1.msra.mxu0 %v2773
        %2894 = vmatprep.subr.mxu0 0.0
        %2895 = vmatpush1.msra.mxu0 %v2774
        %2896 = vmatprep.subr.mxu0 0.0
        %2897 = vmatpush1.msra.mxu0 %v2775
        %2898 = vmatprep.subr.mxu0 0.0
        %2899 = vmatpush1.msra.mxu0 %v2776
        %2900 = vmatprep.subr.mxu0 0.0
        %2901 = vmatpush1.msra.mxu0 %v2777
        %2902 = vmatprep.subr.mxu0 0.0
        %2903 = vmatpush1.msra.mxu0 %v2778
        %2904 = vmatprep.subr.mxu0 0.0
        %2905 = vmatpush1.msra.mxu0 %v2779
        %2906 = vmatprep.subr.mxu0 0.0
        %2907 = vmatpush1.msra.mxu0 %v2780
        %2908 = vmatprep.subr.mxu0 0.0
        %2909 = vmatpush1.msra.mxu0 %v2781
        %2910 = vmatprep.subr.mxu0 0.0
        %2911 = vmatpush1.msra.mxu0 %v2782
        %2912 = vmatprep.subr.mxu0 0.0
        %2913 = vmatpush1.msra.mxu0 %v2783
        %2914 = vmatprep.subr.mxu0 0.0
        %2915 = vmatpush1.msra.mxu0 %v2784
        %2916 = vmatprep.subr.mxu0 0.0
        %2917 = vmatpush1.msra.mxu0 %v2785
        %2918 = vmatprep.subr.mxu0 0.0
        %2919 = vmatpush1.msra.mxu0 %v2786
        %2920 = vmatprep.subr.mxu0 0.0
        %2921 = vmatpush1.msra.mxu0 %v2787
        %2922 = vmatprep.subr.mxu0 0.0
        %2923 = vmatpush1.msra.mxu0 %v2788
        %2924 = vmatprep.subr.mxu0 0.0
        %2925 = vmatpush1.msra.mxu0 %v2789
        %2926 = vmatprep.subr.mxu0 0.0
        %2927 = vmatpush1.msra.mxu0 %v2790
        %2928 = vmatprep.subr.mxu0 0.0
        %2929 = vmatpush1.msra.mxu0 %v2791
        %2930 = vmatprep.subr.mxu0 0.0
        %2931 = vmatpush1.msra.mxu0 %v2792
        %2932 = vmatprep.mubr.f32.mxu0 %v413
        %2933 = vmatmul.mubr.f32.gmra.mrb[0].mxu0 %v412
        %v2934 = vpop.f32.mrb[0].mxu0
        %v2935 = vadd.f32 %v2860, %v2934
        %v2936 = vpop.f32.mrb[0].mxu0
        %2937 = vmatprep.mubr.f32.mxu0 %v417
        %2938 = vmatmul.mubr.f32.gmra.mrb[0].mxu0 %v416
        %v2939 = vpop.f32.mrb[0].mxu0
        %v2940 = vadd.f32 %v2865, %v2939
        %v2941 = vpop.f32.mrb[0].mxu0
        %2942 = vdwg.mxu0
        %s2943 = scalar_lea.vmem %s6, 1024
        %v2944 = vld [vmem:[%s2943] sm:$0xff]
        %v2945 = vld [vmem:[%s2943 + $0x8] sm:$0xff]
        %v2946 = vld [vmem:[%s2943 + $0x10] sm:$0xff]
        %v2947 = vld [vmem:[%s2943 + $0x18] sm:$0xff]
        %v2948 = vld [vmem:[%s2943 + $0x20] sm:$0xff]
        %v2949 = vld [vmem:[%s2943 + $0x28] sm:$0xff]
        %v2950 = vld [vmem:[%s2943 + $0x30] sm:$0xff]
        %v2951 = vld [vmem:[%s2943 + $0x38] sm:$0xff]
        %v2952 = vld [vmem:[%s2943 + $0x40] sm:$0xff]
        %v2953 = vld [vmem:[%s2943 + $0x48] sm:$0xff]
        %v2954 = vld [vmem:[%s2943 + $0x50] sm:$0xff]
        %v2955 = vld [vmem:[%s2943 + $0x58] sm:$0xff]
        %v2956 = vld [vmem:[%s2943 + $0x60] sm:$0xff]
        %v2957 = vld [vmem:[%s2943 + $0x68] sm:$0xff]
        %v2958 = vld [vmem:[%s2943 + $0x70] sm:$0xff]
        %v2959 = vld [vmem:[%s2943 + $0x78] sm:$0xff]
        %v2960 = vld [vmem:[%s2943 + $0x80] sm:$0xff]
        %v2961 = vld [vmem:[%s2943 + $0x88] sm:$0xff]
        %v2962 = vld [vmem:[%s2943 + $0x90] sm:$0xff]
        %v2963 = vld [vmem:[%s2943 + $0x98] sm:$0xff]
        %v2964 = vld [vmem:[%s2943 + $0xa0] sm:$0xff]
        %v2965 = vld [vmem:[%s2943 + $0xa8] sm:$0xff]
        %v2966 = vld [vmem:[%s2943 + $0xb0] sm:$0xff]
        %v2967 = vld [vmem:[%s2943 + $0xb8] sm:$0xff]
        %v2968 = vld [vmem:[%s2943 + $0xc0] sm:$0xff]
        %v2969 = vld [vmem:[%s2943 + $0xc8] sm:$0xff]
        %v2970 = vld [vmem:[%s2943 + $0xd0] sm:$0xff]
        %v2971 = vld [vmem:[%s2943 + $0xd8] sm:$0xff]
        %v2972 = vld [vmem:[%s2943 + $0xe0] sm:$0xff]
        %v2973 = vld [vmem:[%s2943 + $0xe8] sm:$0xff]
        %v2974 = vld [vmem:[%s2943 + $0xf0] sm:$0xff]
        %v2975 = vld [vmem:[%s2943 + $0xf8] sm:$0xff]
        %v2976 = vld [vmem:[%s2943 + $0x100] sm:$0xff]
        %v2977 = vld [vmem:[%s2943 + $0x108] sm:$0xff]
        %v2978 = vld [vmem:[%s2943 + $0x110] sm:$0xff]
        %v2979 = vld [vmem:[%s2943 + $0x118] sm:$0xff]
        %v2980 = vld [vmem:[%s2943 + $0x120] sm:$0xff]
        %v2981 = vld [vmem:[%s2943 + $0x128] sm:$0xff]
        %v2982 = vld [vmem:[%s2943 + $0x130] sm:$0xff]
        %v2983 = vld [vmem:[%s2943 + $0x138] sm:$0xff]
        %v2984 = vld [vmem:[%s2943 + $0x140] sm:$0xff]
        %v2985 = vld [vmem:[%s2943 + $0x148] sm:$0xff]
        %v2986 = vld [vmem:[%s2943 + $0x150] sm:$0xff]
        %v2987 = vld [vmem:[%s2943 + $0x158] sm:$0xff]
        %v2988 = vld [vmem:[%s2943 + $0x160] sm:$0xff]
        %v2989 = vld [vmem:[%s2943 + $0x168] sm:$0xff]
        %v2990 = vld [vmem:[%s2943 + $0x170] sm:$0xff]
        %v2991 = vld [vmem:[%s2943 + $0x178] sm:$0xff]
        %v2992 = vld [vmem:[%s2943 + $0x180] sm:$0xff]
        %v2993 = vld [vmem:[%s2943 + $0x188] sm:$0xff]
        %v2994 = vld [vmem:[%s2943 + $0x190] sm:$0xff]
        %v2995 = vld [vmem:[%s2943 + $0x198] sm:$0xff]
        %v2996 = vld [vmem:[%s2943 + $0x1a0] sm:$0xff]
        %v2997 = vld [vmem:[%s2943 + $0x1a8] sm:$0xff]
        %v2998 = vld [vmem:[%s2943 + $0x1b0] sm:$0xff]
        %v2999 = vld [vmem:[%s2943 + $0x1b8] sm:$0xff]
        %v3000 = vld [vmem:[%s2943 + $0x1c0] sm:$0xff]
        %v3001 = vld [vmem:[%s2943 + $0x1c8] sm:$0xff]
        %v3002 = vld [vmem:[%s2943 + $0x1d0] sm:$0xff]
        %v3003 = vld [vmem:[%s2943 + $0x1d8] sm:$0xff]
        %v3004 = vld [vmem:[%s2943 + $0x1e0] sm:$0xff]
        %v3005 = vld [vmem:[%s2943 + $0x1e8] sm:$0xff]
        %v3006 = vld [vmem:[%s2943 + $0x1f0] sm:$0xff]
        %v3007 = vld [vmem:[%s2943 + $0x1f8] sm:$0xff]
        %3008 = vmatprep.subr.mxu0 0.0
        %3009 = vmatpush1.msra.mxu0 %v2944
        %3010 = vmatprep.subr.mxu0 0.0
        %3011 = vmatpush1.msra.mxu0 %v2945
        %3012 = vmatprep.subr.mxu0 0.0
        %3013 = vmatpush1.msra.mxu0 %v2946
        %3014 = vmatprep.subr.mxu0 0.0
        %3015 = vmatpush1.msra.mxu0 %v2947
        %3016 = vmatprep.subr.mxu0 0.0
        %3017 = vmatpush1.msra.mxu0 %v2948
        %3018 = vmatprep.subr.mxu0 0.0
        %3019 = vmatpush1.msra.mxu0 %v2949
        %3020 = vmatprep.subr.mxu0 0.0
        %3021 = vmatpush1.msra.mxu0 %v2950
        %3022 = vmatprep.subr.mxu0 0.0
        %3023 = vmatpush1.msra.mxu0 %v2951
        %3024 = vmatprep.subr.mxu0 0.0
        %3025 = vmatpush1.msra.mxu0 %v2952
        %3026 = vmatprep.subr.mxu0 0.0
        %3027 = vmatpush1.msra.mxu0 %v2953
        %3028 = vmatprep.subr.mxu0 0.0
        %3029 = vmatpush1.msra.mxu0 %v2954
        %3030 = vmatprep.subr.mxu0 0.0
        %3031 = vmatpush1.msra.mxu0 %v2955
        %3032 = vmatprep.subr.mxu0 0.0
        %3033 = vmatpush1.msra.mxu0 %v2956
        %3034 = vmatprep.subr.mxu0 0.0
        %3035 = vmatpush1.msra.mxu0 %v2957
        %3036 = vmatprep.subr.mxu0 0.0
        %3037 = vmatpush1.msra.mxu0 %v2958
        %3038 = vmatprep.subr.mxu0 0.0
        %3039 = vmatpush1.msra.mxu0 %v2959
        %3040 = vmatprep.subr.mxu0 0.0
        %3041 = vmatpush1.msra.mxu0 %v2960
        %3042 = vmatprep.subr.mxu0 0.0
        %3043 = vmatpush1.msra.mxu0 %v2961
        %3044 = vmatprep.subr.mxu0 0.0
        %3045 = vmatpush1.msra.mxu0 %v2962
        %3046 = vmatprep.subr.mxu0 0.0
        %3047 = vmatpush1.msra.mxu0 %v2963
        %3048 = vmatprep.subr.mxu0 0.0
        %3049 = vmatpush1.msra.mxu0 %v2964
        %3050 = vmatprep.subr.mxu0 0.0
        %3051 = vmatpush1.msra.mxu0 %v2965
        %3052 = vmatprep.subr.mxu0 0.0
        %3053 = vmatpush1.msra.mxu0 %v2966
        %3054 = vmatprep.subr.mxu0 0.0
        %3055 = vmatpush1.msra.mxu0 %v2967
        %3056 = vmatprep.subr.mxu0 0.0
        %3057 = vmatpush1.msra.mxu0 %v2968
        %3058 = vmatprep.subr.mxu0 0.0
        %3059 = vmatpush1.msra.mxu0 %v2969
        %3060 = vmatprep.subr.mxu0 0.0
        %3061 = vmatpush1.msra.mxu0 %v2970
        %3062 = vmatprep.subr.mxu0 0.0
        %3063 = vmatpush1.msra.mxu0 %v2971
        %3064 = vmatprep.subr.mxu0 0.0
        %3065 = vmatpush1.msra.mxu0 %v2972
        %3066 = vmatprep.subr.mxu0 0.0
        %3067 = vmatpush1.msra.mxu0 %v2973
        %3068 = vmatprep.subr.mxu0 0.0
        %3069 = vmatpush1.msra.mxu0 %v2974
        %3070 = vmatprep.subr.mxu0 0.0
        %3071 = vmatpush1.msra.mxu0 %v2975
        %3072 = vmatprep.mubr.f32.mxu0 %v419
        %3073 = vmatmul.mubr.f32.gmra.mrb[0].mxu0 %v418
        %v3074 = vpop.f32.mrb[0].mxu0
        %v3075 = vadd.f32 0.0, %v3074
        %v3076 = vpop.f32.mrb[0].mxu0
        %3077 = vmatprep.mubr.f32.mxu0 %v423
        %3078 = vmatmul.mubr.f32.gmra.mrb[0].mxu0 %v422
        %v3079 = vpop.f32.mrb[0].mxu0
        %v3080 = vadd.f32 0.0, %v3079
        %v3081 = vpop.f32.mrb[0].mxu0
        %3082 = vdwg.mxu0
        %3083 = vmatprep.subr.mxu0 0.0
        %3084 = vmatpush1.msra.mxu0 %v2976
        %3085 = vmatprep.subr.mxu0 0.0
        %3086 = vmatpush1.msra.mxu0 %v2977
        %3087 = vmatprep.subr.mxu0 0.0
        %3088 = vmatpush1.msra.mxu0 %v2978
        %3089 = vmatprep.subr.mxu0 0.0
        %3090 = vmatpush1.msra.mxu0 %v2979
        %3091 = vmatprep.subr.mxu0 0.0
        %3092 = vmatpush1.msra.mxu0 %v2980
        %3093 = vmatprep.subr.mxu0 0.0
        %3094 = vmatpush1.msra.mxu0 %v2981
        %3095 = vmatprep.subr.mxu0 0.0
        %3096 = vmatpush1.msra.mxu0 %v2982
        %3097 = vmatprep.subr.mxu0 0.0
        %3098 = vmatpush1.msra.mxu0 %v2983
        %3099 = vmatprep.subr.mxu0 0.0
        %3100 = vmatpush1.msra.mxu0 %v2984
        %3101 = vmatprep.subr.mxu0 0.0
        %3102 = vmatpush1.msra.mxu0 %v2985
        %3103 = vmatprep.subr.mxu0 0.0
        %3104 = vmatpush1.msra.mxu0 %v2986
        %3105 = vmatprep.subr.mxu0 0.0
        %3106 = vmatpush1.msra.mxu0 %v2987
        %3107 = vmatprep.subr.mxu0 0.0
        %3108 = vmatpush1.msra.mxu0 %v2988
        %3109 = vmatprep.subr.mxu0 0.0
        %3110 = vmatpush1.msra.mxu0 %v2989
        %3111 = vmatprep.subr.mxu0 0.0
        %3112 = vmatpush1.msra.mxu0 %v2990
        %3113 = vmatprep.subr.mxu0 0.0
        %3114 = vmatpush1.msra.mxu0 %v2991
        %3115 = vmatprep.subr.mxu0 0.0
        %3116 = vmatpush1.msra.mxu0 %v2992
        %3117 = vmatprep.subr.mxu0 0.0
        %3118 = vmatpush1.msra.mxu0 %v2993
        %3119 = vmatprep.subr.mxu0 0.0
        %3120 = vmatpush1.msra.mxu0 %v2994
        %3121 = vmatprep.subr.mxu0 0.0
        %3122 = vmatpush1.msra.mxu0 %v2995
        %3123 = vmatprep.subr.mxu0 0.0
        %3124 = vmatpush1.msra.mxu0 %v2996
        %3125 = vmatprep.subr.mxu0 0.0
        %3126 = vmatpush1.msra.mxu0 %v2997
        %3127 = vmatprep.subr.mxu0 0.0
        %3128 = vmatpush1.msra.mxu0 %v2998
        %3129 = vmatprep.subr.mxu0 0.0
        %3130 = vmatpush1.msra.mxu0 %v2999
        %3131 = vmatprep.subr.mxu0 0.0
        %3132 = vmatpush1.msra.mxu0 %v3000
        %3133 = vmatprep.subr.mxu0 0.0
        %3134 = vmatpush1.msra.mxu0 %v3001
        %3135 = vmatprep.subr.mxu0 0.0
        %3136 = vmatpush1.msra.mxu0 %v3002
        %3137 = vmatprep.subr.mxu0 0.0
        %3138 = vmatpush1.msra.mxu0 %v3003
        %3139 = vmatprep.subr.mxu0 0.0
        %3140 = vmatpush1.msra.mxu0 %v3004
        %3141 = vmatprep.subr.mxu0 0.0
        %3142 = vmatpush1.msra.mxu0 %v3005
        %3143 = vmatprep.subr.mxu0 0.0
        %3144 = vmatpush1.msra.mxu0 %v3006
        %3145 = vmatprep.subr.mxu0 0.0
        %3146 = vmatpush1.msra.mxu0 %v3007
        %3147 = vmatprep.mubr.f32.mxu0 %v421
        %3148 = vmatmul.mubr.f32.gmra.mrb[0].mxu0 %v420
        %v3149 = vpop.f32.mrb[0].mxu0
        %v3150 = vadd.f32 %v3075, %v3149
        %v3151 = vpop.f32.mrb[0].mxu0
        %3152 = vmatprep.mubr.f32.mxu0 %v425
        %3153 = vmatmul.mubr.f32.gmra.mrb[0].mxu0 %v424
        %v3154 = vpop.f32.mrb[0].mxu0
        %v3155 = vadd.f32 %v3080, %v3154
        %v3156 = vpop.f32.mrb[0].mxu0
        %3157 = vdwg.mxu0
        %v3159 = vsel %vm1072, %v2720, 0
        %v3162 = vsel %vm1072, %v2725, 0
        %v3165 = vsel %vm1072, %v2935, 0
        %v3168 = vsel %vm1072, %v2940, 0
        %3170 = vmatprep.subr.mxu0 0.0
        %3171 = vmatpush1.xpose.msra.mxu0 %v3165
        %3172 = vmatprep.subr.mxu0 0.0
        %3173 = vmatpush1.xpose.msra.mxu0 %v3168
        %3174 = vmatprep.subr.mxu0 0.0
        %3175 = vmatpush1.xpose.msra.mxu0 0.0
        %3176 = vmatprep.subr.mxu0 0.0
        %3177 = vmatpush1.xpose.msra.mxu0 0.0
        %3178 = vmatprep.subr.mxu0 0.0
        %3179 = vmatpush1.xpose.msra.mxu0 0.0
        %3180 = vmatprep.subr.mxu0 0.0
        %3181 = vmatpush1.xpose.msra.mxu0 0.0
        %3182 = vmatprep.subr.mxu0 0.0
        %3183 = vmatpush1.xpose.msra.mxu0 0.0
        %3184 = vmatprep.subr.mxu0 0.0
        %3185 = vmatpush1.xpose.msra.mxu0 0.0
        %3186 = vmatprep.subr.mxu0 0.0
        %3187 = vmatpush1.xpose.msra.mxu0 0.0
        %3188 = vmatprep.subr.mxu0 0.0
        %3189 = vmatpush1.xpose.msra.mxu0 0.0
        %3190 = vmatprep.subr.mxu0 0.0
        %3191 = vmatpush1.xpose.msra.mxu0 0.0
        %3192 = vmatprep.subr.mxu0 0.0
        %3193 = vmatpush1.xpose.msra.mxu0 0.0
        %3194 = vmatprep.subr.mxu0 0.0
        %3195 = vmatpush1.xpose.msra.mxu0 0.0
        %3196 = vmatprep.subr.mxu0 0.0
        %3197 = vmatpush1.xpose.msra.mxu0 0.0
        %3198 = vmatprep.subr.mxu0 0.0
        %3199 = vmatpush1.xpose.msra.mxu0 0.0
        %3200 = vmatprep.subr.mxu0 0.0
        %3201 = vmatpush1.xpose.msra.mxu0 0.0
        %3202 = vmatprep.subr.mxu0 0.0
        %3203 = vmatpush1.xpose.msra.mxu0 0.0
        %3204 = vmatprep.subr.mxu0 0.0
        %3205 = vmatpush1.xpose.msra.mxu0 0.0
        %3206 = vmatprep.subr.mxu0 0.0
        %3207 = vmatpush1.xpose.msra.mxu0 0.0
        %3208 = vmatprep.subr.mxu0 0.0
        %3209 = vmatpush1.xpose.msra.mxu0 0.0
        %3210 = vmatprep.subr.mxu0 0.0
        %3211 = vmatpush1.xpose.msra.mxu0 0.0
        %3212 = vmatprep.subr.mxu0 0.0
        %3213 = vmatpush1.xpose.msra.mxu0 0.0
        %3214 = vmatprep.subr.mxu0 0.0
        %3215 = vmatpush1.xpose.msra.mxu0 0.0
        %3216 = vmatprep.subr.mxu0 0.0
        %3217 = vmatpush1.xpose.msra.mxu0 0.0
        %3218 = vmatprep.subr.mxu0 0.0
        %3219 = vmatpush1.xpose.msra.mxu0 0.0
        %3220 = vmatprep.subr.mxu0 0.0
        %3221 = vmatpush1.xpose.msra.mxu0 0.0
        %3222 = vmatprep.subr.mxu0 0.0
        %3223 = vmatpush1.xpose.msra.mxu0 0.0
        %3224 = vmatprep.subr.mxu0 0.0
        %3225 = vmatpush1.xpose.msra.mxu0 0.0
        %3226 = vmatprep.subr.mxu0 0.0
        %3227 = vmatpush1.xpose.msra.mxu0 0.0
        %3228 = vmatprep.subr.mxu0 0.0
        %3229 = vmatpush1.xpose.msra.mxu0 0.0
        %3230 = vmatprep.subr.mxu0 0.0
        %3231 = vmatpush1.xpose.msra.mxu0 0.0
        %3232 = vmatprep.subr.mxu0 0.0
        %3233 = vmatpush1.xpose.msra.mxu0 0.0
        %3234 = vmatprep.mubr.f32.mxu0 0.0
        %3235 = vmatmul.mubr.f32.gmra.mrb[0].mxu0 %v3159
        %v3236 = vpop.f32.mrb[0].mxu0
        %v3237 = vadd.f32 0.0, %v3236
        %v3238 = vpop.f32.mrb[0].mxu0
        %3239 = vmatprep.mubr.f32.mxu0 0.0
        %3240 = vmatmul.mubr.f32.gmra.mrb[0].mxu0 %v3162
        %v3241 = vpop.f32.mrb[0].mxu0
        %v3242 = vadd.f32 0.0, %v3241
        %v3243 = vpop.f32.mrb[0].mxu0
        %3244 = vdwg.mxu0
        %v3245 = vmul.f32 %v3237, 0.125
        %v3246 = vmul.f32 %v3242, 0.125
        %v3247 = vsel %vm428, -1e+09, %v3245
        %v3248 = vsel %vm429, -1e+09, %v3246
        %v3249 = vsel %vm1164, %v3247, -inf
        %3250 = vmax.xlane.f32.xlu0 %v3249
        %v3251 = vpop.xlane.xlu0 %3250
        %v3252 = vsel %vm1164, %v3248, -inf
        %3253 = vmax.xlane.f32.xlu0 %v3252
        %v3254 = vpop.xlane.xlu0 %3253
        %v3255 = vsub.f32 %v3247, %v3251
        %v3256 = vsub.f32 %v3248, %v3254
        %v3257 = vmul.f32 %v3255, 1.442695
        %v3258 = vpow.pop %v3257
        %v3259 = vmul.f32 %v3256, 1.442695
        %v3260 = vpow.pop %v3259
        %v3261 = vsel %vm1164, %v3258, 0.0
        %3262 = vadd.xlane.f32.xlu0 %v3261
        %v3263 = vpop.xlane.xlu0 %3262
        %v3264 = vsel %vm1164, %v3260, 0.0
        %3265 = vadd.xlane.f32.xlu0 %v3264
        %v3266 = vpop.xlane.xlu0 %3265
        %v3267 = vrcp.pop %v3263
        %v3268 = vmul.f32 %v3258, %v3267
        %v3269 = vrcp.pop %v3266
        %v3270 = vmul.f32 %v3260, %v3269
        %s3271 = scalar_lea.vmem %s381, 32 [#allocation4]
        %3272 = vst.msk [vmem:[%s3271] sm:$0xff] %vm1164, %v3268
        %3273 = vst.msk [vmem:[%s3271 + $0x8] sm:$0xff] %vm1164, %v3270
        %v3275 = vsel %vm1164, %v3268, 0
        %v3278 = vsel %vm1164, %v3270, 0
        %3280 = vmatprep.subr.mxu0 0.0
        %3281 = vmatpush1.msra.mxu0 %v3150
        %3282 = vmatprep.subr.mxu0 0.0
        %3283 = vmatpush1.msra.mxu0 %v3155
        %3284 = vmatprep.subr.mxu0 0.0
        %3285 = vmatpush1.msra.mxu0 0.0
        %3286 = vmatprep.subr.mxu0 0.0
        %3287 = vmatpush1.msra.mxu0 0.0
        %3288 = vmatprep.subr.mxu0 0.0
        %3289 = vmatpush1.msra.mxu0 0.0
        %3290 = vmatprep.subr.mxu0 0.0
        %3291 = vmatpush1.msra.mxu0 0.0
        %3292 = vmatprep.subr.mxu0 0.0
        %3293 = vmatpush1.msra.mxu0 0.0
        %3294 = vmatprep.subr.mxu0 0.0
        %3295 = vmatpush1.msra.mxu0 0.0
        %3296 = vmatprep.subr.mxu0 0.0
        %3297 = vmatpush1.msra.mxu0 0.0
        %3298 = vmatprep.subr.mxu0 0.0
        %3299 = vmatpush1.msra.mxu0 0.0
        %3300 = vmatprep.subr.mxu0 0.0
        %3301 = vmatpush1.msra.mxu0 0.0
        %3302 = vmatprep.subr.mxu0 0.0
        %3303 = vmatpush1.msra.mxu0 0.0
        %3304 = vmatprep.subr.mxu0 0.0
        %3305 = vmatpush1.msra.mxu0 0.0
        %3306 = vmatprep.subr.mxu0 0.0
        %3307 = vmatpush1.msra.mxu0 0.0
        %3308 = vmatprep.subr.mxu0 0.0
        %3309 = vmatpush1.msra.mxu0 0.0
        %3310 = vmatprep.subr.mxu0 0.0
        %3311 = vmatpush1.msra.mxu0 0.0
        %3312 = vmatprep.subr.mxu0 0.0
        %3313 = vmatpush1.msra.mxu0 0.0
        %3314 = vmatprep.subr.mxu0 0.0
        %3315 = vmatpush1.msra.mxu0 0.0
        %3316 = vmatprep.subr.mxu0 0.0
        %3317 = vmatpush1.msra.mxu0 0.0
        %3318 = vmatprep.subr.mxu0 0.0
        %3319 = vmatpush1.msra.mxu0 0.0
        %3320 = vmatprep.subr.mxu0 0.0
        %3321 = vmatpush1.msra.mxu0 0.0
        %3322 = vmatprep.subr.mxu0 0.0
        %3323 = vmatpush1.msra.mxu0 0.0
        %3324 = vmatprep.subr.mxu0 0.0
        %3325 = vmatpush1.msra.mxu0 0.0
        %3326 = vmatprep.subr.mxu0 0.0
        %3327 = vmatpush1.msra.mxu0 0.0
        %3328 = vmatprep.subr.mxu0 0.0
        %3329 = vmatpush1.msra.mxu0 0.0
        %3330 = vmatprep.subr.mxu0 0.0
        %3331 = vmatpush1.msra.mxu0 0.0
        %3332 = vmatprep.subr.mxu0 0.0
        %3333 = vmatpush1.msra.mxu0 0.0
        %3334 = vmatprep.subr.mxu0 0.0
        %3335 = vmatpush1.msra.mxu0 0.0
        %3336 = vmatprep.subr.mxu0 0.0
        %3337 = vmatpush1.msra.mxu0 0.0
        %3338 = vmatprep.subr.mxu0 0.0
        %3339 = vmatpush1.msra.mxu0 0.0
        %3340 = vmatprep.subr.mxu0 0.0
        %3341 = vmatpush1.msra.mxu0 0.0
        %3342 = vmatprep.subr.mxu0 0.0
        %3343 = vmatpush1.msra.mxu0 0.0
        %3344 = vmatprep.mubr.f32.mxu0 0.0
        %3345 = vmatmul.mubr.f32.gmra.mrb[0].mxu0 %v3275
        %v3346 = vpop.f32.mrb[0].mxu0
        %v3347 = vadd.f32 0.0, %v3346
        %v3348 = vpop.f32.mrb[0].mxu0
        %3349 = vmatprep.mubr.f32.mxu0 0.0
        %3350 = vmatmul.mubr.f32.gmra.mrb[0].mxu0 %v3278
        %v3351 = vpop.f32.mrb[0].mxu0
        %v3352 = vadd.f32 0.0, %v3351
        %v3353 = vpop.f32.mrb[0].mxu0
        %3354 = vdwg.mxu0
        %s3355 = scalar_lea.vmem %s7, 512
        %v3356 = vld [vmem:[%s3355] sm:$0xff]
        %v3357 = vld [vmem:[%s3355 + $0x8] sm:$0xff]
        %v3358 = vld [vmem:[%s3355 + $0x10] sm:$0xff]
        %v3359 = vld [vmem:[%s3355 + $0x18] sm:$0xff]
        %v3360 = vld [vmem:[%s3355 + $0x20] sm:$0xff]
        %v3361 = vld [vmem:[%s3355 + $0x28] sm:$0xff]
        %v3362 = vld [vmem:[%s3355 + $0x30] sm:$0xff]
        %v3363 = vld [vmem:[%s3355 + $0x38] sm:$0xff]
        %v3364 = vld [vmem:[%s3355 + $0x40] sm:$0xff]
        %v3365 = vld [vmem:[%s3355 + $0x48] sm:$0xff]
        %v3366 = vld [vmem:[%s3355 + $0x50] sm:$0xff]
        %v3367 = vld [vmem:[%s3355 + $0x58] sm:$0xff]
        %v3368 = vld [vmem:[%s3355 + $0x60] sm:$0xff]
        %v3369 = vld [vmem:[%s3355 + $0x68] sm:$0xff]
        %v3370 = vld [vmem:[%s3355 + $0x70] sm:$0xff]
        %v3371 = vld [vmem:[%s3355 + $0x78] sm:$0xff]
        %v3372 = vld [vmem:[%s3355 + $0x80] sm:$0xff]
        %v3373 = vld [vmem:[%s3355 + $0x88] sm:$0xff]
        %v3374 = vld [vmem:[%s3355 + $0x90] sm:$0xff]
        %v3375 = vld [vmem:[%s3355 + $0x98] sm:$0xff]
        %v3376 = vld [vmem:[%s3355 + $0xa0] sm:$0xff]
        %v3377 = vld [vmem:[%s3355 + $0xa8] sm:$0xff]
        %v3378 = vld [vmem:[%s3355 + $0xb0] sm:$0xff]
        %v3379 = vld [vmem:[%s3355 + $0xb8] sm:$0xff]
        %v3380 = vld [vmem:[%s3355 + $0xc0] sm:$0xff]
        %v3381 = vld [vmem:[%s3355 + $0xc8] sm:$0xff]
        %v3382 = vld [vmem:[%s3355 + $0xd0] sm:$0xff]
        %v3383 = vld [vmem:[%s3355 + $0xd8] sm:$0xff]
        %v3384 = vld [vmem:[%s3355 + $0xe0] sm:$0xff]
        %v3385 = vld [vmem:[%s3355 + $0xe8] sm:$0xff]
        %v3386 = vld [vmem:[%s3355 + $0xf0] sm:$0xff]
        %v3387 = vld [vmem:[%s3355 + $0xf8] sm:$0xff]
        %v3389 = vsel %vm1072, %v3347, 0
        %v3392 = vsel %vm1072, %v3352, 0
        %3394 = vmatprep.subr.mxu0 %v3357
        %3395 = vmatpush1.msra.mxu0 %v3356
        %3396 = vmatprep.subr.mxu0 %v3361
        %3397 = vmatpush1.msra.mxu0 %v3360
        %3398 = vmatprep.subr.mxu0 %v3365
        %3399 = vmatpush1.msra.mxu0 %v3364
        %3400 = vmatprep.subr.mxu0 %v3369
        %3401 = vmatpush1.msra.mxu0 %v3368
        %3402 = vmatprep.subr.mxu0 %v3373
        %3403 = vmatpush1.msra.mxu0 %v3372
        %3404 = vmatprep.subr.mxu0 %v3377
        %3405 = vmatpush1.msra.mxu0 %v3376
        %3406 = vmatprep.subr.mxu0 %v3381
        %3407 = vmatpush1.msra.mxu0 %v3380
        %3408 = vmatprep.subr.mxu0 %v3385
        %3409 = vmatpush1.msra.mxu0 %v3384
        %3410 = vmatprep.subr.mxu0 0.0
        %3411 = vmatpush1.msra.mxu0 0.0
        %3412 = vmatprep.subr.mxu0 0.0
        %3413 = vmatpush1.msra.mxu0 0.0
        %3414 = vmatprep.subr.mxu0 0.0
        %3415 = vmatpush1.msra.mxu0 0.0
        %3416 = vmatprep.subr.mxu0 0.0
        %3417 = vmatpush1.msra.mxu0 0.0
        %3418 = vmatprep.subr.mxu0 0.0
        %3419 = vmatpush1.msra.mxu0 0.0
        %3420 = vmatprep.subr.mxu0 0.0
        %3421 = vmatpush1.msra.mxu0 0.0
        %3422 = vmatprep.subr.mxu0 0.0
        %3423 = vmatpush1.msra.mxu0 0.0
        %3424 = vmatprep.subr.mxu0 0.0
        %3425 = vmatpush1.msra.mxu0 0.0
        %3426 = vmatprep.subr.mxu0 0.0
        %3427 = vmatpush1.msra.mxu0 0.0
        %3428 = vmatprep.subr.mxu0 0.0
        %3429 = vmatpush1.msra.mxu0 0.0
        %3430 = vmatprep.subr.mxu0 0.0
        %3431 = vmatpush1.msra.mxu0 0.0
        %3432 = vmatprep.subr.mxu0 0.0
        %3433 = vmatpush1.msra.mxu0 0.0
        %3434 = vmatprep.subr.mxu0 0.0
        %3435 = vmatpush1.msra.mxu0 0.0
        %3436 = vmatprep.subr.mxu0 0.0
        %3437 = vmatpush1.msra.mxu0 0.0
        %3438 = vmatprep.subr.mxu0 0.0
        %3439 = vmatpush1.msra.mxu0 0.0
        %3440 = vmatprep.subr.mxu0 0.0
        %3441 = vmatpush1.msra.mxu0 0.0
        %3442 = vmatprep.subr.mxu0 0.0
        %3443 = vmatpush1.msra.mxu0 0.0
        %3444 = vmatprep.subr.mxu0 0.0
        %3445 = vmatpush1.msra.mxu0 0.0
        %3446 = vmatprep.subr.mxu0 0.0
        %3447 = vmatpush1.msra.mxu0 0.0
        %3448 = vmatprep.subr.mxu0 0.0
        %3449 = vmatpush1.msra.mxu0 0.0
        %3450 = vmatprep.subr.mxu0 0.0
        %3451 = vmatpush1.msra.mxu0 0.0
        %3452 = vmatprep.subr.mxu0 0.0
        %3453 = vmatpush1.msra.mxu0 0.0
        %3454 = vmatprep.subr.mxu0 0.0
        %3455 = vmatpush1.msra.mxu0 0.0
        %3456 = vmatprep.subr.mxu0 0.0
        %3457 = vmatpush1.msra.mxu0 0.0
        %3458 = vmatprep.mubr.f32.mxu0 0.0
        %3459 = vmatmul.mubr.f32.gmra.mrb[0].mxu0 %v3389
        %v3460 = vpop.f32.mrb[0].mxu0
        %v3461 = vadd.f32 0.0, %v3460
        %v3462 = vpop.f32.mrb[0].mxu0
        %v3463 = vadd.f32 0.0, %v3462
        %3464 = vmatprep.mubr.f32.mxu0 0.0
        %3465 = vmatmul.mubr.f32.gmra.mrb[0].mxu0 %v3392
        %v3466 = vpop.f32.mrb[0].mxu0
        %v3467 = vadd.f32 0.0, %v3466
        %v3468 = vpop.f32.mrb[0].mxu0
        %v3469 = vadd.f32 0.0, %v3468
        %3470 = vdwg.mxu0
        %3471 = vmatprep.subr.mxu0 %v3359
        %3472 = vmatpush1.msra.mxu0 %v3358
        %3473 = vmatprep.subr.mxu0 %v3363
        %3474 = vmatpush1.msra.mxu0 %v3362
        %3475 = vmatprep.subr.mxu0 %v3367
        %3476 = vmatpush1.msra.mxu0 %v3366
        %3477 = vmatprep.subr.mxu0 %v3371
        %3478 = vmatpush1.msra.mxu0 %v3370
        %3479 = vmatprep.subr.mxu0 %v3375
        %3480 = vmatpush1.msra.mxu0 %v3374
        %3481 = vmatprep.subr.mxu0 %v3379
        %3482 = vmatpush1.msra.mxu0 %v3378
        %3483 = vmatprep.subr.mxu0 %v3383
        %3484 = vmatpush1.msra.mxu0 %v3382
        %3485 = vmatprep.subr.mxu0 %v3387
        %3486 = vmatpush1.msra.mxu0 %v3386
        %3487 = vmatprep.subr.mxu0 0.0
        %3488 = vmatpush1.msra.mxu0 0.0
        %3489 = vmatprep.subr.mxu0 0.0
        %3490 = vmatpush1.msra.mxu0 0.0
        %3491 = vmatprep.subr.mxu0 0.0
        %3492 = vmatpush1.msra.mxu0 0.0
        %3493 = vmatprep.subr.mxu0 0.0
        %3494 = vmatpush1.msra.mxu0 0.0
        %3495 = vmatprep.subr.mxu0 0.0
        %3496 = vmatpush1.msra.mxu0 0.0
        %3497 = vmatprep.subr.mxu0 0.0
        %3498 = vmatpush1.msra.mxu0 0.0
        %3499 = vmatprep.subr.mxu0 0.0
        %3500 = vmatpush1.msra.mxu0 0.0
        %3501 = vmatprep.subr.mxu0 0.0
        %3502 = vmatpush1.msra.mxu0 0.0
        %3503 = vmatprep.subr.mxu0 0.0
        %3504 = vmatpush1.msra.mxu0 0.0
        %3505 = vmatprep.subr.mxu0 0.0
        %3506 = vmatpush1.msra.mxu0 0.0
        %3507 = vmatprep.subr.mxu0 0.0
        %3508 = vmatpush1.msra.mxu0 0.0
        %3509 = vmatprep.subr.mxu0 0.0
        %3510 = vmatpush1.msra.mxu0 0.0
        %3511 = vmatprep.subr.mxu0 0.0
        %3512 = vmatpush1.msra.mxu0 0.0
        %3513 = vmatprep.subr.mxu0 0.0
        %3514 = vmatpush1.msra.mxu0 0.0
        %3515 = vmatprep.subr.mxu0 0.0
        %3516 = vmatpush1.msra.mxu0 0.0
        %3517 = vmatprep.subr.mxu0 0.0
        %3518 = vmatpush1.msra.mxu0 0.0
        %3519 = vmatprep.subr.mxu0 0.0
        %3520 = vmatpush1.msra.mxu0 0.0
        %3521 = vmatprep.subr.mxu0 0.0
        %3522 = vmatpush1.msra.mxu0 0.0
        %3523 = vmatprep.subr.mxu0 0.0
        %3524 = vmatpush1.msra.mxu0 0.0
        %3525 = vmatprep.subr.mxu0 0.0
        %3526 = vmatpush1.msra.mxu0 0.0
        %3527 = vmatprep.subr.mxu0 0.0
        %3528 = vmatpush1.msra.mxu0 0.0
        %3529 = vmatprep.subr.mxu0 0.0
        %3530 = vmatpush1.msra.mxu0 0.0
        %3531 = vmatprep.subr.mxu0 0.0
        %3532 = vmatpush1.msra.mxu0 0.0
        %3533 = vmatprep.subr.mxu0 0.0
        %3534 = vmatpush1.msra.mxu0 0.0
        %3535 = vmatprep.mubr.f32.mxu0 0.0
        %3536 = vmatmul.mubr.f32.gmra.mrb[0].mxu0 %v3389
        %v3537 = vpop.f32.mrb[0].mxu0
        %v3538 = vadd.f32 0.0, %v3537
        %v3539 = vpop.f32.mrb[0].mxu0
        %v3540 = vadd.f32 0.0, %v3539
        %3541 = vmatprep.mubr.f32.mxu0 0.0
        %3542 = vmatmul.mubr.f32.gmra.mrb[0].mxu0 %v3392
        %v3543 = vpop.f32.mrb[0].mxu0
        %v3544 = vadd.f32 0.0, %v3543
        %v3545 = vpop.f32.mrb[0].mxu0
        %v3546 = vadd.f32 0.0, %v3545
        %3547 = vdwg.mxu0
        %v3548 = vadd.f32 %v2505, %v3461
        %v3549 = vadd.f32 %v2506, %v3463
        %v3550 = vadd.f32 %v2507, %v3538
        %v3551 = vadd.f32 %v2508, %v3540
        %v3552 = vadd.f32 %v2509, %v3467
        %v3553 = vadd.f32 %v2510, %v3469
        %v3554 = vadd.f32 %v2511, %v3544
        %v3555 = vadd.f32 %v2512, %v3546
        %s3556 = scalar_lea.vmem %s4, 1536
        %v3557 = vld [vmem:[%s3556] sm:$0xff]
        %v3558 = vld [vmem:[%s3556 + $0x8] sm:$0xff]
        %v3559 = vld [vmem:[%s3556 + $0x10] sm:$0xff]
        %v3560 = vld [vmem:[%s3556 + $0x18] sm:$0xff]
        %v3561 = vld [vmem:[%s3556 + $0x20] sm:$0xff]
        %v3562 = vld [vmem:[%s3556 + $0x28] sm:$0xff]
        %v3563 = vld [vmem:[%s3556 + $0x30] sm:$0xff]
        %v3564 = vld [vmem:[%s3556 + $0x38] sm:$0xff]
        %v3565 = vld [vmem:[%s3556 + $0x40] sm:$0xff]
        %v3566 = vld [vmem:[%s3556 + $0x48] sm:$0xff]
        %v3567 = vld [vmem:[%s3556 + $0x50] sm:$0xff]
        %v3568 = vld [vmem:[%s3556 + $0x58] sm:$0xff]
        %v3569 = vld [vmem:[%s3556 + $0x60] sm:$0xff]
        %v3570 = vld [vmem:[%s3556 + $0x68] sm:$0xff]
        %v3571 = vld [vmem:[%s3556 + $0x70] sm:$0xff]
        %v3572 = vld [vmem:[%s3556 + $0x78] sm:$0xff]
        %v3573 = vld [vmem:[%s3556 + $0x80] sm:$0xff]
        %v3574 = vld [vmem:[%s3556 + $0x88] sm:$0xff]
        %v3575 = vld [vmem:[%s3556 + $0x90] sm:$0xff]
        %v3576 = vld [vmem:[%s3556 + $0x98] sm:$0xff]
        %v3577 = vld [vmem:[%s3556 + $0xa0] sm:$0xff]
        %v3578 = vld [vmem:[%s3556 + $0xa8] sm:$0xff]
        %v3579 = vld [vmem:[%s3556 + $0xb0] sm:$0xff]
        %v3580 = vld [vmem:[%s3556 + $0xb8] sm:$0xff]
        %v3581 = vld [vmem:[%s3556 + $0xc0] sm:$0xff]
        %v3582 = vld [vmem:[%s3556 + $0xc8] sm:$0xff]
        %v3583 = vld [vmem:[%s3556 + $0xd0] sm:$0xff]
        %v3584 = vld [vmem:[%s3556 + $0xd8] sm:$0xff]
        %v3585 = vld [vmem:[%s3556 + $0xe0] sm:$0xff]
        %v3586 = vld [vmem:[%s3556 + $0xe8] sm:$0xff]
        %v3587 = vld [vmem:[%s3556 + $0xf0] sm:$0xff]
        %v3588 = vld [vmem:[%s3556 + $0xf8] sm:$0xff]
        %v3589 = vld [vmem:[%s3556 + $0x100] sm:$0xff]
        %v3590 = vld [vmem:[%s3556 + $0x108] sm:$0xff]
        %v3591 = vld [vmem:[%s3556 + $0x110] sm:$0xff]
        %v3592 = vld [vmem:[%s3556 + $0x118] sm:$0xff]
        %v3593 = vld [vmem:[%s3556 + $0x120] sm:$0xff]
        %v3594 = vld [vmem:[%s3556 + $0x128] sm:$0xff]
        %v3595 = vld [vmem:[%s3556 + $0x130] sm:$0xff]
        %v3596 = vld [vmem:[%s3556 + $0x138] sm:$0xff]
        %v3597 = vld [vmem:[%s3556 + $0x140] sm:$0xff]
        %v3598 = vld [vmem:[%s3556 + $0x148] sm:$0xff]
        %v3599 = vld [vmem:[%s3556 + $0x150] sm:$0xff]
        %v3600 = vld [vmem:[%s3556 + $0x158] sm:$0xff]
        %v3601 = vld [vmem:[%s3556 + $0x160] sm:$0xff]
        %v3602 = vld [vmem:[%s3556 + $0x168] sm:$0xff]
        %v3603 = vld [vmem:[%s3556 + $0x170] sm:$0xff]
        %v3604 = vld [vmem:[%s3556 + $0x178] sm:$0xff]
        %v3605 = vld [vmem:[%s3556 + $0x180] sm:$0xff]
        %v3606 = vld [vmem:[%s3556 + $0x188] sm:$0xff]
        %v3607 = vld [vmem:[%s3556 + $0x190] sm:$0xff]
        %v3608 = vld [vmem:[%s3556 + $0x198] sm:$0xff]
        %v3609 = vld [vmem:[%s3556 + $0x1a0] sm:$0xff]
        %v3610 = vld [vmem:[%s3556 + $0x1a8] sm:$0xff]
        %v3611 = vld [vmem:[%s3556 + $0x1b0] sm:$0xff]
        %v3612 = vld [vmem:[%s3556 + $0x1b8] sm:$0xff]
        %v3613 = vld [vmem:[%s3556 + $0x1c0] sm:$0xff]
        %v3614 = vld [vmem:[%s3556 + $0x1c8] sm:$0xff]
        %v3615 = vld [vmem:[%s3556 + $0x1d0] sm:$0xff]
        %v3616 = vld [vmem:[%s3556 + $0x1d8] sm:$0xff]
        %v3617 = vld [vmem:[%s3556 + $0x1e0] sm:$0xff]
        %v3618 = vld [vmem:[%s3556 + $0x1e8] sm:$0xff]
        %v3619 = vld [vmem:[%s3556 + $0x1f0] sm:$0xff]
        %v3620 = vld [vmem:[%s3556 + $0x1f8] sm:$0xff]
        %3621 = vmatprep.subr.mxu0 0.0
        %3622 = vmatpush1.msra.mxu0 %v3557
        %3623 = vmatprep.subr.mxu0 0.0
        %3624 = vmatpush1.msra.mxu0 %v3558
        %3625 = vmatprep.subr.mxu0 0.0
        %3626 = vmatpush1.msra.mxu0 %v3559
        %3627 = vmatprep.subr.mxu0 0.0
        %3628 = vmatpush1.msra.mxu0 %v3560
        %3629 = vmatprep.subr.mxu0 0.0
        %3630 = vmatpush1.msra.mxu0 %v3561
        %3631 = vmatprep.subr.mxu0 0.0
        %3632 = vmatpush1.msra.mxu0 %v3562
        %3633 = vmatprep.subr.mxu0 0.0
        %3634 = vmatpush1.msra.mxu0 %v3563
        %3635 = vmatprep.subr.mxu0 0.0
        %3636 = vmatpush1.msra.mxu0 %v3564
        %3637 = vmatprep.subr.mxu0 0.0
        %3638 = vmatpush1.msra.mxu0 %v3565
        %3639 = vmatprep.subr.mxu0 0.0
        %3640 = vmatpush1.msra.mxu0 %v3566
        %3641 = vmatprep.subr.mxu0 0.0
        %3642 = vmatpush1.msra.mxu0 %v3567
        %3643 = vmatprep.subr.mxu0 0.0
        %3644 = vmatpush1.msra.mxu0 %v3568
        %3645 = vmatprep.subr.mxu0 0.0
        %3646 = vmatpush1.msra.mxu0 %v3569
        %3647 = vmatprep.subr.mxu0 0.0
        %3648 = vmatpush1.msra.mxu0 %v3570
        %3649 = vmatprep.subr.mxu0 0.0
        %3650 = vmatpush1.msra.mxu0 %v3571
        %3651 = vmatprep.subr.mxu0 0.0
        %3652 = vmatpush1.msra.mxu0 %v3572
        %3653 = vmatprep.subr.mxu0 0.0
        %3654 = vmatpush1.msra.mxu0 %v3573
        %3655 = vmatprep.subr.mxu0 0.0
        %3656 = vmatpush1.msra.mxu0 %v3574
        %3657 = vmatprep.subr.mxu0 0.0
        %3658 = vmatpush1.msra.mxu0 %v3575
        %3659 = vmatprep.subr.mxu0 0.0
        %3660 = vmatpush1.msra.mxu0 %v3576
        %3661 = vmatprep.subr.mxu0 0.0
        %3662 = vmatpush1.msra.mxu0 %v3577
        %3663 = vmatprep.subr.mxu0 0.0
        %3664 = vmatpush1.msra.mxu0 %v3578
        %3665 = vmatprep.subr.mxu0 0.0
        %3666 = vmatpush1.msra.mxu0 %v3579
        %3667 = vmatprep.subr.mxu0 0.0
        %3668 = vmatpush1.msra.mxu0 %v3580
        %3669 = vmatprep.subr.mxu0 0.0
        %3670 = vmatpush1.msra.mxu0 %v3581
        %3671 = vmatprep.subr.mxu0 0.0
        %3672 = vmatpush1.msra.mxu0 %v3582
        %3673 = vmatprep.subr.mxu0 0.0
        %3674 = vmatpush1.msra.mxu0 %v3583
        %3675 = vmatprep.subr.mxu0 0.0
        %3676 = vmatpush1.msra.mxu0 %v3584
        %3677 = vmatprep.subr.mxu0 0.0
        %3678 = vmatpush1.msra.mxu0 %v3585
        %3679 = vmatprep.subr.mxu0 0.0
        %3680 = vmatpush1.msra.mxu0 %v3586
        %3681 = vmatprep.subr.mxu0 0.0
        %3682 = vmatpush1.msra.mxu0 %v3587
        %3683 = vmatprep.subr.mxu0 0.0
        %3684 = vmatpush1.msra.mxu0 %v3588
        %3685 = vmatprep.mubr.f32.mxu0 %v403
        %3686 = vmatmul.mubr.f32.gmra.mrb[0].mxu0 %v402
        %v3687 = vpop.f32.mrb[0].mxu0
        %v3688 = vadd.f32 0.0, %v3687
        %v3689 = vpop.f32.mrb[0].mxu0
        %3690 = vmatprep.mubr.f32.mxu0 %v407
        %3691 = vmatmul.mubr.f32.gmra.mrb[0].mxu0 %v406
        %v3692 = vpop.f32.mrb[0].mxu0
        %v3693 = vadd.f32 0.0, %v3692
        %v3694 = vpop.f32.mrb[0].mxu0
        %3695 = vdwg.mxu0
        %3696 = vmatprep.subr.mxu0 0.0
        %3697 = vmatpush1.msra.mxu0 %v3589
        %3698 = vmatprep.subr.mxu0 0.0
        %3699 = vmatpush1.msra.mxu0 %v3590
        %3700 = vmatprep.subr.mxu0 0.0
        %3701 = vmatpush1.msra.mxu0 %v3591
        %3702 = vmatprep.subr.mxu0 0.0
        %3703 = vmatpush1.msra.mxu0 %v3592
        %3704 = vmatprep.subr.mxu0 0.0
        %3705 = vmatpush1.msra.mxu0 %v3593
        %3706 = vmatprep.subr.mxu0 0.0
        %3707 = vmatpush1.msra.mxu0 %v3594
        %3708 = vmatprep.subr.mxu0 0.0
        %3709 = vmatpush1.msra.mxu0 %v3595
        %3710 = vmatprep.subr.mxu0 0.0
        %3711 = vmatpush1.msra.mxu0 %v3596
        %3712 = vmatprep.subr.mxu0 0.0
        %3713 = vmatpush1.msra.mxu0 %v3597
        %3714 = vmatprep.subr.mxu0 0.0
        %3715 = vmatpush1.msra.mxu0 %v3598
        %3716 = vmatprep.subr.mxu0 0.0
        %3717 = vmatpush1.msra.mxu0 %v3599
        %3718 = vmatprep.subr.mxu0 0.0
        %3719 = vmatpush1.msra.mxu0 %v3600
        %3720 = vmatprep.subr.mxu0 0.0
        %3721 = vmatpush1.msra.mxu0 %v3601
        %3722 = vmatprep.subr.mxu0 0.0
        %3723 = vmatpush1.msra.mxu0 %v3602
        %3724 = vmatprep.subr.mxu0 0.0
        %3725 = vmatpush1.msra.mxu0 %v3603
        %3726 = vmatprep.subr.mxu0 0.0
        %3727 = vmatpush1.msra.mxu0 %v3604
        %3728 = vmatprep.subr.mxu0 0.0
        %3729 = vmatpush1.msra.mxu0 %v3605
        %3730 = vmatprep.subr.mxu0 0.0
        %3731 = vmatpush1.msra.mxu0 %v3606
        %3732 = vmatprep.subr.mxu0 0.0
        %3733 = vmatpush1.msra.mxu0 %v3607
        %3734 = vmatprep.subr.mxu0 0.0
        %3735 = vmatpush1.msra.mxu0 %v3608
        %3736 = vmatprep.subr.mxu0 0.0
        %3737 = vmatpush1.msra.mxu0 %v3609
        %3738 = vmatprep.subr.mxu0 0.0
        %3739 = vmatpush1.msra.mxu0 %v3610
        %3740 = vmatprep.subr.mxu0 0.0
        %3741 = vmatpush1.msra.mxu0 %v3611
        %3742 = vmatprep.subr.mxu0 0.0
        %3743 = vmatpush1.msra.mxu0 %v3612
        %3744 = vmatprep.subr.mxu0 0.0
        %3745 = vmatpush1.msra.mxu0 %v3613
        %3746 = vmatprep.subr.mxu0 0.0
        %3747 = vmatpush1.msra.mxu0 %v3614
        %3748 = vmatprep.subr.mxu0 0.0
        %3749 = vmatpush1.msra.mxu0 %v3615
        %3750 = vmatprep.subr.mxu0 0.0
        %3751 = vmatpush1.msra.mxu0 %v3616
        %3752 = vmatprep.subr.mxu0 0.0
        %3753 = vmatpush1.msra.mxu0 %v3617
        %3754 = vmatprep.subr.mxu0 0.0
        %3755 = vmatpush1.msra.mxu0 %v3618
        %3756 = vmatprep.subr.mxu0 0.0
        %3757 = vmatpush1.msra.mxu0 %v3619
        %3758 = vmatprep.subr.mxu0 0.0
        %3759 = vmatpush1.msra.mxu0 %v3620
        %3760 = vmatprep.mubr.f32.mxu0 %v405
        %3761 = vmatmul.mubr.f32.gmra.mrb[0].mxu0 %v404
        %v3762 = vpop.f32.mrb[0].mxu0
        %v3763 = vadd.f32 %v3688, %v3762
        %v3764 = vpop.f32.mrb[0].mxu0
        %3765 = vmatprep.mubr.f32.mxu0 %v409
        %3766 = vmatmul.mubr.f32.gmra.mrb[0].mxu0 %v408
        %v3767 = vpop.f32.mrb[0].mxu0
        %v3768 = vadd.f32 %v3693, %v3767
        %v3769 = vpop.f32.mrb[0].mxu0
        %3770 = vdwg.mxu0
        %s3771 = scalar_lea.vmem %s5, 1536
        %v3772 = vld [vmem:[%s3771] sm:$0xff]
        %v3773 = vld [vmem:[%s3771 + $0x8] sm:$0xff]
        %v3774 = vld [vmem:[%s3771 + $0x10] sm:$0xff]
        %v3775 = vld [vmem:[%s3771 + $0x18] sm:$0xff]
        %v3776 = vld [vmem:[%s3771 + $0x20] sm:$0xff]
        %v3777 = vld [vmem:[%s3771 + $0x28] sm:$0xff]
        %v3778 = vld [vmem:[%s3771 + $0x30] sm:$0xff]
        %v3779 = vld [vmem:[%s3771 + $0x38] sm:$0xff]
        %v3780 = vld [vmem:[%s3771 + $0x40] sm:$0xff]
        %v3781 = vld [vmem:[%s3771 + $0x48] sm:$0xff]
        %v3782 = vld [vmem:[%s3771 + $0x50] sm:$0xff]
        %v3783 = vld [vmem:[%s3771 + $0x58] sm:$0xff]
        %v3784 = vld [vmem:[%s3771 + $0x60] sm:$0xff]
        %v3785 = vld [vmem:[%s3771 + $0x68] sm:$0xff]
        %v3786 = vld [vmem:[%s3771 + $0x70] sm:$0xff]
        %v3787 = vld [vmem:[%s3771 + $0x78] sm:$0xff]
        %v3788 = vld [vmem:[%s3771 + $0x80] sm:$0xff]
        %v3789 = vld [vmem:[%s3771 + $0x88] sm:$0xff]
        %v3790 = vld [vmem:[%s3771 + $0x90] sm:$0xff]
        %v3791 = vld [vmem:[%s3771 + $0x98] sm:$0xff]
        %v3792 = vld [vmem:[%s3771 + $0xa0] sm:$0xff]
        %v3793 = vld [vmem:[%s3771 + $0xa8] sm:$0xff]
        %v3794 = vld [vmem:[%s3771 + $0xb0] sm:$0xff]
        %v3795 = vld [vmem:[%s3771 + $0xb8] sm:$0xff]
        %v3796 = vld [vmem:[%s3771 + $0xc0] sm:$0xff]
        %v3797 = vld [vmem:[%s3771 + $0xc8] sm:$0xff]
        %v3798 = vld [vmem:[%s3771 + $0xd0] sm:$0xff]
        %v3799 = vld [vmem:[%s3771 + $0xd8] sm:$0xff]
        %v3800 = vld [vmem:[%s3771 + $0xe0] sm:$0xff]
        %v3801 = vld [vmem:[%s3771 + $0xe8] sm:$0xff]
        %v3802 = vld [vmem:[%s3771 + $0xf0] sm:$0xff]
        %v3803 = vld [vmem:[%s3771 + $0xf8] sm:$0xff]
        %v3804 = vld [vmem:[%s3771 + $0x100] sm:$0xff]
        %v3805 = vld [vmem:[%s3771 + $0x108] sm:$0xff]
        %v3806 = vld [vmem:[%s3771 + $0x110] sm:$0xff]
        %v3807 = vld [vmem:[%s3771 + $0x118] sm:$0xff]
        %v3808 = vld [vmem:[%s3771 + $0x120] sm:$0xff]
        %v3809 = vld [vmem:[%s3771 + $0x128] sm:$0xff]
        %v3810 = vld [vmem:[%s3771 + $0x130] sm:$0xff]
        %v3811 = vld [vmem:[%s3771 + $0x138] sm:$0xff]
        %v3812 = vld [vmem:[%s3771 + $0x140] sm:$0xff]
        %v3813 = vld [vmem:[%s3771 + $0x148] sm:$0xff]
        %v3814 = vld [vmem:[%s3771 + $0x150] sm:$0xff]
        %v3815 = vld [vmem:[%s3771 + $0x158] sm:$0xff]
        %v3816 = vld [vmem:[%s3771 + $0x160] sm:$0xff]
        %v3817 = vld [vmem:[%s3771 + $0x168] sm:$0xff]
        %v3818 = vld [vmem:[%s3771 + $0x170] sm:$0xff]
        %v3819 = vld [vmem:[%s3771 + $0x178] sm:$0xff]
        %v3820 = vld [vmem:[%s3771 + $0x180] sm:$0xff]
        %v3821 = vld [vmem:[%s3771 + $0x188] sm:$0xff]
        %v3822 = vld [vmem:[%s3771 + $0x190] sm:$0xff]
        %v3823 = vld [vmem:[%s3771 + $0x198] sm:$0xff]
        %v3824 = vld [vmem:[%s3771 + $0x1a0] sm:$0xff]
        %v3825 = vld [vmem:[%s3771 + $0x1a8] sm:$0xff]
        %v3826 = vld [vmem:[%s3771 + $0x1b0] sm:$0xff]
        %v3827 = vld [vmem:[%s3771 + $0x1b8] sm:$0xff]
        %v3828 = vld [vmem:[%s3771 + $0x1c0] sm:$0xff]
        %v3829 = vld [vmem:[%s3771 + $0x1c8] sm:$0xff]
        %v3830 = vld [vmem:[%s3771 + $0x1d0] sm:$0xff]
        %v3831 = vld [vmem:[%s3771 + $0x1d8] sm:$0xff]
        %v3832 = vld [vmem:[%s3771 + $0x1e0] sm:$0xff]
        %v3833 = vld [vmem:[%s3771 + $0x1e8] sm:$0xff]
        %v3834 = vld [vmem:[%s3771 + $0x1f0] sm:$0xff]
        %v3835 = vld [vmem:[%s3771 + $0x1f8] sm:$0xff]
        %3836 = vmatprep.subr.mxu0 0.0
        %3837 = vmatpush1.msra.mxu0 %v3772
        %3838 = vmatprep.subr.mxu0 0.0
        %3839 = vmatpush1.msra.mxu0 %v3773
        %3840 = vmatprep.subr.mxu0 0.0
        %3841 = vmatpush1.msra.mxu0 %v3774
        %3842 = vmatprep.subr.mxu0 0.0
        %3843 = vmatpush1.msra.mxu0 %v3775
        %3844 = vmatprep.subr.mxu0 0.0
        %3845 = vmatpush1.msra.mxu0 %v3776
        %3846 = vmatprep.subr.mxu0 0.0
        %3847 = vmatpush1.msra.mxu0 %v3777
        %3848 = vmatprep.subr.mxu0 0.0
        %3849 = vmatpush1.msra.mxu0 %v3778
        %3850 = vmatprep.subr.mxu0 0.0
        %3851 = vmatpush1.msra.mxu0 %v3779
        %3852 = vmatprep.subr.mxu0 0.0
        %3853 = vmatpush1.msra.mxu0 %v3780
        %3854 = vmatprep.subr.mxu0 0.0
        %3855 = vmatpush1.msra.mxu0 %v3781
        %3856 = vmatprep.subr.mxu0 0.0
        %3857 = vmatpush1.msra.mxu0 %v3782
        %3858 = vmatprep.subr.mxu0 0.0
        %3859 = vmatpush1.msra.mxu0 %v3783
        %3860 = vmatprep.subr.mxu0 0.0
        %3861 = vmatpush1.msra.mxu0 %v3784
        %3862 = vmatprep.subr.mxu0 0.0
        %3863 = vmatpush1.msra.mxu0 %v3785
        %3864 = vmatprep.subr.mxu0 0.0
        %3865 = vmatpush1.msra.mxu0 %v3786
        %3866 = vmatprep.subr.mxu0 0.0
        %3867 = vmatpush1.msra.mxu0 %v3787
        %3868 = vmatprep.subr.mxu0 0.0
        %3869 = vmatpush1.msra.mxu0 %v3788
        %3870 = vmatprep.subr.mxu0 0.0
        %3871 = vmatpush1.msra.mxu0 %v3789
        %3872 = vmatprep.subr.mxu0 0.0
        %3873 = vmatpush1.msra.mxu0 %v3790
        %3874 = vmatprep.subr.mxu0 0.0
        %3875 = vmatpush1.msra.mxu0 %v3791
        %3876 = vmatprep.subr.mxu0 0.0
        %3877 = vmatpush1.msra.mxu0 %v3792
        %3878 = vmatprep.subr.mxu0 0.0
        %3879 = vmatpush1.msra.mxu0 %v3793
        %3880 = vmatprep.subr.mxu0 0.0
        %3881 = vmatpush1.msra.mxu0 %v3794
        %3882 = vmatprep.subr.mxu0 0.0
        %3883 = vmatpush1.msra.mxu0 %v3795
        %3884 = vmatprep.subr.mxu0 0.0
        %3885 = vmatpush1.msra.mxu0 %v3796
        %3886 = vmatprep.subr.mxu0 0.0
        %3887 = vmatpush1.msra.mxu0 %v3797
        %3888 = vmatprep.subr.mxu0 0.0
        %3889 = vmatpush1.msra.mxu0 %v3798
        %3890 = vmatprep.subr.mxu0 0.0
        %3891 = vmatpush1.msra.mxu0 %v3799
        %3892 = vmatprep.subr.mxu0 0.0
        %3893 = vmatpush1.msra.mxu0 %v3800
        %3894 = vmatprep.subr.mxu0 0.0
        %3895 = vmatpush1.msra.mxu0 %v3801
        %3896 = vmatprep.subr.mxu0 0.0
        %3897 = vmatpush1.msra.mxu0 %v3802
        %3898 = vmatprep.subr.mxu0 0.0
        %3899 = vmatpush1.msra.mxu0 %v3803
        %3900 = vmatprep.mubr.f32.mxu0 %v411
        %3901 = vmatmul.mubr.f32.gmra.mrb[0].mxu0 %v410
        %v3902 = vpop.f32.mrb[0].mxu0
        %v3903 = vadd.f32 0.0, %v3902
        %v3904 = vpop.f32.mrb[0].mxu0
        %3905 = vmatprep.mubr.f32.mxu0 %v415
        %3906 = vmatmul.mubr.f32.gmra.mrb[0].mxu0 %v414
        %v3907 = vpop.f32.mrb[0].mxu0
        %v3908 = vadd.f32 0.0, %v3907
        %v3909 = vpop.f32.mrb[0].mxu0
        %3910 = vdwg.mxu0
        %3911 = vmatprep.subr.mxu0 0.0
        %3912 = vmatpush1.msra.mxu0 %v3804
        %3913 = vmatprep.subr.mxu0 0.0
        %3914 = vmatpush1.msra.mxu0 %v3805
        %3915 = vmatprep.subr.mxu0 0.0
        %3916 = vmatpush1.msra.mxu0 %v3806
        %3917 = vmatprep.subr.mxu0 0.0
        %3918 = vmatpush1.msra.mxu0 %v3807
        %3919 = vmatprep.subr.mxu0 0.0
        %3920 = vmatpush1.msra.mxu0 %v3808
        %3921 = vmatprep.subr.mxu0 0.0
        %3922 = vmatpush1.msra.mxu0 %v3809
        %3923 = vmatprep.subr.mxu0 0.0
        %3924 = vmatpush1.msra.mxu0 %v3810
        %3925 = vmatprep.subr.mxu0 0.0
        %3926 = vmatpush1.msra.mxu0 %v3811
        %3927 = vmatprep.subr.mxu0 0.0
        %3928 = vmatpush1.msra.mxu0 %v3812
        %3929 = vmatprep.subr.mxu0 0.0
        %3930 = vmatpush1.msra.mxu0 %v3813
        %3931 = vmatprep.subr.mxu0 0.0
        %3932 = vmatpush1.msra.mxu0 %v3814
        %3933 = vmatprep.subr.mxu0 0.0
        %3934 = vmatpush1.msra.mxu0 %v3815
        %3935 = vmatprep.subr.mxu0 0.0
        %3936 = vmatpush1.msra.mxu0 %v3816
        %3937 = vmatprep.subr.mxu0 0.0
        %3938 = vmatpush1.msra.mxu0 %v3817
        %3939 = vmatprep.subr.mxu0 0.0
        %3940 = vmatpush1.msra.mxu0 %v3818
        %3941 = vmatprep.subr.mxu0 0.0
        %3942 = vmatpush1.msra.mxu0 %v3819
        %3943 = vmatprep.subr.mxu0 0.0
        %3944 = vmatpush1.msra.mxu0 %v3820
        %3945 = vmatprep.subr.mxu0 0.0
        %3946 = vmatpush1.msra.mxu0 %v3821
        %3947 = vmatprep.subr.mxu0 0.0
        %3948 = vmatpush1.msra.mxu0 %v3822
        %3949 = vmatprep.subr.mxu0 0.0
        %3950 = vmatpush1.msra.mxu0 %v3823
        %3951 = vmatprep.subr.mxu0 0.0
        %3952 = vmatpush1.msra.mxu0 %v3824
        %3953 = vmatprep.subr.mxu0 0.0
        %3954 = vmatpush1.msra.mxu0 %v3825
        %3955 = vmatprep.subr.mxu0 0.0
        %3956 = vmatpush1.msra.mxu0 %v3826
        %3957 = vmatprep.subr.mxu0 0.0
        %3958 = vmatpush1.msra.mxu0 %v3827
        %3959 = vmatprep.subr.mxu0 0.0
        %3960 = vmatpush1.msra.mxu0 %v3828
        %3961 = vmatprep.subr.mxu0 0.0
        %3962 = vmatpush1.msra.mxu0 %v3829
        %3963 = vmatprep.subr.mxu0 0.0
        %3964 = vmatpush1.msra.mxu0 %v3830
        %3965 = vmatprep.subr.mxu0 0.0
        %3966 = vmatpush1.msra.mxu0 %v3831
        %3967 = vmatprep.subr.mxu0 0.0
        %3968 = vmatpush1.msra.mxu0 %v3832
        %3969 = vmatprep.subr.mxu0 0.0
        %3970 = vmatpush1.msra.mxu0 %v3833
        %3971 = vmatprep.subr.mxu0 0.0
        %3972 = vmatpush1.msra.mxu0 %v3834
        %3973 = vmatprep.subr.mxu0 0.0
        %3974 = vmatpush1.msra.mxu0 %v3835
        %3975 = vmatprep.mubr.f32.mxu0 %v413
        %3976 = vmatmul.mubr.f32.gmra.mrb[0].mxu0 %v412
        %v3977 = vpop.f32.mrb[0].mxu0
        %v3978 = vadd.f32 %v3903, %v3977
        %v3979 = vpop.f32.mrb[0].mxu0
        %3980 = vmatprep.mubr.f32.mxu0 %v417
        %3981 = vmatmul.mubr.f32.gmra.mrb[0].mxu0 %v416
        %v3982 = vpop.f32.mrb[0].mxu0
        %v3983 = vadd.f32 %v3908, %v3982
        %v3984 = vpop.f32.mrb[0].mxu0
        %3985 = vdwg.mxu0
        %s3986 = scalar_lea.vmem %s6, 1536
        %v3987 = vld [vmem:[%s3986] sm:$0xff]
        %v3988 = vld [vmem:[%s3986 + $0x8] sm:$0xff]
        %v3989 = vld [vmem:[%s3986 + $0x10] sm:$0xff]
        %v3990 = vld [vmem:[%s3986 + $0x18] sm:$0xff]
        %v3991 = vld [vmem:[%s3986 + $0x20] sm:$0xff]
        %v3992 = vld [vmem:[%s3986 + $0x28] sm:$0xff]
        %v3993 = vld [vmem:[%s3986 + $0x30] sm:$0xff]
        %v3994 = vld [vmem:[%s3986 + $0x38] sm:$0xff]
        %v3995 = vld [vmem:[%s3986 + $0x40] sm:$0xff]
        %v3996 = vld [vmem:[%s3986 + $0x48] sm:$0xff]
        %v3997 = vld [vmem:[%s3986 + $0x50] sm:$0xff]
        %v3998 = vld [vmem:[%s3986 + $0x58] sm:$0xff]
        %v3999 = vld [vmem:[%s3986 + $0x60] sm:$0xff]
        %v4000 = vld [vmem:[%s3986 + $0x68] sm:$0xff]
        %v4001 = vld [vmem:[%s3986 + $0x70] sm:$0xff]
        %v4002 = vld [vmem:[%s3986 + $0x78] sm:$0xff]
        %v4003 = vld [vmem:[%s3986 + $0x80] sm:$0xff]
        %v4004 = vld [vmem:[%s3986 + $0x88] sm:$0xff]
        %v4005 = vld [vmem:[%s3986 + $0x90] sm:$0xff]
        %v4006 = vld [vmem:[%s3986 + $0x98] sm:$0xff]
        %v4007 = vld [vmem:[%s3986 + $0xa0] sm:$0xff]
        %v4008 = vld [vmem:[%s3986 + $0xa8] sm:$0xff]
        %v4009 = vld [vmem:[%s3986 + $0xb0] sm:$0xff]
        %v4010 = vld [vmem:[%s3986 + $0xb8] sm:$0xff]
        %v4011 = vld [vmem:[%s3986 + $0xc0] sm:$0xff]
        %v4012 = vld [vmem:[%s3986 + $0xc8] sm:$0xff]
        %v4013 = vld [vmem:[%s3986 + $0xd0] sm:$0xff]
        %v4014 = vld [vmem:[%s3986 + $0xd8] sm:$0xff]
        %v4015 = vld [vmem:[%s3986 + $0xe0] sm:$0xff]
        %v4016 = vld [vmem:[%s3986 + $0xe8] sm:$0xff]
        %v4017 = vld [vmem:[%s3986 + $0xf0] sm:$0xff]
        %v4018 = vld [vmem:[%s3986 + $0xf8] sm:$0xff]
        %v4019 = vld [vmem:[%s3986 + $0x100] sm:$0xff]
        %v4020 = vld [vmem:[%s3986 + $0x108] sm:$0xff]
        %v4021 = vld [vmem:[%s3986 + $0x110] sm:$0xff]
        %v4022 = vld [vmem:[%s3986 + $0x118] sm:$0xff]
        %v4023 = vld [vmem:[%s3986 + $0x120] sm:$0xff]
        %v4024 = vld [vmem:[%s3986 + $0x128] sm:$0xff]
        %v4025 = vld [vmem:[%s3986 + $0x130] sm:$0xff]
        %v4026 = vld [vmem:[%s3986 + $0x138] sm:$0xff]
        %v4027 = vld [vmem:[%s3986 + $0x140] sm:$0xff]
        %v4028 = vld [vmem:[%s3986 + $0x148] sm:$0xff]
        %v4029 = vld [vmem:[%s3986 + $0x150] sm:$0xff]
        %v4030 = vld [vmem:[%s3986 + $0x158] sm:$0xff]
        %v4031 = vld [vmem:[%s3986 + $0x160] sm:$0xff]
        %v4032 = vld [vmem:[%s3986 + $0x168] sm:$0xff]
        %v4033 = vld [vmem:[%s3986 + $0x170] sm:$0xff]
        %v4034 = vld [vmem:[%s3986 + $0x178] sm:$0xff]
        %v4035 = vld [vmem:[%s3986 + $0x180] sm:$0xff]
        %v4036 = vld [vmem:[%s3986 + $0x188] sm:$0xff]
        %v4037 = vld [vmem:[%s3986 + $0x190] sm:$0xff]
        %v4038 = vld [vmem:[%s3986 + $0x198] sm:$0xff]
        %v4039 = vld [vmem:[%s3986 + $0x1a0] sm:$0xff]
        %v4040 = vld [vmem:[%s3986 + $0x1a8] sm:$0xff]
        %v4041 = vld [vmem:[%s3986 + $0x1b0] sm:$0xff]
        %v4042 = vld [vmem:[%s3986 + $0x1b8] sm:$0xff]
        %v4043 = vld [vmem:[%s3986 + $0x1c0] sm:$0xff]
        %v4044 = vld [vmem:[%s3986 + $0x1c8] sm:$0xff]
        %v4045 = vld [vmem:[%s3986 + $0x1d0] sm:$0xff]
        %v4046 = vld [vmem:[%s3986 + $0x1d8] sm:$0xff]
        %v4047 = vld [vmem:[%s3986 + $0x1e0] sm:$0xff]
        %v4048 = vld [vmem:[%s3986 + $0x1e8] sm:$0xff]
        %v4049 = vld [vmem:[%s3986 + $0x1f0] sm:$0xff]
        %v4050 = vld [vmem:[%s3986 + $0x1f8] sm:$0xff]
        %4051 = vmatprep.subr.mxu0 0.0
        %4052 = vmatpush1.msra.mxu0 %v3987
        %4053 = vmatprep.subr.mxu0 0.0
        %4054 = vmatpush1.msra.mxu0 %v3988
        %4055 = vmatprep.subr.mxu0 0.0
        %4056 = vmatpush1.msra.mxu0 %v3989
        %4057 = vmatprep.subr.mxu0 0.0
        %4058 = vmatpush1.msra.mxu0 %v3990
        %4059 = vmatprep.subr.mxu0 0.0
        %4060 = vmatpush1.msra.mxu0 %v3991
        %4061 = vmatprep.subr.mxu0 0.0
        %4062 = vmatpush1.msra.mxu0 %v3992
        %4063 = vmatprep.subr.mxu0 0.0
        %4064 = vmatpush1.msra.mxu0 %v3993
        %4065 = vmatprep.subr.mxu0 0.0
        %4066 = vmatpush1.msra.mxu0 %v3994
        %4067 = vmatprep.subr.mxu0 0.0
        %4068 = vmatpush1.msra.mxu0 %v3995
        %4069 = vmatprep.subr.mxu0 0.0
        %4070 = vmatpush1.msra.mxu0 %v3996
        %4071 = vmatprep.subr.mxu0 0.0
        %4072 = vmatpush1.msra.mxu0 %v3997
        %4073 = vmatprep.subr.mxu0 0.0
        %4074 = vmatpush1.msra.mxu0 %v3998
        %4075 = vmatprep.subr.mxu0 0.0
        %4076 = vmatpush1.msra.mxu0 %v3999
        %4077 = vmatprep.subr.mxu0 0.0
        %4078 = vmatpush1.msra.mxu0 %v4000
        %4079 = vmatprep.subr.mxu0 0.0
        %4080 = vmatpush1.msra.mxu0 %v4001
        %4081 = vmatprep.subr.mxu0 0.0
        %4082 = vmatpush1.msra.mxu0 %v4002
        %4083 = vmatprep.subr.mxu0 0.0
        %4084 = vmatpush1.msra.mxu0 %v4003
        %4085 = vmatprep.subr.mxu0 0.0
        %4086 = vmatpush1.msra.mxu0 %v4004
        %4087 = vmatprep.subr.mxu0 0.0
        %4088 = vmatpush1.msra.mxu0 %v4005
        %4089 = vmatprep.subr.mxu0 0.0
        %4090 = vmatpush1.msra.mxu0 %v4006
        %4091 = vmatprep.subr.mxu0 0.0
        %4092 = vmatpush1.msra.mxu0 %v4007
        %4093 = vmatprep.subr.mxu0 0.0
        %4094 = vmatpush1.msra.mxu0 %v4008
        %4095 = vmatprep.subr.mxu0 0.0
        %4096 = vmatpush1.msra.mxu0 %v4009
        %4097 = vmatprep.subr.mxu0 0.0
        %4098 = vmatpush1.msra.mxu0 %v4010
        %4099 = vmatprep.subr.mxu0 0.0
        %4100 = vmatpush1.msra.mxu0 %v4011
        %4101 = vmatprep.subr.mxu0 0.0
        %4102 = vmatpush1.msra.mxu0 %v4012
        %4103 = vmatprep.subr.mxu0 0.0
        %4104 = vmatpush1.msra.mxu0 %v4013
        %4105 = vmatprep.subr.mxu0 0.0
        %4106 = vmatpush1.msra.mxu0 %v4014
        %4107 = vmatprep.subr.mxu0 0.0
        %4108 = vmatpush1.msra.mxu0 %v4015
        %4109 = vmatprep.subr.mxu0 0.0
        %4110 = vmatpush1.msra.mxu0 %v4016
        %4111 = vmatprep.subr.mxu0 0.0
        %4112 = vmatpush1.msra.mxu0 %v4017
        %4113 = vmatprep.subr.mxu0 0.0
        %4114 = vmatpush1.msra.mxu0 %v4018
        %4115 = vmatprep.mubr.f32.mxu0 %v419
        %4116 = vmatmul.mubr.f32.gmra.mrb[0].mxu0 %v418
        %v4117 = vpop.f32.mrb[0].mxu0
        %v4118 = vadd.f32 0.0, %v4117
        %v4119 = vpop.f32.mrb[0].mxu0
        %4120 = vmatprep.mubr.f32.mxu0 %v423
        %4121 = vmatmul.mubr.f32.gmra.mrb[0].mxu0 %v422
        %v4122 = vpop.f32.mrb[0].mxu0
        %v4123 = vadd.f32 0.0, %v4122
        %v4124 = vpop.f32.mrb[0].mxu0
        %4125 = vdwg.mxu0
        %4126 = vmatprep.subr.mxu0 0.0
        %4127 = vmatpush1.msra.mxu0 %v4019
        %4128 = vmatprep.subr.mxu0 0.0
        %4129 = vmatpush1.msra.mxu0 %v4020
        %4130 = vmatprep.subr.mxu0 0.0
        %4131 = vmatpush1.msra.mxu0 %v4021
        %4132 = vmatprep.subr.mxu0 0.0
        %4133 = vmatpush1.msra.mxu0 %v4022
        %4134 = vmatprep.subr.mxu0 0.0
        %4135 = vmatpush1.msra.mxu0 %v4023
        %4136 = vmatprep.subr.mxu0 0.0
        %4137 = vmatpush1.msra.mxu0 %v4024
        %4138 = vmatprep.subr.mxu0 0.0
        %4139 = vmatpush1.msra.mxu0 %v4025
        %4140 = vmatprep.subr.mxu0 0.0
        %4141 = vmatpush1.msra.mxu0 %v4026
        %4142 = vmatprep.subr.mxu0 0.0
        %4143 = vmatpush1.msra.mxu0 %v4027
        %4144 = vmatprep.subr.mxu0 0.0
        %4145 = vmatpush1.msra.mxu0 %v4028
        %4146 = vmatprep.subr.mxu0 0.0
        %4147 = vmatpush1.msra.mxu0 %v4029
        %4148 = vmatprep.subr.mxu0 0.0
        %4149 = vmatpush1.msra.mxu0 %v4030
        %4150 = vmatprep.subr.mxu0 0.0
        %4151 = vmatpush1.msra.mxu0 %v4031
        %4152 = vmatprep.subr.mxu0 0.0
        %4153 = vmatpush1.msra.mxu0 %v4032
        %4154 = vmatprep.subr.mxu0 0.0
        %4155 = vmatpush1.msra.mxu0 %v4033
        %4156 = vmatprep.subr.mxu0 0.0
        %4157 = vmatpush1.msra.mxu0 %v4034
        %4158 = vmatprep.subr.mxu0 0.0
        %4159 = vmatpush1.msra.mxu0 %v4035
        %4160 = vmatprep.subr.mxu0 0.0
        %4161 = vmatpush1.msra.mxu0 %v4036
        %4162 = vmatprep.subr.mxu0 0.0
        %4163 = vmatpush1.msra.mxu0 %v4037
        %4164 = vmatprep.subr.mxu0 0.0
        %4165 = vmatpush1.msra.mxu0 %v4038
        %4166 = vmatprep.subr.mxu0 0.0
        %4167 = vmatpush1.msra.mxu0 %v4039
        %4168 = vmatprep.subr.mxu0 0.0
        %4169 = vmatpush1.msra.mxu0 %v4040
        %4170 = vmatprep.subr.mxu0 0.0
        %4171 = vmatpush1.msra.mxu0 %v4041
        %4172 = vmatprep.subr.mxu0 0.0
        %4173 = vmatpush1.msra.mxu0 %v4042
        %4174 = vmatprep.subr.mxu0 0.0
        %4175 = vmatpush1.msra.mxu0 %v4043
        %4176 = vmatprep.subr.mxu0 0.0
        %4177 = vmatpush1.msra.mxu0 %v4044
        %4178 = vmatprep.subr.mxu0 0.0
        %4179 = vmatpush1.msra.mxu0 %v4045
        %4180 = vmatprep.subr.mxu0 0.0
        %4181 = vmatpush1.msra.mxu0 %v4046
        %4182 = vmatprep.subr.mxu0 0.0
        %4183 = vmatpush1.msra.mxu0 %v4047
        %4184 = vmatprep.subr.mxu0 0.0
        %4185 = vmatpush1.msra.mxu0 %v4048
        %4186 = vmatprep.subr.mxu0 0.0
        %4187 = vmatpush1.msra.mxu0 %v4049
        %4188 = vmatprep.subr.mxu0 0.0
        %4189 = vmatpush1.msra.mxu0 %v4050
        %4190 = vmatprep.mubr.f32.mxu0 %v421
        %4191 = vmatmul.mubr.f32.gmra.mrb[0].mxu0 %v420
        %v4192 = vpop.f32.mrb[0].mxu0
        %v4193 = vadd.f32 %v4118, %v4192
        %v4194 = vpop.f32.mrb[0].mxu0
        %4195 = vmatprep.mubr.f32.mxu0 %v425
        %4196 = vmatmul.mubr.f32.gmra.mrb[0].mxu0 %v424
        %v4197 = vpop.f32.mrb[0].mxu0
        %v4198 = vadd.f32 %v4123, %v4197
        %v4199 = vpop.f32.mrb[0].mxu0
        %4200 = vdwg.mxu0
        %v4202 = vsel %vm1072, %v3763, 0
        %v4205 = vsel %vm1072, %v3768, 0
        %v4208 = vsel %vm1072, %v3978, 0
        %v4211 = vsel %vm1072, %v3983, 0
        %4213 = vmatprep.subr.mxu0 0.0
        %4214 = vmatpush1.xpose.msra.mxu0 %v4208
        %4215 = vmatprep.subr.mxu0 0.0
        %4216 = vmatpush1.xpose.msra.mxu0 %v4211
        %4217 = vmatprep.subr.mxu0 0.0
        %4218 = vmatpush1.xpose.msra.mxu0 0.0
        %4219 = vmatprep.subr.mxu0 0.0
        %4220 = vmatpush1.xpose.msra.mxu0 0.0
        %4221 = vmatprep.subr.mxu0 0.0
        %4222 = vmatpush1.xpose.msra.mxu0 0.0
        %4223 = vmatprep.subr.mxu0 0.0
        %4224 = vmatpush1.xpose.msra.mxu0 0.0
        %4225 = vmatprep.subr.mxu0 0.0
        %4226 = vmatpush1.xpose.msra.mxu0 0.0
        %4227 = vmatprep.subr.mxu0 0.0
        %4228 = vmatpush1.xpose.msra.mxu0 0.0
        %4229 = vmatprep.subr.mxu0 0.0
        %4230 = vmatpush1.xpose.msra.mxu0 0.0
        %4231 = vmatprep.subr.mxu0 0.0
        %4232 = vmatpush1.xpose.msra.mxu0 0.0
        %4233 = vmatprep.subr.mxu0 0.0
        %4234 = vmatpush1.xpose.msra.mxu0 0.0
        %4235 = vmatprep.subr.mxu0 0.0
        %4236 = vmatpush1.xpose.msra.mxu0 0.0
        %4237 = vmatprep.subr.mxu0 0.0
        %4238 = vmatpush1.xpose.msra.mxu0 0.0
        %4239 = vmatprep.subr.mxu0 0.0
        %4240 = vmatpush1.xpose.msra.mxu0 0.0
        %4241 = vmatprep.subr.mxu0 0.0
        %4242 = vmatpush1.xpose.msra.mxu0 0.0
        %4243 = vmatprep.subr.mxu0 0.0
        %4244 = vmatpush1.xpose.msra.mxu0 0.0
        %4245 = vmatprep.subr.mxu0 0.0
        %4246 = vmatpush1.xpose.msra.mxu0 0.0
        %4247 = vmatprep.subr.mxu0 0.0
        %4248 = vmatpush1.xpose.msra.mxu0 0.0
        %4249 = vmatprep.subr.mxu0 0.0
        %4250 = vmatpush1.xpose.msra.mxu0 0.0
        %4251 = vmatprep.subr.mxu0 0.0
        %4252 = vmatpush1.xpose.msra.mxu0 0.0
        %4253 = vmatprep.subr.mxu0 0.0
        %4254 = vmatpush1.xpose.msra.mxu0 0.0
        %4255 = vmatprep.subr.mxu0 0.0
        %4256 = vmatpush1.xpose.msra.mxu0 0.0
        %4257 = vmatprep.subr.mxu0 0.0
        %4258 = vmatpush1.xpose.msra.mxu0 0.0
        %4259 = vmatprep.subr.mxu0 0.0
        %4260 = vmatpush1.xpose.msra.mxu0 0.0
        %4261 = vmatprep.subr.mxu0 0.0
        %4262 = vmatpush1.xpose.msra.mxu0 0.0
        %4263 = vmatprep.subr.mxu0 0.0
        %4264 = vmatpush1.xpose.msra.mxu0 0.0
        %4265 = vmatprep.subr.mxu0 0.0
        %4266 = vmatpush1.xpose.msra.mxu0 0.0
        %4267 = vmatprep.subr.mxu0 0.0
        %4268 = vmatpush1.xpose.msra.mxu0 0.0
        %4269 = vmatprep.subr.mxu0 0.0
        %4270 = vmatpush1.xpose.msra.mxu0 0.0
        %4271 = vmatprep.subr.mxu0 0.0
        %4272 = vmatpush1.xpose.msra.mxu0 0.0
        %4273 = vmatprep.subr.mxu0 0.0
        %4274 = vmatpush1.xpose.msra.mxu0 0.0
        %4275 = vmatprep.subr.mxu0 0.0
        %4276 = vmatpush1.xpose.msra.mxu0 0.0
        %4277 = vmatprep.mubr.f32.mxu0 0.0
        %4278 = vmatmul.mubr.f32.gmra.mrb[0].mxu0 %v4202
        %v4279 = vpop.f32.mrb[0].mxu0
        %v4280 = vadd.f32 0.0, %v4279
        %v4281 = vpop.f32.mrb[0].mxu0
        %4282 = vmatprep.mubr.f32.mxu0 0.0
        %4283 = vmatmul.mubr.f32.gmra.mrb[0].mxu0 %v4205
        %v4284 = vpop.f32.mrb[0].mxu0
        %v4285 = vadd.f32 0.0, %v4284
        %v4286 = vpop.f32.mrb[0].mxu0
        %4287 = vdwg.mxu0
        %v4288 = vmul.f32 %v4280, 0.125
        %v4289 = vmul.f32 %v4285, 0.125
        %v4290 = vsel %vm428, -1e+09, %v4288
        %v4291 = vsel %vm429, -1e+09, %v4289
        %v4292 = vsel %vm1164, %v4290, -inf
        %4293 = vmax.xlane.f32.xlu0 %v4292
        %v4294 = vpop.xlane.xlu0 %4293
        %v4295 = vsel %vm1164, %v4291, -inf
        %4296 = vmax.xlane.f32.xlu0 %v4295
        %v4297 = vpop.xlane.xlu0 %4296
        %v4298 = vsub.f32 %v4290, %v4294
        %v4299 = vsub.f32 %v4291, %v4297
        %v4300 = vmul.f32 %v4298, 1.442695
        %v4301 = vpow.pop %v4300
        %v4302 = vmul.f32 %v4299, 1.442695
        %v4303 = vpow.pop %v4302
        %v4304 = vsel %vm1164, %v4301, 0.0
        %4305 = vadd.xlane.f32.xlu0 %v4304
        %v4306 = vpop.xlane.xlu0 %4305
        %v4307 = vsel %vm1164, %v4303, 0.0
        %4308 = vadd.xlane.f32.xlu0 %v4307
        %v4309 = vpop.xlane.xlu0 %4308
        %v4310 = vrcp.pop %v4306
        %v4311 = vmul.f32 %v4301, %v4310
        %v4312 = vrcp.pop %v4309
        %v4313 = vmul.f32 %v4303, %v4312
        %s4314 = scalar_lea.vmem %s381, 48 [#allocation4]
        %4315 = vst.msk [vmem:[%s4314] sm:$0xff] %vm1164, %v4311
        %4316 = vst.msk [vmem:[%s4314 + $0x8] sm:$0xff] %vm1164, %v4313
        %v4318 = vsel %vm1164, %v4311, 0
        %v4321 = vsel %vm1164, %v4313, 0
        %4323 = vmatprep.subr.mxu0 0.0
        %4324 = vmatpush1.msra.mxu0 %v4193
        %4325 = vmatprep.subr.mxu0 0.0
        %4326 = vmatpush1.msra.mxu0 %v4198
        %4327 = vmatprep.subr.mxu0 0.0
        %4328 = vmatpush1.msra.mxu0 0.0
        %4329 = vmatprep.subr.mxu0 0.0
        %4330 = vmatpush1.msra.mxu0 0.0
        %4331 = vmatprep.subr.mxu0 0.0
        %4332 = vmatpush1.msra.mxu0 0.0
        %4333 = vmatprep.subr.mxu0 0.0
        %4334 = vmatpush1.msra.mxu0 0.0
        %4335 = vmatprep.subr.mxu0 0.0
        %4336 = vmatpush1.msra.mxu0 0.0
        %4337 = vmatprep.subr.mxu0 0.0
        %4338 = vmatpush1.msra.mxu0 0.0
        %4339 = vmatprep.subr.mxu0 0.0
        %4340 = vmatpush1.msra.mxu0 0.0
        %4341 = vmatprep.subr.mxu0 0.0
        %4342 = vmatpush1.msra.mxu0 0.0
        %4343 = vmatprep.subr.mxu0 0.0
        %4344 = vmatpush1.msra.mxu0 0.0
        %4345 = vmatprep.subr.mxu0 0.0
        %4346 = vmatpush1.msra.mxu0 0.0
        %4347 = vmatprep.subr.mxu0 0.0
        %4348 = vmatpush1.msra.mxu0 0.0
        %4349 = vmatprep.subr.mxu0 0.0
        %4350 = vmatpush1.msra.mxu0 0.0
        %4351 = vmatprep.subr.mxu0 0.0
        %4352 = vmatpush1.msra.mxu0 0.0
        %4353 = vmatprep.subr.mxu0 0.0
        %4354 = vmatpush1.msra.mxu0 0.0
        %4355 = vmatprep.subr.mxu0 0.0
        %4356 = vmatpush1.msra.mxu0 0.0
        %4357 = vmatprep.subr.mxu0 0.0
        %4358 = vmatpush1.msra.mxu0 0.0
        %4359 = vmatprep.subr.mxu0 0.0
        %4360 = vmatpush1.msra.mxu0 0.0
        %4361 = vmatprep.subr.mxu0 0.0
        %4362 = vmatpush1.msra.mxu0 0.0
        %4363 = vmatprep.subr.mxu0 0.0
        %4364 = vmatpush1.msra.mxu0 0.0
        %4365 = vmatprep.subr.mxu0 0.0
        %4366 = vmatpush1.msra.mxu0 0.0
        %4367 = vmatprep.subr.mxu0 0.0
        %4368 = vmatpush1.msra.mxu0 0.0
        %4369 = vmatprep.subr.mxu0 0.0
        %4370 = vmatpush1.msra.mxu0 0.0
        %4371 = vmatprep.subr.mxu0 0.0
        %4372 = vmatpush1.msra.mxu0 0.0
        %4373 = vmatprep.subr.mxu0 0.0
        %4374 = vmatpush1.msra.mxu0 0.0
        %4375 = vmatprep.subr.mxu0 0.0
        %4376 = vmatpush1.msra.mxu0 0.0
        %4377 = vmatprep.subr.mxu0 0.0
        %4378 = vmatpush1.msra.mxu0 0.0
        %4379 = vmatprep.subr.mxu0 0.0
        %4380 = vmatpush1.msra.mxu0 0.0
        %4381 = vmatprep.subr.mxu0 0.0
        %4382 = vmatpush1.msra.mxu0 0.0
        %4383 = vmatprep.subr.mxu0 0.0
        %4384 = vmatpush1.msra.mxu0 0.0
        %4385 = vmatprep.subr.mxu0 0.0
        %4386 = vmatpush1.msra.mxu0 0.0
        %4387 = vmatprep.mubr.f32.mxu0 0.0
        %4388 = vmatmul.mubr.f32.gmra.mrb[0].mxu0 %v4318
        %v4389 = vpop.f32.mrb[0].mxu0
        %v4390 = vadd.f32 0.0, %v4389
        %v4391 = vpop.f32.mrb[0].mxu0
        %4392 = vmatprep.mubr.f32.mxu0 0.0
        %4393 = vmatmul.mubr.f32.gmra.mrb[0].mxu0 %v4321
        %v4394 = vpop.f32.mrb[0].mxu0
        %v4395 = vadd.f32 0.0, %v4394
        %v4396 = vpop.f32.mrb[0].mxu0
        %4397 = vdwg.mxu0
        %s4398 = scalar_lea.vmem %s7, 768
        %v4399 = vld [vmem:[%s4398] sm:$0xff]
        %v4400 = vld [vmem:[%s4398 + $0x8] sm:$0xff]
        %v4401 = vld [vmem:[%s4398 + $0x10] sm:$0xff]
        %v4402 = vld [vmem:[%s4398 + $0x18] sm:$0xff]
        %v4403 = vld [vmem:[%s4398 + $0x20] sm:$0xff]
        %v4404 = vld [vmem:[%s4398 + $0x28] sm:$0xff]
        %v4405 = vld [vmem:[%s4398 + $0x30] sm:$0xff]
        %v4406 = vld [vmem:[%s4398 + $0x38] sm:$0xff]
        %v4407 = vld [vmem:[%s4398 + $0x40] sm:$0xff]
        %v4408 = vld [vmem:[%s4398 + $0x48] sm:$0xff]
        %v4409 = vld [vmem:[%s4398 + $0x50] sm:$0xff]
        %v4410 = vld [vmem:[%s4398 + $0x58] sm:$0xff]
        %v4411 = vld [vmem:[%s4398 + $0x60] sm:$0xff]
        %v4412 = vld [vmem:[%s4398 + $0x68] sm:$0xff]
        %v4413 = vld [vmem:[%s4398 + $0x70] sm:$0xff]
        %v4414 = vld [vmem:[%s4398 + $0x78] sm:$0xff]
        %v4415 = vld [vmem:[%s4398 + $0x80] sm:$0xff]
        %v4416 = vld [vmem:[%s4398 + $0x88] sm:$0xff]
        %v4417 = vld [vmem:[%s4398 + $0x90] sm:$0xff]
        %v4418 = vld [vmem:[%s4398 + $0x98] sm:$0xff]
        %v4419 = vld [vmem:[%s4398 + $0xa0] sm:$0xff]
        %v4420 = vld [vmem:[%s4398 + $0xa8] sm:$0xff]
        %v4421 = vld [vmem:[%s4398 + $0xb0] sm:$0xff]
        %v4422 = vld [vmem:[%s4398 + $0xb8] sm:$0xff]
        %v4423 = vld [vmem:[%s4398 + $0xc0] sm:$0xff]
        %v4424 = vld [vmem:[%s4398 + $0xc8] sm:$0xff]
        %v4425 = vld [vmem:[%s4398 + $0xd0] sm:$0xff]
        %v4426 = vld [vmem:[%s4398 + $0xd8] sm:$0xff]
        %v4427 = vld [vmem:[%s4398 + $0xe0] sm:$0xff]
        %v4428 = vld [vmem:[%s4398 + $0xe8] sm:$0xff]
        %v4429 = vld [vmem:[%s4398 + $0xf0] sm:$0xff]
        %v4430 = vld [vmem:[%s4398 + $0xf8] sm:$0xff]
        %v4432 = vsel %vm1072, %v4390, 0
        %v4435 = vsel %vm1072, %v4395, 0
        %4437 = vmatprep.subr.mxu0 %v4400
        %4438 = vmatpush1.msra.mxu0 %v4399
        %4439 = vmatprep.subr.mxu0 %v4404
        %4440 = vmatpush1.msra.mxu0 %v4403
        %4441 = vmatprep.subr.mxu0 %v4408
        %4442 = vmatpush1.msra.mxu0 %v4407
        %4443 = vmatprep.subr.mxu0 %v4412
        %4444 = vmatpush1.msra.mxu0 %v4411
        %4445 = vmatprep.subr.mxu0 %v4416
        %4446 = vmatpush1.msra.mxu0 %v4415
        %4447 = vmatprep.subr.mxu0 %v4420
        %4448 = vmatpush1.msra.mxu0 %v4419
        %4449 = vmatprep.subr.mxu0 %v4424
        %4450 = vmatpush1.msra.mxu0 %v4423
        %4451 = vmatprep.subr.mxu0 %v4428
        %4452 = vmatpush1.msra.mxu0 %v4427
        %4453 = vmatprep.subr.mxu0 0.0
        %4454 = vmatpush1.msra.mxu0 0.0
        %4455 = vmatprep.subr.mxu0 0.0
        %4456 = vmatpush1.msra.mxu0 0.0
        %4457 = vmatprep.subr.mxu0 0.0
        %4458 = vmatpush1.msra.mxu0 0.0
        %4459 = vmatprep.subr.mxu0 0.0
        %4460 = vmatpush1.msra.mxu0 0.0
        %4461 = vmatprep.subr.mxu0 0.0
        %4462 = vmatpush1.msra.mxu0 0.0
        %4463 = vmatprep.subr.mxu0 0.0
        %4464 = vmatpush1.msra.mxu0 0.0
        %4465 = vmatprep.subr.mxu0 0.0
        %4466 = vmatpush1.msra.mxu0 0.0
        %4467 = vmatprep.subr.mxu0 0.0
        %4468 = vmatpush1.msra.mxu0 0.0
        %4469 = vmatprep.subr.mxu0 0.0
        %4470 = vmatpush1.msra.mxu0 0.0
        %4471 = vmatprep.subr.mxu0 0.0
        %4472 = vmatpush1.msra.mxu0 0.0
        %4473 = vmatprep.subr.mxu0 0.0
        %4474 = vmatpush1.msra.mxu0 0.0
        %4475 = vmatprep.subr.mxu0 0.0
        %4476 = vmatpush1.msra.mxu0 0.0
        %4477 = vmatprep.subr.mxu0 0.0
        %4478 = vmatpush1.msra.mxu0 0.0
        %4479 = vmatprep.subr.mxu0 0.0
        %4480 = vmatpush1.msra.mxu0 0.0
        %4481 = vmatprep.subr.mxu0 0.0
        %4482 = vmatpush1.msra.mxu0 0.0
        %4483 = vmatprep.subr.mxu0 0.0
        %4484 = vmatpush1.msra.mxu0 0.0
        %4485 = vmatprep.subr.mxu0 0.0
        %4486 = vmatpush1.msra.mxu0 0.0
        %4487 = vmatprep.subr.mxu0 0.0
        %4488 = vmatpush1.msra.mxu0 0.0
        %4489 = vmatprep.subr.mxu0 0.0
        %4490 = vmatpush1.msra.mxu0 0.0
        %4491 = vmatprep.subr.mxu0 0.0
        %4492 = vmatpush1.msra.mxu0 0.0
        %4493 = vmatprep.subr.mxu0 0.0
        %4494 = vmatpush1.msra.mxu0 0.0
        %4495 = vmatprep.subr.mxu0 0.0
        %4496 = vmatpush1.msra.mxu0 0.0
        %4497 = vmatprep.subr.mxu0 0.0
        %4498 = vmatpush1.msra.mxu0 0.0
        %4499 = vmatprep.subr.mxu0 0.0
        %4500 = vmatpush1.msra.mxu0 0.0
        %4501 = vmatprep.mubr.f32.mxu0 0.0
        %4502 = vmatmul.mubr.f32.gmra.mrb[0].mxu0 %v4432
        %v4503 = vpop.f32.mrb[0].mxu0
        %v4504 = vadd.f32 0.0, %v4503
        %v4505 = vpop.f32.mrb[0].mxu0
        %v4506 = vadd.f32 0.0, %v4505
        %4507 = vmatprep.mubr.f32.mxu0 0.0
        %4508 = vmatmul.mubr.f32.gmra.mrb[0].mxu0 %v4435
        %v4509 = vpop.f32.mrb[0].mxu0
        %v4510 = vadd.f32 0.0, %v4509
        %v4511 = vpop.f32.mrb[0].mxu0
        %v4512 = vadd.f32 0.0, %v4511
        %4513 = vdwg.mxu0
        %4514 = vmatprep.subr.mxu0 %v4402
        %4515 = vmatpush1.msra.mxu0 %v4401
        %4516 = vmatprep.subr.mxu0 %v4406
        %4517 = vmatpush1.msra.mxu0 %v4405
        %4518 = vmatprep.subr.mxu0 %v4410
        %4519 = vmatpush1.msra.mxu0 %v4409
        %4520 = vmatprep.subr.mxu0 %v4414
        %4521 = vmatpush1.msra.mxu0 %v4413
        %4522 = vmatprep.subr.mxu0 %v4418
        %4523 = vmatpush1.msra.mxu0 %v4417
        %4524 = vmatprep.subr.mxu0 %v4422
        %4525 = vmatpush1.msra.mxu0 %v4421
        %4526 = vmatprep.subr.mxu0 %v4426
        %4527 = vmatpush1.msra.mxu0 %v4425
        %4528 = vmatprep.subr.mxu0 %v4430
        %4529 = vmatpush1.msra.mxu0 %v4429
        %4530 = vmatprep.subr.mxu0 0.0
        %4531 = vmatpush1.msra.mxu0 0.0
        %4532 = vmatprep.subr.mxu0 0.0
        %4533 = vmatpush1.msra.mxu0 0.0
        %4534 = vmatprep.subr.mxu0 0.0
        %4535 = vmatpush1.msra.mxu0 0.0
        %4536 = vmatprep.subr.mxu0 0.0
        %4537 = vmatpush1.msra.mxu0 0.0
        %4538 = vmatprep.subr.mxu0 0.0
        %4539 = vmatpush1.msra.mxu0 0.0
        %4540 = vmatprep.subr.mxu0 0.0
        %4541 = vmatpush1.msra.mxu0 0.0
        %4542 = vmatprep.subr.mxu0 0.0
        %4543 = vmatpush1.msra.mxu0 0.0
        %4544 = vmatprep.subr.mxu0 0.0
        %4545 = vmatpush1.msra.mxu0 0.0
        %4546 = vmatprep.subr.mxu0 0.0
        %4547 = vmatpush1.msra.mxu0 0.0
        %4548 = vmatprep.subr.mxu0 0.0
        %4549 = vmatpush1.msra.mxu0 0.0
        %4550 = vmatprep.subr.mxu0 0.0
        %4551 = vmatpush1.msra.mxu0 0.0
        %4552 = vmatprep.subr.mxu0 0.0
        %4553 = vmatpush1.msra.mxu0 0.0
        %4554 = vmatprep.subr.mxu0 0.0
        %4555 = vmatpush1.msra.mxu0 0.0
        %4556 = vmatprep.subr.mxu0 0.0
        %4557 = vmatpush1.msra.mxu0 0.0
        %4558 = vmatprep.subr.mxu0 0.0
        %4559 = vmatpush1.msra.mxu0 0.0
        %4560 = vmatprep.subr.mxu0 0.0
        %4561 = vmatpush1.msra.mxu0 0.0
        %4562 = vmatprep.subr.mxu0 0.0
        %4563 = vmatpush1.msra.mxu0 0.0
        %4564 = vmatprep.subr.mxu0 0.0
        %4565 = vmatpush1.msra.mxu0 0.0
        %4566 = vmatprep.subr.mxu0 0.0
        %4567 = vmatpush1.msra.mxu0 0.0
        %4568 = vmatprep.subr.mxu0 0.0
        %4569 = vmatpush1.msra.mxu0 0.0
        %4570 = vmatprep.subr.mxu0 0.0
        %4571 = vmatpush1.msra.mxu0 0.0
        %4572 = vmatprep.subr.mxu0 0.0
        %4573 = vmatpush1.msra.mxu0 0.0
        %4574 = vmatprep.subr.mxu0 0.0
        %4575 = vmatpush1.msra.mxu0 0.0
        %4576 = vmatprep.subr.mxu0 0.0
        %4577 = vmatpush1.msra.mxu0 0.0
        %4578 = vmatprep.mubr.f32.mxu0 0.0
        %4579 = vmatmul.mubr.f32.gmra.mrb[0].mxu0 %v4432
        %v4580 = vpop.f32.mrb[0].mxu0
        %v4581 = vadd.f32 0.0, %v4580
        %v4582 = vpop.f32.mrb[0].mxu0
        %v4583 = vadd.f32 0.0, %v4582
        %4584 = vmatprep.mubr.f32.mxu0 0.0
        %4585 = vmatmul.mubr.f32.gmra.mrb[0].mxu0 %v4435
        %v4586 = vpop.f32.mrb[0].mxu0
        %v4587 = vadd.f32 0.0, %v4586
        %v4588 = vpop.f32.mrb[0].mxu0
        %v4589 = vadd.f32 0.0, %v4588
        %4590 = vdwg.mxu0
        %v4591 = vadd.f32 %v3548, %v4504
        %v4592 = vadd.f32 %v3549, %v4506
        %v4593 = vadd.f32 %v3550, %v4581
        %v4594 = vadd.f32 %v3551, %v4583
        %v4595 = vadd.f32 %v3552, %v4510
        %v4596 = vadd.f32 %v3553, %v4512
        %v4597 = vadd.f32 %v3554, %v4587
        %v4598 = vadd.f32 %v3555, %v4589
        %s4599 = scalar_lea.vmem %s4, 2048
        %v4600 = vld [vmem:[%s4599] sm:$0xff]
        %v4601 = vld [vmem:[%s4599 + $0x8] sm:$0xff]
        %v4602 = vld [vmem:[%s4599 + $0x10] sm:$0xff]
        %v4603 = vld [vmem:[%s4599 + $0x18] sm:$0xff]
        %v4604 = vld [vmem:[%s4599 + $0x20] sm:$0xff]
        %v4605 = vld [vmem:[%s4599 + $0x28] sm:$0xff]
        %v4606 = vld [vmem:[%s4599 + $0x30] sm:$0xff]
        %v4607 = vld [vmem:[%s4599 + $0x38] sm:$0xff]
        %v4608 = vld [vmem:[%s4599 + $0x40] sm:$0xff]
        %v4609 = vld [vmem:[%s4599 + $0x48] sm:$0xff]
        %v4610 = vld [vmem:[%s4599 + $0x50] sm:$0xff]
        %v4611 = vld [vmem:[%s4599 + $0x58] sm:$0xff]
        %v4612 = vld [vmem:[%s4599 + $0x60] sm:$0xff]
        %v4613 = vld [vmem:[%s4599 + $0x68] sm:$0xff]
        %v4614 = vld [vmem:[%s4599 + $0x70] sm:$0xff]
        %v4615 = vld [vmem:[%s4599 + $0x78] sm:$0xff]
        %v4616 = vld [vmem:[%s4599 + $0x80] sm:$0xff]
        %v4617 = vld [vmem:[%s4599 + $0x88] sm:$0xff]
        %v4618 = vld [vmem:[%s4599 + $0x90] sm:$0xff]
        %v4619 = vld [vmem:[%s4599 + $0x98] sm:$0xff]
        %v4620 = vld [vmem:[%s4599 + $0xa0] sm:$0xff]
        %v4621 = vld [vmem:[%s4599 + $0xa8] sm:$0xff]
        %v4622 = vld [vmem:[%s4599 + $0xb0] sm:$0xff]
        %v4623 = vld [vmem:[%s4599 + $0xb8] sm:$0xff]
        %v4624 = vld [vmem:[%s4599 + $0xc0] sm:$0xff]
        %v4625 = vld [vmem:[%s4599 + $0xc8] sm:$0xff]
        %v4626 = vld [vmem:[%s4599 + $0xd0] sm:$0xff]
        %v4627 = vld [vmem:[%s4599 + $0xd8] sm:$0xff]
        %v4628 = vld [vmem:[%s4599 + $0xe0] sm:$0xff]
        %v4629 = vld [vmem:[%s4599 + $0xe8] sm:$0xff]
        %v4630 = vld [vmem:[%s4599 + $0xf0] sm:$0xff]
        %v4631 = vld [vmem:[%s4599 + $0xf8] sm:$0xff]
        %v4632 = vld [vmem:[%s4599 + $0x100] sm:$0xff]
        %v4633 = vld [vmem:[%s4599 + $0x108] sm:$0xff]
        %v4634 = vld [vmem:[%s4599 + $0x110] sm:$0xff]
        %v4635 = vld [vmem:[%s4599 + $0x118] sm:$0xff]
        %v4636 = vld [vmem:[%s4599 + $0x120] sm:$0xff]
        %v4637 = vld [vmem:[%s4599 + $0x128] sm:$0xff]
        %v4638 = vld [vmem:[%s4599 + $0x130] sm:$0xff]
        %v4639 = vld [vmem:[%s4599 + $0x138] sm:$0xff]
        %v4640 = vld [vmem:[%s4599 + $0x140] sm:$0xff]
        %v4641 = vld [vmem:[%s4599 + $0x148] sm:$0xff]
        %v4642 = vld [vmem:[%s4599 + $0x150] sm:$0xff]
        %v4643 = vld [vmem:[%s4599 + $0x158] sm:$0xff]
        %v4644 = vld [vmem:[%s4599 + $0x160] sm:$0xff]
        %v4645 = vld [vmem:[%s4599 + $0x168] sm:$0xff]
        %v4646 = vld [vmem:[%s4599 + $0x170] sm:$0xff]
        %v4647 = vld [vmem:[%s4599 + $0x178] sm:$0xff]
        %v4648 = vld [vmem:[%s4599 + $0x180] sm:$0xff]
        %v4649 = vld [vmem:[%s4599 + $0x188] sm:$0xff]
        %v4650 = vld [vmem:[%s4599 + $0x190] sm:$0xff]
        %v4651 = vld [vmem:[%s4599 + $0x198] sm:$0xff]
        %v4652 = vld [vmem:[%s4599 + $0x1a0] sm:$0xff]
        %v4653 = vld [vmem:[%s4599 + $0x1a8] sm:$0xff]
        %v4654 = vld [vmem:[%s4599 + $0x1b0] sm:$0xff]
        %v4655 = vld [vmem:[%s4599 + $0x1b8] sm:$0xff]
        %v4656 = vld [vmem:[%s4599 + $0x1c0] sm:$0xff]
        %v4657 = vld [vmem:[%s4599 + $0x1c8] sm:$0xff]
        %v4658 = vld [vmem:[%s4599 + $0x1d0] sm:$0xff]
        %v4659 = vld [vmem:[%s4599 + $0x1d8] sm:$0xff]
        %v4660 = vld [vmem:[%s4599 + $0x1e0] sm:$0xff]
        %v4661 = vld [vmem:[%s4599 + $0x1e8] sm:$0xff]
        %v4662 = vld [vmem:[%s4599 + $0x1f0] sm:$0xff]
        %v4663 = vld [vmem:[%s4599 + $0x1f8] sm:$0xff]
        %4664 = vmatprep.subr.mxu0 0.0
        %4665 = vmatpush1.msra.mxu0 %v4600
        %4666 = vmatprep.subr.mxu0 0.0
        %4667 = vmatpush1.msra.mxu0 %v4601
        %4668 = vmatprep.subr.mxu0 0.0
        %4669 = vmatpush1.msra.mxu0 %v4602
        %4670 = vmatprep.subr.mxu0 0.0
        %4671 = vmatpush1.msra.mxu0 %v4603
        %4672 = vmatprep.subr.mxu0 0.0
        %4673 = vmatpush1.msra.mxu0 %v4604
        %4674 = vmatprep.subr.mxu0 0.0
        %4675 = vmatpush1.msra.mxu0 %v4605
        %4676 = vmatprep.subr.mxu0 0.0
        %4677 = vmatpush1.msra.mxu0 %v4606
        %4678 = vmatprep.subr.mxu0 0.0
        %4679 = vmatpush1.msra.mxu0 %v4607
        %4680 = vmatprep.subr.mxu0 0.0
        %4681 = vmatpush1.msra.mxu0 %v4608
        %4682 = vmatprep.subr.mxu0 0.0
        %4683 = vmatpush1.msra.mxu0 %v4609
        %4684 = vmatprep.subr.mxu0 0.0
        %4685 = vmatpush1.msra.mxu0 %v4610
        %4686 = vmatprep.subr.mxu0 0.0
        %4687 = vmatpush1.msra.mxu0 %v4611
        %4688 = vmatprep.subr.mxu0 0.0
        %4689 = vmatpush1.msra.mxu0 %v4612
        %4690 = vmatprep.subr.mxu0 0.0
        %4691 = vmatpush1.msra.mxu0 %v4613
        %4692 = vmatprep.subr.mxu0 0.0
        %4693 = vmatpush1.msra.mxu0 %v4614
        %4694 = vmatprep.subr.mxu0 0.0
        %4695 = vmatpush1.msra.mxu0 %v4615
        %4696 = vmatprep.subr.mxu0 0.0
        %4697 = vmatpush1.msra.mxu0 %v4616
        %4698 = vmatprep.subr.mxu0 0.0
        %4699 = vmatpush1.msra.mxu0 %v4617
        %4700 = vmatprep.subr.mxu0 0.0
        %4701 = vmatpush1.msra.mxu0 %v4618
        %4702 = vmatprep.subr.mxu0 0.0
        %4703 = vmatpush1.msra.mxu0 %v4619
        %4704 = vmatprep.subr.mxu0 0.0
        %4705 = vmatpush1.msra.mxu0 %v4620
        %4706 = vmatprep.subr.mxu0 0.0
        %4707 = vmatpush1.msra.mxu0 %v4621
        %4708 = vmatprep.subr.mxu0 0.0
        %4709 = vmatpush1.msra.mxu0 %v4622
        %4710 = vmatprep.subr.mxu0 0.0
        %4711 = vmatpush1.msra.mxu0 %v4623
        %4712 = vmatprep.subr.mxu0 0.0
        %4713 = vmatpush1.msra.mxu0 %v4624
        %4714 = vmatprep.subr.mxu0 0.0
        %4715 = vmatpush1.msra.mxu0 %v4625
        %4716 = vmatprep.subr.mxu0 0.0
        %4717 = vmatpush1.msra.mxu0 %v4626
        %4718 = vmatprep.subr.mxu0 0.0
        %4719 = vmatpush1.msra.mxu0 %v4627
        %4720 = vmatprep.subr.mxu0 0.0
        %4721 = vmatpush1.msra.mxu0 %v4628
        %4722 = vmatprep.subr.mxu0 0.0
        %4723 = vmatpush1.msra.mxu0 %v4629
        %4724 = vmatprep.subr.mxu0 0.0
        %4725 = vmatpush1.msra.mxu0 %v4630
        %4726 = vmatprep.subr.mxu0 0.0
        %4727 = vmatpush1.msra.mxu0 %v4631
        %4728 = vmatprep.mubr.f32.mxu0 %v403
        %4729 = vmatmul.mubr.f32.gmra.mrb[0].mxu0 %v402
        %v4730 = vpop.f32.mrb[0].mxu0
        %v4731 = vadd.f32 0.0, %v4730
        %v4732 = vpop.f32.mrb[0].mxu0
        %4733 = vmatprep.mubr.f32.mxu0 %v407
        %4734 = vmatmul.mubr.f32.gmra.mrb[0].mxu0 %v406
        %v4735 = vpop.f32.mrb[0].mxu0
        %v4736 = vadd.f32 0.0, %v4735
        %v4737 = vpop.f32.mrb[0].mxu0
        %4738 = vdwg.mxu0
        %4739 = vmatprep.subr.mxu0 0.0
        %4740 = vmatpush1.msra.mxu0 %v4632
        %4741 = vmatprep.subr.mxu0 0.0
        %4742 = vmatpush1.msra.mxu0 %v4633
        %4743 = vmatprep.subr.mxu0 0.0
        %4744 = vmatpush1.msra.mxu0 %v4634
        %4745 = vmatprep.subr.mxu0 0.0
        %4746 = vmatpush1.msra.mxu0 %v4635
        %4747 = vmatprep.subr.mxu0 0.0
        %4748 = vmatpush1.msra.mxu0 %v4636
        %4749 = vmatprep.subr.mxu0 0.0
        %4750 = vmatpush1.msra.mxu0 %v4637
        %4751 = vmatprep.subr.mxu0 0.0
        %4752 = vmatpush1.msra.mxu0 %v4638
        %4753 = vmatprep.subr.mxu0 0.0
        %4754 = vmatpush1.msra.mxu0 %v4639
        %4755 = vmatprep.subr.mxu0 0.0
        %4756 = vmatpush1.msra.mxu0 %v4640
        %4757 = vmatprep.subr.mxu0 0.0
        %4758 = vmatpush1.msra.mxu0 %v4641
        %4759 = vmatprep.subr.mxu0 0.0
        %4760 = vmatpush1.msra.mxu0 %v4642
        %4761 = vmatprep.subr.mxu0 0.0
        %4762 = vmatpush1.msra.mxu0 %v4643
        %4763 = vmatprep.subr.mxu0 0.0
        %4764 = vmatpush1.msra.mxu0 %v4644
        %4765 = vmatprep.subr.mxu0 0.0
        %4766 = vmatpush1.msra.mxu0 %v4645
        %4767 = vmatprep.subr.mxu0 0.0
        %4768 = vmatpush1.msra.mxu0 %v4646
        %4769 = vmatprep.subr.mxu0 0.0
        %4770 = vmatpush1.msra.mxu0 %v4647
        %4771 = vmatprep.subr.mxu0 0.0
        %4772 = vmatpush1.msra.mxu0 %v4648
        %4773 = vmatprep.subr.mxu0 0.0
        %4774 = vmatpush1.msra.mxu0 %v4649
        %4775 = vmatprep.subr.mxu0 0.0
        %4776 = vmatpush1.msra.mxu0 %v4650
        %4777 = vmatprep.subr.mxu0 0.0
        %4778 = vmatpush1.msra.mxu0 %v4651
        %4779 = vmatprep.subr.mxu0 0.0
        %4780 = vmatpush1.msra.mxu0 %v4652
        %4781 = vmatprep.subr.mxu0 0.0
        %4782 = vmatpush1.msra.mxu0 %v4653
        %4783 = vmatprep.subr.mxu0 0.0
        %4784 = vmatpush1.msra.mxu0 %v4654
        %4785 = vmatprep.subr.mxu0 0.0
        %4786 = vmatpush1.msra.mxu0 %v4655
        %4787 = vmatprep.subr.mxu0 0.0
        %4788 = vmatpush1.msra.mxu0 %v4656
        %4789 = vmatprep.subr.mxu0 0.0
        %4790 = vmatpush1.msra.mxu0 %v4657
        %4791 = vmatprep.subr.mxu0 0.0
        %4792 = vmatpush1.msra.mxu0 %v4658
        %4793 = vmatprep.subr.mxu0 0.0
        %4794 = vmatpush1.msra.mxu0 %v4659
        %4795 = vmatprep.subr.mxu0 0.0
        %4796 = vmatpush1.msra.mxu0 %v4660
        %4797 = vmatprep.subr.mxu0 0.0
        %4798 = vmatpush1.msra.mxu0 %v4661
        %4799 = vmatprep.subr.mxu0 0.0
        %4800 = vmatpush1.msra.mxu0 %v4662
        %4801 = vmatprep.subr.mxu0 0.0
        %4802 = vmatpush1.msra.mxu0 %v4663
        %4803 = vmatprep.mubr.f32.mxu0 %v405
        %4804 = vmatmul.mubr.f32.gmra.mrb[0].mxu0 %v404
        %v4805 = vpop.f32.mrb[0].mxu0
        %v4806 = vadd.f32 %v4731, %v4805
        %v4807 = vpop.f32.mrb[0].mxu0
        %4808 = vmatprep.mubr.f32.mxu0 %v409
        %4809 = vmatmul.mubr.f32.gmra.mrb[0].mxu0 %v408
        %v4810 = vpop.f32.mrb[0].mxu0
        %v4811 = vadd.f32 %v4736, %v4810
        %v4812 = vpop.f32.mrb[0].mxu0
        %4813 = vdwg.mxu0
        %s4814 = scalar_lea.vmem %s5, 2048
        %v4815 = vld [vmem:[%s4814] sm:$0xff]
        %v4816 = vld [vmem:[%s4814 + $0x8] sm:$0xff]
        %v4817 = vld [vmem:[%s4814 + $0x10] sm:$0xff]
        %v4818 = vld [vmem:[%s4814 + $0x18] sm:$0xff]
        %v4819 = vld [vmem:[%s4814 + $0x20] sm:$0xff]
        %v4820 = vld [vmem:[%s4814 + $0x28] sm:$0xff]
        %v4821 = vld [vmem:[%s4814 + $0x30] sm:$0xff]
        %v4822 = vld [vmem:[%s4814 + $0x38] sm:$0xff]
        %v4823 = vld [vmem:[%s4814 + $0x40] sm:$0xff]
        %v4824 = vld [vmem:[%s4814 + $0x48] sm:$0xff]
        %v4825 = vld [vmem:[%s4814 + $0x50] sm:$0xff]
        %v4826 = vld [vmem:[%s4814 + $0x58] sm:$0xff]
        %v4827 = vld [vmem:[%s4814 + $0x60] sm:$0xff]
        %v4828 = vld [vmem:[%s4814 + $0x68] sm:$0xff]
        %v4829 = vld [vmem:[%s4814 + $0x70] sm:$0xff]
        %v4830 = vld [vmem:[%s4814 + $0x78] sm:$0xff]
        %v4831 = vld [vmem:[%s4814 + $0x80] sm:$0xff]
        %v4832 = vld [vmem:[%s4814 + $0x88] sm:$0xff]
        %v4833 = vld [vmem:[%s4814 + $0x90] sm:$0xff]
        %v4834 = vld [vmem:[%s4814 + $0x98] sm:$0xff]
        %v4835 = vld [vmem:[%s4814 + $0xa0] sm:$0xff]
        %v4836 = vld [vmem:[%s4814 + $0xa8] sm:$0xff]
        %v4837 = vld [vmem:[%s4814 + $0xb0] sm:$0xff]
        %v4838 = vld [vmem:[%s4814 + $0xb8] sm:$0xff]
        %v4839 = vld [vmem:[%s4814 + $0xc0] sm:$0xff]
        %v4840 = vld [vmem:[%s4814 + $0xc8] sm:$0xff]
        %v4841 = vld [vmem:[%s4814 + $0xd0] sm:$0xff]
        %v4842 = vld [vmem:[%s4814 + $0xd8] sm:$0xff]
        %v4843 = vld [vmem:[%s4814 + $0xe0] sm:$0xff]
        %v4844 = vld [vmem:[%s4814 + $0xe8] sm:$0xff]
        %v4845 = vld [vmem:[%s4814 + $0xf0] sm:$0xff]
        %v4846 = vld [vmem:[%s4814 + $0xf8] sm:$0xff]
        %v4847 = vld [vmem:[%s4814 + $0x100] sm:$0xff]
        %v4848 = vld [vmem:[%s4814 + $0x108] sm:$0xff]
        %v4849 = vld [vmem:[%s4814 + $0x110] sm:$0xff]
        %v4850 = vld [vmem:[%s4814 + $0x118] sm:$0xff]
        %v4851 = vld [vmem:[%s4814 + $0x120] sm:$0xff]
        %v4852 = vld [vmem:[%s4814 + $0x128] sm:$0xff]
        %v4853 = vld [vmem:[%s4814 + $0x130] sm:$0xff]
        %v4854 = vld [vmem:[%s4814 + $0x138] sm:$0xff]
        %v4855 = vld [vmem:[%s4814 + $0x140] sm:$0xff]
        %v4856 = vld [vmem:[%s4814 + $0x148] sm:$0xff]
        %v4857 = vld [vmem:[%s4814 + $0x150] sm:$0xff]
        %v4858 = vld [vmem:[%s4814 + $0x158] sm:$0xff]
        %v4859 = vld [vmem:[%s4814 + $0x160] sm:$0xff]
        %v4860 = vld [vmem:[%s4814 + $0x168] sm:$0xff]
        %v4861 = vld [vmem:[%s4814 + $0x170] sm:$0xff]
        %v4862 = vld [vmem:[%s4814 + $0x178] sm:$0xff]
        %v4863 = vld [vmem:[%s4814 + $0x180] sm:$0xff]
        %v4864 = vld [vmem:[%s4814 + $0x188] sm:$0xff]
        %v4865 = vld [vmem:[%s4814 + $0x190] sm:$0xff]
        %v4866 = vld [vmem:[%s4814 + $0x198] sm:$0xff]
        %v4867 = vld [vmem:[%s4814 + $0x1a0] sm:$0xff]
        %v4868 = vld [vmem:[%s4814 + $0x1a8] sm:$0xff]
        %v4869 = vld [vmem:[%s4814 + $0x1b0] sm:$0xff]
        %v4870 = vld [vmem:[%s4814 + $0x1b8] sm:$0xff]
        %v4871 = vld [vmem:[%s4814 + $0x1c0] sm:$0xff]
        %v4872 = vld [vmem:[%s4814 + $0x1c8] sm:$0xff]
        %v4873 = vld [vmem:[%s4814 + $0x1d0] sm:$0xff]
        %v4874 = vld [vmem:[%s4814 + $0x1d8] sm:$0xff]
        %v4875 = vld [vmem:[%s4814 + $0x1e0] sm:$0xff]
        %v4876 = vld [vmem:[%s4814 + $0x1e8] sm:$0xff]
        %v4877 = vld [vmem:[%s4814 + $0x1f0] sm:$0xff]
        %v4878 = vld [vmem:[%s4814 + $0x1f8] sm:$0xff]
        %4879 = vmatprep.subr.mxu0 0.0
        %4880 = vmatpush1.msra.mxu0 %v4815
        %4881 = vmatprep.subr.mxu0 0.0
        %4882 = vmatpush1.msra.mxu0 %v4816
        %4883 = vmatprep.subr.mxu0 0.0
        %4884 = vmatpush1.msra.mxu0 %v4817
        %4885 = vmatprep.subr.mxu0 0.0
        %4886 = vmatpush1.msra.mxu0 %v4818
        %4887 = vmatprep.subr.mxu0 0.0
        %4888 = vmatpush1.msra.mxu0 %v4819
        %4889 = vmatprep.subr.mxu0 0.0
        %4890 = vmatpush1.msra.mxu0 %v4820
        %4891 = vmatprep.subr.mxu0 0.0
        %4892 = vmatpush1.msra.mxu0 %v4821
        %4893 = vmatprep.subr.mxu0 0.0
        %4894 = vmatpush1.msra.mxu0 %v4822
        %4895 = vmatprep.subr.mxu0 0.0
        %4896 = vmatpush1.msra.mxu0 %v4823
        %4897 = vmatprep.subr.mxu0 0.0
        %4898 = vmatpush1.msra.mxu0 %v4824
        %4899 = vmatprep.subr.mxu0 0.0
        %4900 = vmatpush1.msra.mxu0 %v4825
        %4901 = vmatprep.subr.mxu0 0.0
        %4902 = vmatpush1.msra.mxu0 %v4826
        %4903 = vmatprep.subr.mxu0 0.0
        %4904 = vmatpush1.msra.mxu0 %v4827
        %4905 = vmatprep.subr.mxu0 0.0
        %4906 = vmatpush1.msra.mxu0 %v4828
        %4907 = vmatprep.subr.mxu0 0.0
        %4908 = vmatpush1.msra.mxu0 %v4829
        %4909 = vmatprep.subr.mxu0 0.0
        %4910 = vmatpush1.msra.mxu0 %v4830
        %4911 = vmatprep.subr.mxu0 0.0
        %4912 = vmatpush1.msra.mxu0 %v4831
        %4913 = vmatprep.subr.mxu0 0.0
        %4914 = vmatpush1.msra.mxu0 %v4832
        %4915 = vmatprep.subr.mxu0 0.0
        %4916 = vmatpush1.msra.mxu0 %v4833
        %4917 = vmatprep.subr.mxu0 0.0
        %4918 = vmatpush1.msra.mxu0 %v4834
        %4919 = vmatprep.subr.mxu0 0.0
        %4920 = vmatpush1.msra.mxu0 %v4835
        %4921 = vmatprep.subr.mxu0 0.0
        %4922 = vmatpush1.msra.mxu0 %v4836
        %4923 = vmatprep.subr.mxu0 0.0
        %4924 = vmatpush1.msra.mxu0 %v4837
        %4925 = vmatprep.subr.mxu0 0.0
        %4926 = vmatpush1.msra.mxu0 %v4838
        %4927 = vmatprep.subr.mxu0 0.0
        %4928 = vmatpush1.msra.mxu0 %v4839
        %4929 = vmatprep.subr.mxu0 0.0
        %4930 = vmatpush1.msra.mxu0 %v4840
        %4931 = vmatprep.subr.mxu0 0.0
        %4932 = vmatpush1.msra.mxu0 %v4841
        %4933 = vmatprep.subr.mxu0 0.0
        %4934 = vmatpush1.msra.mxu0 %v4842
        %4935 = vmatprep.subr.mxu0 0.0
        %4936 = vmatpush1.msra.mxu0 %v4843
        %4937 = vmatprep.subr.mxu0 0.0
        %4938 = vmatpush1.msra.mxu0 %v4844
        %4939 = vmatprep.subr.mxu0 0.0
        %4940 = vmatpush1.msra.mxu0 %v4845
        %4941 = vmatprep.subr.mxu0 0.0
        %4942 = vmatpush1.msra.mxu0 %v4846
        %4943 = vmatprep.mubr.f32.mxu0 %v411
        %4944 = vmatmul.mubr.f32.gmra.mrb[0].mxu0 %v410
        %v4945 = vpop.f32.mrb[0].mxu0
        %v4946 = vadd.f32 0.0, %v4945
        %v4947 = vpop.f32.mrb[0].mxu0
        %4948 = vmatprep.mubr.f32.mxu0 %v415
        %4949 = vmatmul.mubr.f32.gmra.mrb[0].mxu0 %v414
        %v4950 = vpop.f32.mrb[0].mxu0
        %v4951 = vadd.f32 0.0, %v4950
        %v4952 = vpop.f32.mrb[0].mxu0
        %4953 = vdwg.mxu0
        %4954 = vmatprep.subr.mxu0 0.0
        %4955 = vmatpush1.msra.mxu0 %v4847
        %4956 = vmatprep.subr.mxu0 0.0
        %4957 = vmatpush1.msra.mxu0 %v4848
        %4958 = vmatprep.subr.mxu0 0.0
        %4959 = vmatpush1.msra.mxu0 %v4849
        %4960 = vmatprep.subr.mxu0 0.0
        %4961 = vmatpush1.msra.mxu0 %v4850
        %4962 = vmatprep.subr.mxu0 0.0
        %4963 = vmatpush1.msra.mxu0 %v4851
        %4964 = vmatprep.subr.mxu0 0.0
        %4965 = vmatpush1.msra.mxu0 %v4852
        %4966 = vmatprep.subr.mxu0 0.0
        %4967 = vmatpush1.msra.mxu0 %v4853
        %4968 = vmatprep.subr.mxu0 0.0
        %4969 = vmatpush1.msra.mxu0 %v4854
        %4970 = vmatprep.subr.mxu0 0.0
        %4971 = vmatpush1.msra.mxu0 %v4855
        %4972 = vmatprep.subr.mxu0 0.0
        %4973 = vmatpush1.msra.mxu0 %v4856
        %4974 = vmatprep.subr.mxu0 0.0
        %4975 = vmatpush1.msra.mxu0 %v4857
        %4976 = vmatprep.subr.mxu0 0.0
        %4977 = vmatpush1.msra.mxu0 %v4858
        %4978 = vmatprep.subr.mxu0 0.0
        %4979 = vmatpush1.msra.mxu0 %v4859
        %4980 = vmatprep.subr.mxu0 0.0
        %4981 = vmatpush1.msra.mxu0 %v4860
        %4982 = vmatprep.subr.mxu0 0.0
        %4983 = vmatpush1.msra.mxu0 %v4861
        %4984 = vmatprep.subr.mxu0 0.0
        %4985 = vmatpush1.msra.mxu0 %v4862
        %4986 = vmatprep.subr.mxu0 0.0
        %4987 = vmatpush1.msra.mxu0 %v4863
        %4988 = vmatprep.subr.mxu0 0.0
        %4989 = vmatpush1.msra.mxu0 %v4864
        %4990 = vmatprep.subr.mxu0 0.0
        %4991 = vmatpush1.msra.mxu0 %v4865
        %4992 = vmatprep.subr.mxu0 0.0
        %4993 = vmatpush1.msra.mxu0 %v4866
        %4994 = vmatprep.subr.mxu0 0.0
        %4995 = vmatpush1.msra.mxu0 %v4867
        %4996 = vmatprep.subr.mxu0 0.0
        %4997 = vmatpush1.msra.mxu0 %v4868
        %4998 = vmatprep.subr.mxu0 0.0
        %4999 = vmatpush1.msra.mxu0 %v4869
        %5000 = vmatprep.subr.mxu0 0.0
        %5001 = vmatpush1.msra.mxu0 %v4870
        %5002 = vmatprep.subr.mxu0 0.0
        %5003 = vmatpush1.msra.mxu0 %v4871
        %5004 = vmatprep.subr.mxu0 0.0
        %5005 = vmatpush1.msra.mxu0 %v4872
        %5006 = vmatprep.subr.mxu0 0.0
        %5007 = vmatpush1.msra.mxu0 %v4873
        %5008 = vmatprep.subr.mxu0 0.0
        %5009 = vmatpush1.msra.mxu0 %v4874
        %5010 = vmatprep.subr.mxu0 0.0
        %5011 = vmatpush1.msra.mxu0 %v4875
        %5012 = vmatprep.subr.mxu0 0.0
        %5013 = vmatpush1.msra.mxu0 %v4876
        %5014 = vmatprep.subr.mxu0 0.0
        %5015 = vmatpush1.msra.mxu0 %v4877
        %5016 = vmatprep.subr.mxu0 0.0
        %5017 = vmatpush1.msra.mxu0 %v4878
        %5018 = vmatprep.mubr.f32.mxu0 %v413
        %5019 = vmatmul.mubr.f32.gmra.mrb[0].mxu0 %v412
        %v5020 = vpop.f32.mrb[0].mxu0
        %v5021 = vadd.f32 %v4946, %v5020
        %v5022 = vpop.f32.mrb[0].mxu0
        %5023 = vmatprep.mubr.f32.mxu0 %v417
        %5024 = vmatmul.mubr.f32.gmra.mrb[0].mxu0 %v416
        %v5025 = vpop.f32.mrb[0].mxu0
        %v5026 = vadd.f32 %v4951, %v5025
        %v5027 = vpop.f32.mrb[0].mxu0
        %5028 = vdwg.mxu0
        %s5029 = scalar_lea.vmem %s6, 2048
        %v5030 = vld [vmem:[%s5029] sm:$0xff]
        %v5031 = vld [vmem:[%s5029 + $0x8] sm:$0xff]
        %v5032 = vld [vmem:[%s5029 + $0x10] sm:$0xff]
        %v5033 = vld [vmem:[%s5029 + $0x18] sm:$0xff]
        %v5034 = vld [vmem:[%s5029 + $0x20] sm:$0xff]
        %v5035 = vld [vmem:[%s5029 + $0x28] sm:$0xff]
        %v5036 = vld [vmem:[%s5029 + $0x30] sm:$0xff]
        %v5037 = vld [vmem:[%s5029 + $0x38] sm:$0xff]
        %v5038 = vld [vmem:[%s5029 + $0x40] sm:$0xff]
        %v5039 = vld [vmem:[%s5029 + $0x48] sm:$0xff]
        %v5040 = vld [vmem:[%s5029 + $0x50] sm:$0xff]
        %v5041 = vld [vmem:[%s5029 + $0x58] sm:$0xff]
        %v5042 = vld [vmem:[%s5029 + $0x60] sm:$0xff]
        %v5043 = vld [vmem:[%s5029 + $0x68] sm:$0xff]
        %v5044 = vld [vmem:[%s5029 + $0x70] sm:$0xff]
        %v5045 = vld [vmem:[%s5029 + $0x78] sm:$0xff]
        %v5046 = vld [vmem:[%s5029 + $0x80] sm:$0xff]
        %v5047 = vld [vmem:[%s5029 + $0x88] sm:$0xff]
        %v5048 = vld [vmem:[%s5029 + $0x90] sm:$0xff]
        %v5049 = vld [vmem:[%s5029 + $0x98] sm:$0xff]
        %v5050 = vld [vmem:[%s5029 + $0xa0] sm:$0xff]
        %v5051 = vld [vmem:[%s5029 + $0xa8] sm:$0xff]
        %v5052 = vld [vmem:[%s5029 + $0xb0] sm:$0xff]
        %v5053 = vld [vmem:[%s5029 + $0xb8] sm:$0xff]
        %v5054 = vld [vmem:[%s5029 + $0xc0] sm:$0xff]
        %v5055 = vld [vmem:[%s5029 + $0xc8] sm:$0xff]
        %v5056 = vld [vmem:[%s5029 + $0xd0] sm:$0xff]
        %v5057 = vld [vmem:[%s5029 + $0xd8] sm:$0xff]
        %v5058 = vld [vmem:[%s5029 + $0xe0] sm:$0xff]
        %v5059 = vld [vmem:[%s5029 + $0xe8] sm:$0xff]
        %v5060 = vld [vmem:[%s5029 + $0xf0] sm:$0xff]
        %v5061 = vld [vmem:[%s5029 + $0xf8] sm:$0xff]
        %v5062 = vld [vmem:[%s5029 + $0x100] sm:$0xff]
        %v5063 = vld [vmem:[%s5029 + $0x108] sm:$0xff]
        %v5064 = vld [vmem:[%s5029 + $0x110] sm:$0xff]
        %v5065 = vld [vmem:[%s5029 + $0x118] sm:$0xff]
        %v5066 = vld [vmem:[%s5029 + $0x120] sm:$0xff]
        %v5067 = vld [vmem:[%s5029 + $0x128] sm:$0xff]
        %v5068 = vld [vmem:[%s5029 + $0x130] sm:$0xff]
        %v5069 = vld [vmem:[%s5029 + $0x138] sm:$0xff]
        %v5070 = vld [vmem:[%s5029 + $0x140] sm:$0xff]
        %v5071 = vld [vmem:[%s5029 + $0x148] sm:$0xff]
        %v5072 = vld [vmem:[%s5029 + $0x150] sm:$0xff]
        %v5073 = vld [vmem:[%s5029 + $0x158] sm:$0xff]
        %v5074 = vld [vmem:[%s5029 + $0x160] sm:$0xff]
        %v5075 = vld [vmem:[%s5029 + $0x168] sm:$0xff]
        %v5076 = vld [vmem:[%s5029 + $0x170] sm:$0xff]
        %v5077 = vld [vmem:[%s5029 + $0x178] sm:$0xff]
        %v5078 = vld [vmem:[%s5029 + $0x180] sm:$0xff]
        %v5079 = vld [vmem:[%s5029 + $0x188] sm:$0xff]
        %v5080 = vld [vmem:[%s5029 + $0x190] sm:$0xff]
        %v5081 = vld [vmem:[%s5029 + $0x198] sm:$0xff]
        %v5082 = vld [vmem:[%s5029 + $0x1a0] sm:$0xff]
        %v5083 = vld [vmem:[%s5029 + $0x1a8] sm:$0xff]
        %v5084 = vld [vmem:[%s5029 + $0x1b0] sm:$0xff]
        %v5085 = vld [vmem:[%s5029 + $0x1b8] sm:$0xff]
        %v5086 = vld [vmem:[%s5029 + $0x1c0] sm:$0xff]
        %v5087 = vld [vmem:[%s5029 + $0x1c8] sm:$0xff]
        %v5088 = vld [vmem:[%s5029 + $0x1d0] sm:$0xff]
        %v5089 = vld [vmem:[%s5029 + $0x1d8] sm:$0xff]
        %v5090 = vld [vmem:[%s5029 + $0x1e0] sm:$0xff]
        %v5091 = vld [vmem:[%s5029 + $0x1e8] sm:$0xff]
        %v5092 = vld [vmem:[%s5029 + $0x1f0] sm:$0xff]
        %v5093 = vld [vmem:[%s5029 + $0x1f8] sm:$0xff]
        %5094 = vmatprep.subr.mxu0 0.0
        %5095 = vmatpush1.msra.mxu0 %v5030
        %5096 = vmatprep.subr.mxu0 0.0
        %5097 = vmatpush1.msra.mxu0 %v5031
        %5098 = vmatprep.subr.mxu0 0.0
        %5099 = vmatpush1.msra.mxu0 %v5032
        %5100 = vmatprep.subr.mxu0 0.0
        %5101 = vmatpush1.msra.mxu0 %v5033
        %5102 = vmatprep.subr.mxu0 0.0
        %5103 = vmatpush1.msra.mxu0 %v5034
        %5104 = vmatprep.subr.mxu0 0.0
        %5105 = vmatpush1.msra.mxu0 %v5035
        %5106 = vmatprep.subr.mxu0 0.0
        %5107 = vmatpush1.msra.mxu0 %v5036
        %5108 = vmatprep.subr.mxu0 0.0
        %5109 = vmatpush1.msra.mxu0 %v5037
        %5110 = vmatprep.subr.mxu0 0.0
        %5111 = vmatpush1.msra.mxu0 %v5038
        %5112 = vmatprep.subr.mxu0 0.0
        %5113 = vmatpush1.msra.mxu0 %v5039
        %5114 = vmatprep.subr.mxu0 0.0
        %5115 = vmatpush1.msra.mxu0 %v5040
        %5116 = vmatprep.subr.mxu0 0.0
        %5117 = vmatpush1.msra.mxu0 %v5041
        %5118 = vmatprep.subr.mxu0 0.0
        %5119 = vmatpush1.msra.mxu0 %v5042
        %5120 = vmatprep.subr.mxu0 0.0
        %5121 = vmatpush1.msra.mxu0 %v5043
        %5122 = vmatprep.subr.mxu0 0.0
        %5123 = vmatpush1.msra.mxu0 %v5044
        %5124 = vmatprep.subr.mxu0 0.0
        %5125 = vmatpush1.msra.mxu0 %v5045
        %5126 = vmatprep.subr.mxu0 0.0
        %5127 = vmatpush1.msra.mxu0 %v5046
        %5128 = vmatprep.subr.mxu0 0.0
        %5129 = vmatpush1.msra.mxu0 %v5047
        %5130 = vmatprep.subr.mxu0 0.0
        %5131 = vmatpush1.msra.mxu0 %v5048
        %5132 = vmatprep.subr.mxu0 0.0
        %5133 = vmatpush1.msra.mxu0 %v5049
        %5134 = vmatprep.subr.mxu0 0.0
        %5135 = vmatpush1.msra.mxu0 %v5050
        %5136 = vmatprep.subr.mxu0 0.0
        %5137 = vmatpush1.msra.mxu0 %v5051
        %5138 = vmatprep.subr.mxu0 0.0
        %5139 = vmatpush1.msra.mxu0 %v5052
        %5140 = vmatprep.subr.mxu0 0.0
        %5141 = vmatpush1.msra.mxu0 %v5053
        %5142 = vmatprep.subr.mxu0 0.0
        %5143 = vmatpush1.msra.mxu0 %v5054
        %5144 = vmatprep.subr.mxu0 0.0
        %5145 = vmatpush1.msra.mxu0 %v5055
        %5146 = vmatprep.subr.mxu0 0.0
        %5147 = vmatpush1.msra.mxu0 %v5056
        %5148 = vmatprep.subr.mxu0 0.0
        %5149 = vmatpush1.msra.mxu0 %v5057
        %5150 = vmatprep.subr.mxu0 0.0
        %5151 = vmatpush1.msra.mxu0 %v5058
        %5152 = vmatprep.subr.mxu0 0.0
        %5153 = vmatpush1.msra.mxu0 %v5059
        %5154 = vmatprep.subr.mxu0 0.0
        %5155 = vmatpush1.msra.mxu0 %v5060
        %5156 = vmatprep.subr.mxu0 0.0
        %5157 = vmatpush1.msra.mxu0 %v5061
        %5158 = vmatprep.mubr.f32.mxu0 %v419
        %5159 = vmatmul.mubr.f32.gmra.mrb[0].mxu0 %v418
        %v5160 = vpop.f32.mrb[0].mxu0
        %v5161 = vadd.f32 0.0, %v5160
        %v5162 = vpop.f32.mrb[0].mxu0
        %5163 = vmatprep.mubr.f32.mxu0 %v423
        %5164 = vmatmul.mubr.f32.gmra.mrb[0].mxu0 %v422
        %v5165 = vpop.f32.mrb[0].mxu0
        %v5166 = vadd.f32 0.0, %v5165
        %v5167 = vpop.f32.mrb[0].mxu0
        %5168 = vdwg.mxu0
        %5169 = vmatprep.subr.mxu0 0.0
        %5170 = vmatpush1.msra.mxu0 %v5062
        %5171 = vmatprep.subr.mxu0 0.0
        %5172 = vmatpush1.msra.mxu0 %v5063
        %5173 = vmatprep.subr.mxu0 0.0
        %5174 = vmatpush1.msra.mxu0 %v5064
        %5175 = vmatprep.subr.mxu0 0.0
        %5176 = vmatpush1.msra.mxu0 %v5065
        %5177 = vmatprep.subr.mxu0 0.0
        %5178 = vmatpush1.msra.mxu0 %v5066
        %5179 = vmatprep.subr.mxu0 0.0
        %5180 = vmatpush1.msra.mxu0 %v5067
        %5181 = vmatprep.subr.mxu0 0.0
        %5182 = vmatpush1.msra.mxu0 %v5068
        %5183 = vmatprep.subr.mxu0 0.0
        %5184 = vmatpush1.msra.mxu0 %v5069
        %5185 = vmatprep.subr.mxu0 0.0
        %5186 = vmatpush1.msra.mxu0 %v5070
        %5187 = vmatprep.subr.mxu0 0.0
        %5188 = vmatpush1.msra.mxu0 %v5071
        %5189 = vmatprep.subr.mxu0 0.0
        %5190 = vmatpush1.msra.mxu0 %v5072
        %5191 = vmatprep.subr.mxu0 0.0
        %5192 = vmatpush1.msra.mxu0 %v5073
        %5193 = vmatprep.subr.mxu0 0.0
        %5194 = vmatpush1.msra.mxu0 %v5074
        %5195 = vmatprep.subr.mxu0 0.0
        %5196 = vmatpush1.msra.mxu0 %v5075
        %5197 = vmatprep.subr.mxu0 0.0
        %5198 = vmatpush1.msra.mxu0 %v5076
        %5199 = vmatprep.subr.mxu0 0.0
        %5200 = vmatpush1.msra.mxu0 %v5077
        %5201 = vmatprep.subr.mxu0 0.0
        %5202 = vmatpush1.msra.mxu0 %v5078
        %5203 = vmatprep.subr.mxu0 0.0
        %5204 = vmatpush1.msra.mxu0 %v5079
        %5205 = vmatprep.subr.mxu0 0.0
        %5206 = vmatpush1.msra.mxu0 %v5080
        %5207 = vmatprep.subr.mxu0 0.0
        %5208 = vmatpush1.msra.mxu0 %v5081
        %5209 = vmatprep.subr.mxu0 0.0
        %5210 = vmatpush1.msra.mxu0 %v5082
        %5211 = vmatprep.subr.mxu0 0.0
        %5212 = vmatpush1.msra.mxu0 %v5083
        %5213 = vmatprep.subr.mxu0 0.0
        %5214 = vmatpush1.msra.mxu0 %v5084
        %5215 = vmatprep.subr.mxu0 0.0
        %5216 = vmatpush1.msra.mxu0 %v5085
        %5217 = vmatprep.subr.mxu0 0.0
        %5218 = vmatpush1.msra.mxu0 %v5086
        %5219 = vmatprep.subr.mxu0 0.0
        %5220 = vmatpush1.msra.mxu0 %v5087
        %5221 = vmatprep.subr.mxu0 0.0
        %5222 = vmatpush1.msra.mxu0 %v5088
        %5223 = vmatprep.subr.mxu0 0.0
        %5224 = vmatpush1.msra.mxu0 %v5089
        %5225 = vmatprep.subr.mxu0 0.0
        %5226 = vmatpush1.msra.mxu0 %v5090
        %5227 = vmatprep.subr.mxu0 0.0
        %5228 = vmatpush1.msra.mxu0 %v5091
        %5229 = vmatprep.subr.mxu0 0.0
        %5230 = vmatpush1.msra.mxu0 %v5092
        %5231 = vmatprep.subr.mxu0 0.0
        %5232 = vmatpush1.msra.mxu0 %v5093
        %5233 = vmatprep.mubr.f32.mxu0 %v421
        %5234 = vmatmul.mubr.f32.gmra.mrb[0].mxu0 %v420
        %v5235 = vpop.f32.mrb[0].mxu0
        %v5236 = vadd.f32 %v5161, %v5235
        %v5237 = vpop.f32.mrb[0].mxu0
        %5238 = vmatprep.mubr.f32.mxu0 %v425
        %5239 = vmatmul.mubr.f32.gmra.mrb[0].mxu0 %v424
        %v5240 = vpop.f32.mrb[0].mxu0
        %v5241 = vadd.f32 %v5166, %v5240
        %v5242 = vpop.f32.mrb[0].mxu0
        %5243 = vdwg.mxu0
        %v5245 = vsel %vm1072, %v4806, 0
        %v5248 = vsel %vm1072, %v4811, 0
        %v5251 = vsel %vm1072, %v5021, 0
        %v5254 = vsel %vm1072, %v5026, 0
        %5256 = vmatprep.subr.mxu0 0.0
        %5257 = vmatpush1.xpose.msra.mxu0 %v5251
        %5258 = vmatprep.subr.mxu0 0.0
        %5259 = vmatpush1.xpose.msra.mxu0 %v5254
        %5260 = vmatprep.subr.mxu0 0.0
        %5261 = vmatpush1.xpose.msra.mxu0 0.0
        %5262 = vmatprep.subr.mxu0 0.0
        %5263 = vmatpush1.xpose.msra.mxu0 0.0
        %5264 = vmatprep.subr.mxu0 0.0
        %5265 = vmatpush1.xpose.msra.mxu0 0.0
        %5266 = vmatprep.subr.mxu0 0.0
        %5267 = vmatpush1.xpose.msra.mxu0 0.0
        %5268 = vmatprep.subr.mxu0 0.0
        %5269 = vmatpush1.xpose.msra.mxu0 0.0
        %5270 = vmatprep.subr.mxu0 0.0
        %5271 = vmatpush1.xpose.msra.mxu0 0.0
        %5272 = vmatprep.subr.mxu0 0.0
        %5273 = vmatpush1.xpose.msra.mxu0 0.0
        %5274 = vmatprep.subr.mxu0 0.0
        %5275 = vmatpush1.xpose.msra.mxu0 0.0
        %5276 = vmatprep.subr.mxu0 0.0
        %5277 = vmatpush1.xpose.msra.mxu0 0.0
        %5278 = vmatprep.subr.mxu0 0.0
        %5279 = vmatpush1.xpose.msra.mxu0 0.0
        %5280 = vmatprep.subr.mxu0 0.0
        %5281 = vmatpush1.xpose.msra.mxu0 0.0
        %5282 = vmatprep.subr.mxu0 0.0
        %5283 = vmatpush1.xpose.msra.mxu0 0.0
        %5284 = vmatprep.subr.mxu0 0.0
        %5285 = vmatpush1.xpose.msra.mxu0 0.0
        %5286 = vmatprep.subr.mxu0 0.0
        %5287 = vmatpush1.xpose.msra.mxu0 0.0
        %5288 = vmatprep.subr.mxu0 0.0
        %5289 = vmatpush1.xpose.msra.mxu0 0.0
        %5290 = vmatprep.subr.mxu0 0.0
        %5291 = vmatpush1.xpose.msra.mxu0 0.0
        %5292 = vmatprep.subr.mxu0 0.0
        %5293 = vmatpush1.xpose.msra.mxu0 0.0
        %5294 = vmatprep.subr.mxu0 0.0
        %5295 = vmatpush1.xpose.msra.mxu0 0.0
        %5296 = vmatprep.subr.mxu0 0.0
        %5297 = vmatpush1.xpose.msra.mxu0 0.0
        %5298 = vmatprep.subr.mxu0 0.0
        %5299 = vmatpush1.xpose.msra.mxu0 0.0
        %5300 = vmatprep.subr.mxu0 0.0
        %5301 = vmatpush1.xpose.msra.mxu0 0.0
        %5302 = vmatprep.subr.mxu0 0.0
        %5303 = vmatpush1.xpose.msra.mxu0 0.0
        %5304 = vmatprep.subr.mxu0 0.0
        %5305 = vmatpush1.xpose.msra.mxu0 0.0
        %5306 = vmatprep.subr.mxu0 0.0
        %5307 = vmatpush1.xpose.msra.mxu0 0.0
        %5308 = vmatprep.subr.mxu0 0.0
        %5309 = vmatpush1.xpose.msra.mxu0 0.0
        %5310 = vmatprep.subr.mxu0 0.0
        %5311 = vmatpush1.xpose.msra.mxu0 0.0
        %5312 = vmatprep.subr.mxu0 0.0
        %5313 = vmatpush1.xpose.msra.mxu0 0.0
        %5314 = vmatprep.subr.mxu0 0.0
        %5315 = vmatpush1.xpose.msra.mxu0 0.0
        %5316 = vmatprep.subr.mxu0 0.0
        %5317 = vmatpush1.xpose.msra.mxu0 0.0
        %5318 = vmatprep.subr.mxu0 0.0
        %5319 = vmatpush1.xpose.msra.mxu0 0.0
        %5320 = vmatprep.mubr.f32.mxu0 0.0
        %5321 = vmatmul.mubr.f32.gmra.mrb[0].mxu0 %v5245
        %v5322 = vpop.f32.mrb[0].mxu0
        %v5323 = vadd.f32 0.0, %v5322
        %v5324 = vpop.f32.mrb[0].mxu0
        %5325 = vmatprep.mubr.f32.mxu0 0.0
        %5326 = vmatmul.mubr.f32.gmra.mrb[0].mxu0 %v5248
        %v5327 = vpop.f32.mrb[0].mxu0
        %v5328 = vadd.f32 0.0, %v5327
        %v5329 = vpop.f32.mrb[0].mxu0
        %5330 = vdwg.mxu0
        %v5331 = vmul.f32 %v5323, 0.125
        %v5332 = vmul.f32 %v5328, 0.125
        %v5333 = vsel %vm428, -1e+09, %v5331
        %v5334 = vsel %vm429, -1e+09, %v5332
        %v5335 = vsel %vm1164, %v5333, -inf
        %5336 = vmax.xlane.f32.xlu0 %v5335
        %v5337 = vpop.xlane.xlu0 %5336
        %v5338 = vsel %vm1164, %v5334, -inf
        %5339 = vmax.xlane.f32.xlu0 %v5338
        %v5340 = vpop.xlane.xlu0 %5339
        %v5341 = vsub.f32 %v5333, %v5337
        %v5342 = vsub.f32 %v5334, %v5340
        %v5343 = vmul.f32 %v5341, 1.442695
        %v5344 = vpow.pop %v5343
        %v5345 = vmul.f32 %v5342, 1.442695
        %v5346 = vpow.pop %v5345
        %v5347 = vsel %vm1164, %v5344, 0.0
        %5348 = vadd.xlane.f32.xlu0 %v5347
        %v5349 = vpop.xlane.xlu0 %5348
        %v5350 = vsel %vm1164, %v5346, 0.0
        %5351 = vadd.xlane.f32.xlu0 %v5350
        %v5352 = vpop.xlane.xlu0 %5351
        %v5353 = vrcp.pop %v5349
        %v5354 = vmul.f32 %v5344, %v5353
        %v5355 = vrcp.pop %v5352
        %v5356 = vmul.f32 %v5346, %v5355
        %s5357 = scalar_lea.vmem %s381, 64 [#allocation4]
        %5358 = vst.msk [vmem:[%s5357] sm:$0xff] %vm1164, %v5354
        %5359 = vst.msk [vmem:[%s5357 + $0x8] sm:$0xff] %vm1164, %v5356
        %v5361 = vsel %vm1164, %v5354, 0
        %v5364 = vsel %vm1164, %v5356, 0
        %5366 = vmatprep.subr.mxu0 0.0
        %5367 = vmatpush1.msra.mxu0 %v5236
        %5368 = vmatprep.subr.mxu0 0.0
        %5369 = vmatpush1.msra.mxu0 %v5241
        %5370 = vmatprep.subr.mxu0 0.0
        %5371 = vmatpush1.msra.mxu0 0.0
        %5372 = vmatprep.subr.mxu0 0.0
        %5373 = vmatpush1.msra.mxu0 0.0
        %5374 = vmatprep.subr.mxu0 0.0
        %5375 = vmatpush1.msra.mxu0 0.0
        %5376 = vmatprep.subr.mxu0 0.0
        %5377 = vmatpush1.msra.mxu0 0.0
        %5378 = vmatprep.subr.mxu0 0.0
        %5379 = vmatpush1.msra.mxu0 0.0
        %5380 = vmatprep.subr.mxu0 0.0
        %5381 = vmatpush1.msra.mxu0 0.0
        %5382 = vmatprep.subr.mxu0 0.0
        %5383 = vmatpush1.msra.mxu0 0.0
        %5384 = vmatprep.subr.mxu0 0.0
        %5385 = vmatpush1.msra.mxu0 0.0
        %5386 = vmatprep.subr.mxu0 0.0
        %5387 = vmatpush1.msra.mxu0 0.0
        %5388 = vmatprep.subr.mxu0 0.0
        %5389 = vmatpush1.msra.mxu0 0.0
        %5390 = vmatprep.subr.mxu0 0.0
        %5391 = vmatpush1.msra.mxu0 0.0
        %5392 = vmatprep.subr.mxu0 0.0
        %5393 = vmatpush1.msra.mxu0 0.0
        %5394 = vmatprep.subr.mxu0 0.0
        %5395 = vmatpush1.msra.mxu0 0.0
        %5396 = vmatprep.subr.mxu0 0.0
        %5397 = vmatpush1.msra.mxu0 0.0
        %5398 = vmatprep.subr.mxu0 0.0
        %5399 = vmatpush1.msra.mxu0 0.0
        %5400 = vmatprep.subr.mxu0 0.0
        %5401 = vmatpush1.msra.mxu0 0.0
        %5402 = vmatprep.subr.mxu0 0.0
        %5403 = vmatpush1.msra.mxu0 0.0
        %5404 = vmatprep.subr.mxu0 0.0
        %5405 = vmatpush1.msra.mxu0 0.0
        %5406 = vmatprep.subr.mxu0 0.0
        %5407 = vmatpush1.msra.mxu0 0.0
        %5408 = vmatprep.subr.mxu0 0.0
        %5409 = vmatpush1.msra.mxu0 0.0
        %5410 = vmatprep.subr.mxu0 0.0
        %5411 = vmatpush1.msra.mxu0 0.0
        %5412 = vmatprep.subr.mxu0 0.0
        %5413 = vmatpush1.msra.mxu0 0.0
        %5414 = vmatprep.subr.mxu0 0.0
        %5415 = vmatpush1.msra.mxu0 0.0
        %5416 = vmatprep.subr.mxu0 0.0
        %5417 = vmatpush1.msra.mxu0 0.0
        %5418 = vmatprep.subr.mxu0 0.0
        %5419 = vmatpush1.msra.mxu0 0.0
        %5420 = vmatprep.subr.mxu0 0.0
        %5421 = vmatpush1.msra.mxu0 0.0
        %5422 = vmatprep.subr.mxu0 0.0
        %5423 = vmatpush1.msra.mxu0 0.0
        %5424 = vmatprep.subr.mxu0 0.0
        %5425 = vmatpush1.msra.mxu0 0.0
        %5426 = vmatprep.subr.mxu0 0.0
        %5427 = vmatpush1.msra.mxu0 0.0
        %5428 = vmatprep.subr.mxu0 0.0
        %5429 = vmatpush1.msra.mxu0 0.0
        %5430 = vmatprep.mubr.f32.mxu0 0.0
        %5431 = vmatmul.mubr.f32.gmra.mrb[0].mxu0 %v5361
        %v5432 = vpop.f32.mrb[0].mxu0
        %v5433 = vadd.f32 0.0, %v5432
        %v5434 = vpop.f32.mrb[0].mxu0
        %5435 = vmatprep.mubr.f32.mxu0 0.0
        %5436 = vmatmul.mubr.f32.gmra.mrb[0].mxu0 %v5364
        %v5437 = vpop.f32.mrb[0].mxu0
        %v5438 = vadd.f32 0.0, %v5437
        %v5439 = vpop.f32.mrb[0].mxu0
        %5440 = vdwg.mxu0
        %s5441 = scalar_lea.vmem %s7, 1024
        %v5442 = vld [vmem:[%s5441] sm:$0xff]
        %v5443 = vld [vmem:[%s5441 + $0x8] sm:$0xff]
        %v5444 = vld [vmem:[%s5441 + $0x10] sm:$0xff]
        %v5445 = vld [vmem:[%s5441 + $0x18] sm:$0xff]
        %v5446 = vld [vmem:[%s5441 + $0x20] sm:$0xff]
        %v5447 = vld [vmem:[%s5441 + $0x28] sm:$0xff]
        %v5448 = vld [vmem:[%s5441 + $0x30] sm:$0xff]
        %v5449 = vld [vmem:[%s5441 + $0x38] sm:$0xff]
        %v5450 = vld [vmem:[%s5441 + $0x40] sm:$0xff]
        %v5451 = vld [vmem:[%s5441 + $0x48] sm:$0xff]
        %v5452 = vld [vmem:[%s5441 + $0x50] sm:$0xff]
        %v5453 = vld [vmem:[%s5441 + $0x58] sm:$0xff]
        %v5454 = vld [vmem:[%s5441 + $0x60] sm:$0xff]
        %v5455 = vld [vmem:[%s5441 + $0x68] sm:$0xff]
        %v5456 = vld [vmem:[%s5441 + $0x70] sm:$0xff]
        %v5457 = vld [vmem:[%s5441 + $0x78] sm:$0xff]
        %v5458 = vld [vmem:[%s5441 + $0x80] sm:$0xff]
        %v5459 = vld [vmem:[%s5441 + $0x88] sm:$0xff]
        %v5460 = vld [vmem:[%s5441 + $0x90] sm:$0xff]
        %v5461 = vld [vmem:[%s5441 + $0x98] sm:$0xff]
        %v5462 = vld [vmem:[%s5441 + $0xa0] sm:$0xff]
        %v5463 = vld [vmem:[%s5441 + $0xa8] sm:$0xff]
        %v5464 = vld [vmem:[%s5441 + $0xb0] sm:$0xff]
        %v5465 = vld [vmem:[%s5441 + $0xb8] sm:$0xff]
        %v5466 = vld [vmem:[%s5441 + $0xc0] sm:$0xff]
        %v5467 = vld [vmem:[%s5441 + $0xc8] sm:$0xff]
        %v5468 = vld [vmem:[%s5441 + $0xd0] sm:$0xff]
        %v5469 = vld [vmem:[%s5441 + $0xd8] sm:$0xff]
        %v5470 = vld [vmem:[%s5441 + $0xe0] sm:$0xff]
        %v5471 = vld [vmem:[%s5441 + $0xe8] sm:$0xff]
        %v5472 = vld [vmem:[%s5441 + $0xf0] sm:$0xff]
        %v5473 = vld [vmem:[%s5441 + $0xf8] sm:$0xff]
        %v5475 = vsel %vm1072, %v5433, 0
        %v5478 = vsel %vm1072, %v5438, 0
        %5480 = vmatprep.subr.mxu0 %v5443
        %5481 = vmatpush1.msra.mxu0 %v5442
        %5482 = vmatprep.subr.mxu0 %v5447
        %5483 = vmatpush1.msra.mxu0 %v5446
        %5484 = vmatprep.subr.mxu0 %v5451
        %5485 = vmatpush1.msra.mxu0 %v5450
        %5486 = vmatprep.subr.mxu0 %v5455
        %5487 = vmatpush1.msra.mxu0 %v5454
        %5488 = vmatprep.subr.mxu0 %v5459
        %5489 = vmatpush1.msra.mxu0 %v5458
        %5490 = vmatprep.subr.mxu0 %v5463
        %5491 = vmatpush1.msra.mxu0 %v5462
        %5492 = vmatprep.subr.mxu0 %v5467
        %5493 = vmatpush1.msra.mxu0 %v5466
        %5494 = vmatprep.subr.mxu0 %v5471
        %5495 = vmatpush1.msra.mxu0 %v5470
        %5496 = vmatprep.subr.mxu0 0.0
        %5497 = vmatpush1.msra.mxu0 0.0
        %5498 = vmatprep.subr.mxu0 0.0
        %5499 = vmatpush1.msra.mxu0 0.0
        %5500 = vmatprep.subr.mxu0 0.0
        %5501 = vmatpush1.msra.mxu0 0.0
        %5502 = vmatprep.subr.mxu0 0.0
        %5503 = vmatpush1.msra.mxu0 0.0
        %5504 = vmatprep.subr.mxu0 0.0
        %5505 = vmatpush1.msra.mxu0 0.0
        %5506 = vmatprep.subr.mxu0 0.0
        %5507 = vmatpush1.msra.mxu0 0.0
        %5508 = vmatprep.subr.mxu0 0.0
        %5509 = vmatpush1.msra.mxu0 0.0
        %5510 = vmatprep.subr.mxu0 0.0
        %5511 = vmatpush1.msra.mxu0 0.0
        %5512 = vmatprep.subr.mxu0 0.0
        %5513 = vmatpush1.msra.mxu0 0.0
        %5514 = vmatprep.subr.mxu0 0.0
        %5515 = vmatpush1.msra.mxu0 0.0
        %5516 = vmatprep.subr.mxu0 0.0
        %5517 = vmatpush1.msra.mxu0 0.0
        %5518 = vmatprep.subr.mxu0 0.0
        %5519 = vmatpush1.msra.mxu0 0.0
        %5520 = vmatprep.subr.mxu0 0.0
        %5521 = vmatpush1.msra.mxu0 0.0
        %5522 = vmatprep.subr.mxu0 0.0
        %5523 = vmatpush1.msra.mxu0 0.0
        %5524 = vmatprep.subr.mxu0 0.0
        %5525 = vmatpush1.msra.mxu0 0.0
        %5526 = vmatprep.subr.mxu0 0.0
        %5527 = vmatpush1.msra.mxu0 0.0
        %5528 = vmatprep.subr.mxu0 0.0
        %5529 = vmatpush1.msra.mxu0 0.0
        %5530 = vmatprep.subr.mxu0 0.0
        %5531 = vmatpush1.msra.mxu0 0.0
        %5532 = vmatprep.subr.mxu0 0.0
        %5533 = vmatpush1.msra.mxu0 0.0
        %5534 = vmatprep.subr.mxu0 0.0
        %5535 = vmatpush1.msra.mxu0 0.0
        %5536 = vmatprep.subr.mxu0 0.0
        %5537 = vmatpush1.msra.mxu0 0.0
        %5538 = vmatprep.subr.mxu0 0.0
        %5539 = vmatpush1.msra.mxu0 0.0
        %5540 = vmatprep.subr.mxu0 0.0
        %5541 = vmatpush1.msra.mxu0 0.0
        %5542 = vmatprep.subr.mxu0 0.0
        %5543 = vmatpush1.msra.mxu0 0.0
        %5544 = vmatprep.mubr.f32.mxu0 0.0
        %5545 = vmatmul.mubr.f32.gmra.mrb[0].mxu0 %v5475
        %v5546 = vpop.f32.mrb[0].mxu0
        %v5547 = vadd.f32 0.0, %v5546
        %v5548 = vpop.f32.mrb[0].mxu0
        %v5549 = vadd.f32 0.0, %v5548
        %5550 = vmatprep.mubr.f32.mxu0 0.0
        %5551 = vmatmul.mubr.f32.gmra.mrb[0].mxu0 %v5478
        %v5552 = vpop.f32.mrb[0].mxu0
        %v5553 = vadd.f32 0.0, %v5552
        %v5554 = vpop.f32.mrb[0].mxu0
        %v5555 = vadd.f32 0.0, %v5554
        %5556 = vdwg.mxu0
        %5557 = vmatprep.subr.mxu0 %v5445
        %5558 = vmatpush1.msra.mxu0 %v5444
        %5559 = vmatprep.subr.mxu0 %v5449
        %5560 = vmatpush1.msra.mxu0 %v5448
        %5561 = vmatprep.subr.mxu0 %v5453
        %5562 = vmatpush1.msra.mxu0 %v5452
        %5563 = vmatprep.subr.mxu0 %v5457
        %5564 = vmatpush1.msra.mxu0 %v5456
        %5565 = vmatprep.subr.mxu0 %v5461
        %5566 = vmatpush1.msra.mxu0 %v5460
        %5567 = vmatprep.subr.mxu0 %v5465
        %5568 = vmatpush1.msra.mxu0 %v5464
        %5569 = vmatprep.subr.mxu0 %v5469
        %5570 = vmatpush1.msra.mxu0 %v5468
        %5571 = vmatprep.subr.mxu0 %v5473
        %5572 = vmatpush1.msra.mxu0 %v5472
        %5573 = vmatprep.subr.mxu0 0.0
        %5574 = vmatpush1.msra.mxu0 0.0
        %5575 = vmatprep.subr.mxu0 0.0
        %5576 = vmatpush1.msra.mxu0 0.0
        %5577 = vmatprep.subr.mxu0 0.0
        %5578 = vmatpush1.msra.mxu0 0.0
        %5579 = vmatprep.subr.mxu0 0.0
        %5580 = vmatpush1.msra.mxu0 0.0
        %5581 = vmatprep.subr.mxu0 0.0
        %5582 = vmatpush1.msra.mxu0 0.0
        %5583 = vmatprep.subr.mxu0 0.0
        %5584 = vmatpush1.msra.mxu0 0.0
        %5585 = vmatprep.subr.mxu0 0.0
        %5586 = vmatpush1.msra.mxu0 0.0
        %5587 = vmatprep.subr.mxu0 0.0
        %5588 = vmatpush1.msra.mxu0 0.0
        %5589 = vmatprep.subr.mxu0 0.0
        %5590 = vmatpush1.msra.mxu0 0.0
        %5591 = vmatprep.subr.mxu0 0.0
        %5592 = vmatpush1.msra.mxu0 0.0
        %5593 = vmatprep.subr.mxu0 0.0
        %5594 = vmatpush1.msra.mxu0 0.0
        %5595 = vmatprep.subr.mxu0 0.0
        %5596 = vmatpush1.msra.mxu0 0.0
        %5597 = vmatprep.subr.mxu0 0.0
        %5598 = vmatpush1.msra.mxu0 0.0
        %5599 = vmatprep.subr.mxu0 0.0
        %5600 = vmatpush1.msra.mxu0 0.0
        %5601 = vmatprep.subr.mxu0 0.0
        %5602 = vmatpush1.msra.mxu0 0.0
        %5603 = vmatprep.subr.mxu0 0.0
        %5604 = vmatpush1.msra.mxu0 0.0
        %5605 = vmatprep.subr.mxu0 0.0
        %5606 = vmatpush1.msra.mxu0 0.0
        %5607 = vmatprep.subr.mxu0 0.0
        %5608 = vmatpush1.msra.mxu0 0.0
        %5609 = vmatprep.subr.mxu0 0.0
        %5610 = vmatpush1.msra.mxu0 0.0
        %5611 = vmatprep.subr.mxu0 0.0
        %5612 = vmatpush1.msra.mxu0 0.0
        %5613 = vmatprep.subr.mxu0 0.0
        %5614 = vmatpush1.msra.mxu0 0.0
        %5615 = vmatprep.subr.mxu0 0.0
        %5616 = vmatpush1.msra.mxu0 0.0
        %5617 = vmatprep.subr.mxu0 0.0
        %5618 = vmatpush1.msra.mxu0 0.0
        %5619 = vmatprep.subr.mxu0 0.0
        %5620 = vmatpush1.msra.mxu0 0.0
        %5621 = vmatprep.mubr.f32.mxu0 0.0
        %5622 = vmatmul.mubr.f32.gmra.mrb[0].mxu0 %v5475
        %v5623 = vpop.f32.mrb[0].mxu0
        %v5624 = vadd.f32 0.0, %v5623
        %v5625 = vpop.f32.mrb[0].mxu0
        %v5626 = vadd.f32 0.0, %v5625
        %5627 = vmatprep.mubr.f32.mxu0 0.0
        %5628 = vmatmul.mubr.f32.gmra.mrb[0].mxu0 %v5478
        %v5629 = vpop.f32.mrb[0].mxu0
        %v5630 = vadd.f32 0.0, %v5629
        %v5631 = vpop.f32.mrb[0].mxu0
        %v5632 = vadd.f32 0.0, %v5631
        %5633 = vdwg.mxu0
        %v5634 = vadd.f32 %v4591, %v5547
        %v5635 = vadd.f32 %v4592, %v5549
        %v5636 = vadd.f32 %v4593, %v5624
        %v5637 = vadd.f32 %v4594, %v5626
        %v5638 = vadd.f32 %v4595, %v5553
        %v5639 = vadd.f32 %v4596, %v5555
        %v5640 = vadd.f32 %v4597, %v5630
        %v5641 = vadd.f32 %v4598, %v5632
        %s5642 = scalar_lea.vmem %s4, 2560
        %v5643 = vld [vmem:[%s5642] sm:$0xff]
        %v5644 = vld [vmem:[%s5642 + $0x8] sm:$0xff]
        %v5645 = vld [vmem:[%s5642 + $0x10] sm:$0xff]
        %v5646 = vld [vmem:[%s5642 + $0x18] sm:$0xff]
        %v5647 = vld [vmem:[%s5642 + $0x20] sm:$0xff]
        %v5648 = vld [vmem:[%s5642 + $0x28] sm:$0xff]
        %v5649 = vld [vmem:[%s5642 + $0x30] sm:$0xff]
        %v5650 = vld [vmem:[%s5642 + $0x38] sm:$0xff]
        %v5651 = vld [vmem:[%s5642 + $0x40] sm:$0xff]
        %v5652 = vld [vmem:[%s5642 + $0x48] sm:$0xff]
        %v5653 = vld [vmem:[%s5642 + $0x50] sm:$0xff]
        %v5654 = vld [vmem:[%s5642 + $0x58] sm:$0xff]
        %v5655 = vld [vmem:[%s5642 + $0x60] sm:$0xff]
        %v5656 = vld [vmem:[%s5642 + $0x68] sm:$0xff]
        %v5657 = vld [vmem:[%s5642 + $0x70] sm:$0xff]
        %v5658 = vld [vmem:[%s5642 + $0x78] sm:$0xff]
        %v5659 = vld [vmem:[%s5642 + $0x80] sm:$0xff]
        %v5660 = vld [vmem:[%s5642 + $0x88] sm:$0xff]
        %v5661 = vld [vmem:[%s5642 + $0x90] sm:$0xff]
        %v5662 = vld [vmem:[%s5642 + $0x98] sm:$0xff]
        %v5663 = vld [vmem:[%s5642 + $0xa0] sm:$0xff]
        %v5664 = vld [vmem:[%s5642 + $0xa8] sm:$0xff]
        %v5665 = vld [vmem:[%s5642 + $0xb0] sm:$0xff]
        %v5666 = vld [vmem:[%s5642 + $0xb8] sm:$0xff]
        %v5667 = vld [vmem:[%s5642 + $0xc0] sm:$0xff]
        %v5668 = vld [vmem:[%s5642 + $0xc8] sm:$0xff]
        %v5669 = vld [vmem:[%s5642 + $0xd0] sm:$0xff]
        %v5670 = vld [vmem:[%s5642 + $0xd8] sm:$0xff]
        %v5671 = vld [vmem:[%s5642 + $0xe0] sm:$0xff]
        %v5672 = vld [vmem:[%s5642 + $0xe8] sm:$0xff]
        %v5673 = vld [vmem:[%s5642 + $0xf0] sm:$0xff]
        %v5674 = vld [vmem:[%s5642 + $0xf8] sm:$0xff]
        %v5675 = vld [vmem:[%s5642 + $0x100] sm:$0xff]
        %v5676 = vld [vmem:[%s5642 + $0x108] sm:$0xff]
        %v5677 = vld [vmem:[%s5642 + $0x110] sm:$0xff]
        %v5678 = vld [vmem:[%s5642 + $0x118] sm:$0xff]
        %v5679 = vld [vmem:[%s5642 + $0x120] sm:$0xff]
        %v5680 = vld [vmem:[%s5642 + $0x128] sm:$0xff]
        %v5681 = vld [vmem:[%s5642 + $0x130] sm:$0xff]
        %v5682 = vld [vmem:[%s5642 + $0x138] sm:$0xff]
        %v5683 = vld [vmem:[%s5642 + $0x140] sm:$0xff]
        %v5684 = vld [vmem:[%s5642 + $0x148] sm:$0xff]
        %v5685 = vld [vmem:[%s5642 + $0x150] sm:$0xff]
        %v5686 = vld [vmem:[%s5642 + $0x158] sm:$0xff]
        %v5687 = vld [vmem:[%s5642 + $0x160] sm:$0xff]
        %v5688 = vld [vmem:[%s5642 + $0x168] sm:$0xff]
        %v5689 = vld [vmem:[%s5642 + $0x170] sm:$0xff]
        %v5690 = vld [vmem:[%s5642 + $0x178] sm:$0xff]
        %v5691 = vld [vmem:[%s5642 + $0x180] sm:$0xff]
        %v5692 = vld [vmem:[%s5642 + $0x188] sm:$0xff]
        %v5693 = vld [vmem:[%s5642 + $0x190] sm:$0xff]
        %v5694 = vld [vmem:[%s5642 + $0x198] sm:$0xff]
        %v5695 = vld [vmem:[%s5642 + $0x1a0] sm:$0xff]
        %v5696 = vld [vmem:[%s5642 + $0x1a8] sm:$0xff]
        %v5697 = vld [vmem:[%s5642 + $0x1b0] sm:$0xff]
        %v5698 = vld [vmem:[%s5642 + $0x1b8] sm:$0xff]
        %v5699 = vld [vmem:[%s5642 + $0x1c0] sm:$0xff]
        %v5700 = vld [vmem:[%s5642 + $0x1c8] sm:$0xff]
        %v5701 = vld [vmem:[%s5642 + $0x1d0] sm:$0xff]
        %v5702 = vld [vmem:[%s5642 + $0x1d8] sm:$0xff]
        %v5703 = vld [vmem:[%s5642 + $0x1e0] sm:$0xff]
        %v5704 = vld [vmem:[%s5642 + $0x1e8] sm:$0xff]
        %v5705 = vld [vmem:[%s5642 + $0x1f0] sm:$0xff]
        %v5706 = vld [vmem:[%s5642 + $0x1f8] sm:$0xff]
        %5707 = vmatprep.subr.mxu0 0.0
        %5708 = vmatpush1.msra.mxu0 %v5643
        %5709 = vmatprep.subr.mxu0 0.0
        %5710 = vmatpush1.msra.mxu0 %v5644
        %5711 = vmatprep.subr.mxu0 0.0
        %5712 = vmatpush1.msra.mxu0 %v5645
        %5713 = vmatprep.subr.mxu0 0.0
        %5714 = vmatpush1.msra.mxu0 %v5646
        %5715 = vmatprep.subr.mxu0 0.0
        %5716 = vmatpush1.msra.mxu0 %v5647
        %5717 = vmatprep.subr.mxu0 0.0
        %5718 = vmatpush1.msra.mxu0 %v5648
        %5719 = vmatprep.subr.mxu0 0.0
        %5720 = vmatpush1.msra.mxu0 %v5649
        %5721 = vmatprep.subr.mxu0 0.0
        %5722 = vmatpush1.msra.mxu0 %v5650
        %5723 = vmatprep.subr.mxu0 0.0
        %5724 = vmatpush1.msra.mxu0 %v5651
        %5725 = vmatprep.subr.mxu0 0.0
        %5726 = vmatpush1.msra.mxu0 %v5652
        %5727 = vmatprep.subr.mxu0 0.0
        %5728 = vmatpush1.msra.mxu0 %v5653
        %5729 = vmatprep.subr.mxu0 0.0
        %5730 = vmatpush1.msra.mxu0 %v5654
        %5731 = vmatprep.subr.mxu0 0.0
        %5732 = vmatpush1.msra.mxu0 %v5655
        %5733 = vmatprep.subr.mxu0 0.0
        %5734 = vmatpush1.msra.mxu0 %v5656
        %5735 = vmatprep.subr.mxu0 0.0
        %5736 = vmatpush1.msra.mxu0 %v5657
        %5737 = vmatprep.subr.mxu0 0.0
        %5738 = vmatpush1.msra.mxu0 %v5658
        %5739 = vmatprep.subr.mxu0 0.0
        %5740 = vmatpush1.msra.mxu0 %v5659
        %5741 = vmatprep.subr.mxu0 0.0
        %5742 = vmatpush1.msra.mxu0 %v5660
        %5743 = vmatprep.subr.mxu0 0.0
        %5744 = vmatpush1.msra.mxu0 %v5661
        %5745 = vmatprep.subr.mxu0 0.0
        %5746 = vmatpush1.msra.mxu0 %v5662
        %5747 = vmatprep.subr.mxu0 0.0
        %5748 = vmatpush1.msra.mxu0 %v5663
        %5749 = vmatprep.subr.mxu0 0.0
        %5750 = vmatpush1.msra.mxu0 %v5664
        %5751 = vmatprep.subr.mxu0 0.0
        %5752 = vmatpush1.msra.mxu0 %v5665
        %5753 = vmatprep.subr.mxu0 0.0
        %5754 = vmatpush1.msra.mxu0 %v5666
        %5755 = vmatprep.subr.mxu0 0.0
        %5756 = vmatpush1.msra.mxu0 %v5667
        %5757 = vmatprep.subr.mxu0 0.0
        %5758 = vmatpush1.msra.mxu0 %v5668
        %5759 = vmatprep.subr.mxu0 0.0
        %5760 = vmatpush1.msra.mxu0 %v5669
        %5761 = vmatprep.subr.mxu0 0.0
        %5762 = vmatpush1.msra.mxu0 %v5670
        %5763 = vmatprep.subr.mxu0 0.0
        %5764 = vmatpush1.msra.mxu0 %v5671
        %5765 = vmatprep.subr.mxu0 0.0
        %5766 = vmatpush1.msra.mxu0 %v5672
        %5767 = vmatprep.subr.mxu0 0.0
        %5768 = vmatpush1.msra.mxu0 %v5673
        %5769 = vmatprep.subr.mxu0 0.0
        %5770 = vmatpush1.msra.mxu0 %v5674
        %5771 = vmatprep.mubr.f32.mxu0 %v403
        %5772 = vmatmul.mubr.f32.gmra.mrb[0].mxu0 %v402
        %v5773 = vpop.f32.mrb[0].mxu0
        %v5774 = vadd.f32 0.0, %v5773
        %v5775 = vpop.f32.mrb[0].mxu0
        %5776 = vmatprep.mubr.f32.mxu0 %v407
        %5777 = vmatmul.mubr.f32.gmra.mrb[0].mxu0 %v406
        %v5778 = vpop.f32.mrb[0].mxu0
        %v5779 = vadd.f32 0.0, %v5778
        %v5780 = vpop.f32.mrb[0].mxu0
        %5781 = vdwg.mxu0
        %5782 = vmatprep.subr.mxu0 0.0
        %5783 = vmatpush1.msra.mxu0 %v5675
        %5784 = vmatprep.subr.mxu0 0.0
        %5785 = vmatpush1.msra.mxu0 %v5676
        %5786 = vmatprep.subr.mxu0 0.0
        %5787 = vmatpush1.msra.mxu0 %v5677
        %5788 = vmatprep.subr.mxu0 0.0
        %5789 = vmatpush1.msra.mxu0 %v5678
        %5790 = vmatprep.subr.mxu0 0.0
        %5791 = vmatpush1.msra.mxu0 %v5679
        %5792 = vmatprep.subr.mxu0 0.0
        %5793 = vmatpush1.msra.mxu0 %v5680
        %5794 = vmatprep.subr.mxu0 0.0
        %5795 = vmatpush1.msra.mxu0 %v5681
        %5796 = vmatprep.subr.mxu0 0.0
        %5797 = vmatpush1.msra.mxu0 %v5682
        %5798 = vmatprep.subr.mxu0 0.0
        %5799 = vmatpush1.msra.mxu0 %v5683
        %5800 = vmatprep.subr.mxu0 0.0
        %5801 = vmatpush1.msra.mxu0 %v5684
        %5802 = vmatprep.subr.mxu0 0.0
        %5803 = vmatpush1.msra.mxu0 %v5685
        %5804 = vmatprep.subr.mxu0 0.0
        %5805 = vmatpush1.msra.mxu0 %v5686
        %5806 = vmatprep.subr.mxu0 0.0
        %5807 = vmatpush1.msra.mxu0 %v5687
        %5808 = vmatprep.subr.mxu0 0.0
        %5809 = vmatpush1.msra.mxu0 %v5688
        %5810 = vmatprep.subr.mxu0 0.0
        %5811 = vmatpush1.msra.mxu0 %v5689
        %5812 = vmatprep.subr.mxu0 0.0
        %5813 = vmatpush1.msra.mxu0 %v5690
        %5814 = vmatprep.subr.mxu0 0.0
        %5815 = vmatpush1.msra.mxu0 %v5691
        %5816 = vmatprep.subr.mxu0 0.0
        %5817 = vmatpush1.msra.mxu0 %v5692
        %5818 = vmatprep.subr.mxu0 0.0
        %5819 = vmatpush1.msra.mxu0 %v5693
        %5820 = vmatprep.subr.mxu0 0.0
        %5821 = vmatpush1.msra.mxu0 %v5694
        %5822 = vmatprep.subr.mxu0 0.0
        %5823 = vmatpush1.msra.mxu0 %v5695
        %5824 = vmatprep.subr.mxu0 0.0
        %5825 = vmatpush1.msra.mxu0 %v5696
        %5826 = vmatprep.subr.mxu0 0.0
        %5827 = vmatpush1.msra.mxu0 %v5697
        %5828 = vmatprep.subr.mxu0 0.0
        %5829 = vmatpush1.msra.mxu0 %v5698
        %5830 = vmatprep.subr.mxu0 0.0
        %5831 = vmatpush1.msra.mxu0 %v5699
        %5832 = vmatprep.subr.mxu0 0.0
        %5833 = vmatpush1.msra.mxu0 %v5700
        %5834 = vmatprep.subr.mxu0 0.0
        %5835 = vmatpush1.msra.mxu0 %v5701
        %5836 = vmatprep.subr.mxu0 0.0
        %5837 = vmatpush1.msra.mxu0 %v5702
        %5838 = vmatprep.subr.mxu0 0.0
        %5839 = vmatpush1.msra.mxu0 %v5703
        %5840 = vmatprep.subr.mxu0 0.0
        %5841 = vmatpush1.msra.mxu0 %v5704
        %5842 = vmatprep.subr.mxu0 0.0
        %5843 = vmatpush1.msra.mxu0 %v5705
        %5844 = vmatprep.subr.mxu0 0.0
        %5845 = vmatpush1.msra.mxu0 %v5706
        %5846 = vmatprep.mubr.f32.mxu0 %v405
        %5847 = vmatmul.mubr.f32.gmra.mrb[0].mxu0 %v404
        %v5848 = vpop.f32.mrb[0].mxu0
        %v5849 = vadd.f32 %v5774, %v5848
        %v5850 = vpop.f32.mrb[0].mxu0
        %5851 = vmatprep.mubr.f32.mxu0 %v409
        %5852 = vmatmul.mubr.f32.gmra.mrb[0].mxu0 %v408
        %v5853 = vpop.f32.mrb[0].mxu0
        %v5854 = vadd.f32 %v5779, %v5853
        %v5855 = vpop.f32.mrb[0].mxu0
        %5856 = vdwg.mxu0
        %s5857 = scalar_lea.vmem %s5, 2560
        %v5858 = vld [vmem:[%s5857] sm:$0xff]
        %v5859 = vld [vmem:[%s5857 + $0x8] sm:$0xff]
        %v5860 = vld [vmem:[%s5857 + $0x10] sm:$0xff]
        %v5861 = vld [vmem:[%s5857 + $0x18] sm:$0xff]
        %v5862 = vld [vmem:[%s5857 + $0x20] sm:$0xff]
        %v5863 = vld [vmem:[%s5857 + $0x28] sm:$0xff]
        %v5864 = vld [vmem:[%s5857 + $0x30] sm:$0xff]
        %v5865 = vld [vmem:[%s5857 + $0x38] sm:$0xff]
        %v5866 = vld [vmem:[%s5857 + $0x40] sm:$0xff]
        %v5867 = vld [vmem:[%s5857 + $0x48] sm:$0xff]
        %v5868 = vld [vmem:[%s5857 + $0x50] sm:$0xff]
        %v5869 = vld [vmem:[%s5857 + $0x58] sm:$0xff]
        %v5870 = vld [vmem:[%s5857 + $0x60] sm:$0xff]
        %v5871 = vld [vmem:[%s5857 + $0x68] sm:$0xff]
        %v5872 = vld [vmem:[%s5857 + $0x70] sm:$0xff]
        %v5873 = vld [vmem:[%s5857 + $0x78] sm:$0xff]
        %v5874 = vld [vmem:[%s5857 + $0x80] sm:$0xff]
        %v5875 = vld [vmem:[%s5857 + $0x88] sm:$0xff]
        %v5876 = vld [vmem:[%s5857 + $0x90] sm:$0xff]
        %v5877 = vld [vmem:[%s5857 + $0x98] sm:$0xff]
        %v5878 = vld [vmem:[%s5857 + $0xa0] sm:$0xff]
        %v5879 = vld [vmem:[%s5857 + $0xa8] sm:$0xff]
        %v5880 = vld [vmem:[%s5857 + $0xb0] sm:$0xff]
        %v5881 = vld [vmem:[%s5857 + $0xb8] sm:$0xff]
        %v5882 = vld [vmem:[%s5857 + $0xc0] sm:$0xff]
        %v5883 = vld [vmem:[%s5857 + $0xc8] sm:$0xff]
        %v5884 = vld [vmem:[%s5857 + $0xd0] sm:$0xff]
        %v5885 = vld [vmem:[%s5857 + $0xd8] sm:$0xff]
        %v5886 = vld [vmem:[%s5857 + $0xe0] sm:$0xff]
        %v5887 = vld [vmem:[%s5857 + $0xe8] sm:$0xff]
        %v5888 = vld [vmem:[%s5857 + $0xf0] sm:$0xff]
        %v5889 = vld [vmem:[%s5857 + $0xf8] sm:$0xff]
        %v5890 = vld [vmem:[%s5857 + $0x100] sm:$0xff]
        %v5891 = vld [vmem:[%s5857 + $0x108] sm:$0xff]
        %v5892 = vld [vmem:[%s5857 + $0x110] sm:$0xff]
        %v5893 = vld [vmem:[%s5857 + $0x118] sm:$0xff]
        %v5894 = vld [vmem:[%s5857 + $0x120] sm:$0xff]
        %v5895 = vld [vmem:[%s5857 + $0x128] sm:$0xff]
        %v5896 = vld [vmem:[%s5857 + $0x130] sm:$0xff]
        %v5897 = vld [vmem:[%s5857 + $0x138] sm:$0xff]
        %v5898 = vld [vmem:[%s5857 + $0x140] sm:$0xff]
        %v5899 = vld [vmem:[%s5857 + $0x148] sm:$0xff]
        %v5900 = vld [vmem:[%s5857 + $0x150] sm:$0xff]
        %v5901 = vld [vmem:[%s5857 + $0x158] sm:$0xff]
        %v5902 = vld [vmem:[%s5857 + $0x160] sm:$0xff]
        %v5903 = vld [vmem:[%s5857 + $0x168] sm:$0xff]
        %v5904 = vld [vmem:[%s5857 + $0x170] sm:$0xff]
        %v5905 = vld [vmem:[%s5857 + $0x178] sm:$0xff]
        %v5906 = vld [vmem:[%s5857 + $0x180] sm:$0xff]
        %v5907 = vld [vmem:[%s5857 + $0x188] sm:$0xff]
        %v5908 = vld [vmem:[%s5857 + $0x190] sm:$0xff]
        %v5909 = vld [vmem:[%s5857 + $0x198] sm:$0xff]
        %v5910 = vld [vmem:[%s5857 + $0x1a0] sm:$0xff]
        %v5911 = vld [vmem:[%s5857 + $0x1a8] sm:$0xff]
        %v5912 = vld [vmem:[%s5857 + $0x1b0] sm:$0xff]
        %v5913 = vld [vmem:[%s5857 + $0x1b8] sm:$0xff]
        %v5914 = vld [vmem:[%s5857 + $0x1c0] sm:$0xff]
        %v5915 = vld [vmem:[%s5857 + $0x1c8] sm:$0xff]
        %v5916 = vld [vmem:[%s5857 + $0x1d0] sm:$0xff]
        %v5917 = vld [vmem:[%s5857 + $0x1d8] sm:$0xff]
        %v5918 = vld [vmem:[%s5857 + $0x1e0] sm:$0xff]
        %v5919 = vld [vmem:[%s5857 + $0x1e8] sm:$0xff]
        %v5920 = vld [vmem:[%s5857 + $0x1f0] sm:$0xff]
        %v5921 = vld [vmem:[%s5857 + $0x1f8] sm:$0xff]
        %5922 = vmatprep.subr.mxu0 0.0
        %5923 = vmatpush1.msra.mxu0 %v5858
        %5924 = vmatprep.subr.mxu0 0.0
        %5925 = vmatpush1.msra.mxu0 %v5859
        %5926 = vmatprep.subr.mxu0 0.0
        %5927 = vmatpush1.msra.mxu0 %v5860
        %5928 = vmatprep.subr.mxu0 0.0
        %5929 = vmatpush1.msra.mxu0 %v5861
        %5930 = vmatprep.subr.mxu0 0.0
        %5931 = vmatpush1.msra.mxu0 %v5862
        %5932 = vmatprep.subr.mxu0 0.0
        %5933 = vmatpush1.msra.mxu0 %v5863
        %5934 = vmatprep.subr.mxu0 0.0
        %5935 = vmatpush1.msra.mxu0 %v5864
        %5936 = vmatprep.subr.mxu0 0.0
        %5937 = vmatpush1.msra.mxu0 %v5865
        %5938 = vmatprep.subr.mxu0 0.0
        %5939 = vmatpush1.msra.mxu0 %v5866
        %5940 = vmatprep.subr.mxu0 0.0
        %5941 = vmatpush1.msra.mxu0 %v5867
        %5942 = vmatprep.subr.mxu0 0.0
        %5943 = vmatpush1.msra.mxu0 %v5868
        %5944 = vmatprep.subr.mxu0 0.0
        %5945 = vmatpush1.msra.mxu0 %v5869
        %5946 = vmatprep.subr.mxu0 0.0
        %5947 = vmatpush1.msra.mxu0 %v5870
        %5948 = vmatprep.subr.mxu0 0.0
        %5949 = vmatpush1.msra.mxu0 %v5871
        %5950 = vmatprep.subr.mxu0 0.0
        %5951 = vmatpush1.msra.mxu0 %v5872
        %5952 = vmatprep.subr.mxu0 0.0
        %5953 = vmatpush1.msra.mxu0 %v5873
        %5954 = vmatprep.subr.mxu0 0.0
        %5955 = vmatpush1.msra.mxu0 %v5874
        %5956 = vmatprep.subr.mxu0 0.0
        %5957 = vmatpush1.msra.mxu0 %v5875
        %5958 = vmatprep.subr.mxu0 0.0
        %5959 = vmatpush1.msra.mxu0 %v5876
        %5960 = vmatprep.subr.mxu0 0.0
        %5961 = vmatpush1.msra.mxu0 %v5877
        %5962 = vmatprep.subr.mxu0 0.0
        %5963 = vmatpush1.msra.mxu0 %v5878
        %5964 = vmatprep.subr.mxu0 0.0
        %5965 = vmatpush1.msra.mxu0 %v5879
        %5966 = vmatprep.subr.mxu0 0.0
        %5967 = vmatpush1.msra.mxu0 %v5880
        %5968 = vmatprep.subr.mxu0 0.0
        %5969 = vmatpush1.msra.mxu0 %v5881
        %5970 = vmatprep.subr.mxu0 0.0
        %5971 = vmatpush1.msra.mxu0 %v5882
        %5972 = vmatprep.subr.mxu0 0.0
        %5973 = vmatpush1.msra.mxu0 %v5883
        %5974 = vmatprep.subr.mxu0 0.0
        %5975 = vmatpush1.msra.mxu0 %v5884
        %5976 = vmatprep.subr.mxu0 0.0
        %5977 = vmatpush1.msra.mxu0 %v5885
        %5978 = vmatprep.subr.mxu0 0.0
        %5979 = vmatpush1.msra.mxu0 %v5886
        %5980 = vmatprep.subr.mxu0 0.0
        %5981 = vmatpush1.msra.mxu0 %v5887
        %5982 = vmatprep.subr.mxu0 0.0
        %5983 = vmatpush1.msra.mxu0 %v5888
        %5984 = vmatprep.subr.mxu0 0.0
        %5985 = vmatpush1.msra.mxu0 %v5889
        %5986 = vmatprep.mubr.f32.mxu0 %v411
        %5987 = vmatmul.mubr.f32.gmra.mrb[0].mxu0 %v410
        %v5988 = vpop.f32.mrb[0].mxu0
        %v5989 = vadd.f32 0.0, %v5988
        %v5990 = vpop.f32.mrb[0].mxu0
        %5991 = vmatprep.mubr.f32.mxu0 %v415
        %5992 = vmatmul.mubr.f32.gmra.mrb[0].mxu0 %v414
        %v5993 = vpop.f32.mrb[0].mxu0
        %v5994 = vadd.f32 0.0, %v5993
        %v5995 = vpop.f32.mrb[0].mxu0
        %5996 = vdwg.mxu0
        %5997 = vmatprep.subr.mxu0 0.0
        %5998 = vmatpush1.msra.mxu0 %v5890
        %5999 = vmatprep.subr.mxu0 0.0
        %6000 = vmatpush1.msra.mxu0 %v5891
        %6001 = vmatprep.subr.mxu0 0.0
        %6002 = vmatpush1.msra.mxu0 %v5892
        %6003 = vmatprep.subr.mxu0 0.0
        %6004 = vmatpush1.msra.mxu0 %v5893
        %6005 = vmatprep.subr.mxu0 0.0
        %6006 = vmatpush1.msra.mxu0 %v5894
        %6007 = vmatprep.subr.mxu0 0.0
        %6008 = vmatpush1.msra.mxu0 %v5895
        %6009 = vmatprep.subr.mxu0 0.0
        %6010 = vmatpush1.msra.mxu0 %v5896
        %6011 = vmatprep.subr.mxu0 0.0
        %6012 = vmatpush1.msra.mxu0 %v5897
        %6013 = vmatprep.subr.mxu0 0.0
        %6014 = vmatpush1.msra.mxu0 %v5898
        %6015 = vmatprep.subr.mxu0 0.0
        %6016 = vmatpush1.msra.mxu0 %v5899
        %6017 = vmatprep.subr.mxu0 0.0
        %6018 = vmatpush1.msra.mxu0 %v5900
        %6019 = vmatprep.subr.mxu0 0.0
        %6020 = vmatpush1.msra.mxu0 %v5901
        %6021 = vmatprep.subr.mxu0 0.0
        %6022 = vmatpush1.msra.mxu0 %v5902
        %6023 = vmatprep.subr.mxu0 0.0
        %6024 = vmatpush1.msra.mxu0 %v5903
        %6025 = vmatprep.subr.mxu0 0.0
        %6026 = vmatpush1.msra.mxu0 %v5904
        %6027 = vmatprep.subr.mxu0 0.0
        %6028 = vmatpush1.msra.mxu0 %v5905
        %6029 = vmatprep.subr.mxu0 0.0
        %6030 = vmatpush1.msra.mxu0 %v5906
        %6031 = vmatprep.subr.mxu0 0.0
        %6032 = vmatpush1.msra.mxu0 %v5907
        %6033 = vmatprep.subr.mxu0 0.0
        %6034 = vmatpush1.msra.mxu0 %v5908
        %6035 = vmatprep.subr.mxu0 0.0
        %6036 = vmatpush1.msra.mxu0 %v5909
        %6037 = vmatprep.subr.mxu0 0.0
        %6038 = vmatpush1.msra.mxu0 %v5910
        %6039 = vmatprep.subr.mxu0 0.0
        %6040 = vmatpush1.msra.mxu0 %v5911
        %6041 = vmatprep.subr.mxu0 0.0
        %6042 = vmatpush1.msra.mxu0 %v5912
        %6043 = vmatprep.subr.mxu0 0.0
        %6044 = vmatpush1.msra.mxu0 %v5913
        %6045 = vmatprep.subr.mxu0 0.0
        %6046 = vmatpush1.msra.mxu0 %v5914
        %6047 = vmatprep.subr.mxu0 0.0
        %6048 = vmatpush1.msra.mxu0 %v5915
        %6049 = vmatprep.subr.mxu0 0.0
        %6050 = vmatpush1.msra.mxu0 %v5916
        %6051 = vmatprep.subr.mxu0 0.0
        %6052 = vmatpush1.msra.mxu0 %v5917
        %6053 = vmatprep.subr.mxu0 0.0
        %6054 = vmatpush1.msra.mxu0 %v5918
        %6055 = vmatprep.subr.mxu0 0.0
        %6056 = vmatpush1.msra.mxu0 %v5919
        %6057 = vmatprep.subr.mxu0 0.0
        %6058 = vmatpush1.msra.mxu0 %v5920
        %6059 = vmatprep.subr.mxu0 0.0
        %6060 = vmatpush1.msra.mxu0 %v5921
        %6061 = vmatprep.mubr.f32.mxu0 %v413
        %6062 = vmatmul.mubr.f32.gmra.mrb[0].mxu0 %v412
        %v6063 = vpop.f32.mrb[0].mxu0
        %v6064 = vadd.f32 %v5989, %v6063
        %v6065 = vpop.f32.mrb[0].mxu0
        %6066 = vmatprep.mubr.f32.mxu0 %v417
        %6067 = vmatmul.mubr.f32.gmra.mrb[0].mxu0 %v416
        %v6068 = vpop.f32.mrb[0].mxu0
        %v6069 = vadd.f32 %v5994, %v6068
        %v6070 = vpop.f32.mrb[0].mxu0
        %6071 = vdwg.mxu0
        %s6072 = scalar_lea.vmem %s6, 2560
        %v6073 = vld [vmem:[%s6072] sm:$0xff]
        %v6074 = vld [vmem:[%s6072 + $0x8] sm:$0xff]
        %v6075 = vld [vmem:[%s6072 + $0x10] sm:$0xff]
        %v6076 = vld [vmem:[%s6072 + $0x18] sm:$0xff]
        %v6077 = vld [vmem:[%s6072 + $0x20] sm:$0xff]
        %v6078 = vld [vmem:[%s6072 + $0x28] sm:$0xff]
        %v6079 = vld [vmem:[%s6072 + $0x30] sm:$0xff]
        %v6080 = vld [vmem:[%s6072 + $0x38] sm:$0xff]
        %v6081 = vld [vmem:[%s6072 + $0x40] sm:$0xff]
        %v6082 = vld [vmem:[%s6072 + $0x48] sm:$0xff]
        %v6083 = vld [vmem:[%s6072 + $0x50] sm:$0xff]
        %v6084 = vld [vmem:[%s6072 + $0x58] sm:$0xff]
        %v6085 = vld [vmem:[%s6072 + $0x60] sm:$0xff]
        %v6086 = vld [vmem:[%s6072 + $0x68] sm:$0xff]
        %v6087 = vld [vmem:[%s6072 + $0x70] sm:$0xff]
        %v6088 = vld [vmem:[%s6072 + $0x78] sm:$0xff]
        %v6089 = vld [vmem:[%s6072 + $0x80] sm:$0xff]
        %v6090 = vld [vmem:[%s6072 + $0x88] sm:$0xff]
        %v6091 = vld [vmem:[%s6072 + $0x90] sm:$0xff]
        %v6092 = vld [vmem:[%s6072 + $0x98] sm:$0xff]
        %v6093 = vld [vmem:[%s6072 + $0xa0] sm:$0xff]
        %v6094 = vld [vmem:[%s6072 + $0xa8] sm:$0xff]
        %v6095 = vld [vmem:[%s6072 + $0xb0] sm:$0xff]
        %v6096 = vld [vmem:[%s6072 + $0xb8] sm:$0xff]
        %v6097 = vld [vmem:[%s6072 + $0xc0] sm:$0xff]
        %v6098 = vld [vmem:[%s6072 + $0xc8] sm:$0xff]
        %v6099 = vld [vmem:[%s6072 + $0xd0] sm:$0xff]
        %v6100 = vld [vmem:[%s6072 + $0xd8] sm:$0xff]
        %v6101 = vld [vmem:[%s6072 + $0xe0] sm:$0xff]
        %v6102 = vld [vmem:[%s6072 + $0xe8] sm:$0xff]
        %v6103 = vld [vmem:[%s6072 + $0xf0] sm:$0xff]
        %v6104 = vld [vmem:[%s6072 + $0xf8] sm:$0xff]
        %v6105 = vld [vmem:[%s6072 + $0x100] sm:$0xff]
        %v6106 = vld [vmem:[%s6072 + $0x108] sm:$0xff]
        %v6107 = vld [vmem:[%s6072 + $0x110] sm:$0xff]
        %v6108 = vld [vmem:[%s6072 + $0x118] sm:$0xff]
        %v6109 = vld [vmem:[%s6072 + $0x120] sm:$0xff]
        %v6110 = vld [vmem:[%s6072 + $0x128] sm:$0xff]
        %v6111 = vld [vmem:[%s6072 + $0x130] sm:$0xff]
        %v6112 = vld [vmem:[%s6072 + $0x138] sm:$0xff]
        %v6113 = vld [vmem:[%s6072 + $0x140] sm:$0xff]
        %v6114 = vld [vmem:[%s6072 + $0x148] sm:$0xff]
        %v6115 = vld [vmem:[%s6072 + $0x150] sm:$0xff]
        %v6116 = vld [vmem:[%s6072 + $0x158] sm:$0xff]
        %v6117 = vld [vmem:[%s6072 + $0x160] sm:$0xff]
        %v6118 = vld [vmem:[%s6072 + $0x168] sm:$0xff]
        %v6119 = vld [vmem:[%s6072 + $0x170] sm:$0xff]
        %v6120 = vld [vmem:[%s6072 + $0x178] sm:$0xff]
        %v6121 = vld [vmem:[%s6072 + $0x180] sm:$0xff]
        %v6122 = vld [vmem:[%s6072 + $0x188] sm:$0xff]
        %v6123 = vld [vmem:[%s6072 + $0x190] sm:$0xff]
        %v6124 = vld [vmem:[%s6072 + $0x198] sm:$0xff]
        %v6125 = vld [vmem:[%s6072 + $0x1a0] sm:$0xff]
        %v6126 = vld [vmem:[%s6072 + $0x1a8] sm:$0xff]
        %v6127 = vld [vmem:[%s6072 + $0x1b0] sm:$0xff]
        %v6128 = vld [vmem:[%s6072 + $0x1b8] sm:$0xff]
        %v6129 = vld [vmem:[%s6072 + $0x1c0] sm:$0xff]
        %v6130 = vld [vmem:[%s6072 + $0x1c8] sm:$0xff]
        %v6131 = vld [vmem:[%s6072 + $0x1d0] sm:$0xff]
        %v6132 = vld [vmem:[%s6072 + $0x1d8] sm:$0xff]
        %v6133 = vld [vmem:[%s6072 + $0x1e0] sm:$0xff]
        %v6134 = vld [vmem:[%s6072 + $0x1e8] sm:$0xff]
        %v6135 = vld [vmem:[%s6072 + $0x1f0] sm:$0xff]
        %v6136 = vld [vmem:[%s6072 + $0x1f8] sm:$0xff]
        %6137 = vmatprep.subr.mxu0 0.0
        %6138 = vmatpush1.msra.mxu0 %v6073
        %6139 = vmatprep.subr.mxu0 0.0
        %6140 = vmatpush1.msra.mxu0 %v6074
        %6141 = vmatprep.subr.mxu0 0.0
        %6142 = vmatpush1.msra.mxu0 %v6075
        %6143 = vmatprep.subr.mxu0 0.0
        %6144 = vmatpush1.msra.mxu0 %v6076
        %6145 = vmatprep.subr.mxu0 0.0
        %6146 = vmatpush1.msra.mxu0 %v6077
        %6147 = vmatprep.subr.mxu0 0.0
        %6148 = vmatpush1.msra.mxu0 %v6078
        %6149 = vmatprep.subr.mxu0 0.0
        %6150 = vmatpush1.msra.mxu0 %v6079
        %6151 = vmatprep.subr.mxu0 0.0
        %6152 = vmatpush1.msra.mxu0 %v6080
        %6153 = vmatprep.subr.mxu0 0.0
        %6154 = vmatpush1.msra.mxu0 %v6081
        %6155 = vmatprep.subr.mxu0 0.0
        %6156 = vmatpush1.msra.mxu0 %v6082
        %6157 = vmatprep.subr.mxu0 0.0
        %6158 = vmatpush1.msra.mxu0 %v6083
        %6159 = vmatprep.subr.mxu0 0.0
        %6160 = vmatpush1.msra.mxu0 %v6084
        %6161 = vmatprep.subr.mxu0 0.0
        %6162 = vmatpush1.msra.mxu0 %v6085
        %6163 = vmatprep.subr.mxu0 0.0
        %6164 = vmatpush1.msra.mxu0 %v6086
        %6165 = vmatprep.subr.mxu0 0.0
        %6166 = vmatpush1.msra.mxu0 %v6087
        %6167 = vmatprep.subr.mxu0 0.0
        %6168 = vmatpush1.msra.mxu0 %v6088
        %6169 = vmatprep.subr.mxu0 0.0
        %6170 = vmatpush1.msra.mxu0 %v6089
        %6171 = vmatprep.subr.mxu0 0.0
        %6172 = vmatpush1.msra.mxu0 %v6090
        %6173 = vmatprep.subr.mxu0 0.0
        %6174 = vmatpush1.msra.mxu0 %v6091
        %6175 = vmatprep.subr.mxu0 0.0
        %6176 = vmatpush1.msra.mxu0 %v6092
        %6177 = vmatprep.subr.mxu0 0.0
        %6178 = vmatpush1.msra.mxu0 %v6093
        %6179 = vmatprep.subr.mxu0 0.0
        %6180 = vmatpush1.msra.mxu0 %v6094
        %6181 = vmatprep.subr.mxu0 0.0
        %6182 = vmatpush1.msra.mxu0 %v6095
        %6183 = vmatprep.subr.mxu0 0.0
        %6184 = vmatpush1.msra.mxu0 %v6096
        %6185 = vmatprep.subr.mxu0 0.0
        %6186 = vmatpush1.msra.mxu0 %v6097
        %6187 = vmatprep.subr.mxu0 0.0
        %6188 = vmatpush1.msra.mxu0 %v6098
        %6189 = vmatprep.subr.mxu0 0.0
        %6190 = vmatpush1.msra.mxu0 %v6099
        %6191 = vmatprep.subr.mxu0 0.0
        %6192 = vmatpush1.msra.mxu0 %v6100
        %6193 = vmatprep.subr.mxu0 0.0
        %6194 = vmatpush1.msra.mxu0 %v6101
        %6195 = vmatprep.subr.mxu0 0.0
        %6196 = vmatpush1.msra.mxu0 %v6102
        %6197 = vmatprep.subr.mxu0 0.0
        %6198 = vmatpush1.msra.mxu0 %v6103
        %6199 = vmatprep.subr.mxu0 0.0
        %6200 = vmatpush1.msra.mxu0 %v6104
        %6201 = vmatprep.mubr.f32.mxu0 %v419
        %6202 = vmatmul.mubr.f32.gmra.mrb[0].mxu0 %v418
        %v6203 = vpop.f32.mrb[0].mxu0
        %v6204 = vadd.f32 0.0, %v6203
        %v6205 = vpop.f32.mrb[0].mxu0
        %6206 = vmatprep.mubr.f32.mxu0 %v423
        %6207 = vmatmul.mubr.f32.gmra.mrb[0].mxu0 %v422
        %v6208 = vpop.f32.mrb[0].mxu0
        %v6209 = vadd.f32 0.0, %v6208
        %v6210 = vpop.f32.mrb[0].mxu0
        %6211 = vdwg.mxu0
        %6212 = vmatprep.subr.mxu0 0.0
        %6213 = vmatpush1.msra.mxu0 %v6105
        %6214 = vmatprep.subr.mxu0 0.0
        %6215 = vmatpush1.msra.mxu0 %v6106
        %6216 = vmatprep.subr.mxu0 0.0
        %6217 = vmatpush1.msra.mxu0 %v6107
        %6218 = vmatprep.subr.mxu0 0.0
        %6219 = vmatpush1.msra.mxu0 %v6108
        %6220 = vmatprep.subr.mxu0 0.0
        %6221 = vmatpush1.msra.mxu0 %v6109
        %6222 = vmatprep.subr.mxu0 0.0
        %6223 = vmatpush1.msra.mxu0 %v6110
        %6224 = vmatprep.subr.mxu0 0.0
        %6225 = vmatpush1.msra.mxu0 %v6111
        %6226 = vmatprep.subr.mxu0 0.0
        %6227 = vmatpush1.msra.mxu0 %v6112
        %6228 = vmatprep.subr.mxu0 0.0
        %6229 = vmatpush1.msra.mxu0 %v6113
        %6230 = vmatprep.subr.mxu0 0.0
        %6231 = vmatpush1.msra.mxu0 %v6114
        %6232 = vmatprep.subr.mxu0 0.0
        %6233 = vmatpush1.msra.mxu0 %v6115
        %6234 = vmatprep.subr.mxu0 0.0
        %6235 = vmatpush1.msra.mxu0 %v6116
        %6236 = vmatprep.subr.mxu0 0.0
        %6237 = vmatpush1.msra.mxu0 %v6117
        %6238 = vmatprep.subr.mxu0 0.0
        %6239 = vmatpush1.msra.mxu0 %v6118
        %6240 = vmatprep.subr.mxu0 0.0
        %6241 = vmatpush1.msra.mxu0 %v6119
        %6242 = vmatprep.subr.mxu0 0.0
        %6243 = vmatpush1.msra.mxu0 %v6120
        %6244 = vmatprep.subr.mxu0 0.0
        %6245 = vmatpush1.msra.mxu0 %v6121
        %6246 = vmatprep.subr.mxu0 0.0
        %6247 = vmatpush1.msra.mxu0 %v6122
        %6248 = vmatprep.subr.mxu0 0.0
        %6249 = vmatpush1.msra.mxu0 %v6123
        %6250 = vmatprep.subr.mxu0 0.0
        %6251 = vmatpush1.msra.mxu0 %v6124
        %6252 = vmatprep.subr.mxu0 0.0
        %6253 = vmatpush1.msra.mxu0 %v6125
        %6254 = vmatprep.subr.mxu0 0.0
        %6255 = vmatpush1.msra.mxu0 %v6126
        %6256 = vmatprep.subr.mxu0 0.0
        %6257 = vmatpush1.msra.mxu0 %v6127
        %6258 = vmatprep.subr.mxu0 0.0
        %6259 = vmatpush1.msra.mxu0 %v6128
        %6260 = vmatprep.subr.mxu0 0.0
        %6261 = vmatpush1.msra.mxu0 %v6129
        %6262 = vmatprep.subr.mxu0 0.0
        %6263 = vmatpush1.msra.mxu0 %v6130
        %6264 = vmatprep.subr.mxu0 0.0
        %6265 = vmatpush1.msra.mxu0 %v6131
        %6266 = vmatprep.subr.mxu0 0.0
        %6267 = vmatpush1.msra.mxu0 %v6132
        %6268 = vmatprep.subr.mxu0 0.0
        %6269 = vmatpush1.msra.mxu0 %v6133
        %6270 = vmatprep.subr.mxu0 0.0
        %6271 = vmatpush1.msra.mxu0 %v6134
        %6272 = vmatprep.subr.mxu0 0.0
        %6273 = vmatpush1.msra.mxu0 %v6135
        %6274 = vmatprep.subr.mxu0 0.0
        %6275 = vmatpush1.msra.mxu0 %v6136
        %6276 = vmatprep.mubr.f32.mxu0 %v421
        %6277 = vmatmul.mubr.f32.gmra.mrb[0].mxu0 %v420
        %v6278 = vpop.f32.mrb[0].mxu0
        %v6279 = vadd.f32 %v6204, %v6278
        %v6280 = vpop.f32.mrb[0].mxu0
        %6281 = vmatprep.mubr.f32.mxu0 %v425
        %6282 = vmatmul.mubr.f32.gmra.mrb[0].mxu0 %v424
        %v6283 = vpop.f32.mrb[0].mxu0
        %v6284 = vadd.f32 %v6209, %v6283
        %v6285 = vpop.f32.mrb[0].mxu0
        %6286 = vdwg.mxu0
        %v6288 = vsel %vm1072, %v5849, 0
        %v6291 = vsel %vm1072, %v5854, 0
        %v6294 = vsel %vm1072, %v6064, 0
        %v6297 = vsel %vm1072, %v6069, 0
        %6299 = vmatprep.subr.mxu0 0.0
        %6300 = vmatpush1.xpose.msra.mxu0 %v6294
        %6301 = vmatprep.subr.mxu0 0.0
        %6302 = vmatpush1.xpose.msra.mxu0 %v6297
        %6303 = vmatprep.subr.mxu0 0.0
        %6304 = vmatpush1.xpose.msra.mxu0 0.0
        %6305 = vmatprep.subr.mxu0 0.0
        %6306 = vmatpush1.xpose.msra.mxu0 0.0
        %6307 = vmatprep.subr.mxu0 0.0
        %6308 = vmatpush1.xpose.msra.mxu0 0.0
        %6309 = vmatprep.subr.mxu0 0.0
        %6310 = vmatpush1.xpose.msra.mxu0 0.0
        %6311 = vmatprep.subr.mxu0 0.0
        %6312 = vmatpush1.xpose.msra.mxu0 0.0
        %6313 = vmatprep.subr.mxu0 0.0
        %6314 = vmatpush1.xpose.msra.mxu0 0.0
        %6315 = vmatprep.subr.mxu0 0.0
        %6316 = vmatpush1.xpose.msra.mxu0 0.0
        %6317 = vmatprep.subr.mxu0 0.0
        %6318 = vmatpush1.xpose.msra.mxu0 0.0
        %6319 = vmatprep.subr.mxu0 0.0
        %6320 = vmatpush1.xpose.msra.mxu0 0.0
        %6321 = vmatprep.subr.mxu0 0.0
        %6322 = vmatpush1.xpose.msra.mxu0 0.0
        %6323 = vmatprep.subr.mxu0 0.0
        %6324 = vmatpush1.xpose.msra.mxu0 0.0
        %6325 = vmatprep.subr.mxu0 0.0
        %6326 = vmatpush1.xpose.msra.mxu0 0.0
        %6327 = vmatprep.subr.mxu0 0.0
        %6328 = vmatpush1.xpose.msra.mxu0 0.0
        %6329 = vmatprep.subr.mxu0 0.0
        %6330 = vmatpush1.xpose.msra.mxu0 0.0
        %6331 = vmatprep.subr.mxu0 0.0
        %6332 = vmatpush1.xpose.msra.mxu0 0.0
        %6333 = vmatprep.subr.mxu0 0.0
        %6334 = vmatpush1.xpose.msra.mxu0 0.0
        %6335 = vmatprep.subr.mxu0 0.0
        %6336 = vmatpush1.xpose.msra.mxu0 0.0
        %6337 = vmatprep.subr.mxu0 0.0
        %6338 = vmatpush1.xpose.msra.mxu0 0.0
        %6339 = vmatprep.subr.mxu0 0.0
        %6340 = vmatpush1.xpose.msra.mxu0 0.0
        %6341 = vmatprep.subr.mxu0 0.0
        %6342 = vmatpush1.xpose.msra.mxu0 0.0
        %6343 = vmatprep.subr.mxu0 0.0
        %6344 = vmatpush1.xpose.msra.mxu0 0.0
        %6345 = vmatprep.subr.mxu0 0.0
        %6346 = vmatpush1.xpose.msra.mxu0 0.0
        %6347 = vmatprep.subr.mxu0 0.0
        %6348 = vmatpush1.xpose.msra.mxu0 0.0
        %6349 = vmatprep.subr.mxu0 0.0
        %6350 = vmatpush1.xpose.msra.mxu0 0.0
        %6351 = vmatprep.subr.mxu0 0.0
        %6352 = vmatpush1.xpose.msra.mxu0 0.0
        %6353 = vmatprep.subr.mxu0 0.0
        %6354 = vmatpush1.xpose.msra.mxu0 0.0
        %6355 = vmatprep.subr.mxu0 0.0
        %6356 = vmatpush1.xpose.msra.mxu0 0.0
        %6357 = vmatprep.subr.mxu0 0.0
        %6358 = vmatpush1.xpose.msra.mxu0 0.0
        %6359 = vmatprep.subr.mxu0 0.0
        %6360 = vmatpush1.xpose.msra.mxu0 0.0
        %6361 = vmatprep.subr.mxu0 0.0
        %6362 = vmatpush1.xpose.msra.mxu0 0.0
        %6363 = vmatprep.mubr.f32.mxu0 0.0
        %6364 = vmatmul.mubr.f32.gmra.mrb[0].mxu0 %v6288
        %v6365 = vpop.f32.mrb[0].mxu0
        %v6366 = vadd.f32 0.0, %v6365
        %v6367 = vpop.f32.mrb[0].mxu0
        %6368 = vmatprep.mubr.f32.mxu0 0.0
        %6369 = vmatmul.mubr.f32.gmra.mrb[0].mxu0 %v6291
        %v6370 = vpop.f32.mrb[0].mxu0
        %v6371 = vadd.f32 0.0, %v6370
        %v6372 = vpop.f32.mrb[0].mxu0
        %6373 = vdwg.mxu0
        %v6374 = vmul.f32 %v6366, 0.125
        %v6375 = vmul.f32 %v6371, 0.125
        %v6376 = vsel %vm428, -1e+09, %v6374
        %v6377 = vsel %vm429, -1e+09, %v6375
        %v6378 = vsel %vm1164, %v6376, -inf
        %6379 = vmax.xlane.f32.xlu0 %v6378
        %v6380 = vpop.xlane.xlu0 %6379
        %v6381 = vsel %vm1164, %v6377, -inf
        %6382 = vmax.xlane.f32.xlu0 %v6381
        %v6383 = vpop.xlane.xlu0 %6382
        %v6384 = vsub.f32 %v6376, %v6380
        %v6385 = vsub.f32 %v6377, %v6383
        %v6386 = vmul.f32 %v6384, 1.442695
        %v6387 = vpow.pop %v6386
        %v6388 = vmul.f32 %v6385, 1.442695
        %v6389 = vpow.pop %v6388
        %v6390 = vsel %vm1164, %v6387, 0.0
        %6391 = vadd.xlane.f32.xlu0 %v6390
        %v6392 = vpop.xlane.xlu0 %6391
        %v6393 = vsel %vm1164, %v6389, 0.0
        %6394 = vadd.xlane.f32.xlu0 %v6393
        %v6395 = vpop.xlane.xlu0 %6394
        %v6396 = vrcp.pop %v6392
        %v6397 = vmul.f32 %v6387, %v6396
        %v6398 = vrcp.pop %v6395
        %v6399 = vmul.f32 %v6389, %v6398
        %s6400 = scalar_lea.vmem %s381, 80 [#allocation4]
        %6401 = vst.msk [vmem:[%s6400] sm:$0xff] %vm1164, %v6397
        %6402 = vst.msk [vmem:[%s6400 + $0x8] sm:$0xff] %vm1164, %v6399
        %v6404 = vsel %vm1164, %v6397, 0
        %v6407 = vsel %vm1164, %v6399, 0
        %6409 = vmatprep.subr.mxu0 0.0
        %6410 = vmatpush1.msra.mxu0 %v6279
        %6411 = vmatprep.subr.mxu0 0.0
        %6412 = vmatpush1.msra.mxu0 %v6284
        %6413 = vmatprep.subr.mxu0 0.0
        %6414 = vmatpush1.msra.mxu0 0.0
        %6415 = vmatprep.subr.mxu0 0.0
        %6416 = vmatpush1.msra.mxu0 0.0
        %6417 = vmatprep.subr.mxu0 0.0
        %6418 = vmatpush1.msra.mxu0 0.0
        %6419 = vmatprep.subr.mxu0 0.0
        %6420 = vmatpush1.msra.mxu0 0.0
        %6421 = vmatprep.subr.mxu0 0.0
        %6422 = vmatpush1.msra.mxu0 0.0
        %6423 = vmatprep.subr.mxu0 0.0
        %6424 = vmatpush1.msra.mxu0 0.0
        %6425 = vmatprep.subr.mxu0 0.0
        %6426 = vmatpush1.msra.mxu0 0.0
        %6427 = vmatprep.subr.mxu0 0.0
        %6428 = vmatpush1.msra.mxu0 0.0
        %6429 = vmatprep.subr.mxu0 0.0
        %6430 = vmatpush1.msra.mxu0 0.0
        %6431 = vmatprep.subr.mxu0 0.0
        %6432 = vmatpush1.msra.mxu0 0.0
        %6433 = vmatprep.subr.mxu0 0.0
        %6434 = vmatpush1.msra.mxu0 0.0
        %6435 = vmatprep.subr.mxu0 0.0
        %6436 = vmatpush1.msra.mxu0 0.0
        %6437 = vmatprep.subr.mxu0 0.0
        %6438 = vmatpush1.msra.mxu0 0.0
        %6439 = vmatprep.subr.mxu0 0.0
        %6440 = vmatpush1.msra.mxu0 0.0
        %6441 = vmatprep.subr.mxu0 0.0
        %6442 = vmatpush1.msra.mxu0 0.0
        %6443 = vmatprep.subr.mxu0 0.0
        %6444 = vmatpush1.msra.mxu0 0.0
        %6445 = vmatprep.subr.mxu0 0.0
        %6446 = vmatpush1.msra.mxu0 0.0
        %6447 = vmatprep.subr.mxu0 0.0
        %6448 = vmatpush1.msra.mxu0 0.0
        %6449 = vmatprep.subr.mxu0 0.0
        %6450 = vmatpush1.msra.mxu0 0.0
        %6451 = vmatprep.subr.mxu0 0.0
        %6452 = vmatpush1.msra.mxu0 0.0
        %6453 = vmatprep.subr.mxu0 0.0
        %6454 = vmatpush1.msra.mxu0 0.0
        %6455 = vmatprep.subr.mxu0 0.0
        %6456 = vmatpush1.msra.mxu0 0.0
        %6457 = vmatprep.subr.mxu0 0.0
        %6458 = vmatpush1.msra.mxu0 0.0
        %6459 = vmatprep.subr.mxu0 0.0
        %6460 = vmatpush1.msra.mxu0 0.0
        %6461 = vmatprep.subr.mxu0 0.0
        %6462 = vmatpush1.msra.mxu0 0.0
        %6463 = vmatprep.subr.mxu0 0.0
        %6464 = vmatpush1.msra.mxu0 0.0
        %6465 = vmatprep.subr.mxu0 0.0
        %6466 = vmatpush1.msra.mxu0 0.0
        %6467 = vmatprep.subr.mxu0 0.0
        %6468 = vmatpush1.msra.mxu0 0.0
        %6469 = vmatprep.subr.mxu0 0.0
        %6470 = vmatpush1.msra.mxu0 0.0
        %6471 = vmatprep.subr.mxu0 0.0
        %6472 = vmatpush1.msra.mxu0 0.0
        %6473 = vmatprep.mubr.f32.mxu0 0.0
        %6474 = vmatmul.mubr.f32.gmra.mrb[0].mxu0 %v6404
        %v6475 = vpop.f32.mrb[0].mxu0
        %v6476 = vadd.f32 0.0, %v6475
        %v6477 = vpop.f32.mrb[0].mxu0
        %6478 = vmatprep.mubr.f32.mxu0 0.0
        %6479 = vmatmul.mubr.f32.gmra.mrb[0].mxu0 %v6407
        %v6480 = vpop.f32.mrb[0].mxu0
        %v6481 = vadd.f32 0.0, %v6480
        %v6482 = vpop.f32.mrb[0].mxu0
        %6483 = vdwg.mxu0
        %s6484 = scalar_lea.vmem %s7, 1280
        %v6485 = vld [vmem:[%s6484] sm:$0xff]
        %v6486 = vld [vmem:[%s6484 + $0x8] sm:$0xff]
        %v6487 = vld [vmem:[%s6484 + $0x10] sm:$0xff]
        %v6488 = vld [vmem:[%s6484 + $0x18] sm:$0xff]
        %v6489 = vld [vmem:[%s6484 + $0x20] sm:$0xff]
        %v6490 = vld [vmem:[%s6484 + $0x28] sm:$0xff]
        %v6491 = vld [vmem:[%s6484 + $0x30] sm:$0xff]
        %v6492 = vld [vmem:[%s6484 + $0x38] sm:$0xff]
        %v6493 = vld [vmem:[%s6484 + $0x40] sm:$0xff]
        %v6494 = vld [vmem:[%s6484 + $0x48] sm:$0xff]
        %v6495 = vld [vmem:[%s6484 + $0x50] sm:$0xff]
        %v6496 = vld [vmem:[%s6484 + $0x58] sm:$0xff]
        %v6497 = vld [vmem:[%s6484 + $0x60] sm:$0xff]
        %v6498 = vld [vmem:[%s6484 + $0x68] sm:$0xff]
        %v6499 = vld [vmem:[%s6484 + $0x70] sm:$0xff]
        %v6500 = vld [vmem:[%s6484 + $0x78] sm:$0xff]
        %v6501 = vld [vmem:[%s6484 + $0x80] sm:$0xff]
        %v6502 = vld [vmem:[%s6484 + $0x88] sm:$0xff]
        %v6503 = vld [vmem:[%s6484 + $0x90] sm:$0xff]
        %v6504 = vld [vmem:[%s6484 + $0x98] sm:$0xff]
        %v6505 = vld [vmem:[%s6484 + $0xa0] sm:$0xff]
        %v6506 = vld [vmem:[%s6484 + $0xa8] sm:$0xff]
        %v6507 = vld [vmem:[%s6484 + $0xb0] sm:$0xff]
        %v6508 = vld [vmem:[%s6484 + $0xb8] sm:$0xff]
        %v6509 = vld [vmem:[%s6484 + $0xc0] sm:$0xff]
        %v6510 = vld [vmem:[%s6484 + $0xc8] sm:$0xff]
        %v6511 = vld [vmem:[%s6484 + $0xd0] sm:$0xff]
        %v6512 = vld [vmem:[%s6484 + $0xd8] sm:$0xff]
        %v6513 = vld [vmem:[%s6484 + $0xe0] sm:$0xff]
        %v6514 = vld [vmem:[%s6484 + $0xe8] sm:$0xff]
        %v6515 = vld [vmem:[%s6484 + $0xf0] sm:$0xff]
        %v6516 = vld [vmem:[%s6484 + $0xf8] sm:$0xff]
        %v6518 = vsel %vm1072, %v6476, 0
        %v6521 = vsel %vm1072, %v6481, 0
        %6523 = vmatprep.subr.mxu0 %v6486
        %6524 = vmatpush1.msra.mxu0 %v6485
        %6525 = vmatprep.subr.mxu0 %v6490
        %6526 = vmatpush1.msra.mxu0 %v6489
        %6527 = vmatprep.subr.mxu0 %v6494
        %6528 = vmatpush1.msra.mxu0 %v6493
        %6529 = vmatprep.subr.mxu0 %v6498
        %6530 = vmatpush1.msra.mxu0 %v6497
        %6531 = vmatprep.subr.mxu0 %v6502
        %6532 = vmatpush1.msra.mxu0 %v6501
        %6533 = vmatprep.subr.mxu0 %v6506
        %6534 = vmatpush1.msra.mxu0 %v6505
        %6535 = vmatprep.subr.mxu0 %v6510
        %6536 = vmatpush1.msra.mxu0 %v6509
        %6537 = vmatprep.subr.mxu0 %v6514
        %6538 = vmatpush1.msra.mxu0 %v6513
        %6539 = vmatprep.subr.mxu0 0.0
        %6540 = vmatpush1.msra.mxu0 0.0
        %6541 = vmatprep.subr.mxu0 0.0
        %6542 = vmatpush1.msra.mxu0 0.0
        %6543 = vmatprep.subr.mxu0 0.0
        %6544 = vmatpush1.msra.mxu0 0.0
        %6545 = vmatprep.subr.mxu0 0.0
        %6546 = vmatpush1.msra.mxu0 0.0
        %6547 = vmatprep.subr.mxu0 0.0
        %6548 = vmatpush1.msra.mxu0 0.0
        %6549 = vmatprep.subr.mxu0 0.0
        %6550 = vmatpush1.msra.mxu0 0.0
        %6551 = vmatprep.subr.mxu0 0.0
        %6552 = vmatpush1.msra.mxu0 0.0
        %6553 = vmatprep.subr.mxu0 0.0
        %6554 = vmatpush1.msra.mxu0 0.0
        %6555 = vmatprep.subr.mxu0 0.0
        %6556 = vmatpush1.msra.mxu0 0.0
        %6557 = vmatprep.subr.mxu0 0.0
        %6558 = vmatpush1.msra.mxu0 0.0
        %6559 = vmatprep.subr.mxu0 0.0
        %6560 = vmatpush1.msra.mxu0 0.0
        %6561 = vmatprep.subr.mxu0 0.0
        %6562 = vmatpush1.msra.mxu0 0.0
        %6563 = vmatprep.subr.mxu0 0.0
        %6564 = vmatpush1.msra.mxu0 0.0
        %6565 = vmatprep.subr.mxu0 0.0
        %6566 = vmatpush1.msra.mxu0 0.0
        %6567 = vmatprep.subr.mxu0 0.0
        %6568 = vmatpush1.msra.mxu0 0.0
        %6569 = vmatprep.subr.mxu0 0.0
        %6570 = vmatpush1.msra.mxu0 0.0
        %6571 = vmatprep.subr.mxu0 0.0
        %6572 = vmatpush1.msra.mxu0 0.0
        %6573 = vmatprep.subr.mxu0 0.0
        %6574 = vmatpush1.msra.mxu0 0.0
        %6575 = vmatprep.subr.mxu0 0.0
        %6576 = vmatpush1.msra.mxu0 0.0
        %6577 = vmatprep.subr.mxu0 0.0
        %6578 = vmatpush1.msra.mxu0 0.0
        %6579 = vmatprep.subr.mxu0 0.0
        %6580 = vmatpush1.msra.mxu0 0.0
        %6581 = vmatprep.subr.mxu0 0.0
        %6582 = vmatpush1.msra.mxu0 0.0
        %6583 = vmatprep.subr.mxu0 0.0
        %6584 = vmatpush1.msra.mxu0 0.0
        %6585 = vmatprep.subr.mxu0 0.0
        %6586 = vmatpush1.msra.mxu0 0.0
        %6587 = vmatprep.mubr.f32.mxu0 0.0
        %6588 = vmatmul.mubr.f32.gmra.mrb[0].mxu0 %v6518
        %v6589 = vpop.f32.mrb[0].mxu0
        %v6590 = vadd.f32 0.0, %v6589
        %v6591 = vpop.f32.mrb[0].mxu0
        %v6592 = vadd.f32 0.0, %v6591
        %6593 = vmatprep.mubr.f32.mxu0 0.0
        %6594 = vmatmul.mubr.f32.gmra.mrb[0].mxu0 %v6521
        %v6595 = vpop.f32.mrb[0].mxu0
        %v6596 = vadd.f32 0.0, %v6595
        %v6597 = vpop.f32.mrb[0].mxu0
        %v6598 = vadd.f32 0.0, %v6597
        %6599 = vdwg.mxu0
        %6600 = vmatprep.subr.mxu0 %v6488
        %6601 = vmatpush1.msra.mxu0 %v6487
        %6602 = vmatprep.subr.mxu0 %v6492
        %6603 = vmatpush1.msra.mxu0 %v6491
        %6604 = vmatprep.subr.mxu0 %v6496
        %6605 = vmatpush1.msra.mxu0 %v6495
        %6606 = vmatprep.subr.mxu0 %v6500
        %6607 = vmatpush1.msra.mxu0 %v6499
        %6608 = vmatprep.subr.mxu0 %v6504
        %6609 = vmatpush1.msra.mxu0 %v6503
        %6610 = vmatprep.subr.mxu0 %v6508
        %6611 = vmatpush1.msra.mxu0 %v6507
        %6612 = vmatprep.subr.mxu0 %v6512
        %6613 = vmatpush1.msra.mxu0 %v6511
        %6614 = vmatprep.subr.mxu0 %v6516
        %6615 = vmatpush1.msra.mxu0 %v6515
        %6616 = vmatprep.subr.mxu0 0.0
        %6617 = vmatpush1.msra.mxu0 0.0
        %6618 = vmatprep.subr.mxu0 0.0
        %6619 = vmatpush1.msra.mxu0 0.0
        %6620 = vmatprep.subr.mxu0 0.0
        %6621 = vmatpush1.msra.mxu0 0.0
        %6622 = vmatprep.subr.mxu0 0.0
        %6623 = vmatpush1.msra.mxu0 0.0
        %6624 = vmatprep.subr.mxu0 0.0
        %6625 = vmatpush1.msra.mxu0 0.0
        %6626 = vmatprep.subr.mxu0 0.0
        %6627 = vmatpush1.msra.mxu0 0.0
        %6628 = vmatprep.subr.mxu0 0.0
        %6629 = vmatpush1.msra.mxu0 0.0
        %6630 = vmatprep.subr.mxu0 0.0
        %6631 = vmatpush1.msra.mxu0 0.0
        %6632 = vmatprep.subr.mxu0 0.0
        %6633 = vmatpush1.msra.mxu0 0.0
        %6634 = vmatprep.subr.mxu0 0.0
        %6635 = vmatpush1.msra.mxu0 0.0
        %6636 = vmatprep.subr.mxu0 0.0
        %6637 = vmatpush1.msra.mxu0 0.0
        %6638 = vmatprep.subr.mxu0 0.0
        %6639 = vmatpush1.msra.mxu0 0.0
        %6640 = vmatprep.subr.mxu0 0.0
        %6641 = vmatpush1.msra.mxu0 0.0
        %6642 = vmatprep.subr.mxu0 0.0
        %6643 = vmatpush1.msra.mxu0 0.0
        %6644 = vmatprep.subr.mxu0 0.0
        %6645 = vmatpush1.msra.mxu0 0.0
        %6646 = vmatprep.subr.mxu0 0.0
        %6647 = vmatpush1.msra.mxu0 0.0
        %6648 = vmatprep.subr.mxu0 0.0
        %6649 = vmatpush1.msra.mxu0 0.0
        %6650 = vmatprep.subr.mxu0 0.0
        %6651 = vmatpush1.msra.mxu0 0.0
        %6652 = vmatprep.subr.mxu0 0.0
        %6653 = vmatpush1.msra.mxu0 0.0
        %6654 = vmatprep.subr.mxu0 0.0
        %6655 = vmatpush1.msra.mxu0 0.0
        %6656 = vmatprep.subr.mxu0 0.0
        %6657 = vmatpush1.msra.mxu0 0.0
        %6658 = vmatprep.subr.mxu0 0.0
        %6659 = vmatpush1.msra.mxu0 0.0
        %6660 = vmatprep.subr.mxu0 0.0
        %6661 = vmatpush1.msra.mxu0 0.0
        %6662 = vmatprep.subr.mxu0 0.0
        %6663 = vmatpush1.msra.mxu0 0.0
        %6664 = vmatprep.mubr.f32.mxu0 0.0
        %6665 = vmatmul.mubr.f32.gmra.mrb[0].mxu0 %v6518
        %v6666 = vpop.f32.mrb[0].mxu0
        %v6667 = vadd.f32 0.0, %v6666
        %v6668 = vpop.f32.mrb[0].mxu0
        %v6669 = vadd.f32 0.0, %v6668
        %6670 = vmatprep.mubr.f32.mxu0 0.0
        %6671 = vmatmul.mubr.f32.gmra.mrb[0].mxu0 %v6521
        %v6672 = vpop.f32.mrb[0].mxu0
        %v6673 = vadd.f32 0.0, %v6672
        %v6674 = vpop.f32.mrb[0].mxu0
        %v6675 = vadd.f32 0.0, %v6674
        %6676 = vdwg.mxu0
        %v6677 = vadd.f32 %v5634, %v6590
        %v6678 = vadd.f32 %v5635, %v6592
        %v6679 = vadd.f32 %v5636, %v6667
        %v6680 = vadd.f32 %v5637, %v6669
        %v6681 = vadd.f32 %v5638, %v6596
        %v6682 = vadd.f32 %v5639, %v6598
        %v6683 = vadd.f32 %v5640, %v6673
        %v6684 = vadd.f32 %v5641, %v6675
        %s6685 = scalar_lea.vmem %s4, 3072
        %v6686 = vld [vmem:[%s6685] sm:$0xff]
        %v6687 = vld [vmem:[%s6685 + $0x8] sm:$0xff]
        %v6688 = vld [vmem:[%s6685 + $0x10] sm:$0xff]
        %v6689 = vld [vmem:[%s6685 + $0x18] sm:$0xff]
        %v6690 = vld [vmem:[%s6685 + $0x20] sm:$0xff]
        %v6691 = vld [vmem:[%s6685 + $0x28] sm:$0xff]
        %v6692 = vld [vmem:[%s6685 + $0x30] sm:$0xff]
        %v6693 = vld [vmem:[%s6685 + $0x38] sm:$0xff]
        %v6694 = vld [vmem:[%s6685 + $0x40] sm:$0xff]
        %v6695 = vld [vmem:[%s6685 + $0x48] sm:$0xff]
        %v6696 = vld [vmem:[%s6685 + $0x50] sm:$0xff]
        %v6697 = vld [vmem:[%s6685 + $0x58] sm:$0xff]
        %v6698 = vld [vmem:[%s6685 + $0x60] sm:$0xff]
        %v6699 = vld [vmem:[%s6685 + $0x68] sm:$0xff]
        %v6700 = vld [vmem:[%s6685 + $0x70] sm:$0xff]
        %v6701 = vld [vmem:[%s6685 + $0x78] sm:$0xff]
        %v6702 = vld [vmem:[%s6685 + $0x80] sm:$0xff]
        %v6703 = vld [vmem:[%s6685 + $0x88] sm:$0xff]
        %v6704 = vld [vmem:[%s6685 + $0x90] sm:$0xff]
        %v6705 = vld [vmem:[%s6685 + $0x98] sm:$0xff]
        %v6706 = vld [vmem:[%s6685 + $0xa0] sm:$0xff]
        %v6707 = vld [vmem:[%s6685 + $0xa8] sm:$0xff]
        %v6708 = vld [vmem:[%s6685 + $0xb0] sm:$0xff]
        %v6709 = vld [vmem:[%s6685 + $0xb8] sm:$0xff]
        %v6710 = vld [vmem:[%s6685 + $0xc0] sm:$0xff]
        %v6711 = vld [vmem:[%s6685 + $0xc8] sm:$0xff]
        %v6712 = vld [vmem:[%s6685 + $0xd0] sm:$0xff]
        %v6713 = vld [vmem:[%s6685 + $0xd8] sm:$0xff]
        %v6714 = vld [vmem:[%s6685 + $0xe0] sm:$0xff]
        %v6715 = vld [vmem:[%s6685 + $0xe8] sm:$0xff]
        %v6716 = vld [vmem:[%s6685 + $0xf0] sm:$0xff]
        %v6717 = vld [vmem:[%s6685 + $0xf8] sm:$0xff]
        %v6718 = vld [vmem:[%s6685 + $0x100] sm:$0xff]
        %v6719 = vld [vmem:[%s6685 + $0x108] sm:$0xff]
        %v6720 = vld [vmem:[%s6685 + $0x110] sm:$0xff]
        %v6721 = vld [vmem:[%s6685 + $0x118] sm:$0xff]
        %v6722 = vld [vmem:[%s6685 + $0x120] sm:$0xff]
        %v6723 = vld [vmem:[%s6685 + $0x128] sm:$0xff]
        %v6724 = vld [vmem:[%s6685 + $0x130] sm:$0xff]
        %v6725 = vld [vmem:[%s6685 + $0x138] sm:$0xff]
        %v6726 = vld [vmem:[%s6685 + $0x140] sm:$0xff]
        %v6727 = vld [vmem:[%s6685 + $0x148] sm:$0xff]
        %v6728 = vld [vmem:[%s6685 + $0x150] sm:$0xff]
        %v6729 = vld [vmem:[%s6685 + $0x158] sm:$0xff]
        %v6730 = vld [vmem:[%s6685 + $0x160] sm:$0xff]
        %v6731 = vld [vmem:[%s6685 + $0x168] sm:$0xff]
        %v6732 = vld [vmem:[%s6685 + $0x170] sm:$0xff]
        %v6733 = vld [vmem:[%s6685 + $0x178] sm:$0xff]
        %v6734 = vld [vmem:[%s6685 + $0x180] sm:$0xff]
        %v6735 = vld [vmem:[%s6685 + $0x188] sm:$0xff]
        %v6736 = vld [vmem:[%s6685 + $0x190] sm:$0xff]
        %v6737 = vld [vmem:[%s6685 + $0x198] sm:$0xff]
        %v6738 = vld [vmem:[%s6685 + $0x1a0] sm:$0xff]
        %v6739 = vld [vmem:[%s6685 + $0x1a8] sm:$0xff]
        %v6740 = vld [vmem:[%s6685 + $0x1b0] sm:$0xff]
        %v6741 = vld [vmem:[%s6685 + $0x1b8] sm:$0xff]
        %v6742 = vld [vmem:[%s6685 + $0x1c0] sm:$0xff]
        %v6743 = vld [vmem:[%s6685 + $0x1c8] sm:$0xff]
        %v6744 = vld [vmem:[%s6685 + $0x1d0] sm:$0xff]
        %v6745 = vld [vmem:[%s6685 + $0x1d8] sm:$0xff]
        %v6746 = vld [vmem:[%s6685 + $0x1e0] sm:$0xff]
        %v6747 = vld [vmem:[%s6685 + $0x1e8] sm:$0xff]
        %v6748 = vld [vmem:[%s6685 + $0x1f0] sm:$0xff]
        %v6749 = vld [vmem:[%s6685 + $0x1f8] sm:$0xff]
        %6750 = vmatprep.subr.mxu0 0.0
        %6751 = vmatpush1.msra.mxu0 %v6686
        %6752 = vmatprep.subr.mxu0 0.0
        %6753 = vmatpush1.msra.mxu0 %v6687
        %6754 = vmatprep.subr.mxu0 0.0
        %6755 = vmatpush1.msra.mxu0 %v6688
        %6756 = vmatprep.subr.mxu0 0.0
        %6757 = vmatpush1.msra.mxu0 %v6689
        %6758 = vmatprep.subr.mxu0 0.0
        %6759 = vmatpush1.msra.mxu0 %v6690
        %6760 = vmatprep.subr.mxu0 0.0
        %6761 = vmatpush1.msra.mxu0 %v6691
        %6762 = vmatprep.subr.mxu0 0.0
        %6763 = vmatpush1.msra.mxu0 %v6692
        %6764 = vmatprep.subr.mxu0 0.0
        %6765 = vmatpush1.msra.mxu0 %v6693
        %6766 = vmatprep.subr.mxu0 0.0
        %6767 = vmatpush1.msra.mxu0 %v6694
        %6768 = vmatprep.subr.mxu0 0.0
        %6769 = vmatpush1.msra.mxu0 %v6695
        %6770 = vmatprep.subr.mxu0 0.0
        %6771 = vmatpush1.msra.mxu0 %v6696
        %6772 = vmatprep.subr.mxu0 0.0
        %6773 = vmatpush1.msra.mxu0 %v6697
        %6774 = vmatprep.subr.mxu0 0.0
        %6775 = vmatpush1.msra.mxu0 %v6698
        %6776 = vmatprep.subr.mxu0 0.0
        %6777 = vmatpush1.msra.mxu0 %v6699
        %6778 = vmatprep.subr.mxu0 0.0
        %6779 = vmatpush1.msra.mxu0 %v6700
        %6780 = vmatprep.subr.mxu0 0.0
        %6781 = vmatpush1.msra.mxu0 %v6701
        %6782 = vmatprep.subr.mxu0 0.0
        %6783 = vmatpush1.msra.mxu0 %v6702
        %6784 = vmatprep.subr.mxu0 0.0
        %6785 = vmatpush1.msra.mxu0 %v6703
        %6786 = vmatprep.subr.mxu0 0.0
        %6787 = vmatpush1.msra.mxu0 %v6704
        %6788 = vmatprep.subr.mxu0 0.0
        %6789 = vmatpush1.msra.mxu0 %v6705
        %6790 = vmatprep.subr.mxu0 0.0
        %6791 = vmatpush1.msra.mxu0 %v6706
        %6792 = vmatprep.subr.mxu0 0.0
        %6793 = vmatpush1.msra.mxu0 %v6707
        %6794 = vmatprep.subr.mxu0 0.0
        %6795 = vmatpush1.msra.mxu0 %v6708
        %6796 = vmatprep.subr.mxu0 0.0
        %6797 = vmatpush1.msra.mxu0 %v6709
        %6798 = vmatprep.subr.mxu0 0.0
        %6799 = vmatpush1.msra.mxu0 %v6710
        %6800 = vmatprep.subr.mxu0 0.0
        %6801 = vmatpush1.msra.mxu0 %v6711
        %6802 = vmatprep.subr.mxu0 0.0
        %6803 = vmatpush1.msra.mxu0 %v6712
        %6804 = vmatprep.subr.mxu0 0.0
        %6805 = vmatpush1.msra.mxu0 %v6713
        %6806 = vmatprep.subr.mxu0 0.0
        %6807 = vmatpush1.msra.mxu0 %v6714
        %6808 = vmatprep.subr.mxu0 0.0
        %6809 = vmatpush1.msra.mxu0 %v6715
        %6810 = vmatprep.subr.mxu0 0.0
        %6811 = vmatpush1.msra.mxu0 %v6716
        %6812 = vmatprep.subr.mxu0 0.0
        %6813 = vmatpush1.msra.mxu0 %v6717
        %6814 = vmatprep.mubr.f32.mxu0 %v403
        %6815 = vmatmul.mubr.f32.gmra.mrb[0].mxu0 %v402
        %v6816 = vpop.f32.mrb[0].mxu0
        %v6817 = vadd.f32 0.0, %v6816
        %v6818 = vpop.f32.mrb[0].mxu0
        %6819 = vmatprep.mubr.f32.mxu0 %v407
        %6820 = vmatmul.mubr.f32.gmra.mrb[0].mxu0 %v406
        %v6821 = vpop.f32.mrb[0].mxu0
        %v6822 = vadd.f32 0.0, %v6821
        %v6823 = vpop.f32.mrb[0].mxu0
        %6824 = vdwg.mxu0
        %6825 = vmatprep.subr.mxu0 0.0
        %6826 = vmatpush1.msra.mxu0 %v6718
        %6827 = vmatprep.subr.mxu0 0.0
        %6828 = vmatpush1.msra.mxu0 %v6719
        %6829 = vmatprep.subr.mxu0 0.0
        %6830 = vmatpush1.msra.mxu0 %v6720
        %6831 = vmatprep.subr.mxu0 0.0
        %6832 = vmatpush1.msra.mxu0 %v6721
        %6833 = vmatprep.subr.mxu0 0.0
        %6834 = vmatpush1.msra.mxu0 %v6722
        %6835 = vmatprep.subr.mxu0 0.0
        %6836 = vmatpush1.msra.mxu0 %v6723
        %6837 = vmatprep.subr.mxu0 0.0
        %6838 = vmatpush1.msra.mxu0 %v6724
        %6839 = vmatprep.subr.mxu0 0.0
        %6840 = vmatpush1.msra.mxu0 %v6725
        %6841 = vmatprep.subr.mxu0 0.0
        %6842 = vmatpush1.msra.mxu0 %v6726
        %6843 = vmatprep.subr.mxu0 0.0
        %6844 = vmatpush1.msra.mxu0 %v6727
        %6845 = vmatprep.subr.mxu0 0.0
        %6846 = vmatpush1.msra.mxu0 %v6728
        %6847 = vmatprep.subr.mxu0 0.0
        %6848 = vmatpush1.msra.mxu0 %v6729
        %6849 = vmatprep.subr.mxu0 0.0
        %6850 = vmatpush1.msra.mxu0 %v6730
        %6851 = vmatprep.subr.mxu0 0.0
        %6852 = vmatpush1.msra.mxu0 %v6731
        %6853 = vmatprep.subr.mxu0 0.0
        %6854 = vmatpush1.msra.mxu0 %v6732
        %6855 = vmatprep.subr.mxu0 0.0
        %6856 = vmatpush1.msra.mxu0 %v6733
        %6857 = vmatprep.subr.mxu0 0.0
        %6858 = vmatpush1.msra.mxu0 %v6734
        %6859 = vmatprep.subr.mxu0 0.0
        %6860 = vmatpush1.msra.mxu0 %v6735
        %6861 = vmatprep.subr.mxu0 0.0
        %6862 = vmatpush1.msra.mxu0 %v6736
        %6863 = vmatprep.subr.mxu0 0.0
        %6864 = vmatpush1.msra.mxu0 %v6737
        %6865 = vmatprep.subr.mxu0 0.0
        %6866 = vmatpush1.msra.mxu0 %v6738
        %6867 = vmatprep.subr.mxu0 0.0
        %6868 = vmatpush1.msra.mxu0 %v6739
        %6869 = vmatprep.subr.mxu0 0.0
        %6870 = vmatpush1.msra.mxu0 %v6740
        %6871 = vmatprep.subr.mxu0 0.0
        %6872 = vmatpush1.msra.mxu0 %v6741
        %6873 = vmatprep.subr.mxu0 0.0
        %6874 = vmatpush1.msra.mxu0 %v6742
        %6875 = vmatprep.subr.mxu0 0.0
        %6876 = vmatpush1.msra.mxu0 %v6743
        %6877 = vmatprep.subr.mxu0 0.0
        %6878 = vmatpush1.msra.mxu0 %v6744
        %6879 = vmatprep.subr.mxu0 0.0
        %6880 = vmatpush1.msra.mxu0 %v6745
        %6881 = vmatprep.subr.mxu0 0.0
        %6882 = vmatpush1.msra.mxu0 %v6746
        %6883 = vmatprep.subr.mxu0 0.0
        %6884 = vmatpush1.msra.mxu0 %v6747
        %6885 = vmatprep.subr.mxu0 0.0
        %6886 = vmatpush1.msra.mxu0 %v6748
        %6887 = vmatprep.subr.mxu0 0.0
        %6888 = vmatpush1.msra.mxu0 %v6749
        %6889 = vmatprep.mubr.f32.mxu0 %v405
        %6890 = vmatmul.mubr.f32.gmra.mrb[0].mxu0 %v404
        %v6891 = vpop.f32.mrb[0].mxu0
        %v6892 = vadd.f32 %v6817, %v6891
        %v6893 = vpop.f32.mrb[0].mxu0
        %6894 = vmatprep.mubr.f32.mxu0 %v409
        %6895 = vmatmul.mubr.f32.gmra.mrb[0].mxu0 %v408
        %v6896 = vpop.f32.mrb[0].mxu0
        %v6897 = vadd.f32 %v6822, %v6896
        %v6898 = vpop.f32.mrb[0].mxu0
        %6899 = vdwg.mxu0
        %s6900 = scalar_lea.vmem %s5, 3072
        %v6901 = vld [vmem:[%s6900] sm:$0xff]
        %v6902 = vld [vmem:[%s6900 + $0x8] sm:$0xff]
        %v6903 = vld [vmem:[%s6900 + $0x10] sm:$0xff]
        %v6904 = vld [vmem:[%s6900 + $0x18] sm:$0xff]
        %v6905 = vld [vmem:[%s6900 + $0x20] sm:$0xff]
        %v6906 = vld [vmem:[%s6900 + $0x28] sm:$0xff]
        %v6907 = vld [vmem:[%s6900 + $0x30] sm:$0xff]
        %v6908 = vld [vmem:[%s6900 + $0x38] sm:$0xff]
        %v6909 = vld [vmem:[%s6900 + $0x40] sm:$0xff]
        %v6910 = vld [vmem:[%s6900 + $0x48] sm:$0xff]
        %v6911 = vld [vmem:[%s6900 + $0x50] sm:$0xff]
        %v6912 = vld [vmem:[%s6900 + $0x58] sm:$0xff]
        %v6913 = vld [vmem:[%s6900 + $0x60] sm:$0xff]
        %v6914 = vld [vmem:[%s6900 + $0x68] sm:$0xff]
        %v6915 = vld [vmem:[%s6900 + $0x70] sm:$0xff]
        %v6916 = vld [vmem:[%s6900 + $0x78] sm:$0xff]
        %v6917 = vld [vmem:[%s6900 + $0x80] sm:$0xff]
        %v6918 = vld [vmem:[%s6900 + $0x88] sm:$0xff]
        %v6919 = vld [vmem:[%s6900 + $0x90] sm:$0xff]
        %v6920 = vld [vmem:[%s6900 + $0x98] sm:$0xff]
        %v6921 = vld [vmem:[%s6900 + $0xa0] sm:$0xff]
        %v6922 = vld [vmem:[%s6900 + $0xa8] sm:$0xff]
        %v6923 = vld [vmem:[%s6900 + $0xb0] sm:$0xff]
        %v6924 = vld [vmem:[%s6900 + $0xb8] sm:$0xff]
        %v6925 = vld [vmem:[%s6900 + $0xc0] sm:$0xff]
        %v6926 = vld [vmem:[%s6900 + $0xc8] sm:$0xff]
        %v6927 = vld [vmem:[%s6900 + $0xd0] sm:$0xff]
        %v6928 = vld [vmem:[%s6900 + $0xd8] sm:$0xff]
        %v6929 = vld [vmem:[%s6900 + $0xe0] sm:$0xff]
        %v6930 = vld [vmem:[%s6900 + $0xe8] sm:$0xff]
        %v6931 = vld [vmem:[%s6900 + $0xf0] sm:$0xff]
        %v6932 = vld [vmem:[%s6900 + $0xf8] sm:$0xff]
        %v6933 = vld [vmem:[%s6900 + $0x100] sm:$0xff]
        %v6934 = vld [vmem:[%s6900 + $0x108] sm:$0xff]
        %v6935 = vld [vmem:[%s6900 + $0x110] sm:$0xff]
        %v6936 = vld [vmem:[%s6900 + $0x118] sm:$0xff]
        %v6937 = vld [vmem:[%s6900 + $0x120] sm:$0xff]
        %v6938 = vld [vmem:[%s6900 + $0x128] sm:$0xff]
        %v6939 = vld [vmem:[%s6900 + $0x130] sm:$0xff]
        %v6940 = vld [vmem:[%s6900 + $0x138] sm:$0xff]
        %v6941 = vld [vmem:[%s6900 + $0x140] sm:$0xff]
        %v6942 = vld [vmem:[%s6900 + $0x148] sm:$0xff]
        %v6943 = vld [vmem:[%s6900 + $0x150] sm:$0xff]
        %v6944 = vld [vmem:[%s6900 + $0x158] sm:$0xff]
        %v6945 = vld [vmem:[%s6900 + $0x160] sm:$0xff]
        %v6946 = vld [vmem:[%s6900 + $0x168] sm:$0xff]
        %v6947 = vld [vmem:[%s6900 + $0x170] sm:$0xff]
        %v6948 = vld [vmem:[%s6900 + $0x178] sm:$0xff]
        %v6949 = vld [vmem:[%s6900 + $0x180] sm:$0xff]
        %v6950 = vld [vmem:[%s6900 + $0x188] sm:$0xff]
        %v6951 = vld [vmem:[%s6900 + $0x190] sm:$0xff]
        %v6952 = vld [vmem:[%s6900 + $0x198] sm:$0xff]
        %v6953 = vld [vmem:[%s6900 + $0x1a0] sm:$0xff]
        %v6954 = vld [vmem:[%s6900 + $0x1a8] sm:$0xff]
        %v6955 = vld [vmem:[%s6900 + $0x1b0] sm:$0xff]
        %v6956 = vld [vmem:[%s6900 + $0x1b8] sm:$0xff]
        %v6957 = vld [vmem:[%s6900 + $0x1c0] sm:$0xff]
        %v6958 = vld [vmem:[%s6900 + $0x1c8] sm:$0xff]
        %v6959 = vld [vmem:[%s6900 + $0x1d0] sm:$0xff]
        %v6960 = vld [vmem:[%s6900 + $0x1d8] sm:$0xff]
        %v6961 = vld [vmem:[%s6900 + $0x1e0] sm:$0xff]
        %v6962 = vld [vmem:[%s6900 + $0x1e8] sm:$0xff]
        %v6963 = vld [vmem:[%s6900 + $0x1f0] sm:$0xff]
        %v6964 = vld [vmem:[%s6900 + $0x1f8] sm:$0xff]
        %6965 = vmatprep.subr.mxu0 0.0
        %6966 = vmatpush1.msra.mxu0 %v6901
        %6967 = vmatprep.subr.mxu0 0.0
        %6968 = vmatpush1.msra.mxu0 %v6902
        %6969 = vmatprep.subr.mxu0 0.0
        %6970 = vmatpush1.msra.mxu0 %v6903
        %6971 = vmatprep.subr.mxu0 0.0
        %6972 = vmatpush1.msra.mxu0 %v6904
        %6973 = vmatprep.subr.mxu0 0.0
        %6974 = vmatpush1.msra.mxu0 %v6905
        %6975 = vmatprep.subr.mxu0 0.0
        %6976 = vmatpush1.msra.mxu0 %v6906
        %6977 = vmatprep.subr.mxu0 0.0
        %6978 = vmatpush1.msra.mxu0 %v6907
        %6979 = vmatprep.subr.mxu0 0.0
        %6980 = vmatpush1.msra.mxu0 %v6908
        %6981 = vmatprep.subr.mxu0 0.0
        %6982 = vmatpush1.msra.mxu0 %v6909
        %6983 = vmatprep.subr.mxu0 0.0
        %6984 = vmatpush1.msra.mxu0 %v6910
        %6985 = vmatprep.subr.mxu0 0.0
        %6986 = vmatpush1.msra.mxu0 %v6911
        %6987 = vmatprep.subr.mxu0 0.0
        %6988 = vmatpush1.msra.mxu0 %v6912
        %6989 = vmatprep.subr.mxu0 0.0
        %6990 = vmatpush1.msra.mxu0 %v6913
        %6991 = vmatprep.subr.mxu0 0.0
        %6992 = vmatpush1.msra.mxu0 %v6914
        %6993 = vmatprep.subr.mxu0 0.0
        %6994 = vmatpush1.msra.mxu0 %v6915
        %6995 = vmatprep.subr.mxu0 0.0
        %6996 = vmatpush1.msra.mxu0 %v6916
        %6997 = vmatprep.subr.mxu0 0.0
        %6998 = vmatpush1.msra.mxu0 %v6917
        %6999 = vmatprep.subr.mxu0 0.0
        %7000 = vmatpush1.msra.mxu0 %v6918
        %7001 = vmatprep.subr.mxu0 0.0
        %7002 = vmatpush1.msra.mxu0 %v6919
        %7003 = vmatprep.subr.mxu0 0.0
        %7004 = vmatpush1.msra.mxu0 %v6920
        %7005 = vmatprep.subr.mxu0 0.0
        %7006 = vmatpush1.msra.mxu0 %v6921
        %7007 = vmatprep.subr.mxu0 0.0
        %7008 = vmatpush1.msra.mxu0 %v6922
        %7009 = vmatprep.subr.mxu0 0.0
        %7010 = vmatpush1.msra.mxu0 %v6923
        %7011 = vmatprep.subr.mxu0 0.0
        %7012 = vmatpush1.msra.mxu0 %v6924
        %7013 = vmatprep.subr.mxu0 0.0
        %7014 = vmatpush1.msra.mxu0 %v6925
        %7015 = vmatprep.subr.mxu0 0.0
        %7016 = vmatpush1.msra.mxu0 %v6926
        %7017 = vmatprep.subr.mxu0 0.0
        %7018 = vmatpush1.msra.mxu0 %v6927
        %7019 = vmatprep.subr.mxu0 0.0
        %7020 = vmatpush1.msra.mxu0 %v6928
        %7021 = vmatprep.subr.mxu0 0.0
        %7022 = vmatpush1.msra.mxu0 %v6929
        %7023 = vmatprep.subr.mxu0 0.0
        %7024 = vmatpush1.msra.mxu0 %v6930
        %7025 = vmatprep.subr.mxu0 0.0
        %7026 = vmatpush1.msra.mxu0 %v6931
        %7027 = vmatprep.subr.mxu0 0.0
        %7028 = vmatpush1.msra.mxu0 %v6932
        %7029 = vmatprep.mubr.f32.mxu0 %v411
        %7030 = vmatmul.mubr.f32.gmra.mrb[0].mxu0 %v410
        %v7031 = vpop.f32.mrb[0].mxu0
        %v7032 = vadd.f32 0.0, %v7031
        %v7033 = vpop.f32.mrb[0].mxu0
        %7034 = vmatprep.mubr.f32.mxu0 %v415
        %7035 = vmatmul.mubr.f32.gmra.mrb[0].mxu0 %v414
        %v7036 = vpop.f32.mrb[0].mxu0
        %v7037 = vadd.f32 0.0, %v7036
        %v7038 = vpop.f32.mrb[0].mxu0
        %7039 = vdwg.mxu0
        %7040 = vmatprep.subr.mxu0 0.0
        %7041 = vmatpush1.msra.mxu0 %v6933
        %7042 = vmatprep.subr.mxu0 0.0
        %7043 = vmatpush1.msra.mxu0 %v6934
        %7044 = vmatprep.subr.mxu0 0.0
        %7045 = vmatpush1.msra.mxu0 %v6935
        %7046 = vmatprep.subr.mxu0 0.0
        %7047 = vmatpush1.msra.mxu0 %v6936
        %7048 = vmatprep.subr.mxu0 0.0
        %7049 = vmatpush1.msra.mxu0 %v6937
        %7050 = vmatprep.subr.mxu0 0.0
        %7051 = vmatpush1.msra.mxu0 %v6938
        %7052 = vmatprep.subr.mxu0 0.0
        %7053 = vmatpush1.msra.mxu0 %v6939
        %7054 = vmatprep.subr.mxu0 0.0
        %7055 = vmatpush1.msra.mxu0 %v6940
        %7056 = vmatprep.subr.mxu0 0.0
        %7057 = vmatpush1.msra.mxu0 %v6941
        %7058 = vmatprep.subr.mxu0 0.0
        %7059 = vmatpush1.msra.mxu0 %v6942
        %7060 = vmatprep.subr.mxu0 0.0
        %7061 = vmatpush1.msra.mxu0 %v6943
        %7062 = vmatprep.subr.mxu0 0.0
        %7063 = vmatpush1.msra.mxu0 %v6944
        %7064 = vmatprep.subr.mxu0 0.0
        %7065 = vmatpush1.msra.mxu0 %v6945
        %7066 = vmatprep.subr.mxu0 0.0
        %7067 = vmatpush1.msra.mxu0 %v6946
        %7068 = vmatprep.subr.mxu0 0.0
        %7069 = vmatpush1.msra.mxu0 %v6947
        %7070 = vmatprep.subr.mxu0 0.0
        %7071 = vmatpush1.msra.mxu0 %v6948
        %7072 = vmatprep.subr.mxu0 0.0
        %7073 = vmatpush1.msra.mxu0 %v6949
        %7074 = vmatprep.subr.mxu0 0.0
        %7075 = vmatpush1.msra.mxu0 %v6950
        %7076 = vmatprep.subr.mxu0 0.0
        %7077 = vmatpush1.msra.mxu0 %v6951
        %7078 = vmatprep.subr.mxu0 0.0
        %7079 = vmatpush1.msra.mxu0 %v6952
        %7080 = vmatprep.subr.mxu0 0.0
        %7081 = vmatpush1.msra.mxu0 %v6953
        %7082 = vmatprep.subr.mxu0 0.0
        %7083 = vmatpush1.msra.mxu0 %v6954
        %7084 = vmatprep.subr.mxu0 0.0
        %7085 = vmatpush1.msra.mxu0 %v6955
        %7086 = vmatprep.subr.mxu0 0.0
        %7087 = vmatpush1.msra.mxu0 %v6956
        %7088 = vmatprep.subr.mxu0 0.0
        %7089 = vmatpush1.msra.mxu0 %v6957
        %7090 = vmatprep.subr.mxu0 0.0
        %7091 = vmatpush1.msra.mxu0 %v6958
        %7092 = vmatprep.subr.mxu0 0.0
        %7093 = vmatpush1.msra.mxu0 %v6959
        %7094 = vmatprep.subr.mxu0 0.0
        %7095 = vmatpush1.msra.mxu0 %v6960
        %7096 = vmatprep.subr.mxu0 0.0
        %7097 = vmatpush1.msra.mxu0 %v6961
        %7098 = vmatprep.subr.mxu0 0.0
        %7099 = vmatpush1.msra.mxu0 %v6962
        %7100 = vmatprep.subr.mxu0 0.0
        %7101 = vmatpush1.msra.mxu0 %v6963
        %7102 = vmatprep.subr.mxu0 0.0
        %7103 = vmatpush1.msra.mxu0 %v6964
        %7104 = vmatprep.mubr.f32.mxu0 %v413
        %7105 = vmatmul.mubr.f32.gmra.mrb[0].mxu0 %v412
        %v7106 = vpop.f32.mrb[0].mxu0
        %v7107 = vadd.f32 %v7032, %v7106
        %v7108 = vpop.f32.mrb[0].mxu0
        %7109 = vmatprep.mubr.f32.mxu0 %v417
        %7110 = vmatmul.mubr.f32.gmra.mrb[0].mxu0 %v416
        %v7111 = vpop.f32.mrb[0].mxu0
        %v7112 = vadd.f32 %v7037, %v7111
        %v7113 = vpop.f32.mrb[0].mxu0
        %7114 = vdwg.mxu0
        %s7115 = scalar_lea.vmem %s6, 3072
        %v7116 = vld [vmem:[%s7115] sm:$0xff]
        %v7117 = vld [vmem:[%s7115 + $0x8] sm:$0xff]
        %v7118 = vld [vmem:[%s7115 + $0x10] sm:$0xff]
        %v7119 = vld [vmem:[%s7115 + $0x18] sm:$0xff]
        %v7120 = vld [vmem:[%s7115 + $0x20] sm:$0xff]
        %v7121 = vld [vmem:[%s7115 + $0x28] sm:$0xff]
        %v7122 = vld [vmem:[%s7115 + $0x30] sm:$0xff]
        %v7123 = vld [vmem:[%s7115 + $0x38] sm:$0xff]
        %v7124 = vld [vmem:[%s7115 + $0x40] sm:$0xff]
        %v7125 = vld [vmem:[%s7115 + $0x48] sm:$0xff]
        %v7126 = vld [vmem:[%s7115 + $0x50] sm:$0xff]
        %v7127 = vld [vmem:[%s7115 + $0x58] sm:$0xff]
        %v7128 = vld [vmem:[%s7115 + $0x60] sm:$0xff]
        %v7129 = vld [vmem:[%s7115 + $0x68] sm:$0xff]
        %v7130 = vld [vmem:[%s7115 + $0x70] sm:$0xff]
        %v7131 = vld [vmem:[%s7115 + $0x78] sm:$0xff]
        %v7132 = vld [vmem:[%s7115 + $0x80] sm:$0xff]
        %v7133 = vld [vmem:[%s7115 + $0x88] sm:$0xff]
        %v7134 = vld [vmem:[%s7115 + $0x90] sm:$0xff]
        %v7135 = vld [vmem:[%s7115 + $0x98] sm:$0xff]
        %v7136 = vld [vmem:[%s7115 + $0xa0] sm:$0xff]
        %v7137 = vld [vmem:[%s7115 + $0xa8] sm:$0xff]
        %v7138 = vld [vmem:[%s7115 + $0xb0] sm:$0xff]
        %v7139 = vld [vmem:[%s7115 + $0xb8] sm:$0xff]
        %v7140 = vld [vmem:[%s7115 + $0xc0] sm:$0xff]
        %v7141 = vld [vmem:[%s7115 + $0xc8] sm:$0xff]
        %v7142 = vld [vmem:[%s7115 + $0xd0] sm:$0xff]
        %v7143 = vld [vmem:[%s7115 + $0xd8] sm:$0xff]
        %v7144 = vld [vmem:[%s7115 + $0xe0] sm:$0xff]
        %v7145 = vld [vmem:[%s7115 + $0xe8] sm:$0xff]
        %v7146 = vld [vmem:[%s7115 + $0xf0] sm:$0xff]
        %v7147 = vld [vmem:[%s7115 + $0xf8] sm:$0xff]
        %v7148 = vld [vmem:[%s7115 + $0x100] sm:$0xff]
        %v7149 = vld [vmem:[%s7115 + $0x108] sm:$0xff]
        %v7150 = vld [vmem:[%s7115 + $0x110] sm:$0xff]
        %v7151 = vld [vmem:[%s7115 + $0x118] sm:$0xff]
        %v7152 = vld [vmem:[%s7115 + $0x120] sm:$0xff]
        %v7153 = vld [vmem:[%s7115 + $0x128] sm:$0xff]
        %v7154 = vld [vmem:[%s7115 + $0x130] sm:$0xff]
        %v7155 = vld [vmem:[%s7115 + $0x138] sm:$0xff]
        %v7156 = vld [vmem:[%s7115 + $0x140] sm:$0xff]
        %v7157 = vld [vmem:[%s7115 + $0x148] sm:$0xff]
        %v7158 = vld [vmem:[%s7115 + $0x150] sm:$0xff]
        %v7159 = vld [vmem:[%s7115 + $0x158] sm:$0xff]
        %v7160 = vld [vmem:[%s7115 + $0x160] sm:$0xff]
        %v7161 = vld [vmem:[%s7115 + $0x168] sm:$0xff]
        %v7162 = vld [vmem:[%s7115 + $0x170] sm:$0xff]
        %v7163 = vld [vmem:[%s7115 + $0x178] sm:$0xff]
        %v7164 = vld [vmem:[%s7115 + $0x180] sm:$0xff]
        %v7165 = vld [vmem:[%s7115 + $0x188] sm:$0xff]
        %v7166 = vld [vmem:[%s7115 + $0x190] sm:$0xff]
        %v7167 = vld [vmem:[%s7115 + $0x198] sm:$0xff]
        %v7168 = vld [vmem:[%s7115 + $0x1a0] sm:$0xff]
        %v7169 = vld [vmem:[%s7115 + $0x1a8] sm:$0xff]
        %v7170 = vld [vmem:[%s7115 + $0x1b0] sm:$0xff]
        %v7171 = vld [vmem:[%s7115 + $0x1b8] sm:$0xff]
        %v7172 = vld [vmem:[%s7115 + $0x1c0] sm:$0xff]
        %v7173 = vld [vmem:[%s7115 + $0x1c8] sm:$0xff]
        %v7174 = vld [vmem:[%s7115 + $0x1d0] sm:$0xff]
        %v7175 = vld [vmem:[%s7115 + $0x1d8] sm:$0xff]
        %v7176 = vld [vmem:[%s7115 + $0x1e0] sm:$0xff]
        %v7177 = vld [vmem:[%s7115 + $0x1e8] sm:$0xff]
        %v7178 = vld [vmem:[%s7115 + $0x1f0] sm:$0xff]
        %v7179 = vld [vmem:[%s7115 + $0x1f8] sm:$0xff]
        %7180 = vmatprep.subr.mxu0 0.0
        %7181 = vmatpush1.msra.mxu0 %v7116
        %7182 = vmatprep.subr.mxu0 0.0
        %7183 = vmatpush1.msra.mxu0 %v7117
        %7184 = vmatprep.subr.mxu0 0.0
        %7185 = vmatpush1.msra.mxu0 %v7118
        %7186 = vmatprep.subr.mxu0 0.0
        %7187 = vmatpush1.msra.mxu0 %v7119
        %7188 = vmatprep.subr.mxu0 0.0
        %7189 = vmatpush1.msra.mxu0 %v7120
        %7190 = vmatprep.subr.mxu0 0.0
        %7191 = vmatpush1.msra.mxu0 %v7121
        %7192 = vmatprep.subr.mxu0 0.0
        %7193 = vmatpush1.msra.mxu0 %v7122
        %7194 = vmatprep.subr.mxu0 0.0
        %7195 = vmatpush1.msra.mxu0 %v7123
        %7196 = vmatprep.subr.mxu0 0.0
        %7197 = vmatpush1.msra.mxu0 %v7124
        %7198 = vmatprep.subr.mxu0 0.0
        %7199 = vmatpush1.msra.mxu0 %v7125
        %7200 = vmatprep.subr.mxu0 0.0
        %7201 = vmatpush1.msra.mxu0 %v7126
        %7202 = vmatprep.subr.mxu0 0.0
        %7203 = vmatpush1.msra.mxu0 %v7127
        %7204 = vmatprep.subr.mxu0 0.0
        %7205 = vmatpush1.msra.mxu0 %v7128
        %7206 = vmatprep.subr.mxu0 0.0
        %7207 = vmatpush1.msra.mxu0 %v7129
        %7208 = vmatprep.subr.mxu0 0.0
        %7209 = vmatpush1.msra.mxu0 %v7130
        %7210 = vmatprep.subr.mxu0 0.0
        %7211 = vmatpush1.msra.mxu0 %v7131
        %7212 = vmatprep.subr.mxu0 0.0
        %7213 = vmatpush1.msra.mxu0 %v7132
        %7214 = vmatprep.subr.mxu0 0.0
        %7215 = vmatpush1.msra.mxu0 %v7133
        %7216 = vmatprep.subr.mxu0 0.0
        %7217 = vmatpush1.msra.mxu0 %v7134
        %7218 = vmatprep.subr.mxu0 0.0
        %7219 = vmatpush1.msra.mxu0 %v7135
        %7220 = vmatprep.subr.mxu0 0.0
        %7221 = vmatpush1.msra.mxu0 %v7136
        %7222 = vmatprep.subr.mxu0 0.0
        %7223 = vmatpush1.msra.mxu0 %v7137
        %7224 = vmatprep.subr.mxu0 0.0
        %7225 = vmatpush1.msra.mxu0 %v7138
        %7226 = vmatprep.subr.mxu0 0.0
        %7227 = vmatpush1.msra.mxu0 %v7139
        %7228 = vmatprep.subr.mxu0 0.0
        %7229 = vmatpush1.msra.mxu0 %v7140
        %7230 = vmatprep.subr.mxu0 0.0
        %7231 = vmatpush1.msra.mxu0 %v7141
        %7232 = vmatprep.subr.mxu0 0.0
        %7233 = vmatpush1.msra.mxu0 %v7142
        %7234 = vmatprep.subr.mxu0 0.0
        %7235 = vmatpush1.msra.mxu0 %v7143
        %7236 = vmatprep.subr.mxu0 0.0
        %7237 = vmatpush1.msra.mxu0 %v7144
        %7238 = vmatprep.subr.mxu0 0.0
        %7239 = vmatpush1.msra.mxu0 %v7145
        %7240 = vmatprep.subr.mxu0 0.0
        %7241 = vmatpush1.msra.mxu0 %v7146
        %7242 = vmatprep.subr.mxu0 0.0
        %7243 = vmatpush1.msra.mxu0 %v7147
        %7244 = vmatprep.mubr.f32.mxu0 %v419
        %7245 = vmatmul.mubr.f32.gmra.mrb[0].mxu0 %v418
        %v7246 = vpop.f32.mrb[0].mxu0
        %v7247 = vadd.f32 0.0, %v7246
        %v7248 = vpop.f32.mrb[0].mxu0
        %7249 = vmatprep.mubr.f32.mxu0 %v423
        %7250 = vmatmul.mubr.f32.gmra.mrb[0].mxu0 %v422
        %v7251 = vpop.f32.mrb[0].mxu0
        %v7252 = vadd.f32 0.0, %v7251
        %v7253 = vpop.f32.mrb[0].mxu0
        %7254 = vdwg.mxu0
        %7255 = vmatprep.subr.mxu0 0.0
        %7256 = vmatpush1.msra.mxu0 %v7148
        %7257 = vmatprep.subr.mxu0 0.0
        %7258 = vmatpush1.msra.mxu0 %v7149
        %7259 = vmatprep.subr.mxu0 0.0
        %7260 = vmatpush1.msra.mxu0 %v7150
        %7261 = vmatprep.subr.mxu0 0.0
        %7262 = vmatpush1.msra.mxu0 %v7151
        %7263 = vmatprep.subr.mxu0 0.0
        %7264 = vmatpush1.msra.mxu0 %v7152
        %7265 = vmatprep.subr.mxu0 0.0
        %7266 = vmatpush1.msra.mxu0 %v7153
        %7267 = vmatprep.subr.mxu0 0.0
        %7268 = vmatpush1.msra.mxu0 %v7154
        %7269 = vmatprep.subr.mxu0 0.0
        %7270 = vmatpush1.msra.mxu0 %v7155
        %7271 = vmatprep.subr.mxu0 0.0
        %7272 = vmatpush1.msra.mxu0 %v7156
        %7273 = vmatprep.subr.mxu0 0.0
        %7274 = vmatpush1.msra.mxu0 %v7157
        %7275 = vmatprep.subr.mxu0 0.0
        %7276 = vmatpush1.msra.mxu0 %v7158
        %7277 = vmatprep.subr.mxu0 0.0
        %7278 = vmatpush1.msra.mxu0 %v7159
        %7279 = vmatprep.subr.mxu0 0.0
        %7280 = vmatpush1.msra.mxu0 %v7160
        %7281 = vmatprep.subr.mxu0 0.0
        %7282 = vmatpush1.msra.mxu0 %v7161
        %7283 = vmatprep.subr.mxu0 0.0
        %7284 = vmatpush1.msra.mxu0 %v7162
        %7285 = vmatprep.subr.mxu0 0.0
        %7286 = vmatpush1.msra.mxu0 %v7163
        %7287 = vmatprep.subr.mxu0 0.0
        %7288 = vmatpush1.msra.mxu0 %v7164
        %7289 = vmatprep.subr.mxu0 0.0
        %7290 = vmatpush1.msra.mxu0 %v7165
        %7291 = vmatprep.subr.mxu0 0.0
        %7292 = vmatpush1.msra.mxu0 %v7166
        %7293 = vmatprep.subr.mxu0 0.0
        %7294 = vmatpush1.msra.mxu0 %v7167
        %7295 = vmatprep.subr.mxu0 0.0
        %7296 = vmatpush1.msra.mxu0 %v7168
        %7297 = vmatprep.subr.mxu0 0.0
        %7298 = vmatpush1.msra.mxu0 %v7169
        %7299 = vmatprep.subr.mxu0 0.0
        %7300 = vmatpush1.msra.mxu0 %v7170
        %7301 = vmatprep.subr.mxu0 0.0
        %7302 = vmatpush1.msra.mxu0 %v7171
        %7303 = vmatprep.subr.mxu0 0.0
        %7304 = vmatpush1.msra.mxu0 %v7172
        %7305 = vmatprep.subr.mxu0 0.0
        %7306 = vmatpush1.msra.mxu0 %v7173
        %7307 = vmatprep.subr.mxu0 0.0
        %7308 = vmatpush1.msra.mxu0 %v7174
        %7309 = vmatprep.subr.mxu0 0.0
        %7310 = vmatpush1.msra.mxu0 %v7175
        %7311 = vmatprep.subr.mxu0 0.0
        %7312 = vmatpush1.msra.mxu0 %v7176
        %7313 = vmatprep.subr.mxu0 0.0
        %7314 = vmatpush1.msra.mxu0 %v7177
        %7315 = vmatprep.subr.mxu0 0.0
        %7316 = vmatpush1.msra.mxu0 %v7178
        %7317 = vmatprep.subr.mxu0 0.0
        %7318 = vmatpush1.msra.mxu0 %v7179
        %7319 = vmatprep.mubr.f32.mxu0 %v421
        %7320 = vmatmul.mubr.f32.gmra.mrb[0].mxu0 %v420
        %v7321 = vpop.f32.mrb[0].mxu0
        %v7322 = vadd.f32 %v7247, %v7321
        %v7323 = vpop.f32.mrb[0].mxu0
        %7324 = vmatprep.mubr.f32.mxu0 %v425
        %7325 = vmatmul.mubr.f32.gmra.mrb[0].mxu0 %v424
        %v7326 = vpop.f32.mrb[0].mxu0
        %v7327 = vadd.f32 %v7252, %v7326
        %v7328 = vpop.f32.mrb[0].mxu0
        %7329 = vdwg.mxu0
        %v7331 = vsel %vm1072, %v6892, 0
        %v7334 = vsel %vm1072, %v6897, 0
        %v7337 = vsel %vm1072, %v7107, 0
        %v7340 = vsel %vm1072, %v7112, 0
        %7342 = vmatprep.subr.mxu0 0.0
        %7343 = vmatpush1.xpose.msra.mxu0 %v7337
        %7344 = vmatprep.subr.mxu0 0.0
        %7345 = vmatpush1.xpose.msra.mxu0 %v7340
        %7346 = vmatprep.subr.mxu0 0.0
        %7347 = vmatpush1.xpose.msra.mxu0 0.0
        %7348 = vmatprep.subr.mxu0 0.0
        %7349 = vmatpush1.xpose.msra.mxu0 0.0
        %7350 = vmatprep.subr.mxu0 0.0
        %7351 = vmatpush1.xpose.msra.mxu0 0.0
        %7352 = vmatprep.subr.mxu0 0.0
        %7353 = vmatpush1.xpose.msra.mxu0 0.0
        %7354 = vmatprep.subr.mxu0 0.0
        %7355 = vmatpush1.xpose.msra.mxu0 0.0
        %7356 = vmatprep.subr.mxu0 0.0
        %7357 = vmatpush1.xpose.msra.mxu0 0.0
        %7358 = vmatprep.subr.mxu0 0.0
        %7359 = vmatpush1.xpose.msra.mxu0 0.0
        %7360 = vmatprep.subr.mxu0 0.0
        %7361 = vmatpush1.xpose.msra.mxu0 0.0
        %7362 = vmatprep.subr.mxu0 0.0
        %7363 = vmatpush1.xpose.msra.mxu0 0.0
        %7364 = vmatprep.subr.mxu0 0.0
        %7365 = vmatpush1.xpose.msra.mxu0 0.0
        %7366 = vmatprep.subr.mxu0 0.0
        %7367 = vmatpush1.xpose.msra.mxu0 0.0
        %7368 = vmatprep.subr.mxu0 0.0
        %7369 = vmatpush1.xpose.msra.mxu0 0.0
        %7370 = vmatprep.subr.mxu0 0.0
        %7371 = vmatpush1.xpose.msra.mxu0 0.0
        %7372 = vmatprep.subr.mxu0 0.0
        %7373 = vmatpush1.xpose.msra.mxu0 0.0
        %7374 = vmatprep.subr.mxu0 0.0
        %7375 = vmatpush1.xpose.msra.mxu0 0.0
        %7376 = vmatprep.subr.mxu0 0.0
        %7377 = vmatpush1.xpose.msra.mxu0 0.0
        %7378 = vmatprep.subr.mxu0 0.0
        %7379 = vmatpush1.xpose.msra.mxu0 0.0
        %7380 = vmatprep.subr.mxu0 0.0
        %7381 = vmatpush1.xpose.msra.mxu0 0.0
        %7382 = vmatprep.subr.mxu0 0.0
        %7383 = vmatpush1.xpose.msra.mxu0 0.0
        %7384 = vmatprep.subr.mxu0 0.0
        %7385 = vmatpush1.xpose.msra.mxu0 0.0
        %7386 = vmatprep.subr.mxu0 0.0
        %7387 = vmatpush1.xpose.msra.mxu0 0.0
        %7388 = vmatprep.subr.mxu0 0.0
        %7389 = vmatpush1.xpose.msra.mxu0 0.0
        %7390 = vmatprep.subr.mxu0 0.0
        %7391 = vmatpush1.xpose.msra.mxu0 0.0
        %7392 = vmatprep.subr.mxu0 0.0
        %7393 = vmatpush1.xpose.msra.mxu0 0.0
        %7394 = vmatprep.subr.mxu0 0.0
        %7395 = vmatpush1.xpose.msra.mxu0 0.0
        %7396 = vmatprep.subr.mxu0 0.0
        %7397 = vmatpush1.xpose.msra.mxu0 0.0
        %7398 = vmatprep.subr.mxu0 0.0
        %7399 = vmatpush1.xpose.msra.mxu0 0.0
        %7400 = vmatprep.subr.mxu0 0.0
        %7401 = vmatpush1.xpose.msra.mxu0 0.0
        %7402 = vmatprep.subr.mxu0 0.0
        %7403 = vmatpush1.xpose.msra.mxu0 0.0
        %7404 = vmatprep.subr.mxu0 0.0
        %7405 = vmatpush1.xpose.msra.mxu0 0.0
        %7406 = vmatprep.mubr.f32.mxu0 0.0
        %7407 = vmatmul.mubr.f32.gmra.mrb[0].mxu0 %v7331
        %v7408 = vpop.f32.mrb[0].mxu0
        %v7409 = vadd.f32 0.0, %v7408
        %v7410 = vpop.f32.mrb[0].mxu0
        %7411 = vmatprep.mubr.f32.mxu0 0.0
        %7412 = vmatmul.mubr.f32.gmra.mrb[0].mxu0 %v7334
        %v7413 = vpop.f32.mrb[0].mxu0
        %v7414 = vadd.f32 0.0, %v7413
        %v7415 = vpop.f32.mrb[0].mxu0
        %7416 = vdwg.mxu0
        %v7417 = vmul.f32 %v7409, 0.125
        %v7418 = vmul.f32 %v7414, 0.125
        %v7419 = vsel %vm428, -1e+09, %v7417
        %v7420 = vsel %vm429, -1e+09, %v7418
        %v7421 = vsel %vm1164, %v7419, -inf
        %7422 = vmax.xlane.f32.xlu0 %v7421
        %v7423 = vpop.xlane.xlu0 %7422
        %v7424 = vsel %vm1164, %v7420, -inf
        %7425 = vmax.xlane.f32.xlu0 %v7424
        %v7426 = vpop.xlane.xlu0 %7425
        %v7427 = vsub.f32 %v7419, %v7423
        %v7428 = vsub.f32 %v7420, %v7426
        %v7429 = vmul.f32 %v7427, 1.442695
        %v7430 = vpow.pop %v7429
        %v7431 = vmul.f32 %v7428, 1.442695
        %v7432 = vpow.pop %v7431
        %v7433 = vsel %vm1164, %v7430, 0.0
        %7434 = vadd.xlane.f32.xlu0 %v7433
        %v7435 = vpop.xlane.xlu0 %7434
        %v7436 = vsel %vm1164, %v7432, 0.0
        %7437 = vadd.xlane.f32.xlu0 %v7436
        %v7438 = vpop.xlane.xlu0 %7437
        %v7439 = vrcp.pop %v7435
        %v7440 = vmul.f32 %v7430, %v7439
        %v7441 = vrcp.pop %v7438
        %v7442 = vmul.f32 %v7432, %v7441
        %s7443 = scalar_lea.vmem %s381, 96 [#allocation4]
        %7444 = vst.msk [vmem:[%s7443] sm:$0xff] %vm1164, %v7440
        %7445 = vst.msk [vmem:[%s7443 + $0x8] sm:$0xff] %vm1164, %v7442
        %v7447 = vsel %vm1164, %v7440, 0
        %v7450 = vsel %vm1164, %v7442, 0
        %7452 = vmatprep.subr.mxu0 0.0
        %7453 = vmatpush1.msra.mxu0 %v7322
        %7454 = vmatprep.subr.mxu0 0.0
        %7455 = vmatpush1.msra.mxu0 %v7327
        %7456 = vmatprep.subr.mxu0 0.0
        %7457 = vmatpush1.msra.mxu0 0.0
        %7458 = vmatprep.subr.mxu0 0.0
        %7459 = vmatpush1.msra.mxu0 0.0
        %7460 = vmatprep.subr.mxu0 0.0
        %7461 = vmatpush1.msra.mxu0 0.0
        %7462 = vmatprep.subr.mxu0 0.0
        %7463 = vmatpush1.msra.mxu0 0.0
        %7464 = vmatprep.subr.mxu0 0.0
        %7465 = vmatpush1.msra.mxu0 0.0
        %7466 = vmatprep.subr.mxu0 0.0
        %7467 = vmatpush1.msra.mxu0 0.0
        %7468 = vmatprep.subr.mxu0 0.0
        %7469 = vmatpush1.msra.mxu0 0.0
        %7470 = vmatprep.subr.mxu0 0.0
        %7471 = vmatpush1.msra.mxu0 0.0
        %7472 = vmatprep.subr.mxu0 0.0
        %7473 = vmatpush1.msra.mxu0 0.0
        %7474 = vmatprep.subr.mxu0 0.0
        %7475 = vmatpush1.msra.mxu0 0.0
        %7476 = vmatprep.subr.mxu0 0.0
        %7477 = vmatpush1.msra.mxu0 0.0
        %7478 = vmatprep.subr.mxu0 0.0
        %7479 = vmatpush1.msra.mxu0 0.0
        %7480 = vmatprep.subr.mxu0 0.0
        %7481 = vmatpush1.msra.mxu0 0.0
        %7482 = vmatprep.subr.mxu0 0.0
        %7483 = vmatpush1.msra.mxu0 0.0
        %7484 = vmatprep.subr.mxu0 0.0
        %7485 = vmatpush1.msra.mxu0 0.0
        %7486 = vmatprep.subr.mxu0 0.0
        %7487 = vmatpush1.msra.mxu0 0.0
        %7488 = vmatprep.subr.mxu0 0.0
        %7489 = vmatpush1.msra.mxu0 0.0
        %7490 = vmatprep.subr.mxu0 0.0
        %7491 = vmatpush1.msra.mxu0 0.0
        %7492 = vmatprep.subr.mxu0 0.0
        %7493 = vmatpush1.msra.mxu0 0.0
        %7494 = vmatprep.subr.mxu0 0.0
        %7495 = vmatpush1.msra.mxu0 0.0
        %7496 = vmatprep.subr.mxu0 0.0
        %7497 = vmatpush1.msra.mxu0 0.0
        %7498 = vmatprep.subr.mxu0 0.0
        %7499 = vmatpush1.msra.mxu0 0.0
        %7500 = vmatprep.subr.mxu0 0.0
        %7501 = vmatpush1.msra.mxu0 0.0
        %7502 = vmatprep.subr.mxu0 0.0
        %7503 = vmatpush1.msra.mxu0 0.0
        %7504 = vmatprep.subr.mxu0 0.0
        %7505 = vmatpush1.msra.mxu0 0.0
        %7506 = vmatprep.subr.mxu0 0.0
        %7507 = vmatpush1.msra.mxu0 0.0
        %7508 = vmatprep.subr.mxu0 0.0
        %7509 = vmatpush1.msra.mxu0 0.0
        %7510 = vmatprep.subr.mxu0 0.0
        %7511 = vmatpush1.msra.mxu0 0.0
        %7512 = vmatprep.subr.mxu0 0.0
        %7513 = vmatpush1.msra.mxu0 0.0
        %7514 = vmatprep.subr.mxu0 0.0
        %7515 = vmatpush1.msra.mxu0 0.0
        %7516 = vmatprep.mubr.f32.mxu0 0.0
        %7517 = vmatmul.mubr.f32.gmra.mrb[0].mxu0 %v7447
        %v7518 = vpop.f32.mrb[0].mxu0
        %v7519 = vadd.f32 0.0, %v7518
        %v7520 = vpop.f32.mrb[0].mxu0
        %7521 = vmatprep.mubr.f32.mxu0 0.0
        %7522 = vmatmul.mubr.f32.gmra.mrb[0].mxu0 %v7450
        %v7523 = vpop.f32.mrb[0].mxu0
        %v7524 = vadd.f32 0.0, %v7523
        %v7525 = vpop.f32.mrb[0].mxu0
        %7526 = vdwg.mxu0
        %s7527 = scalar_lea.vmem %s7, 1536
        %v7528 = vld [vmem:[%s7527] sm:$0xff]
        %v7529 = vld [vmem:[%s7527 + $0x8] sm:$0xff]
        %v7530 = vld [vmem:[%s7527 + $0x10] sm:$0xff]
        %v7531 = vld [vmem:[%s7527 + $0x18] sm:$0xff]
        %v7532 = vld [vmem:[%s7527 + $0x20] sm:$0xff]
        %v7533 = vld [vmem:[%s7527 + $0x28] sm:$0xff]
        %v7534 = vld [vmem:[%s7527 + $0x30] sm:$0xff]
        %v7535 = vld [vmem:[%s7527 + $0x38] sm:$0xff]
        %v7536 = vld [vmem:[%s7527 + $0x40] sm:$0xff]
        %v7537 = vld [vmem:[%s7527 + $0x48] sm:$0xff]
        %v7538 = vld [vmem:[%s7527 + $0x50] sm:$0xff]
        %v7539 = vld [vmem:[%s7527 + $0x58] sm:$0xff]
        %v7540 = vld [vmem:[%s7527 + $0x60] sm:$0xff]
        %v7541 = vld [vmem:[%s7527 + $0x68] sm:$0xff]
        %v7542 = vld [vmem:[%s7527 + $0x70] sm:$0xff]
        %v7543 = vld [vmem:[%s7527 + $0x78] sm:$0xff]
        %v7544 = vld [vmem:[%s7527 + $0x80] sm:$0xff]
        %v7545 = vld [vmem:[%s7527 + $0x88] sm:$0xff]
        %v7546 = vld [vmem:[%s7527 + $0x90] sm:$0xff]
        %v7547 = vld [vmem:[%s7527 + $0x98] sm:$0xff]
        %v7548 = vld [vmem:[%s7527 + $0xa0] sm:$0xff]
        %v7549 = vld [vmem:[%s7527 + $0xa8] sm:$0xff]
        %v7550 = vld [vmem:[%s7527 + $0xb0] sm:$0xff]
        %v7551 = vld [vmem:[%s7527 + $0xb8] sm:$0xff]
        %v7552 = vld [vmem:[%s7527 + $0xc0] sm:$0xff]
        %v7553 = vld [vmem:[%s7527 + $0xc8] sm:$0xff]
        %v7554 = vld [vmem:[%s7527 + $0xd0] sm:$0xff]
        %v7555 = vld [vmem:[%s7527 + $0xd8] sm:$0xff]
        %v7556 = vld [vmem:[%s7527 + $0xe0] sm:$0xff]
        %v7557 = vld [vmem:[%s7527 + $0xe8] sm:$0xff]
        %v7558 = vld [vmem:[%s7527 + $0xf0] sm:$0xff]
        %v7559 = vld [vmem:[%s7527 + $0xf8] sm:$0xff]
        %v7561 = vsel %vm1072, %v7519, 0
        %v7564 = vsel %vm1072, %v7524, 0
        %7566 = vmatprep.subr.mxu0 %v7529
        %7567 = vmatpush1.msra.mxu0 %v7528
        %7568 = vmatprep.subr.mxu0 %v7533
        %7569 = vmatpush1.msra.mxu0 %v7532
        %7570 = vmatprep.subr.mxu0 %v7537
        %7571 = vmatpush1.msra.mxu0 %v7536
        %7572 = vmatprep.subr.mxu0 %v7541
        %7573 = vmatpush1.msra.mxu0 %v7540
        %7574 = vmatprep.subr.mxu0 %v7545
        %7575 = vmatpush1.msra.mxu0 %v7544
        %7576 = vmatprep.subr.mxu0 %v7549
        %7577 = vmatpush1.msra.mxu0 %v7548
        %7578 = vmatprep.subr.mxu0 %v7553
        %7579 = vmatpush1.msra.mxu0 %v7552
        %7580 = vmatprep.subr.mxu0 %v7557
        %7581 = vmatpush1.msra.mxu0 %v7556
        %7582 = vmatprep.subr.mxu0 0.0
        %7583 = vmatpush1.msra.mxu0 0.0
        %7584 = vmatprep.subr.mxu0 0.0
        %7585 = vmatpush1.msra.mxu0 0.0
        %7586 = vmatprep.subr.mxu0 0.0
        %7587 = vmatpush1.msra.mxu0 0.0
        %7588 = vmatprep.subr.mxu0 0.0
        %7589 = vmatpush1.msra.mxu0 0.0
        %7590 = vmatprep.subr.mxu0 0.0
        %7591 = vmatpush1.msra.mxu0 0.0
        %7592 = vmatprep.subr.mxu0 0.0
        %7593 = vmatpush1.msra.mxu0 0.0
        %7594 = vmatprep.subr.mxu0 0.0
        %7595 = vmatpush1.msra.mxu0 0.0
        %7596 = vmatprep.subr.mxu0 0.0
        %7597 = vmatpush1.msra.mxu0 0.0
        %7598 = vmatprep.subr.mxu0 0.0
        %7599 = vmatpush1.msra.mxu0 0.0
        %7600 = vmatprep.subr.mxu0 0.0
        %7601 = vmatpush1.msra.mxu0 0.0
        %7602 = vmatprep.subr.mxu0 0.0
        %7603 = vmatpush1.msra.mxu0 0.0
        %7604 = vmatprep.subr.mxu0 0.0
        %7605 = vmatpush1.msra.mxu0 0.0
        %7606 = vmatprep.subr.mxu0 0.0
        %7607 = vmatpush1.msra.mxu0 0.0
        %7608 = vmatprep.subr.mxu0 0.0
        %7609 = vmatpush1.msra.mxu0 0.0
        %7610 = vmatprep.subr.mxu0 0.0
        %7611 = vmatpush1.msra.mxu0 0.0
        %7612 = vmatprep.subr.mxu0 0.0
        %7613 = vmatpush1.msra.mxu0 0.0
        %7614 = vmatprep.subr.mxu0 0.0
        %7615 = vmatpush1.msra.mxu0 0.0
        %7616 = vmatprep.subr.mxu0 0.0
        %7617 = vmatpush1.msra.mxu0 0.0
        %7618 = vmatprep.subr.mxu0 0.0
        %7619 = vmatpush1.msra.mxu0 0.0
        %7620 = vmatprep.subr.mxu0 0.0
        %7621 = vmatpush1.msra.mxu0 0.0
        %7622 = vmatprep.subr.mxu0 0.0
        %7623 = vmatpush1.msra.mxu0 0.0
        %7624 = vmatprep.subr.mxu0 0.0
        %7625 = vmatpush1.msra.mxu0 0.0
        %7626 = vmatprep.subr.mxu0 0.0
        %7627 = vmatpush1.msra.mxu0 0.0
        %7628 = vmatprep.subr.mxu0 0.0
        %7629 = vmatpush1.msra.mxu0 0.0
        %7630 = vmatprep.mubr.f32.mxu0 0.0
        %7631 = vmatmul.mubr.f32.gmra.mrb[0].mxu0 %v7561
        %v7632 = vpop.f32.mrb[0].mxu0
        %v7633 = vadd.f32 0.0, %v7632
        %v7634 = vpop.f32.mrb[0].mxu0
        %v7635 = vadd.f32 0.0, %v7634
        %7636 = vmatprep.mubr.f32.mxu0 0.0
        %7637 = vmatmul.mubr.f32.gmra.mrb[0].mxu0 %v7564
        %v7638 = vpop.f32.mrb[0].mxu0
        %v7639 = vadd.f32 0.0, %v7638
        %v7640 = vpop.f32.mrb[0].mxu0
        %v7641 = vadd.f32 0.0, %v7640
        %7642 = vdwg.mxu0
        %7643 = vmatprep.subr.mxu0 %v7531
        %7644 = vmatpush1.msra.mxu0 %v7530
        %7645 = vmatprep.subr.mxu0 %v7535
        %7646 = vmatpush1.msra.mxu0 %v7534
        %7647 = vmatprep.subr.mxu0 %v7539
        %7648 = vmatpush1.msra.mxu0 %v7538
        %7649 = vmatprep.subr.mxu0 %v7543
        %7650 = vmatpush1.msra.mxu0 %v7542
        %7651 = vmatprep.subr.mxu0 %v7547
        %7652 = vmatpush1.msra.mxu0 %v7546
        %7653 = vmatprep.subr.mxu0 %v7551
        %7654 = vmatpush1.msra.mxu0 %v7550
        %7655 = vmatprep.subr.mxu0 %v7555
        %7656 = vmatpush1.msra.mxu0 %v7554
        %7657 = vmatprep.subr.mxu0 %v7559
        %7658 = vmatpush1.msra.mxu0 %v7558
        %7659 = vmatprep.subr.mxu0 0.0
        %7660 = vmatpush1.msra.mxu0 0.0
        %7661 = vmatprep.subr.mxu0 0.0
        %7662 = vmatpush1.msra.mxu0 0.0
        %7663 = vmatprep.subr.mxu0 0.0
        %7664 = vmatpush1.msra.mxu0 0.0
        %7665 = vmatprep.subr.mxu0 0.0
        %7666 = vmatpush1.msra.mxu0 0.0
        %7667 = vmatprep.subr.mxu0 0.0
        %7668 = vmatpush1.msra.mxu0 0.0
        %7669 = vmatprep.subr.mxu0 0.0
        %7670 = vmatpush1.msra.mxu0 0.0
        %7671 = vmatprep.subr.mxu0 0.0
        %7672 = vmatpush1.msra.mxu0 0.0
        %7673 = vmatprep.subr.mxu0 0.0
        %7674 = vmatpush1.msra.mxu0 0.0
        %7675 = vmatprep.subr.mxu0 0.0
        %7676 = vmatpush1.msra.mxu0 0.0
        %7677 = vmatprep.subr.mxu0 0.0
        %7678 = vmatpush1.msra.mxu0 0.0
        %7679 = vmatprep.subr.mxu0 0.0
        %7680 = vmatpush1.msra.mxu0 0.0
        %7681 = vmatprep.subr.mxu0 0.0
        %7682 = vmatpush1.msra.mxu0 0.0
        %7683 = vmatprep.subr.mxu0 0.0
        %7684 = vmatpush1.msra.mxu0 0.0
        %7685 = vmatprep.subr.mxu0 0.0
        %7686 = vmatpush1.msra.mxu0 0.0
        %7687 = vmatprep.subr.mxu0 0.0
        %7688 = vmatpush1.msra.mxu0 0.0
        %7689 = vmatprep.subr.mxu0 0.0
        %7690 = vmatpush1.msra.mxu0 0.0
        %7691 = vmatprep.subr.mxu0 0.0
        %7692 = vmatpush1.msra.mxu0 0.0
        %7693 = vmatprep.subr.mxu0 0.0
        %7694 = vmatpush1.msra.mxu0 0.0
        %7695 = vmatprep.subr.mxu0 0.0
        %7696 = vmatpush1.msra.mxu0 0.0
        %7697 = vmatprep.subr.mxu0 0.0
        %7698 = vmatpush1.msra.mxu0 0.0
        %7699 = vmatprep.subr.mxu0 0.0
        %7700 = vmatpush1.msra.mxu0 0.0
        %7701 = vmatprep.subr.mxu0 0.0
        %7702 = vmatpush1.msra.mxu0 0.0
        %7703 = vmatprep.subr.mxu0 0.0
        %7704 = vmatpush1.msra.mxu0 0.0
        %7705 = vmatprep.subr.mxu0 0.0
        %7706 = vmatpush1.msra.mxu0 0.0
        %7707 = vmatprep.mubr.f32.mxu0 0.0
        %7708 = vmatmul.mubr.f32.gmra.mrb[0].mxu0 %v7561
        %v7709 = vpop.f32.mrb[0].mxu0
        %v7710 = vadd.f32 0.0, %v7709
        %v7711 = vpop.f32.mrb[0].mxu0
        %v7712 = vadd.f32 0.0, %v7711
        %7713 = vmatprep.mubr.f32.mxu0 0.0
        %7714 = vmatmul.mubr.f32.gmra.mrb[0].mxu0 %v7564
        %v7715 = vpop.f32.mrb[0].mxu0
        %v7716 = vadd.f32 0.0, %v7715
        %v7717 = vpop.f32.mrb[0].mxu0
        %v7718 = vadd.f32 0.0, %v7717
        %7719 = vdwg.mxu0
        %v7720 = vadd.f32 %v6677, %v7633
        %v7721 = vadd.f32 %v6678, %v7635
        %v7722 = vadd.f32 %v6679, %v7710
        %v7723 = vadd.f32 %v6680, %v7712
        %v7724 = vadd.f32 %v6681, %v7639
        %v7725 = vadd.f32 %v6682, %v7641
        %v7726 = vadd.f32 %v6683, %v7716
        %v7727 = vadd.f32 %v6684, %v7718
        %s7728 = scalar_lea.vmem %s4, 3584
        %v7729 = vld [vmem:[%s7728] sm:$0xff]
        %v7730 = vld [vmem:[%s7728 + $0x8] sm:$0xff]
        %v7731 = vld [vmem:[%s7728 + $0x10] sm:$0xff]
        %v7732 = vld [vmem:[%s7728 + $0x18] sm:$0xff]
        %v7733 = vld [vmem:[%s7728 + $0x20] sm:$0xff]
        %v7734 = vld [vmem:[%s7728 + $0x28] sm:$0xff]
        %v7735 = vld [vmem:[%s7728 + $0x30] sm:$0xff]
        %v7736 = vld [vmem:[%s7728 + $0x38] sm:$0xff]
        %v7737 = vld [vmem:[%s7728 + $0x40] sm:$0xff]
        %v7738 = vld [vmem:[%s7728 + $0x48] sm:$0xff]
        %v7739 = vld [vmem:[%s7728 + $0x50] sm:$0xff]
        %v7740 = vld [vmem:[%s7728 + $0x58] sm:$0xff]
        %v7741 = vld [vmem:[%s7728 + $0x60] sm:$0xff]
        %v7742 = vld [vmem:[%s7728 + $0x68] sm:$0xff]
        %v7743 = vld [vmem:[%s7728 + $0x70] sm:$0xff]
        %v7744 = vld [vmem:[%s7728 + $0x78] sm:$0xff]
        %v7745 = vld [vmem:[%s7728 + $0x80] sm:$0xff]
        %v7746 = vld [vmem:[%s7728 + $0x88] sm:$0xff]
        %v7747 = vld [vmem:[%s7728 + $0x90] sm:$0xff]
        %v7748 = vld [vmem:[%s7728 + $0x98] sm:$0xff]
        %v7749 = vld [vmem:[%s7728 + $0xa0] sm:$0xff]
        %v7750 = vld [vmem:[%s7728 + $0xa8] sm:$0xff]
        %v7751 = vld [vmem:[%s7728 + $0xb0] sm:$0xff]
        %v7752 = vld [vmem:[%s7728 + $0xb8] sm:$0xff]
        %v7753 = vld [vmem:[%s7728 + $0xc0] sm:$0xff]
        %v7754 = vld [vmem:[%s7728 + $0xc8] sm:$0xff]
        %v7755 = vld [vmem:[%s7728 + $0xd0] sm:$0xff]
        %v7756 = vld [vmem:[%s7728 + $0xd8] sm:$0xff]
        %v7757 = vld [vmem:[%s7728 + $0xe0] sm:$0xff]
        %v7758 = vld [vmem:[%s7728 + $0xe8] sm:$0xff]
        %v7759 = vld [vmem:[%s7728 + $0xf0] sm:$0xff]
        %v7760 = vld [vmem:[%s7728 + $0xf8] sm:$0xff]
        %v7761 = vld [vmem:[%s7728 + $0x100] sm:$0xff]
        %v7762 = vld [vmem:[%s7728 + $0x108] sm:$0xff]
        %v7763 = vld [vmem:[%s7728 + $0x110] sm:$0xff]
        %v7764 = vld [vmem:[%s7728 + $0x118] sm:$0xff]
        %v7765 = vld [vmem:[%s7728 + $0x120] sm:$0xff]
        %v7766 = vld [vmem:[%s7728 + $0x128] sm:$0xff]
        %v7767 = vld [vmem:[%s7728 + $0x130] sm:$0xff]
        %v7768 = vld [vmem:[%s7728 + $0x138] sm:$0xff]
        %v7769 = vld [vmem:[%s7728 + $0x140] sm:$0xff]
        %v7770 = vld [vmem:[%s7728 + $0x148] sm:$0xff]
        %v7771 = vld [vmem:[%s7728 + $0x150] sm:$0xff]
        %v7772 = vld [vmem:[%s7728 + $0x158] sm:$0xff]
        %v7773 = vld [vmem:[%s7728 + $0x160] sm:$0xff]
        %v7774 = vld [vmem:[%s7728 + $0x168] sm:$0xff]
        %v7775 = vld [vmem:[%s7728 + $0x170] sm:$0xff]
        %v7776 = vld [vmem:[%s7728 + $0x178] sm:$0xff]
        %v7777 = vld [vmem:[%s7728 + $0x180] sm:$0xff]
        %v7778 = vld [vmem:[%s7728 + $0x188] sm:$0xff]
        %v7779 = vld [vmem:[%s7728 + $0x190] sm:$0xff]
        %v7780 = vld [vmem:[%s7728 + $0x198] sm:$0xff]
        %v7781 = vld [vmem:[%s7728 + $0x1a0] sm:$0xff]
        %v7782 = vld [vmem:[%s7728 + $0x1a8] sm:$0xff]
        %v7783 = vld [vmem:[%s7728 + $0x1b0] sm:$0xff]
        %v7784 = vld [vmem:[%s7728 + $0x1b8] sm:$0xff]
        %v7785 = vld [vmem:[%s7728 + $0x1c0] sm:$0xff]
        %v7786 = vld [vmem:[%s7728 + $0x1c8] sm:$0xff]
        %v7787 = vld [vmem:[%s7728 + $0x1d0] sm:$0xff]
        %v7788 = vld [vmem:[%s7728 + $0x1d8] sm:$0xff]
        %v7789 = vld [vmem:[%s7728 + $0x1e0] sm:$0xff]
        %v7790 = vld [vmem:[%s7728 + $0x1e8] sm:$0xff]
        %v7791 = vld [vmem:[%s7728 + $0x1f0] sm:$0xff]
        %v7792 = vld [vmem:[%s7728 + $0x1f8] sm:$0xff]
        %7793 = vmatprep.subr.mxu0 0.0
        %7794 = vmatpush1.msra.mxu0 %v7729
        %7795 = vmatprep.subr.mxu0 0.0
        %7796 = vmatpush1.msra.mxu0 %v7730
        %7797 = vmatprep.subr.mxu0 0.0
        %7798 = vmatpush1.msra.mxu0 %v7731
        %7799 = vmatprep.subr.mxu0 0.0
        %7800 = vmatpush1.msra.mxu0 %v7732
        %7801 = vmatprep.subr.mxu0 0.0
        %7802 = vmatpush1.msra.mxu0 %v7733
        %7803 = vmatprep.subr.mxu0 0.0
        %7804 = vmatpush1.msra.mxu0 %v7734
        %7805 = vmatprep.subr.mxu0 0.0
        %7806 = vmatpush1.msra.mxu0 %v7735
        %7807 = vmatprep.subr.mxu0 0.0
        %7808 = vmatpush1.msra.mxu0 %v7736
        %7809 = vmatprep.subr.mxu0 0.0
        %7810 = vmatpush1.msra.mxu0 %v7737
        %7811 = vmatprep.subr.mxu0 0.0
        %7812 = vmatpush1.msra.mxu0 %v7738
        %7813 = vmatprep.subr.mxu0 0.0
        %7814 = vmatpush1.msra.mxu0 %v7739
        %7815 = vmatprep.subr.mxu0 0.0
        %7816 = vmatpush1.msra.mxu0 %v7740
        %7817 = vmatprep.subr.mxu0 0.0
        %7818 = vmatpush1.msra.mxu0 %v7741
        %7819 = vmatprep.subr.mxu0 0.0
        %7820 = vmatpush1.msra.mxu0 %v7742
        %7821 = vmatprep.subr.mxu0 0.0
        %7822 = vmatpush1.msra.mxu0 %v7743
        %7823 = vmatprep.subr.mxu0 0.0
        %7824 = vmatpush1.msra.mxu0 %v7744
        %7825 = vmatprep.subr.mxu0 0.0
        %7826 = vmatpush1.msra.mxu0 %v7745
        %7827 = vmatprep.subr.mxu0 0.0
        %7828 = vmatpush1.msra.mxu0 %v7746
        %7829 = vmatprep.subr.mxu0 0.0
        %7830 = vmatpush1.msra.mxu0 %v7747
        %7831 = vmatprep.subr.mxu0 0.0
        %7832 = vmatpush1.msra.mxu0 %v7748
        %7833 = vmatprep.subr.mxu0 0.0
        %7834 = vmatpush1.msra.mxu0 %v7749
        %7835 = vmatprep.subr.mxu0 0.0
        %7836 = vmatpush1.msra.mxu0 %v7750
        %7837 = vmatprep.subr.mxu0 0.0
        %7838 = vmatpush1.msra.mxu0 %v7751
        %7839 = vmatprep.subr.mxu0 0.0
        %7840 = vmatpush1.msra.mxu0 %v7752
        %7841 = vmatprep.subr.mxu0 0.0
        %7842 = vmatpush1.msra.mxu0 %v7753
        %7843 = vmatprep.subr.mxu0 0.0
        %7844 = vmatpush1.msra.mxu0 %v7754
        %7845 = vmatprep.subr.mxu0 0.0
        %7846 = vmatpush1.msra.mxu0 %v7755
        %7847 = vmatprep.subr.mxu0 0.0
        %7848 = vmatpush1.msra.mxu0 %v7756
        %7849 = vmatprep.subr.mxu0 0.0
        %7850 = vmatpush1.msra.mxu0 %v7757
        %7851 = vmatprep.subr.mxu0 0.0
        %7852 = vmatpush1.msra.mxu0 %v7758
        %7853 = vmatprep.subr.mxu0 0.0
        %7854 = vmatpush1.msra.mxu0 %v7759
        %7855 = vmatprep.subr.mxu0 0.0
        %7856 = vmatpush1.msra.mxu0 %v7760
        %7857 = vmatprep.mubr.f32.mxu0 %v403
        %7858 = vmatmul.mubr.f32.gmra.mrb[0].mxu0 %v402
        %v7859 = vpop.f32.mrb[0].mxu0
        %v7860 = vadd.f32 0.0, %v7859
        %v7861 = vpop.f32.mrb[0].mxu0
        %7862 = vmatprep.mubr.f32.mxu0 %v407
        %7863 = vmatmul.mubr.f32.gmra.mrb[0].mxu0 %v406
        %v7864 = vpop.f32.mrb[0].mxu0
        %v7865 = vadd.f32 0.0, %v7864
        %v7866 = vpop.f32.mrb[0].mxu0
        %7867 = vdwg.mxu0
        %7868 = vmatprep.subr.mxu0 0.0
        %7869 = vmatpush1.msra.mxu0 %v7761
        %7870 = vmatprep.subr.mxu0 0.0
        %7871 = vmatpush1.msra.mxu0 %v7762
        %7872 = vmatprep.subr.mxu0 0.0
        %7873 = vmatpush1.msra.mxu0 %v7763
        %7874 = vmatprep.subr.mxu0 0.0
        %7875 = vmatpush1.msra.mxu0 %v7764
        %7876 = vmatprep.subr.mxu0 0.0
        %7877 = vmatpush1.msra.mxu0 %v7765
        %7878 = vmatprep.subr.mxu0 0.0
        %7879 = vmatpush1.msra.mxu0 %v7766
        %7880 = vmatprep.subr.mxu0 0.0
        %7881 = vmatpush1.msra.mxu0 %v7767
        %7882 = vmatprep.subr.mxu0 0.0
        %7883 = vmatpush1.msra.mxu0 %v7768
        %7884 = vmatprep.subr.mxu0 0.0
        %7885 = vmatpush1.msra.mxu0 %v7769
        %7886 = vmatprep.subr.mxu0 0.0
        %7887 = vmatpush1.msra.mxu0 %v7770
        %7888 = vmatprep.subr.mxu0 0.0
        %7889 = vmatpush1.msra.mxu0 %v7771
        %7890 = vmatprep.subr.mxu0 0.0
        %7891 = vmatpush1.msra.mxu0 %v7772
        %7892 = vmatprep.subr.mxu0 0.0
        %7893 = vmatpush1.msra.mxu0 %v7773
        %7894 = vmatprep.subr.mxu0 0.0
        %7895 = vmatpush1.msra.mxu0 %v7774
        %7896 = vmatprep.subr.mxu0 0.0
        %7897 = vmatpush1.msra.mxu0 %v7775
        %7898 = vmatprep.subr.mxu0 0.0
        %7899 = vmatpush1.msra.mxu0 %v7776
        %7900 = vmatprep.subr.mxu0 0.0
        %7901 = vmatpush1.msra.mxu0 %v7777
        %7902 = vmatprep.subr.mxu0 0.0
        %7903 = vmatpush1.msra.mxu0 %v7778
        %7904 = vmatprep.subr.mxu0 0.0
        %7905 = vmatpush1.msra.mxu0 %v7779
        %7906 = vmatprep.subr.mxu0 0.0
        %7907 = vmatpush1.msra.mxu0 %v7780
        %7908 = vmatprep.subr.mxu0 0.0
        %7909 = vmatpush1.msra.mxu0 %v7781
        %7910 = vmatprep.subr.mxu0 0.0
        %7911 = vmatpush1.msra.mxu0 %v7782
        %7912 = vmatprep.subr.mxu0 0.0
        %7913 = vmatpush1.msra.mxu0 %v7783
        %7914 = vmatprep.subr.mxu0 0.0
        %7915 = vmatpush1.msra.mxu0 %v7784
        %7916 = vmatprep.subr.mxu0 0.0
        %7917 = vmatpush1.msra.mxu0 %v7785
        %7918 = vmatprep.subr.mxu0 0.0
        %7919 = vmatpush1.msra.mxu0 %v7786
        %7920 = vmatprep.subr.mxu0 0.0
        %7921 = vmatpush1.msra.mxu0 %v7787
        %7922 = vmatprep.subr.mxu0 0.0
        %7923 = vmatpush1.msra.mxu0 %v7788
        %7924 = vmatprep.subr.mxu0 0.0
        %7925 = vmatpush1.msra.mxu0 %v7789
        %7926 = vmatprep.subr.mxu0 0.0
        %7927 = vmatpush1.msra.mxu0 %v7790
        %7928 = vmatprep.subr.mxu0 0.0
        %7929 = vmatpush1.msra.mxu0 %v7791
        %7930 = vmatprep.subr.mxu0 0.0
        %7931 = vmatpush1.msra.mxu0 %v7792
        %7932 = vmatprep.mubr.f32.mxu0 %v405
        %7933 = vmatmul.mubr.f32.gmra.mrb[0].mxu0 %v404
        %v7934 = vpop.f32.mrb[0].mxu0
        %v7935 = vadd.f32 %v7860, %v7934
        %v7936 = vpop.f32.mrb[0].mxu0
        %7937 = vmatprep.mubr.f32.mxu0 %v409
        %7938 = vmatmul.mubr.f32.gmra.mrb[0].mxu0 %v408
        %v7939 = vpop.f32.mrb[0].mxu0
        %v7940 = vadd.f32 %v7865, %v7939
        %v7941 = vpop.f32.mrb[0].mxu0
        %7942 = vdwg.mxu0
        %s7943 = scalar_lea.vmem %s5, 3584
        %v7944 = vld [vmem:[%s7943] sm:$0xff]
        %v7945 = vld [vmem:[%s7943 + $0x8] sm:$0xff]
        %v7946 = vld [vmem:[%s7943 + $0x10] sm:$0xff]
        %v7947 = vld [vmem:[%s7943 + $0x18] sm:$0xff]
        %v7948 = vld [vmem:[%s7943 + $0x20] sm:$0xff]
        %v7949 = vld [vmem:[%s7943 + $0x28] sm:$0xff]
        %v7950 = vld [vmem:[%s7943 + $0x30] sm:$0xff]
        %v7951 = vld [vmem:[%s7943 + $0x38] sm:$0xff]
        %v7952 = vld [vmem:[%s7943 + $0x40] sm:$0xff]
        %v7953 = vld [vmem:[%s7943 + $0x48] sm:$0xff]
        %v7954 = vld [vmem:[%s7943 + $0x50] sm:$0xff]
        %v7955 = vld [vmem:[%s7943 + $0x58] sm:$0xff]
        %v7956 = vld [vmem:[%s7943 + $0x60] sm:$0xff]
        %v7957 = vld [vmem:[%s7943 + $0x68] sm:$0xff]
        %v7958 = vld [vmem:[%s7943 + $0x70] sm:$0xff]
        %v7959 = vld [vmem:[%s7943 + $0x78] sm:$0xff]
        %v7960 = vld [vmem:[%s7943 + $0x80] sm:$0xff]
        %v7961 = vld [vmem:[%s7943 + $0x88] sm:$0xff]
        %v7962 = vld [vmem:[%s7943 + $0x90] sm:$0xff]
        %v7963 = vld [vmem:[%s7943 + $0x98] sm:$0xff]
        %v7964 = vld [vmem:[%s7943 + $0xa0] sm:$0xff]
        %v7965 = vld [vmem:[%s7943 + $0xa8] sm:$0xff]
        %v7966 = vld [vmem:[%s7943 + $0xb0] sm:$0xff]
        %v7967 = vld [vmem:[%s7943 + $0xb8] sm:$0xff]
        %v7968 = vld [vmem:[%s7943 + $0xc0] sm:$0xff]
        %v7969 = vld [vmem:[%s7943 + $0xc8] sm:$0xff]
        %v7970 = vld [vmem:[%s7943 + $0xd0] sm:$0xff]
        %v7971 = vld [vmem:[%s7943 + $0xd8] sm:$0xff]
        %v7972 = vld [vmem:[%s7943 + $0xe0] sm:$0xff]
        %v7973 = vld [vmem:[%s7943 + $0xe8] sm:$0xff]
        %v7974 = vld [vmem:[%s7943 + $0xf0] sm:$0xff]
        %v7975 = vld [vmem:[%s7943 + $0xf8] sm:$0xff]
        %v7976 = vld [vmem:[%s7943 + $0x100] sm:$0xff]
        %v7977 = vld [vmem:[%s7943 + $0x108] sm:$0xff]
        %v7978 = vld [vmem:[%s7943 + $0x110] sm:$0xff]
        %v7979 = vld [vmem:[%s7943 + $0x118] sm:$0xff]
        %v7980 = vld [vmem:[%s7943 + $0x120] sm:$0xff]
        %v7981 = vld [vmem:[%s7943 + $0x128] sm:$0xff]
        %v7982 = vld [vmem:[%s7943 + $0x130] sm:$0xff]
        %v7983 = vld [vmem:[%s7943 + $0x138] sm:$0xff]
        %v7984 = vld [vmem:[%s7943 + $0x140] sm:$0xff]
        %v7985 = vld [vmem:[%s7943 + $0x148] sm:$0xff]
        %v7986 = vld [vmem:[%s7943 + $0x150] sm:$0xff]
        %v7987 = vld [vmem:[%s7943 + $0x158] sm:$0xff]
        %v7988 = vld [vmem:[%s7943 + $0x160] sm:$0xff]
        %v7989 = vld [vmem:[%s7943 + $0x168] sm:$0xff]
        %v7990 = vld [vmem:[%s7943 + $0x170] sm:$0xff]
        %v7991 = vld [vmem:[%s7943 + $0x178] sm:$0xff]
        %v7992 = vld [vmem:[%s7943 + $0x180] sm:$0xff]
        %v7993 = vld [vmem:[%s7943 + $0x188] sm:$0xff]
        %v7994 = vld [vmem:[%s7943 + $0x190] sm:$0xff]
        %v7995 = vld [vmem:[%s7943 + $0x198] sm:$0xff]
        %v7996 = vld [vmem:[%s7943 + $0x1a0] sm:$0xff]
        %v7997 = vld [vmem:[%s7943 + $0x1a8] sm:$0xff]
        %v7998 = vld [vmem:[%s7943 + $0x1b0] sm:$0xff]
        %v7999 = vld [vmem:[%s7943 + $0x1b8] sm:$0xff]
        %v8000 = vld [vmem:[%s7943 + $0x1c0] sm:$0xff]
        %v8001 = vld [vmem:[%s7943 + $0x1c8] sm:$0xff]
        %v8002 = vld [vmem:[%s7943 + $0x1d0] sm:$0xff]
        %v8003 = vld [vmem:[%s7943 + $0x1d8] sm:$0xff]
        %v8004 = vld [vmem:[%s7943 + $0x1e0] sm:$0xff]
        %v8005 = vld [vmem:[%s7943 + $0x1e8] sm:$0xff]
        %v8006 = vld [vmem:[%s7943 + $0x1f0] sm:$0xff]
        %v8007 = vld [vmem:[%s7943 + $0x1f8] sm:$0xff]
        %8008 = vmatprep.subr.mxu0 0.0
        %8009 = vmatpush1.msra.mxu0 %v7944
        %8010 = vmatprep.subr.mxu0 0.0
        %8011 = vmatpush1.msra.mxu0 %v7945
        %8012 = vmatprep.subr.mxu0 0.0
        %8013 = vmatpush1.msra.mxu0 %v7946
        %8014 = vmatprep.subr.mxu0 0.0
        %8015 = vmatpush1.msra.mxu0 %v7947
        %8016 = vmatprep.subr.mxu0 0.0
        %8017 = vmatpush1.msra.mxu0 %v7948
        %8018 = vmatprep.subr.mxu0 0.0
        %8019 = vmatpush1.msra.mxu0 %v7949
        %8020 = vmatprep.subr.mxu0 0.0
        %8021 = vmatpush1.msra.mxu0 %v7950
        %8022 = vmatprep.subr.mxu0 0.0
        %8023 = vmatpush1.msra.mxu0 %v7951
        %8024 = vmatprep.subr.mxu0 0.0
        %8025 = vmatpush1.msra.mxu0 %v7952
        %8026 = vmatprep.subr.mxu0 0.0
        %8027 = vmatpush1.msra.mxu0 %v7953
        %8028 = vmatprep.subr.mxu0 0.0
        %8029 = vmatpush1.msra.mxu0 %v7954
        %8030 = vmatprep.subr.mxu0 0.0
        %8031 = vmatpush1.msra.mxu0 %v7955
        %8032 = vmatprep.subr.mxu0 0.0
        %8033 = vmatpush1.msra.mxu0 %v7956
        %8034 = vmatprep.subr.mxu0 0.0
        %8035 = vmatpush1.msra.mxu0 %v7957
        %8036 = vmatprep.subr.mxu0 0.0
        %8037 = vmatpush1.msra.mxu0 %v7958
        %8038 = vmatprep.subr.mxu0 0.0
        %8039 = vmatpush1.msra.mxu0 %v7959
        %8040 = vmatprep.subr.mxu0 0.0
        %8041 = vmatpush1.msra.mxu0 %v7960
        %8042 = vmatprep.subr.mxu0 0.0
        %8043 = vmatpush1.msra.mxu0 %v7961
        %8044 = vmatprep.subr.mxu0 0.0
        %8045 = vmatpush1.msra.mxu0 %v7962
        %8046 = vmatprep.subr.mxu0 0.0
        %8047 = vmatpush1.msra.mxu0 %v7963
        %8048 = vmatprep.subr.mxu0 0.0
        %8049 = vmatpush1.msra.mxu0 %v7964
        %8050 = vmatprep.subr.mxu0 0.0
        %8051 = vmatpush1.msra.mxu0 %v7965
        %8052 = vmatprep.subr.mxu0 0.0
        %8053 = vmatpush1.msra.mxu0 %v7966
        %8054 = vmatprep.subr.mxu0 0.0
        %8055 = vmatpush1.msra.mxu0 %v7967
        %8056 = vmatprep.subr.mxu0 0.0
        %8057 = vmatpush1.msra.mxu0 %v7968
        %8058 = vmatprep.subr.mxu0 0.0
        %8059 = vmatpush1.msra.mxu0 %v7969
        %8060 = vmatprep.subr.mxu0 0.0
        %8061 = vmatpush1.msra.mxu0 %v7970
        %8062 = vmatprep.subr.mxu0 0.0
        %8063 = vmatpush1.msra.mxu0 %v7971
        %8064 = vmatprep.subr.mxu0 0.0
        %8065 = vmatpush1.msra.mxu0 %v7972
        %8066 = vmatprep.subr.mxu0 0.0
        %8067 = vmatpush1.msra.mxu0 %v7973
        %8068 = vmatprep.subr.mxu0 0.0
        %8069 = vmatpush1.msra.mxu0 %v7974
        %8070 = vmatprep.subr.mxu0 0.0
        %8071 = vmatpush1.msra.mxu0 %v7975
        %8072 = vmatprep.mubr.f32.mxu0 %v411
        %8073 = vmatmul.mubr.f32.gmra.mrb[0].mxu0 %v410
        %v8074 = vpop.f32.mrb[0].mxu0
        %v8075 = vadd.f32 0.0, %v8074
        %v8076 = vpop.f32.mrb[0].mxu0
        %8077 = vmatprep.mubr.f32.mxu0 %v415
        %8078 = vmatmul.mubr.f32.gmra.mrb[0].mxu0 %v414
        %v8079 = vpop.f32.mrb[0].mxu0
        %v8080 = vadd.f32 0.0, %v8079
        %v8081 = vpop.f32.mrb[0].mxu0
        %8082 = vdwg.mxu0
        %8083 = vmatprep.subr.mxu0 0.0
        %8084 = vmatpush1.msra.mxu0 %v7976
        %8085 = vmatprep.subr.mxu0 0.0
        %8086 = vmatpush1.msra.mxu0 %v7977
        %8087 = vmatprep.subr.mxu0 0.0
        %8088 = vmatpush1.msra.mxu0 %v7978
        %8089 = vmatprep.subr.mxu0 0.0
        %8090 = vmatpush1.msra.mxu0 %v7979
        %8091 = vmatprep.subr.mxu0 0.0
        %8092 = vmatpush1.msra.mxu0 %v7980
        %8093 = vmatprep.subr.mxu0 0.0
        %8094 = vmatpush1.msra.mxu0 %v7981
        %8095 = vmatprep.subr.mxu0 0.0
        %8096 = vmatpush1.msra.mxu0 %v7982
        %8097 = vmatprep.subr.mxu0 0.0
        %8098 = vmatpush1.msra.mxu0 %v7983
        %8099 = vmatprep.subr.mxu0 0.0
        %8100 = vmatpush1.msra.mxu0 %v7984
        %8101 = vmatprep.subr.mxu0 0.0
        %8102 = vmatpush1.msra.mxu0 %v7985
        %8103 = vmatprep.subr.mxu0 0.0
        %8104 = vmatpush1.msra.mxu0 %v7986
        %8105 = vmatprep.subr.mxu0 0.0
        %8106 = vmatpush1.msra.mxu0 %v7987
        %8107 = vmatprep.subr.mxu0 0.0
        %8108 = vmatpush1.msra.mxu0 %v7988
        %8109 = vmatprep.subr.mxu0 0.0
        %8110 = vmatpush1.msra.mxu0 %v7989
        %8111 = vmatprep.subr.mxu0 0.0
        %8112 = vmatpush1.msra.mxu0 %v7990
        %8113 = vmatprep.subr.mxu0 0.0
        %8114 = vmatpush1.msra.mxu0 %v7991
        %8115 = vmatprep.subr.mxu0 0.0
        %8116 = vmatpush1.msra.mxu0 %v7992
        %8117 = vmatprep.subr.mxu0 0.0
        %8118 = vmatpush1.msra.mxu0 %v7993
        %8119 = vmatprep.subr.mxu0 0.0
        %8120 = vmatpush1.msra.mxu0 %v7994
        %8121 = vmatprep.subr.mxu0 0.0
        %8122 = vmatpush1.msra.mxu0 %v7995
        %8123 = vmatprep.subr.mxu0 0.0
        %8124 = vmatpush1.msra.mxu0 %v7996
        %8125 = vmatprep.subr.mxu0 0.0
        %8126 = vmatpush1.msra.mxu0 %v7997
        %8127 = vmatprep.subr.mxu0 0.0
        %8128 = vmatpush1.msra.mxu0 %v7998
        %8129 = vmatprep.subr.mxu0 0.0
        %8130 = vmatpush1.msra.mxu0 %v7999
        %8131 = vmatprep.subr.mxu0 0.0
        %8132 = vmatpush1.msra.mxu0 %v8000
        %8133 = vmatprep.subr.mxu0 0.0
        %8134 = vmatpush1.msra.mxu0 %v8001
        %8135 = vmatprep.subr.mxu0 0.0
        %8136 = vmatpush1.msra.mxu0 %v8002
        %8137 = vmatprep.subr.mxu0 0.0
        %8138 = vmatpush1.msra.mxu0 %v8003
        %8139 = vmatprep.subr.mxu0 0.0
        %8140 = vmatpush1.msra.mxu0 %v8004
        %8141 = vmatprep.subr.mxu0 0.0
        %8142 = vmatpush1.msra.mxu0 %v8005
        %8143 = vmatprep.subr.mxu0 0.0
        %8144 = vmatpush1.msra.mxu0 %v8006
        %8145 = vmatprep.subr.mxu0 0.0
        %8146 = vmatpush1.msra.mxu0 %v8007
        %8147 = vmatprep.mubr.f32.mxu0 %v413
        %8148 = vmatmul.mubr.f32.gmra.mrb[0].mxu0 %v412
        %v8149 = vpop.f32.mrb[0].mxu0
        %v8150 = vadd.f32 %v8075, %v8149
        %v8151 = vpop.f32.mrb[0].mxu0
        %8152 = vmatprep.mubr.f32.mxu0 %v417
        %8153 = vmatmul.mubr.f32.gmra.mrb[0].mxu0 %v416
        %v8154 = vpop.f32.mrb[0].mxu0
        %v8155 = vadd.f32 %v8080, %v8154
        %v8156 = vpop.f32.mrb[0].mxu0
        %8157 = vdwg.mxu0
        %s8158 = scalar_lea.vmem %s6, 3584
        %v8159 = vld [vmem:[%s8158] sm:$0xff]
        %v8160 = vld [vmem:[%s8158 + $0x8] sm:$0xff]
        %v8161 = vld [vmem:[%s8158 + $0x10] sm:$0xff]
        %v8162 = vld [vmem:[%s8158 + $0x18] sm:$0xff]
        %v8163 = vld [vmem:[%s8158 + $0x20] sm:$0xff]
        %v8164 = vld [vmem:[%s8158 + $0x28] sm:$0xff]
        %v8165 = vld [vmem:[%s8158 + $0x30] sm:$0xff]
        %v8166 = vld [vmem:[%s8158 + $0x38] sm:$0xff]
        %v8167 = vld [vmem:[%s8158 + $0x40] sm:$0xff]
        %v8168 = vld [vmem:[%s8158 + $0x48] sm:$0xff]
        %v8169 = vld [vmem:[%s8158 + $0x50] sm:$0xff]
        %v8170 = vld [vmem:[%s8158 + $0x58] sm:$0xff]
        %v8171 = vld [vmem:[%s8158 + $0x60] sm:$0xff]
        %v8172 = vld [vmem:[%s8158 + $0x68] sm:$0xff]
        %v8173 = vld [vmem:[%s8158 + $0x70] sm:$0xff]
        %v8174 = vld [vmem:[%s8158 + $0x78] sm:$0xff]
        %v8175 = vld [vmem:[%s8158 + $0x80] sm:$0xff]
        %v8176 = vld [vmem:[%s8158 + $0x88] sm:$0xff]
        %v8177 = vld [vmem:[%s8158 + $0x90] sm:$0xff]
        %v8178 = vld [vmem:[%s8158 + $0x98] sm:$0xff]
        %v8179 = vld [vmem:[%s8158 + $0xa0] sm:$0xff]
        %v8180 = vld [vmem:[%s8158 + $0xa8] sm:$0xff]
        %v8181 = vld [vmem:[%s8158 + $0xb0] sm:$0xff]
        %v8182 = vld [vmem:[%s8158 + $0xb8] sm:$0xff]
        %v8183 = vld [vmem:[%s8158 + $0xc0] sm:$0xff]
        %v8184 = vld [vmem:[%s8158 + $0xc8] sm:$0xff]
        %v8185 = vld [vmem:[%s8158 + $0xd0] sm:$0xff]
        %v8186 = vld [vmem:[%s8158 + $0xd8] sm:$0xff]
        %v8187 = vld [vmem:[%s8158 + $0xe0] sm:$0xff]
        %v8188 = vld [vmem:[%s8158 + $0xe8] sm:$0xff]
        %v8189 = vld [vmem:[%s8158 + $0xf0] sm:$0xff]
        %v8190 = vld [vmem:[%s8158 + $0xf8] sm:$0xff]
        %v8191 = vld [vmem:[%s8158 + $0x100] sm:$0xff]
        %v8192 = vld [vmem:[%s8158 + $0x108] sm:$0xff]
        %v8193 = vld [vmem:[%s8158 + $0x110] sm:$0xff]
        %v8194 = vld [vmem:[%s8158 + $0x118] sm:$0xff]
        %v8195 = vld [vmem:[%s8158 + $0x120] sm:$0xff]
        %v8196 = vld [vmem:[%s8158 + $0x128] sm:$0xff]
        %v8197 = vld [vmem:[%s8158 + $0x130] sm:$0xff]
        %v8198 = vld [vmem:[%s8158 + $0x138] sm:$0xff]
        %v8199 = vld [vmem:[%s8158 + $0x140] sm:$0xff]
        %v8200 = vld [vmem:[%s8158 + $0x148] sm:$0xff]
        %v8201 = vld [vmem:[%s8158 + $0x150] sm:$0xff]
        %v8202 = vld [vmem:[%s8158 + $0x158] sm:$0xff]
        %v8203 = vld [vmem:[%s8158 + $0x160] sm:$0xff]
        %v8204 = vld [vmem:[%s8158 + $0x168] sm:$0xff]
        %v8205 = vld [vmem:[%s8158 + $0x170] sm:$0xff]
        %v8206 = vld [vmem:[%s8158 + $0x178] sm:$0xff]
        %v8207 = vld [vmem:[%s8158 + $0x180] sm:$0xff]
        %v8208 = vld [vmem:[%s8158 + $0x188] sm:$0xff]
        %v8209 = vld [vmem:[%s8158 + $0x190] sm:$0xff]
        %v8210 = vld [vmem:[%s8158 + $0x198] sm:$0xff]
        %v8211 = vld [vmem:[%s8158 + $0x1a0] sm:$0xff]
        %v8212 = vld [vmem:[%s8158 + $0x1a8] sm:$0xff]
        %v8213 = vld [vmem:[%s8158 + $0x1b0] sm:$0xff]
        %v8214 = vld [vmem:[%s8158 + $0x1b8] sm:$0xff]
        %v8215 = vld [vmem:[%s8158 + $0x1c0] sm:$0xff]
        %v8216 = vld [vmem:[%s8158 + $0x1c8] sm:$0xff]
        %v8217 = vld [vmem:[%s8158 + $0x1d0] sm:$0xff]
        %v8218 = vld [vmem:[%s8158 + $0x1d8] sm:$0xff]
        %v8219 = vld [vmem:[%s8158 + $0x1e0] sm:$0xff]
        %v8220 = vld [vmem:[%s8158 + $0x1e8] sm:$0xff]
        %v8221 = vld [vmem:[%s8158 + $0x1f0] sm:$0xff]
        %v8222 = vld [vmem:[%s8158 + $0x1f8] sm:$0xff]
        %8223 = vmatprep.subr.mxu0 0.0
        %8224 = vmatpush1.msra.mxu0 %v8159
        %8225 = vmatprep.subr.mxu0 0.0
        %8226 = vmatpush1.msra.mxu0 %v8160
        %8227 = vmatprep.subr.mxu0 0.0
        %8228 = vmatpush1.msra.mxu0 %v8161
        %8229 = vmatprep.subr.mxu0 0.0
        %8230 = vmatpush1.msra.mxu0 %v8162
        %8231 = vmatprep.subr.mxu0 0.0
        %8232 = vmatpush1.msra.mxu0 %v8163
        %8233 = vmatprep.subr.mxu0 0.0
        %8234 = vmatpush1.msra.mxu0 %v8164
        %8235 = vmatprep.subr.mxu0 0.0
        %8236 = vmatpush1.msra.mxu0 %v8165
        %8237 = vmatprep.subr.mxu0 0.0
        %8238 = vmatpush1.msra.mxu0 %v8166
        %8239 = vmatprep.subr.mxu0 0.0
        %8240 = vmatpush1.msra.mxu0 %v8167
        %8241 = vmatprep.subr.mxu0 0.0
        %8242 = vmatpush1.msra.mxu0 %v8168
        %8243 = vmatprep.subr.mxu0 0.0
        %8244 = vmatpush1.msra.mxu0 %v8169
        %8245 = vmatprep.subr.mxu0 0.0
        %8246 = vmatpush1.msra.mxu0 %v8170
        %8247 = vmatprep.subr.mxu0 0.0
        %8248 = vmatpush1.msra.mxu0 %v8171
        %8249 = vmatprep.subr.mxu0 0.0
        %8250 = vmatpush1.msra.mxu0 %v8172
        %8251 = vmatprep.subr.mxu0 0.0
        %8252 = vmatpush1.msra.mxu0 %v8173
        %8253 = vmatprep.subr.mxu0 0.0
        %8254 = vmatpush1.msra.mxu0 %v8174
        %8255 = vmatprep.subr.mxu0 0.0
        %8256 = vmatpush1.msra.mxu0 %v8175
        %8257 = vmatprep.subr.mxu0 0.0
        %8258 = vmatpush1.msra.mxu0 %v8176
        %8259 = vmatprep.subr.mxu0 0.0
        %8260 = vmatpush1.msra.mxu0 %v8177
        %8261 = vmatprep.subr.mxu0 0.0
        %8262 = vmatpush1.msra.mxu0 %v8178
        %8263 = vmatprep.subr.mxu0 0.0
        %8264 = vmatpush1.msra.mxu0 %v8179
        %8265 = vmatprep.subr.mxu0 0.0
        %8266 = vmatpush1.msra.mxu0 %v8180
        %8267 = vmatprep.subr.mxu0 0.0
        %8268 = vmatpush1.msra.mxu0 %v8181
        %8269 = vmatprep.subr.mxu0 0.0
        %8270 = vmatpush1.msra.mxu0 %v8182
        %8271 = vmatprep.subr.mxu0 0.0
        %8272 = vmatpush1.msra.mxu0 %v8183
        %8273 = vmatprep.subr.mxu0 0.0
        %8274 = vmatpush1.msra.mxu0 %v8184
        %8275 = vmatprep.subr.mxu0 0.0
        %8276 = vmatpush1.msra.mxu0 %v8185
        %8277 = vmatprep.subr.mxu0 0.0
        %8278 = vmatpush1.msra.mxu0 %v8186
        %8279 = vmatprep.subr.mxu0 0.0
        %8280 = vmatpush1.msra.mxu0 %v8187
        %8281 = vmatprep.subr.mxu0 0.0
        %8282 = vmatpush1.msra.mxu0 %v8188
        %8283 = vmatprep.subr.mxu0 0.0
        %8284 = vmatpush1.msra.mxu0 %v8189
        %8285 = vmatprep.subr.mxu0 0.0
        %8286 = vmatpush1.msra.mxu0 %v8190
        %8287 = vmatprep.mubr.f32.mxu0 %v419
        %8288 = vmatmul.mubr.f32.gmra.mrb[0].mxu0 %v418
        %v8289 = vpop.f32.mrb[0].mxu0
        %v8290 = vadd.f32 0.0, %v8289
        %v8291 = vpop.f32.mrb[0].mxu0
        %8292 = vmatprep.mubr.f32.mxu0 %v423
        %8293 = vmatmul.mubr.f32.gmra.mrb[0].mxu0 %v422
        %v8294 = vpop.f32.mrb[0].mxu0
        %v8295 = vadd.f32 0.0, %v8294
        %v8296 = vpop.f32.mrb[0].mxu0
        %8297 = vdwg.mxu0
        %8298 = vmatprep.subr.mxu0 0.0
        %8299 = vmatpush1.msra.mxu0 %v8191
        %8300 = vmatprep.subr.mxu0 0.0
        %8301 = vmatpush1.msra.mxu0 %v8192
        %8302 = vmatprep.subr.mxu0 0.0
        %8303 = vmatpush1.msra.mxu0 %v8193
        %8304 = vmatprep.subr.mxu0 0.0
        %8305 = vmatpush1.msra.mxu0 %v8194
        %8306 = vmatprep.subr.mxu0 0.0
        %8307 = vmatpush1.msra.mxu0 %v8195
        %8308 = vmatprep.subr.mxu0 0.0
        %8309 = vmatpush1.msra.mxu0 %v8196
        %8310 = vmatprep.subr.mxu0 0.0
        %8311 = vmatpush1.msra.mxu0 %v8197
        %8312 = vmatprep.subr.mxu0 0.0
        %8313 = vmatpush1.msra.mxu0 %v8198
        %8314 = vmatprep.subr.mxu0 0.0
        %8315 = vmatpush1.msra.mxu0 %v8199
        %8316 = vmatprep.subr.mxu0 0.0
        %8317 = vmatpush1.msra.mxu0 %v8200
        %8318 = vmatprep.subr.mxu0 0.0
        %8319 = vmatpush1.msra.mxu0 %v8201
        %8320 = vmatprep.subr.mxu0 0.0
        %8321 = vmatpush1.msra.mxu0 %v8202
        %8322 = vmatprep.subr.mxu0 0.0
        %8323 = vmatpush1.msra.mxu0 %v8203
        %8324 = vmatprep.subr.mxu0 0.0
        %8325 = vmatpush1.msra.mxu0 %v8204
        %8326 = vmatprep.subr.mxu0 0.0
        %8327 = vmatpush1.msra.mxu0 %v8205
        %8328 = vmatprep.subr.mxu0 0.0
        %8329 = vmatpush1.msra.mxu0 %v8206
        %8330 = vmatprep.subr.mxu0 0.0
        %8331 = vmatpush1.msra.mxu0 %v8207
        %8332 = vmatprep.subr.mxu0 0.0
        %8333 = vmatpush1.msra.mxu0 %v8208
        %8334 = vmatprep.subr.mxu0 0.0
        %8335 = vmatpush1.msra.mxu0 %v8209
        %8336 = vmatprep.subr.mxu0 0.0
        %8337 = vmatpush1.msra.mxu0 %v8210
        %8338 = vmatprep.subr.mxu0 0.0
        %8339 = vmatpush1.msra.mxu0 %v8211
        %8340 = vmatprep.subr.mxu0 0.0
        %8341 = vmatpush1.msra.mxu0 %v8212
        %8342 = vmatprep.subr.mxu0 0.0
        %8343 = vmatpush1.msra.mxu0 %v8213
        %8344 = vmatprep.subr.mxu0 0.0
        %8345 = vmatpush1.msra.mxu0 %v8214
        %8346 = vmatprep.subr.mxu0 0.0
        %8347 = vmatpush1.msra.mxu0 %v8215
        %8348 = vmatprep.subr.mxu0 0.0
        %8349 = vmatpush1.msra.mxu0 %v8216
        %8350 = vmatprep.subr.mxu0 0.0
        %8351 = vmatpush1.msra.mxu0 %v8217
        %8352 = vmatprep.subr.mxu0 0.0
        %8353 = vmatpush1.msra.mxu0 %v8218
        %8354 = vmatprep.subr.mxu0 0.0
        %8355 = vmatpush1.msra.mxu0 %v8219
        %8356 = vmatprep.subr.mxu0 0.0
        %8357 = vmatpush1.msra.mxu0 %v8220
        %8358 = vmatprep.subr.mxu0 0.0
        %8359 = vmatpush1.msra.mxu0 %v8221
        %8360 = vmatprep.subr.mxu0 0.0
        %8361 = vmatpush1.msra.mxu0 %v8222
        %8362 = vmatprep.mubr.f32.mxu0 %v421
        %8363 = vmatmul.mubr.f32.gmra.mrb[0].mxu0 %v420
        %v8364 = vpop.f32.mrb[0].mxu0
        %v8365 = vadd.f32 %v8290, %v8364
        %v8366 = vpop.f32.mrb[0].mxu0
        %8367 = vmatprep.mubr.f32.mxu0 %v425
        %8368 = vmatmul.mubr.f32.gmra.mrb[0].mxu0 %v424
        %v8369 = vpop.f32.mrb[0].mxu0
        %v8370 = vadd.f32 %v8295, %v8369
        %v8371 = vpop.f32.mrb[0].mxu0
        %8372 = vdwg.mxu0
        %v8374 = vsel %vm1072, %v7935, 0
        %v8377 = vsel %vm1072, %v7940, 0
        %v8380 = vsel %vm1072, %v8150, 0
        %v8383 = vsel %vm1072, %v8155, 0
        %8385 = vmatprep.subr.mxu0 0.0
        %8386 = vmatpush1.xpose.msra.mxu0 %v8380
        %8387 = vmatprep.subr.mxu0 0.0
        %8388 = vmatpush1.xpose.msra.mxu0 %v8383
        %8389 = vmatprep.subr.mxu0 0.0
        %8390 = vmatpush1.xpose.msra.mxu0 0.0
        %8391 = vmatprep.subr.mxu0 0.0
        %8392 = vmatpush1.xpose.msra.mxu0 0.0
        %8393 = vmatprep.subr.mxu0 0.0
        %8394 = vmatpush1.xpose.msra.mxu0 0.0
        %8395 = vmatprep.subr.mxu0 0.0
        %8396 = vmatpush1.xpose.msra.mxu0 0.0
        %8397 = vmatprep.subr.mxu0 0.0
        %8398 = vmatpush1.xpose.msra.mxu0 0.0
        %8399 = vmatprep.subr.mxu0 0.0
        %8400 = vmatpush1.xpose.msra.mxu0 0.0
        %8401 = vmatprep.subr.mxu0 0.0
        %8402 = vmatpush1.xpose.msra.mxu0 0.0
        %8403 = vmatprep.subr.mxu0 0.0
        %8404 = vmatpush1.xpose.msra.mxu0 0.0
        %8405 = vmatprep.subr.mxu0 0.0
        %8406 = vmatpush1.xpose.msra.mxu0 0.0
        %8407 = vmatprep.subr.mxu0 0.0
        %8408 = vmatpush1.xpose.msra.mxu0 0.0
        %8409 = vmatprep.subr.mxu0 0.0
        %8410 = vmatpush1.xpose.msra.mxu0 0.0
        %8411 = vmatprep.subr.mxu0 0.0
        %8412 = vmatpush1.xpose.msra.mxu0 0.0
        %8413 = vmatprep.subr.mxu0 0.0
        %8414 = vmatpush1.xpose.msra.mxu0 0.0
        %8415 = vmatprep.subr.mxu0 0.0
        %8416 = vmatpush1.xpose.msra.mxu0 0.0
        %8417 = vmatprep.subr.mxu0 0.0
        %8418 = vmatpush1.xpose.msra.mxu0 0.0
        %8419 = vmatprep.subr.mxu0 0.0
        %8420 = vmatpush1.xpose.msra.mxu0 0.0
        %8421 = vmatprep.subr.mxu0 0.0
        %8422 = vmatpush1.xpose.msra.mxu0 0.0
        %8423 = vmatprep.subr.mxu0 0.0
        %8424 = vmatpush1.xpose.msra.mxu0 0.0
        %8425 = vmatprep.subr.mxu0 0.0
        %8426 = vmatpush1.xpose.msra.mxu0 0.0
        %8427 = vmatprep.subr.mxu0 0.0
        %8428 = vmatpush1.xpose.msra.mxu0 0.0
        %8429 = vmatprep.subr.mxu0 0.0
        %8430 = vmatpush1.xpose.msra.mxu0 0.0
        %8431 = vmatprep.subr.mxu0 0.0
        %8432 = vmatpush1.xpose.msra.mxu0 0.0
        %8433 = vmatprep.subr.mxu0 0.0
        %8434 = vmatpush1.xpose.msra.mxu0 0.0
        %8435 = vmatprep.subr.mxu0 0.0
        %8436 = vmatpush1.xpose.msra.mxu0 0.0
        %8437 = vmatprep.subr.mxu0 0.0
        %8438 = vmatpush1.xpose.msra.mxu0 0.0
        %8439 = vmatprep.subr.mxu0 0.0
        %8440 = vmatpush1.xpose.msra.mxu0 0.0
        %8441 = vmatprep.subr.mxu0 0.0
        %8442 = vmatpush1.xpose.msra.mxu0 0.0
        %8443 = vmatprep.subr.mxu0 0.0
        %8444 = vmatpush1.xpose.msra.mxu0 0.0
        %8445 = vmatprep.subr.mxu0 0.0
        %8446 = vmatpush1.xpose.msra.mxu0 0.0
        %8447 = vmatprep.subr.mxu0 0.0
        %8448 = vmatpush1.xpose.msra.mxu0 0.0
        %8449 = vmatprep.mubr.f32.mxu0 0.0
        %8450 = vmatmul.mubr.f32.gmra.mrb[0].mxu0 %v8374
        %v8451 = vpop.f32.mrb[0].mxu0
        %v8452 = vadd.f32 0.0, %v8451
        %v8453 = vpop.f32.mrb[0].mxu0
        %8454 = vmatprep.mubr.f32.mxu0 0.0
        %8455 = vmatmul.mubr.f32.gmra.mrb[0].mxu0 %v8377
        %v8456 = vpop.f32.mrb[0].mxu0
        %v8457 = vadd.f32 0.0, %v8456
        %v8458 = vpop.f32.mrb[0].mxu0
        %8459 = vdwg.mxu0
        %v8460 = vmul.f32 %v8452, 0.125
        %v8461 = vmul.f32 %v8457, 0.125
        %v8462 = vsel %vm428, -1e+09, %v8460
        %v8463 = vsel %vm429, -1e+09, %v8461
        %v8464 = vsel %vm1164, %v8462, -inf
        %8465 = vmax.xlane.f32.xlu0 %v8464
        %v8466 = vpop.xlane.xlu0 %8465
        %v8467 = vsel %vm1164, %v8463, -inf
        %8468 = vmax.xlane.f32.xlu0 %v8467
        %v8469 = vpop.xlane.xlu0 %8468
        %v8470 = vsub.f32 %v8462, %v8466
        %v8471 = vsub.f32 %v8463, %v8469
        %v8472 = vmul.f32 %v8470, 1.442695
        %v8473 = vpow.pop %v8472
        %v8474 = vmul.f32 %v8471, 1.442695
        %v8475 = vpow.pop %v8474
        %v8476 = vsel %vm1164, %v8473, 0.0
        %8477 = vadd.xlane.f32.xlu0 %v8476
        %v8478 = vpop.xlane.xlu0 %8477
        %v8479 = vsel %vm1164, %v8475, 0.0
        %8480 = vadd.xlane.f32.xlu0 %v8479
        %v8481 = vpop.xlane.xlu0 %8480
        %v8482 = vrcp.pop %v8478
        %v8483 = vmul.f32 %v8473, %v8482
        %v8484 = vrcp.pop %v8481
        %v8485 = vmul.f32 %v8475, %v8484
        %s8486 = scalar_lea.vmem %s381, 112 [#allocation4]
        %8487 = vst.msk [vmem:[%s8486] sm:$0xff] %vm1164, %v8483
        %8488 = vst.msk [vmem:[%s8486 + $0x8] sm:$0xff] %vm1164, %v8485
        %v8490 = vsel %vm1164, %v8483, 0
        %v8493 = vsel %vm1164, %v8485, 0
        %8495 = vmatprep.subr.mxu0 0.0
        %8496 = vmatpush1.msra.mxu0 %v8365
        %8497 = vmatprep.subr.mxu0 0.0
        %8498 = vmatpush1.msra.mxu0 %v8370
        %8499 = vmatprep.subr.mxu0 0.0
        %8500 = vmatpush1.msra.mxu0 0.0
        %8501 = vmatprep.subr.mxu0 0.0
        %8502 = vmatpush1.msra.mxu0 0.0
        %8503 = vmatprep.subr.mxu0 0.0
        %8504 = vmatpush1.msra.mxu0 0.0
        %8505 = vmatprep.subr.mxu0 0.0
        %8506 = vmatpush1.msra.mxu0 0.0
        %8507 = vmatprep.subr.mxu0 0.0
        %8508 = vmatpush1.msra.mxu0 0.0
        %8509 = vmatprep.subr.mxu0 0.0
        %8510 = vmatpush1.msra.mxu0 0.0
        %8511 = vmatprep.subr.mxu0 0.0
        %8512 = vmatpush1.msra.mxu0 0.0
        %8513 = vmatprep.subr.mxu0 0.0
        %8514 = vmatpush1.msra.mxu0 0.0
        %8515 = vmatprep.subr.mxu0 0.0
        %8516 = vmatpush1.msra.mxu0 0.0
        %8517 = vmatprep.subr.mxu0 0.0
        %8518 = vmatpush1.msra.mxu0 0.0
        %8519 = vmatprep.subr.mxu0 0.0
        %8520 = vmatpush1.msra.mxu0 0.0
        %8521 = vmatprep.subr.mxu0 0.0
        %8522 = vmatpush1.msra.mxu0 0.0
        %8523 = vmatprep.subr.mxu0 0.0
        %8524 = vmatpush1.msra.mxu0 0.0
        %8525 = vmatprep.subr.mxu0 0.0
        %8526 = vmatpush1.msra.mxu0 0.0
        %8527 = vmatprep.subr.mxu0 0.0
        %8528 = vmatpush1.msra.mxu0 0.0
        %8529 = vmatprep.subr.mxu0 0.0
        %8530 = vmatpush1.msra.mxu0 0.0
        %8531 = vmatprep.subr.mxu0 0.0
        %8532 = vmatpush1.msra.mxu0 0.0
        %8533 = vmatprep.subr.mxu0 0.0
        %8534 = vmatpush1.msra.mxu0 0.0
        %8535 = vmatprep.subr.mxu0 0.0
        %8536 = vmatpush1.msra.mxu0 0.0
        %8537 = vmatprep.subr.mxu0 0.0
        %8538 = vmatpush1.msra.mxu0 0.0
        %8539 = vmatprep.subr.mxu0 0.0
        %8540 = vmatpush1.msra.mxu0 0.0
        %8541 = vmatprep.subr.mxu0 0.0
        %8542 = vmatpush1.msra.mxu0 0.0
        %8543 = vmatprep.subr.mxu0 0.0
        %8544 = vmatpush1.msra.mxu0 0.0
        %8545 = vmatprep.subr.mxu0 0.0
        %8546 = vmatpush1.msra.mxu0 0.0
        %8547 = vmatprep.subr.mxu0 0.0
        %8548 = vmatpush1.msra.mxu0 0.0
        %8549 = vmatprep.subr.mxu0 0.0
        %8550 = vmatpush1.msra.mxu0 0.0
        %8551 = vmatprep.subr.mxu0 0.0
        %8552 = vmatpush1.msra.mxu0 0.0
        %8553 = vmatprep.subr.mxu0 0.0
        %8554 = vmatpush1.msra.mxu0 0.0
        %8555 = vmatprep.subr.mxu0 0.0
        %8556 = vmatpush1.msra.mxu0 0.0
        %8557 = vmatprep.subr.mxu0 0.0
        %8558 = vmatpush1.msra.mxu0 0.0
        %8559 = vmatprep.mubr.f32.mxu0 0.0
        %8560 = vmatmul.mubr.f32.gmra.mrb[0].mxu0 %v8490
        %v8561 = vpop.f32.mrb[0].mxu0
        %v8562 = vadd.f32 0.0, %v8561
        %v8563 = vpop.f32.mrb[0].mxu0
        %8564 = vmatprep.mubr.f32.mxu0 0.0
        %8565 = vmatmul.mubr.f32.gmra.mrb[0].mxu0 %v8493
        %v8566 = vpop.f32.mrb[0].mxu0
        %v8567 = vadd.f32 0.0, %v8566
        %v8568 = vpop.f32.mrb[0].mxu0
        %8569 = vdwg.mxu0
        %s8570 = scalar_lea.vmem %s7, 1792
        %v8571 = vld [vmem:[%s8570] sm:$0xff]
        %v8572 = vld [vmem:[%s8570 + $0x8] sm:$0xff]
        %v8573 = vld [vmem:[%s8570 + $0x10] sm:$0xff]
        %v8574 = vld [vmem:[%s8570 + $0x18] sm:$0xff]
        %v8575 = vld [vmem:[%s8570 + $0x20] sm:$0xff]
        %v8576 = vld [vmem:[%s8570 + $0x28] sm:$0xff]
        %v8577 = vld [vmem:[%s8570 + $0x30] sm:$0xff]
        %v8578 = vld [vmem:[%s8570 + $0x38] sm:$0xff]
        %v8579 = vld [vmem:[%s8570 + $0x40] sm:$0xff]
        %v8580 = vld [vmem:[%s8570 + $0x48] sm:$0xff]
        %v8581 = vld [vmem:[%s8570 + $0x50] sm:$0xff]
        %v8582 = vld [vmem:[%s8570 + $0x58] sm:$0xff]
        %v8583 = vld [vmem:[%s8570 + $0x60] sm:$0xff]
        %v8584 = vld [vmem:[%s8570 + $0x68] sm:$0xff]
        %v8585 = vld [vmem:[%s8570 + $0x70] sm:$0xff]
        %v8586 = vld [vmem:[%s8570 + $0x78] sm:$0xff]
        %v8587 = vld [vmem:[%s8570 + $0x80] sm:$0xff]
        %v8588 = vld [vmem:[%s8570 + $0x88] sm:$0xff]
        %v8589 = vld [vmem:[%s8570 + $0x90] sm:$0xff]
        %v8590 = vld [vmem:[%s8570 + $0x98] sm:$0xff]
        %v8591 = vld [vmem:[%s8570 + $0xa0] sm:$0xff]
        %v8592 = vld [vmem:[%s8570 + $0xa8] sm:$0xff]
        %v8593 = vld [vmem:[%s8570 + $0xb0] sm:$0xff]
        %v8594 = vld [vmem:[%s8570 + $0xb8] sm:$0xff]
        %v8595 = vld [vmem:[%s8570 + $0xc0] sm:$0xff]
        %v8596 = vld [vmem:[%s8570 + $0xc8] sm:$0xff]
        %v8597 = vld [vmem:[%s8570 + $0xd0] sm:$0xff]
        %v8598 = vld [vmem:[%s8570 + $0xd8] sm:$0xff]
        %v8599 = vld [vmem:[%s8570 + $0xe0] sm:$0xff]
        %v8600 = vld [vmem:[%s8570 + $0xe8] sm:$0xff]
        %v8601 = vld [vmem:[%s8570 + $0xf0] sm:$0xff]
        %v8602 = vld [vmem:[%s8570 + $0xf8] sm:$0xff]
        %v8604 = vsel %vm1072, %v8562, 0
        %v8607 = vsel %vm1072, %v8567, 0
        %8609 = vmatprep.subr.mxu0 %v8572
        %8610 = vmatpush1.msra.mxu0 %v8571
        %8611 = vmatprep.subr.mxu0 %v8576
        %8612 = vmatpush1.msra.mxu0 %v8575
        %8613 = vmatprep.subr.mxu0 %v8580
        %8614 = vmatpush1.msra.mxu0 %v8579
        %8615 = vmatprep.subr.mxu0 %v8584
        %8616 = vmatpush1.msra.mxu0 %v8583
        %8617 = vmatprep.subr.mxu0 %v8588
        %8618 = vmatpush1.msra.mxu0 %v8587
        %8619 = vmatprep.subr.mxu0 %v8592
        %8620 = vmatpush1.msra.mxu0 %v8591
        %8621 = vmatprep.subr.mxu0 %v8596
        %8622 = vmatpush1.msra.mxu0 %v8595
        %8623 = vmatprep.subr.mxu0 %v8600
        %8624 = vmatpush1.msra.mxu0 %v8599
        %8625 = vmatprep.subr.mxu0 0.0
        %8626 = vmatpush1.msra.mxu0 0.0
        %8627 = vmatprep.subr.mxu0 0.0
        %8628 = vmatpush1.msra.mxu0 0.0
        %8629 = vmatprep.subr.mxu0 0.0
        %8630 = vmatpush1.msra.mxu0 0.0
        %8631 = vmatprep.subr.mxu0 0.0
        %8632 = vmatpush1.msra.mxu0 0.0
        %8633 = vmatprep.subr.mxu0 0.0
        %8634 = vmatpush1.msra.mxu0 0.0
        %8635 = vmatprep.subr.mxu0 0.0
        %8636 = vmatpush1.msra.mxu0 0.0
        %8637 = vmatprep.subr.mxu0 0.0
        %8638 = vmatpush1.msra.mxu0 0.0
        %8639 = vmatprep.subr.mxu0 0.0
        %8640 = vmatpush1.msra.mxu0 0.0
        %8641 = vmatprep.subr.mxu0 0.0
        %8642 = vmatpush1.msra.mxu0 0.0
        %8643 = vmatprep.subr.mxu0 0.0
        %8644 = vmatpush1.msra.mxu0 0.0
        %8645 = vmatprep.subr.mxu0 0.0
        %8646 = vmatpush1.msra.mxu0 0.0
        %8647 = vmatprep.subr.mxu0 0.0
        %8648 = vmatpush1.msra.mxu0 0.0
        %8649 = vmatprep.subr.mxu0 0.0
        %8650 = vmatpush1.msra.mxu0 0.0
        %8651 = vmatprep.subr.mxu0 0.0
        %8652 = vmatpush1.msra.mxu0 0.0
        %8653 = vmatprep.subr.mxu0 0.0
        %8654 = vmatpush1.msra.mxu0 0.0
        %8655 = vmatprep.subr.mxu0 0.0
        %8656 = vmatpush1.msra.mxu0 0.0
        %8657 = vmatprep.subr.mxu0 0.0
        %8658 = vmatpush1.msra.mxu0 0.0
        %8659 = vmatprep.subr.mxu0 0.0
        %8660 = vmatpush1.msra.mxu0 0.0
        %8661 = vmatprep.subr.mxu0 0.0
        %8662 = vmatpush1.msra.mxu0 0.0
        %8663 = vmatprep.subr.mxu0 0.0
        %8664 = vmatpush1.msra.mxu0 0.0
        %8665 = vmatprep.subr.mxu0 0.0
        %8666 = vmatpush1.msra.mxu0 0.0
        %8667 = vmatprep.subr.mxu0 0.0
        %8668 = vmatpush1.msra.mxu0 0.0
        %8669 = vmatprep.subr.mxu0 0.0
        %8670 = vmatpush1.msra.mxu0 0.0
        %8671 = vmatprep.subr.mxu0 0.0
        %8672 = vmatpush1.msra.mxu0 0.0
        %8673 = vmatprep.mubr.f32.mxu0 0.0
        %8674 = vmatmul.mubr.f32.gmra.mrb[0].mxu0 %v8604
        %v8675 = vpop.f32.mrb[0].mxu0
        %v8676 = vadd.f32 0.0, %v8675
        %v8677 = vpop.f32.mrb[0].mxu0
        %v8678 = vadd.f32 0.0, %v8677
        %8679 = vmatprep.mubr.f32.mxu0 0.0
        %8680 = vmatmul.mubr.f32.gmra.mrb[0].mxu0 %v8607
        %v8681 = vpop.f32.mrb[0].mxu0
        %v8682 = vadd.f32 0.0, %v8681
        %v8683 = vpop.f32.mrb[0].mxu0
        %v8684 = vadd.f32 0.0, %v8683
        %8685 = vdwg.mxu0
        %8686 = vmatprep.subr.mxu0 %v8574
        %8687 = vmatpush1.msra.mxu0 %v8573
        %8688 = vmatprep.subr.mxu0 %v8578
        %8689 = vmatpush1.msra.mxu0 %v8577
        %8690 = vmatprep.subr.mxu0 %v8582
        %8691 = vmatpush1.msra.mxu0 %v8581
        %8692 = vmatprep.subr.mxu0 %v8586
        %8693 = vmatpush1.msra.mxu0 %v8585
        %8694 = vmatprep.subr.mxu0 %v8590
        %8695 = vmatpush1.msra.mxu0 %v8589
        %8696 = vmatprep.subr.mxu0 %v8594
        %8697 = vmatpush1.msra.mxu0 %v8593
        %8698 = vmatprep.subr.mxu0 %v8598
        %8699 = vmatpush1.msra.mxu0 %v8597
        %8700 = vmatprep.subr.mxu0 %v8602
        %8701 = vmatpush1.msra.mxu0 %v8601
        %8702 = vmatprep.subr.mxu0 0.0
        %8703 = vmatpush1.msra.mxu0 0.0
        %8704 = vmatprep.subr.mxu0 0.0
        %8705 = vmatpush1.msra.mxu0 0.0
        %8706 = vmatprep.subr.mxu0 0.0
        %8707 = vmatpush1.msra.mxu0 0.0
        %8708 = vmatprep.subr.mxu0 0.0
        %8709 = vmatpush1.msra.mxu0 0.0
        %8710 = vmatprep.subr.mxu0 0.0
        %8711 = vmatpush1.msra.mxu0 0.0
        %8712 = vmatprep.subr.mxu0 0.0
        %8713 = vmatpush1.msra.mxu0 0.0
        %8714 = vmatprep.subr.mxu0 0.0
        %8715 = vmatpush1.msra.mxu0 0.0
        %8716 = vmatprep.subr.mxu0 0.0
        %8717 = vmatpush1.msra.mxu0 0.0
        %8718 = vmatprep.subr.mxu0 0.0
        %8719 = vmatpush1.msra.mxu0 0.0
        %8720 = vmatprep.subr.mxu0 0.0
        %8721 = vmatpush1.msra.mxu0 0.0
        %8722 = vmatprep.subr.mxu0 0.0
        %8723 = vmatpush1.msra.mxu0 0.0
        %8724 = vmatprep.subr.mxu0 0.0
        %8725 = vmatpush1.msra.mxu0 0.0
        %8726 = vmatprep.subr.mxu0 0.0
        %8727 = vmatpush1.msra.mxu0 0.0
        %8728 = vmatprep.subr.mxu0 0.0
        %8729 = vmatpush1.msra.mxu0 0.0
        %8730 = vmatprep.subr.mxu0 0.0
        %8731 = vmatpush1.msra.mxu0 0.0
        %8732 = vmatprep.subr.mxu0 0.0
        %8733 = vmatpush1.msra.mxu0 0.0
        %8734 = vmatprep.subr.mxu0 0.0
        %8735 = vmatpush1.msra.mxu0 0.0
        %8736 = vmatprep.subr.mxu0 0.0
        %8737 = vmatpush1.msra.mxu0 0.0
        %8738 = vmatprep.subr.mxu0 0.0
        %8739 = vmatpush1.msra.mxu0 0.0
        %8740 = vmatprep.subr.mxu0 0.0
        %8741 = vmatpush1.msra.mxu0 0.0
        %8742 = vmatprep.subr.mxu0 0.0
        %8743 = vmatpush1.msra.mxu0 0.0
        %8744 = vmatprep.subr.mxu0 0.0
        %8745 = vmatpush1.msra.mxu0 0.0
        %8746 = vmatprep.subr.mxu0 0.0
        %8747 = vmatpush1.msra.mxu0 0.0
        %8748 = vmatprep.subr.mxu0 0.0
        %8749 = vmatpush1.msra.mxu0 0.0
        %8750 = vmatprep.mubr.f32.mxu0 0.0
        %8751 = vmatmul.mubr.f32.gmra.mrb[0].mxu0 %v8604
        %v8752 = vpop.f32.mrb[0].mxu0
        %v8753 = vadd.f32 0.0, %v8752
        %v8754 = vpop.f32.mrb[0].mxu0
        %v8755 = vadd.f32 0.0, %v8754
        %8756 = vmatprep.mubr.f32.mxu0 0.0
        %8757 = vmatmul.mubr.f32.gmra.mrb[0].mxu0 %v8607
        %v8758 = vpop.f32.mrb[0].mxu0
        %v8759 = vadd.f32 0.0, %v8758
        %v8760 = vpop.f32.mrb[0].mxu0
        %v8761 = vadd.f32 0.0, %v8760
        %8762 = vdwg.mxu0
        %v8763 = vadd.f32 %v7720, %v8676
        %v8764 = vadd.f32 %v7721, %v8678
        %v8765 = vadd.f32 %v7722, %v8753
        %v8766 = vadd.f32 %v7723, %v8755
        %v8767 = vadd.f32 %v7724, %v8682
        %v8768 = vadd.f32 %v7725, %v8684
        %v8769 = vadd.f32 %v7726, %v8759
        %v8770 = vadd.f32 %v7727, %v8761
        %v8771 = vadd.f32 %v8763, %v8764
        %v8772 = vadd.f32 %v8771, %v8765
        %v8773 = vadd.f32 %v8772, %v8766
        %8774 = vadd.xlane.f32.xlu0 %v8773
        %v8775 = vpop.xlane.xlu0 %8774
        %v8776 = vadd.f32 %v8767, %v8768
        %v8777 = vadd.f32 %v8776, %v8769
        %v8778 = vadd.f32 %v8777, %v8770
        %8779 = vadd.xlane.f32.xlu0 %v8778
        %v8780 = vpop.xlane.xlu0 %8779
        %v8781 = vrcp.pop 512.0
        %v8782 = vmul.f32 %v8775, %v8781
        %v8783 = vmul.f32 %v8780, %v8781
        %v8784 = vsub.f32 %v8763, %v8782
        %v8785 = vsub.f32 %v8764, %v8782
        %v8786 = vsub.f32 %v8765, %v8782
        %v8787 = vsub.f32 %v8766, %v8782
        %v8788 = vsub.f32 %v8767, %v8783
        %v8789 = vsub.f32 %v8768, %v8783
        %v8790 = vsub.f32 %v8769, %v8783
        %v8791 = vsub.f32 %v8770, %v8783
        %v8792 = vmul.f32 %v8784, %v8784
        %v8793 = vmul.f32 %v8785, %v8785
        %v8794 = vmul.f32 %v8786, %v8786
        %v8795 = vmul.f32 %v8787, %v8787
        %v8796 = vmul.f32 %v8788, %v8788
        %v8797 = vmul.f32 %v8789, %v8789
        %v8798 = vmul.f32 %v8790, %v8790
        %v8799 = vmul.f32 %v8791, %v8791
        %v8800 = vadd.f32 %v8792, %v8793
        %v8801 = vadd.f32 %v8800, %v8794
        %v8802 = vadd.f32 %v8801, %v8795
        %8803 = vadd.xlane.f32.xlu0 %v8802
        %v8804 = vpop.xlane.xlu0 %8803
        %v8805 = vadd.f32 %v8796, %v8797
        %v8806 = vadd.f32 %v8805, %v8798
        %v8807 = vadd.f32 %v8806, %v8799
        %8808 = vadd.xlane.f32.xlu0 %v8807
        %v8809 = vpop.xlane.xlu0 %8808
        %v8810 = vmul.f32 %v8804, %v8781
        %v8811 = vmul.f32 %v8809, %v8781
        %v8812 = vadd.f32 %v8810, 1e-05
        %v8813 = vadd.f32 %v8811, 1e-05
        %v8814 = vrsqrt.pop %v8812
        %v8815 = vrsqrt.pop %v8813
        %v8816 = vmul.f32 %v8784, %v8814
        %v8817 = vmul.f32 %v8785, %v8814
        %v8818 = vmul.f32 %v8786, %v8814
        %v8819 = vmul.f32 %v8787, %v8814
        %v8820 = vmul.f32 %v8788, %v8815
        %v8821 = vmul.f32 %v8789, %v8815
        %v8822 = vmul.f32 %v8790, %v8815
        %v8823 = vmul.f32 %v8791, %v8815
        %8824 = vst [vmem:[%s374] sm:$0xff] %v8816
        %8825 = vst [vmem:[%s374 + $0x8] sm:$0xff] %v8817
        %8826 = vst [vmem:[%s374 + $0x10] sm:$0xff] %v8818
        %8827 = vst [vmem:[%s374 + $0x18] sm:$0xff] %v8819
        %8828 = vst [vmem:[%s374 + $0x20] sm:$0xff] %v8820
        %8829 = vst [vmem:[%s374 + $0x28] sm:$0xff] %v8821
        %8830 = vst [vmem:[%s374 + $0x30] sm:$0xff] %v8822
        %8831 = vst [vmem:[%s374 + $0x38] sm:$0xff] %v8823
        %s8832 = sand.u32 %s223, 1
        %s8833 = scalar_lea.sflag [#allocation3], %s8832
        %s8834 = sand.u32 %s223, 1
        %s8835 = smul.addr %s8834, 64
        %s8836 = scalar_lea.vmem [#allocation2], %s8835
        %s8837 = sand.u32 %s249, 1
        %s8838 = scalar_lea.sflag [#allocation5], %s8837
        %s8839 = sand.u32 %s249, 1
        %s8840 = smul.addr %s8839, 128
        %s8841 = scalar_lea.vmem [#allocation4], %s8840
        // Predicated region
        $region53: #{tpu_custom_call.1} parent=51 // pred_check
          %p8842 = pneg %p233
        $region54: #{tpu_custom_call.1} parent=51 // pred_check_branch
          %8844 = sbr.rel (%p8842) target = $region56
        $region55: #{tpu_custom_call.1} parent=51 // pred_region
          %s8846 = ssub.s32 1024, 1024
          %8847 = vsyncadd %s8833, %s8846
          %s8848 = smul.addr %s27, 8
          %s8849 = smul.addr %s8848, 128
          %s8850 = scalar_lea.hbm %s8, %s8849
          %s8851 = sshll.u32 %s8836, 4
          %s8852 = int_to_ptr.vmem [resolvable:$true] %s8851
          %8857 = dma.vmem_to_hbm [thread:$0]  %s8852, 1024, %s8850, %s8833, 512, 512, 32
        $region56: #{tpu_custom_call.1} parent=51 // pred_fallthru
          _
        // Predicated region
        $region57: #{tpu_custom_call.1} parent=51 // pred_check
          %p8858 = pneg %p259
        $region58: #{tpu_custom_call.1} parent=51 // pred_check_branch
          %8860 = sbr.rel (%p8858) target = $region60
        $region59: #{tpu_custom_call.1} parent=51 // pred_region
          %s8862 = ssub.s32 2048, 2048
          %8863 = vsyncadd %s8838, %s8862
          %s8864 = smul.addr %s27, 16
          %s8865 = smul.addr %s8864, 128
          %s8866 = scalar_lea.hbm %s9, %s8865
          %s8867 = sshll.u32 %s8841, 4
          %s8868 = int_to_ptr.vmem [resolvable:$true] %s8867
          %8873 = dma.vmem_to_hbm [thread:$0]  %s8868, 2048, %s8866, %s8838, 128, 128, 8
        $region60: #{tpu_custom_call.1} parent=51 // pred_fallthru
          _
      $region52: #{tpu_custom_call.1} parent=5 // pred_fallthru
        _
      %p8874 = scmp.le.s32.totalorder 2, %s22
      // Predicated region
      $region61: #{tpu_custom_call.1} parent=5 // pred_check
        %p8875 = pneg %p8874
      $region62: #{tpu_custom_call.1} parent=5 // pred_check_branch
        %8877 = sbr.rel (%p8875) target = $region64
      $region63: #{tpu_custom_call.1} parent=5 // pred_region
        %s8878 = ssub.s32 %s22, 2
        // Predicated region
        $region65: #{tpu_custom_call.1} parent=63 // pred_check
          %p8879 = pneg %p239
        $region66: #{tpu_custom_call.1} parent=63 // pred_check_branch
          %8881 = sbr.rel (%p8879) target = $region68
        $region67: #{tpu_custom_call.1} parent=63 // pred_region
          %s8882 = sand.u32 %s224, 1
          %s8883 = scalar_lea.sflag [#allocation3], %s8882
          %s8884 = sand.u32 %s224, 1
          %s8885 = smul.addr %s8884, 64
          %s8886 = scalar_lea.vmem [#allocation2], %s8885
          %8887 = dma.done %s8883, 1024
        $region68: #{tpu_custom_call.1} parent=63 // pred_fallthru
          _
        // Predicated region
        $region69: #{tpu_custom_call.1} parent=63 // pred_check
          %p8888 = pneg %p265
        $region70: #{tpu_custom_call.1} parent=63 // pred_check_branch
          %8890 = sbr.rel (%p8888) target = $region72
        $region71: #{tpu_custom_call.1} parent=63 // pred_region
          %s8891 = sand.u32 %s250, 1
          %s8892 = scalar_lea.sflag [#allocation5], %s8891
          %s8893 = sand.u32 %s250, 1
          %s8894 = smul.addr %s8893, 128
          %s8895 = scalar_lea.vmem [#allocation4], %s8894
          %8896 = dma.done %s8892, 2048
        $region72: #{tpu_custom_call.1} parent=63 // pred_fallthru
          _
      $region64: #{tpu_custom_call.1} parent=5 // pred_fallthru
        _
    $region6: #{tpu_custom_call.1} parent=1 // loop_footer
      %s26 = sadd.s32 1, %s22
    $region7: #{tpu_custom_call.1} parent=1 // loop_footer_branch
      %21 = sbr.rel target = $region3
    $region8: #{tpu_custom_call.1} parent=1 // loop_exit
      _
    %8897 = vsyncpa [#allocation3], 1
    %s8898 = scalar_lea.sflag [#allocation3], 1
    %8899 = vsyncpa %s8898, 1
    %8900 = vsyncpa [#allocation5], 1
    %s8901 = scalar_lea.sflag [#allocation5], 1
    %8902 = vsyncpa %s8901, 1

</llo_original>
